<compile_context>
chip_gen: v7x
topology: tpu7x:2x2x1
jax: 0.10.0
libtpu: 0.0.40
codegen_flags: <defaults>
</compile_context>

<pallas_src>
import functools

import jax
import jax.numpy as jnp
from jax.experimental import pallas as pl
from jax.experimental.pallas import tpu as pltpu

LEAKY_SLOPE = 0.2
LANE = 128


def _round_up(x, m):
    return (x + m - 1) // m * m


def _pad_c(c):
    return _round_up(c, LANE)


@functools.lru_cache(maxsize=1)
def _vmem_limit():
    """Per-generation scoped-VMEM limit (v5e/v6e 128MiB, v7x 64MiB)."""
    cap = 128 * 1024 * 1024
    try:
        cap = int(pltpu.get_tpu_info().vmem_capacity_bytes)
    except Exception:
        pass
    return min(100 * 1024 * 1024, (cap * 3) // 4)


def _choose_row_tile(m, cap=512):
    """Row tile for the stride-2 matmul: 512-row tiles when M is big (fills the
    256x256 MXU), otherwise split so >=2 parallel tiles exist for megacore."""
    m8 = _round_up(m, 8)
    if m8 >= 2 * cap:
        return cap, _round_up(m8, cap)
    if m8 >= 16:
        tm = _round_up(m8, 16) // 2
        return tm, _round_up(m8, tm)
    return m8, m8


def _pick_tn(cout_p):
    return 256 if cout_p % 256 == 0 else 128


def _prep_w(w, cin_p, cout_p):
    """(Cout, Cin, kh, kw) torch-layout weight -> (kh*kw, Cin_p, Cout_p) bf16."""
    cout, cin, kh, kw = w.shape
    wt = jnp.transpose(w, (2, 3, 1, 0)).reshape(kh * kw, cin, cout)
    wt = jnp.pad(wt, ((0, 0), (0, cin_p - cin), (0, cout_p - cout)))
    return wt.astype(jnp.bfloat16)


def _prep_b(b, cout_p):
    return jnp.pad(b, (0, cout_p - b.shape[0])).astype(jnp.float32).reshape(1, cout_p)


# ----------------------------------------------------------------------------
# Kernel 1: single-shot matmul + bias + LeakyReLU (tap-packed stride-2 convs)
# ----------------------------------------------------------------------------
def _matmul_bias_act_kernel(x_ref, w_ref, b_ref, o_ref, *, slope):
    # x_ref: (TM, Kp) bf16   w_ref: (Kp, TN) bf16   b_ref: (1, TN) f32
    y = jnp.dot(x_ref[...], w_ref[...], preferred_element_type=jnp.float32)
    y = y + b_ref[...]
    if slope is not None:
        y = jnp.maximum(y, slope * y)          # LeakyReLU
    o_ref[...] = y.astype(o_ref.dtype)


def _conv3x3_s2(x, w, b, *, slope):
    """3x3 / stride-2 / pad-1 conv + bias + LeakyReLU.

    x: (N, H, W, Cstore) with the real channels in [..., :Cin_real];
    returns (N, Ho, Wo, Cout_p) bf16 (Cout zero-padded to 128 lanes).
    Taps are packed into the K dimension: one (M, 9*Cin) @ (9*Cin, Cout) matmul.
    """
    n, h, wd, _ = x.shape
    cout, cin, kh, kw = w.shape
    assert (kh, kw) == (3, 3)
    cout_p = _pad_c(cout)
    ho, wo = (h - 1) // 2 + 1, (wd - 1) // 2 + 1
    m = n * ho * wo

    xr = x[..., :cin].astype(jnp.bfloat16)
    xp = jnp.pad(xr, ((0, 0), (1, 1), (1, 1), (0, 0)))
    cols = []
    for i in range(3):
        for j in range(3):
            cols.append(xp[:, i:i + 2 * ho:2, j:j + 2 * wo:2, :].reshape(m, cin))
    xs = jnp.concatenate(cols, axis=-1)            # (M, 9*Cin_real) bf16

    k = 9 * cin
    kp = _round_up(k, LANE)
    if kp != k:
        xs = jnp.pad(xs, ((0, 0), (0, kp - k)))
    tm, m_pad = _choose_row_tile(m)
    if m_pad != m:
        xs = jnp.pad(xs, ((0, m_pad - m), (0, 0)))

    # weight: (Cout,Cin,3,3) -> (3,3,Cin,Cout) -> (9*Cin, Cout) -> (Kp, Cout_p)
    wt = jnp.transpose(w, (2, 3, 1, 0)).reshape(k, cout)
    wt = jnp.pad(wt, ((0, kp - k), (0, cout_p - cout))).astype(jnp.bfloat16)
    bt = _prep_b(b, cout_p)
    tn = _pick_tn(cout_p)

    grid = (m_pad // tm, cout_p // tn)
    bytes_acc = (xs.size * 2 + wt.size * 2 + bt.size * 4 + m_pad * cout_p * 2)

    out = pl.pallas_call(
        functools.partial(_matmul_bias_act_kernel, slope=slope),
        out_shape=jax.ShapeDtypeStruct((m_pad, cout_p), jnp.bfloat16),
        grid_spec=pltpu.PrefetchScalarGridSpec(
            num_scalar_prefetch=0,
            grid=grid,
            in_specs=[
                pl.BlockSpec((tm, kp), lambda mi, ni: (mi, 0)),
                pl.BlockSpec((kp, tn), lambda mi, ni: (0, ni)),
                pl.BlockSpec((1, tn), lambda mi, ni: (0, ni)),
            ],
            out_specs=pl.BlockSpec((tm, tn), lambda mi, ni: (mi, ni)),
        ),
        compiler_params=pltpu.CompilerParams(
            dimension_semantics=("parallel", "parallel"),
            vmem_limit_bytes=_vmem_limit()),
        cost_estimate=pl.CostEstimate(
            flops=2 * m_pad * kp * cout_p, transcendentals=0,
            bytes_accessed=int(bytes_acc)),
    )(xs, wt, bt)
    return out[:m].reshape(n, ho, wo, cout_p)


# ----------------------------------------------------------------------------
# Kernel 2: fused stride-1 tail (conv3 block + conv4 block + conv5), one call.
# Padded flat-row layout: valid pixel (r, c) lives at flat index
# (r+1)*wp + (c+1); a 3x3/pad-1 tap (i, j) is the constant offset i*wp + j,
# so each conv is 9 shifted MXU matmuls over VMEM-resident buffers.
# ----------------------------------------------------------------------------
def _tail_kernel(x_ref, mask_ref, w3a_ref, b3a_ref, wsc_ref, w3b_ref, b3b_ref,
                 w4a_ref, b4a_ref, w4b_ref, b4b_ref, w5_ref, b5_ref,
                 o_ref, buf_a, buf_b, *, wp, chunks, slope):
    # zero the padded scratch images once per batch element (pad ring stays 0)
    buf_a[...] = jnp.zeros_like(buf_a)
    buf_b[...] = jnp.zeros_like(buf_b)

    def load_x(s, k):
        return x_ref[0, pl.ds(s, k), :]

    def load_a(s, k):
        return buf_a[pl.ds(s, k), :]

    def load_b(s, k):
        return buf_b[pl.ds(s, k), :]

    def conv9(load, w_ref, start, size):
        cout = w_ref.shape[-1]
        acc = jnp.zeros((size, cout), jnp.float32)
        for i in range(3):
            for j in range(3):
                xt = load(start + i * wp + j, size)
                acc = acc + jnp.dot(xt, w_ref[3 * i + j],
                                    preferred_element_type=jnp.float32)
        return acc

    def act_mask_store(y, dst, start, size):
        y = jnp.maximum(y, slope * y)                     # LeakyReLU
        y = y * mask_ref[pl.ds(start, size), :]           # zero the pad columns
        dst[pl.ds(start + wp + 1, size), :] = y.astype(dst.dtype)

    # conv3_a : x2 (128ch) -> buf_a (256ch)
    for start, size in chunks:
        y = conv9(load_x, w3a_ref, start, size) + b3a_ref[...]
        act_mask_store(y, buf_a, start, size)

    # conv3_b + 1x1-conv shortcut(x2) : buf_a -> buf_b
    for start, size in chunks:
        y = conv9(load_a, w3b_ref, start, size) + b3b_ref[...]
        y = y + jnp.dot(load_x(start + wp + 1, size), wsc_ref[...],
                        preferred_element_type=jnp.float32)
        act_mask_store(y, buf_b, start, size)

    # conv4_a : buf_b -> buf_a
    for start, size in chunks:
        y = conv9(load_b, w4a_ref, start, size) + b4a_ref[...]
        act_mask_store(y, buf_a, start, size)

    # conv4_b + identity residual (y3 in buf_b) : buf_a -> buf_b
    # (chunk k overwrites only rows that later chunks never re-read)
    for start, size in chunks:
        y = conv9(load_a, w4b_ref, start, size) + b4b_ref[...]
        y = y + load_b(start + wp + 1, size).astype(jnp.float32)
        act_mask_store(y, buf_b, start, size)

    # conv5 (Cout = 1, no activation): VPU channel FMAs + one lane reduction,
    # written as an (n_rows, 1) f32 map (no 128x-wasted MXU work / HBM write).
    for start, size in chunks:
        acc = jnp.zeros((size, buf_b.shape[-1]), jnp.float32)
        for i in range(3):
            for j in range(3):
                xt = load_b(start + i * wp + j, size).astype(jnp.float32)
                acc = acc + xt * w5_ref[3 * i + j]
        val = jnp.sum(acc, axis=-1, keepdims=True) + b5_ref[...]
        o_ref[0, pl.ds(start, size), :] = val


def _fused_tail(x2, p):
    """conv3 (ResBasicBlock 128->256) + conv4 (ResBasicBlock 256->256) +
    conv5 (ConvBR 256->1, no act), fused into one pallas_call.

    x2: (N, H, W, 128) bf16 (conv2 output).  Returns (N, 1, H, W) f32.
    """
    n, h, w, c2 = x2.shape
    c3 = p["conv3_a"][0].shape[0]
    wp = _round_up(w + 2, 8)              # 8-aligned padded row width
    lp = (h + 3) * wp                     # flat padded length (covers max tap)
    n_rows = h * wp

    xf = jnp.pad(x2.astype(jnp.bfloat16),
                 ((0, 0), (1, 2), (1, wp - w - 1), (0, 0))).reshape(n, lp, c2)

    # column-validity mask for the flat rows (cols >= W are padding)
    colmask = jnp.tile((jnp.arange(wp) < w).astype(jnp.float32), h)
    colmask = colmask.reshape(n_rows, 1)

    w3a = _prep_w(p["conv3_a"][0], c2, c3)
    b3a = _prep_b(p["conv3_a"][1], c3)
    wsc = _prep_w(p["conv3_sc"][0], c2, c3)[0]                 # (c2, c3) bf16
    w3b = _prep_w(p["conv3_b"][0], c3, c3)
    b3b = _prep_b(p["conv3_b"][1] + p["conv3_sc"][1], c3)      # fold sc bias
    w4a = _prep_w(p["conv4_a"][0], c3, c3)
    b4a = _prep_b(p["conv4_a"][1], c3)
    w4b = _prep_w(p["conv4_b"][0], c3, c3)
    b4b = _prep_b(p["conv4_b"][1], c3)
    w5 = jnp.transpose(p["conv5"][0], (2, 3, 0, 1)).reshape(9, 1, c3)
    w5 = w5.astype(jnp.float32)
    b5 = p["conv5"][1].reshape(1, 1).astype(jnp.float32)

    # static row-chunk plan (~128 flat rows, multiples of wp so offsets/masks
    # stay aligned and the f32 accumulator stays in vregs)
    rows_per_chunk = max(1, 128 // wp)
    chunks = []
    r0 = 0
    while r0 < h:
        rh = min(rows_per_chunk, h - r0)
        chunks.append((r0 * wp, rh * wp))
        r0 += rh
    chunks = tuple(chunks)

    flops = 2 * n * n_rows * (9 * (c2 * c3 + 3 * c3 * c3) + c2 * c3 + 9 * c3)
    bytes_acc = (xf.size * 2 + colmask.size * 4 + n * n_rows * 4
                 + (w3a.size + wsc.size + w3b.size + w4a.size + w4b.size) * 2
                 + (b3a.size + b3b.size + b4a.size + b4b.size) * 4
                 + w5.size * 4 + b5.size * 4)

    out = pl.pallas_call(
        functools.partial(_tail_kernel, wp=wp, chunks=chunks, slope=LEAKY_SLOPE),
        out_shape=jax.ShapeDtypeStruct((n, n_rows, 1), jnp.float32),
        grid_spec=pltpu.PrefetchScalarGridSpec(
            num_scalar_prefetch=0,
            grid=(n,),
            in_specs=[
                pl.BlockSpec((1, lp, c2), lambda b: (b, 0, 0)),
                pl.BlockSpec((n_rows, 1), lambda b: (0, 0)),
                pl.BlockSpec((9, c2, c3), lambda b: (0, 0, 0)),
                pl.BlockSpec((1, c3), lambda b: (0, 0)),
                pl.BlockSpec((c2, c3), lambda b: (0, 0)),
                pl.BlockSpec((9, c3, c3), lambda b: (0, 0, 0)),
                pl.BlockSpec((1, c3), lambda b: (0, 0)),
                pl.BlockSpec((9, c3, c3), lambda b: (0, 0, 0)),
                pl.BlockSpec((1, c3), lambda b: (0, 0)),
                pl.BlockSpec((9, c3, c3), lambda b: (0, 0, 0)),
                pl.BlockSpec((1, c3), lambda b: (0, 0)),
                pl.BlockSpec((9, 1, c3), lambda b: (0, 0, 0)),
                pl.BlockSpec((1, 1), lambda b: (0, 0)),
            ],
            out_specs=pl.BlockSpec((1, n_rows, 1), lambda b: (b, 0, 0)),
            scratch_shapes=[pltpu.VMEM((lp, c3), jnp.bfloat16),
                            pltpu.VMEM((lp, c3), jnp.bfloat16)],
        ),
        compiler_params=pltpu.CompilerParams(
            dimension_semantics=("parallel",),
            vmem_limit_bytes=_vmem_limit()),
        cost_estimate=pl.CostEstimate(flops=int(flops), transcendentals=0,
                                      bytes_accessed=int(bytes_acc)),
    )(xf, colmask, w3a, b3a, wsc, w3b, b3b, w4a, b4a, w4b, b4b, w5, b5)

    # flat rows -> (H, Wp), drop the horizontal padding columns.
    out = out.reshape(n, h, wp)[:, :, :w]
    return out[:, None, :, :]


# ----------------------------------------------------------------------------
# Parameter construction (deterministic) and module forward
# ----------------------------------------------------------------------------
def _make_conv_params(key, c_in, c_out, k):
    kw, kb = jax.random.split(key)
    w = 0.05 * jax.random.normal(kw, (c_out, c_in, k, k), dtype=jnp.float32)
    b = 0.05 * jax.random.normal(kb, (c_out,), dtype=jnp.float32)
    return w, b


def make_discriminator_params(key, input_channel=3):
    ch = [32, 64, 128, 256, 256]
    keys = jax.random.split(key, 16)
    p = {}
    p["conv0"] = _make_conv_params(keys[0], input_channel, ch[0], 3)
    p["conv1"] = _make_conv_params(keys[1], ch[0], ch[1], 3)
    p["conv2"] = _make_conv_params(keys[2], ch[1], ch[2], 3)
    # ResBasicBlock conv3: 128 -> 256 (1x1-conv shortcut)
    p["conv3_a"] = _make_conv_params(keys[3], ch[2], ch[3], 3)
    p["conv3_b"] = _make_conv_params(keys[4], ch[3], ch[3], 3)
    p["conv3_sc"] = _make_conv_params(keys[5], ch[2], ch[3], 1)
    # ResBasicBlock conv4: 256 -> 256 (identity shortcut)
    p["conv4_a"] = _make_conv_params(keys[6], ch[3], ch[4], 3)
    p["conv4_b"] = _make_conv_params(keys[7], ch[4], ch[4], 3)
    # final ConvBR: 256 -> 1, no bn, no activation
    p["conv5"] = _make_conv_params(keys[8], ch[4], 1, 3)
    return p


def discriminator_forward(params, x):
    # x: (N, 3, H, W) NCHW f32 -> NHWC (real channels, no storage padding).
    xh = jnp.transpose(x, (0, 2, 3, 1))

    # conv0..conv2: ConvBR, 3x3, stride 2, pad 1, LeakyReLU (tap-packed im2col).
    xh = _conv3x3_s2(xh, *params["conv0"], slope=LEAKY_SLOPE)   # 32ch (pad 128)
    xh = _conv3x3_s2(xh, *params["conv1"], slope=LEAKY_SLOPE)   # 64ch (pad 128)
    xh = _conv3x3_s2(xh, *params["conv2"], slope=LEAKY_SLOPE)   # 128ch

    # conv3..conv5: fused stride-1 tail (res blocks + final 1-channel conv).
    return _fused_tail(xh, params)          # (N, 1, H/8, W/8) f32


if __name__ == "__main__":
    key = jax.random.PRNGKey(0)
    k_params, k_input = jax.random.split(key)

    params = make_discriminator_params(k_params, input_channel=3)

    # Small NCHW input consistent with the module (mode='gan' -> 3 channels).
    x = jax.random.normal(k_input, (2, 3, 16, 16), dtype=jnp.float32)

    out = jax.jit(discriminator_forward)(params, x)
    out = jax.block_until_ready(out)

    assert out.shape == (2, 1, 2, 2), out.shape
    assert out.dtype == jnp.float32
    print("KERNEL_OK")
</pallas_src>

<mosaic_0001>
module attributes {stable_mosaic.version = 11 : i64} {
  func.func @_matmul_bias_act_kernel(%arg0: i32, %arg1: i32, %arg2: memref<64x128xbf16, #tpu.memory_space<vmem>>, %arg3: memref<128x128xbf16, #tpu.memory_space<vmem>>, %arg4: memref<1x128xf32, #tpu.memory_space<vmem>>, %arg5: memref<64x128xbf16, #tpu.memory_space<vmem>>) attributes {dimension_semantics = [#tpu.dimension_semantics<parallel>, #tpu.dimension_semantics<parallel>], iteration_bounds = array<i64: 2, 1>, scalar_prefetch = 0 : i64, scratch_operands = 0 : i64, tpu.core_type = #tpu.core_type<tc>, window_params = [{transform_indices = @transform_0, window_bounds = array<i64: 64, 128>}, {transform_indices = @transform_1, window_bounds = array<i64: 128, 128>}, {transform_indices = @transform_2, window_bounds = array<i64: 1, 128>}, {transform_indices = @transform_3, window_bounds = array<i64: 64, 128>}]} {
    %c0 = arith.constant 0 : index
    %c0_0 = arith.constant 0 : index
    %0 = vector.load %arg2[%c0, %c0_0] : memref<64x128xbf16, #tpu.memory_space<vmem>>, vector<64x128xbf16>
    %c0_1 = arith.constant 0 : index
    %c0_2 = arith.constant 0 : index
    %1 = vector.load %arg3[%c0_1, %c0_2] : memref<128x128xbf16, #tpu.memory_space<vmem>>, vector<128x128xbf16>
    %cst = arith.constant dense<0.000000e+00> : vector<64x128xf32>
    %2 = tpu.matmul %0, %1, %cst {dimension_numbers = #tpu.dot_dimension_numbers<[1], [0], [0], [1], [0, 0, 1, 1], [], []>} : vector<64x128xbf16>, vector<128x128xbf16>, vector<64x128xf32> -> vector<64x128xf32>
    %c0_3 = arith.constant 0 : index
    %c0_4 = arith.constant 0 : index
    %3 = vector.load %arg4[%c0_3, %c0_4] : memref<1x128xf32, #tpu.memory_space<vmem>>, vector<1x128xf32>
    %4 = vector.broadcast %3 : vector<1x128xf32> to vector<64x128xf32>
    %5 = arith.addf %2, %4 : vector<64x128xf32>
    %cst_5 = arith.constant 2.000000e-01 : f32
    %6 = vector.broadcast %cst_5 : f32 to vector<64x128xf32>
    %7 = arith.mulf %6, %5 : vector<64x128xf32>
    %8 = arith.maximumf %5, %7 : vector<64x128xf32>
    %9 = arith.truncf %8 : vector<64x128xf32> to vector<64x128xbf16>
    %c0_6 = arith.constant 0 : index
    %c0_7 = arith.constant 0 : index
    %10 = vector.load %arg5[%c0_6, %c0_7] : memref<64x128xbf16, #tpu.memory_space<vmem>>, vector<64x128xbf16>
    tpu.vector_store %arg5[%c0_6, %c0_7], %9 {strides = array<i32>} : memref<64x128xbf16, #tpu.memory_space<vmem>>, vector<64x128xbf16>,
    return
  }
  func.func @transform_0(%arg0: i32, %arg1: i32) -> (i32, i32) {
    %c0_i32 = arith.constant 0 : i32
    %c0_i32_0 = arith.constant 0 : i32
    return %arg0, %c0_i32 : i32, i32
  }
  func.func @transform_1(%arg0: i32, %arg1: i32) -> (i32, i32) {
    %c0_i32 = arith.constant 0 : i32
    %c0_i32_0 = arith.constant 0 : i32
    return %c0_i32, %arg1 : i32, i32
  }
  func.func @transform_2(%arg0: i32, %arg1: i32) -> (i32, i32) {
    %c0_i32 = arith.constant 0 : i32
    %c0_i32_0 = arith.constant 0 : i32
    return %c0_i32, %arg1 : i32, i32
  }
  func.func @transform_3(%arg0: i32, %arg1: i32) -> (i32, i32) {
    %c0_i32 = arith.constant 0 : i32
    return %arg0, %arg1 : i32, i32
  }
}

module attributes {stable_mosaic.version = 11 : i64} {
  func.func @_matmul_bias_act_kernel(%arg0: i32, %arg1: i32, %arg2: memref<16x384xbf16, #tpu.memory_space<vmem>>, %arg3: memref<384x128xbf16, #tpu.memory_space<vmem>>, %arg4: memref<1x128xf32, #tpu.memory_space<vmem>>, %arg5: memref<16x128xbf16, #tpu.memory_space<vmem>>) attributes {dimension_semantics = [#tpu.dimension_semantics<parallel>, #tpu.dimension_semantics<parallel>], iteration_bounds = array<i64: 2, 1>, scalar_prefetch = 0 : i64, scratch_operands = 0 : i64, tpu.core_type = #tpu.core_type<tc>, window_params = [{transform_indices = @transform_0, window_bounds = array<i64: 16, 384>}, {transform_indices = @transform_1, window_bounds = array<i64: 384, 128>}, {transform_indices = @transform_2, window_bounds = array<i64: 1, 128>}, {transform_indices = @transform_3, window_bounds = array<i64: 16, 128>}]} {
    %c0 = arith.constant 0 : index
    %c0_0 = arith.constant 0 : index
    %0 = vector.load %arg2[%c0, %c0_0] : memref<16x384xbf16, #tpu.memory_space<vmem>>, vector<16x384xbf16>
    %c0_1 = arith.constant 0 : index
    %c0_2 = arith.constant 0 : index
    %1 = vector.load %arg3[%c0_1, %c0_2] : memref<384x128xbf16, #tpu.memory_space<vmem>>, vector<384x128xbf16>
    %cst = arith.constant dense<0.000000e+00> : vector<16x128xf32>
    %2 = tpu.matmul %0, %1, %cst {dimension_numbers = #tpu.dot_dimension_numbers<[1], [0], [0], [1], [0, 0, 1, 1], [], []>} : vector<16x384xbf16>, vector<384x128xbf16>, vector<16x128xf32> -> vector<16x128xf32>
    %c0_3 = arith.constant 0 : index
    %c0_4 = arith.constant 0 : index
    %3 = vector.load %arg4[%c0_3, %c0_4] : memref<1x128xf32, #tpu.memory_space<vmem>>, vector<1x128xf32>
    %4 = vector.broadcast %3 : vector<1x128xf32> to vector<16x128xf32>
    %5 = arith.addf %2, %4 : vector<16x128xf32>
    %cst_5 = arith.constant 2.000000e-01 : f32
    %6 = vector.broadcast %cst_5 : f32 to vector<16x128xf32>
    %7 = arith.mulf %6, %5 : vector<16x128xf32>
    %8 = arith.maximumf %5, %7 : vector<16x128xf32>
    %9 = arith.truncf %8 : vector<16x128xf32> to vector<16x128xbf16>
    %c0_6 = arith.constant 0 : index
    %c0_7 = arith.constant 0 : index
    %10 = vector.load %arg5[%c0_6, %c0_7] : memref<16x128xbf16, #tpu.memory_space<vmem>>, vector<16x128xbf16>
    tpu.vector_store %arg5[%c0_6, %c0_7], %9 {strides = array<i32>} : memref<16x128xbf16, #tpu.memory_space<vmem>>, vector<16x128xbf16>,
    return
  }
  func.func @transform_0(%arg0: i32, %arg1: i32) -> (i32, i32) {
    %c0_i32 = arith.constant 0 : i32
    %c0_i32_0 = arith.constant 0 : i32
    return %arg0, %c0_i32 : i32, i32
  }
  func.func @transform_1(%arg0: i32, %arg1: i32) -> (i32, i32) {
    %c0_i32 = arith.constant 0 : i32
    %c0_i32_0 = arith.constant 0 : i32
    return %c0_i32, %arg1 : i32, i32
  }
  func.func @transform_2(%arg0: i32, %arg1: i32) -> (i32, i32) {
    %c0_i32 = arith.constant 0 : i32
    %c0_i32_0 = arith.constant 0 : i32
    return %c0_i32, %arg1 : i32, i32
  }
  func.func @transform_3(%arg0: i32, %arg1: i32) -> (i32, i32) {
    %c0_i32 = arith.constant 0 : i32
    return %arg0, %arg1 : i32, i32
  }
}

module attributes {stable_mosaic.version = 11 : i64} {
  func.func @_matmul_bias_act_kernel(%arg0: i32, %arg1: i32, %arg2: memref<8x640xbf16, #tpu.memory_space<vmem>>, %arg3: memref<640x128xbf16, #tpu.memory_space<vmem>>, %arg4: memref<1x128xf32, #tpu.memory_space<vmem>>, %arg5: memref<8x128xbf16, #tpu.memory_space<vmem>>) attributes {dimension_semantics = [#tpu.dimension_semantics<parallel>, #tpu.dimension_semantics<parallel>], iteration_bounds = array<i64: 1, 1>, scalar_prefetch = 0 : i64, scratch_operands = 0 : i64, tpu.core_type = #tpu.core_type<tc>, window_params = [{transform_indices = @transform_0, window_bounds = array<i64: 8, 640>}, {transform_indices = @transform_1, window_bounds = array<i64: 640, 128>}, {transform_indices = @transform_2, window_bounds = array<i64: 1, 128>}, {transform_indices = @transform_3, window_bounds = array<i64: 8, 128>}]} {
    %c0 = arith.constant 0 : index
    %c0_0 = arith.constant 0 : index
    %0 = vector.load %arg2[%c0, %c0_0] : memref<8x640xbf16, #tpu.memory_space<vmem>>, vector<8x640xbf16>
    %c0_1 = arith.constant 0 : index
    %c0_2 = arith.constant 0 : index
    %1 = vector.load %arg3[%c0_1, %c0_2] : memref<640x128xbf16, #tpu.memory_space<vmem>>, vector<640x128xbf16>
    %cst = arith.constant dense<0.000000e+00> : vector<8x128xf32>
    %2 = tpu.matmul %0, %1, %cst {dimension_numbers = #tpu.dot_dimension_numbers<[1], [0], [0], [1], [0, 0, 1, 1], [], []>} : vector<8x640xbf16>, vector<640x128xbf16>, vector<8x128xf32> -> vector<8x128xf32>
    %c0_3 = arith.constant 0 : index
    %c0_4 = arith.constant 0 : index
    %3 = vector.load %arg4[%c0_3, %c0_4] : memref<1x128xf32, #tpu.memory_space<vmem>>, vector<1x128xf32>
    %4 = vector.broadcast %3 : vector<1x128xf32> to vector<8x128xf32>
    %5 = arith.addf %2, %4 : vector<8x128xf32>
    %cst_5 = arith.constant 2.000000e-01 : f32
    %6 = vector.broadcast %cst_5 : f32 to vector<8x128xf32>
    %7 = arith.mulf %6, %5 : vector<8x128xf32>
    %8 = arith.maximumf %5, %7 : vector<8x128xf32>
    %9 = arith.truncf %8 : vector<8x128xf32> to vector<8x128xbf16>
    %c0_6 = arith.constant 0 : index
    %c0_7 = arith.constant 0 : index
    %10 = vector.load %arg5[%c0_6, %c0_7] : memref<8x128xbf16, #tpu.memory_space<vmem>>, vector<8x128xbf16>
    tpu.vector_store %arg5[%c0_6, %c0_7], %9 {strides = array<i32>} : memref<8x128xbf16, #tpu.memory_space<vmem>>, vector<8x128xbf16>,
    return
  }
  func.func @transform_0(%arg0: i32, %arg1: i32) -> (i32, i32) {
    %c0_i32 = arith.constant 0 : i32
    %c0_i32_0 = arith.constant 0 : i32
    return %arg0, %c0_i32 : i32, i32
  }
  func.func @transform_1(%arg0: i32, %arg1: i32) -> (i32, i32) {
    %c0_i32 = arith.constant 0 : i32
    %c0_i32_0 = arith.constant 0 : i32
    return %c0_i32, %arg1 : i32, i32
  }
  func.func @transform_2(%arg0: i32, %arg1: i32) -> (i32, i32) {
    %c0_i32 = arith.constant 0 : i32
    %c0_i32_0 = arith.constant 0 : i32
    return %c0_i32, %arg1 : i32, i32
  }
  func.func @transform_3(%arg0: i32, %arg1: i32) -> (i32, i32) {
    %c0_i32 = arith.constant 0 : i32
    return %arg0, %arg1 : i32, i32
  }
}

module attributes {stable_mosaic.version = 11 : i64} {
  func.func @_tail_kernel(%arg0: i32, %arg1: memref<1x40x128xbf16, #tpu.memory_space<vmem>>, %arg2: memref<16x1xf32, #tpu.memory_space<vmem>>, %arg3: memref<9x128x256xbf16, #tpu.memory_space<vmem>>, %arg4: memref<1x256xf32, #tpu.memory_space<vmem>>, %arg5: memref<128x256xbf16, #tpu.memory_space<vmem>>, %arg6: memref<9x256x256xbf16, #tpu.memory_space<vmem>>, %arg7: memref<1x256xf32, #tpu.memory_space<vmem>>, %arg8: memref<9x256x256xbf16, #tpu.memory_space<vmem>>, %arg9: memref<1x256xf32, #tpu.memory_space<vmem>>, %arg10: memref<9x256x256xbf16, #tpu.memory_space<vmem>>, %arg11: memref<1x256xf32, #tpu.memory_space<vmem>>, %arg12: memref<9x1x256xf32, #tpu.memory_space<vmem>>, %arg13: memref<1x1xf32, #tpu.memory_space<vmem>>, %arg14: memref<1x16x1xf32, #tpu.memory_space<vmem>>, %arg15: memref<40x256xbf16, #tpu.memory_space<vmem>>, %arg16: memref<40x256xbf16, #tpu.memory_space<vmem>>) attributes {dimension_semantics = [#tpu.dimension_semantics<parallel>], iteration_bounds = array<i64: 2>, scalar_prefetch = 0 : i64, scratch_operands = 2 : i64, tpu.core_type = #tpu.core_type<tc>, window_params = [{transform_indices = @transform_0, window_bounds = array<i64: 1, 40, 128>}, {pipeline_mode = #tpu.pipeline_mode<synchronous>, transform_indices = @transform_1, window_bounds = array<i64: 16, 1>}, {pipeline_mode = #tpu.pipeline_mode<synchronous>, transform_indices = @transform_2, window_bounds = array<i64: 9, 128, 256>}, {pipeline_mode = #tpu.pipeline_mode<synchronous>, transform_indices = @transform_3, window_bounds = array<i64: 1, 256>}, {pipeline_mode = #tpu.pipeline_mode<synchronous>, transform_indices = @transform_4, window_bounds = array<i64: 128, 256>}, {pipeline_mode = #tpu.pipeline_mode<synchronous>, transform_indices = @transform_5, window_bounds = array<i64: 9, 256, 256>}, {pipeline_mode = #tpu.pipeline_mode<synchronous>, transform_indices = @transform_6, window_bounds = array<i64: 1, 256>}, {pipeline_mode = #tpu.pipeline_mode<synchronous>, transform_indices = @transform_7, window_bounds = array<i64: 9, 256, 256>}, {pipeline_mode = #tpu.pipeline_mode<synchronous>, transform_indices = @transform_8, window_bounds = array<i64: 1, 256>}, {pipeline_mode = #tpu.pipeline_mode<synchronous>, transform_indices = @transform_9, window_bounds = array<i64: 9, 256, 256>}, {pipeline_mode = #tpu.pipeline_mode<synchronous>, transform_indices = @transform_10, window_bounds = array<i64: 1, 256>}, {pipeline_mode = #tpu.pipeline_mode<synchronous>, transform_indices = @transform_11, window_bounds = array<i64: 9, 1, 256>}, {pipeline_mode = #tpu.pipeline_mode<synchronous>, transform_indices = @transform_12, window_bounds = array<i64: 1, 1>}, {transform_indices = @transform_13, window_bounds = array<i64: 1, 16, 1>}]} {
    %cst = arith.constant 0.000000e+00 : bf16
    %0 = vector.broadcast %cst : bf16 to vector<40x256xbf16>
    %c0 = arith.constant 0 : index
    %c0_0 = arith.constant 0 : index
    %1 = vector.load %arg15[%c0, %c0_0] : memref<40x256xbf16, #tpu.memory_space<vmem>>, vector<40x256xbf16>
    tpu.vector_store %arg15[%c0, %c0_0], %0 {strides = array<i32>} : memref<40x256xbf16, #tpu.memory_space<vmem>>, vector<40x256xbf16>,
    %cst_1 = arith.constant 0.000000e+00 : bf16
    %2 = vector.broadcast %cst_1 : bf16 to vector<40x256xbf16>
    %c0_2 = arith.constant 0 : index
    %c0_3 = arith.constant 0 : index
    %3 = vector.load %arg16[%c0_2, %c0_3] : memref<40x256xbf16, #tpu.memory_space<vmem>>, vector<40x256xbf16>
    tpu.vector_store %arg16[%c0_2, %c0_3], %2 {strides = array<i32>} : memref<40x256xbf16, #tpu.memory_space<vmem>>, vector<40x256xbf16>,
    %cst_4 = arith.constant 0.000000e+00 : f32
    %4 = vector.broadcast %cst_4 : f32 to vector<16x256xf32>
    %c0_5 = arith.constant 0 : index
    %c0_6 = arith.constant 0 : index
    %c0_7 = arith.constant 0 : index
    %5 = vector.load %arg1[%c0_5, %c0_6, %c0_7] : memref<1x40x128xbf16, #tpu.memory_space<vmem>>, vector<1x16x128xbf16>
    %6 = vector.shape_cast %5 : vector<1x16x128xbf16> to vector<16x128xbf16>
    %c0_8 = arith.constant 0 : index
    %c0_9 = arith.constant 0 : index
    %c0_10 = arith.constant 0 : index
    %7 = vector.load %arg3[%c0_8, %c0_9, %c0_10] : memref<9x128x256xbf16, #tpu.memory_space<vmem>>, vector<1x128x256xbf16>
    %8 = vector.shape_cast %7 : vector<1x128x256xbf16> to vector<128x256xbf16>
    %cst_11 = arith.constant dense<0.000000e+00> : vector<16x256xf32>
    %9 = tpu.matmul %6, %8, %cst_11 {dimension_numbers = #tpu.dot_dimension_numbers<[1], [0], [0], [1], [0, 0, 1, 1], [], []>} : vector<16x128xbf16>, vector<128x256xbf16>, vector<16x256xf32> -> vector<16x256xf32>
    %10 = arith.addf %4, %9 : vector<16x256xf32>
    %c0_12 = arith.constant 0 : index
    %c1 = arith.constant 1 : index
    %c0_13 = arith.constant 0 : index
    %11 = vector.load %arg1[%c0_12, %c1, %c0_13] : memref<1x40x128xbf16, #tpu.memory_space<vmem>>, vector<1x16x128xbf16>
    %12 = vector.shape_cast %11 : vector<1x16x128xbf16> to vector<16x128xbf16>
    %c1_14 = arith.constant 1 : index
    %c0_15 = arith.constant 0 : index
    %c0_16 = arith.constant 0 : index
    %13 = vector.load %arg3[%c1_14, %c0_15, %c0_16] : memref<9x128x256xbf16, #tpu.memory_space<vmem>>, vector<1x128x256xbf16>
    %14 = vector.shape_cast %13 : vector<1x128x256xbf16> to vector<128x256xbf16>
    %cst_17 = arith.constant dense<0.000000e+00> : vector<16x256xf32>
    %15 = tpu.matmul %12, %14, %cst_17 {dimension_numbers = #tpu.dot_dimension_numbers<[1], [0], [0], [1], [0, 0, 1, 1], [], []>} : vector<16x128xbf16>, vector<128x256xbf16>, vector<16x256xf32> -> vector<16x256xf32>
    %16 = arith.addf %10, %15 : vector<16x256xf32>
    %c0_18 = arith.constant 0 : index
    %c2 = arith.constant 2 : index
    %c0_19 = arith.constant 0 : index
    %17 = vector.load %arg1[%c0_18, %c2, %c0_19] : memref<1x40x128xbf16, #tpu.memory_space<vmem>>, vector<1x16x128xbf16>
    %18 = vector.shape_cast %17 : vector<1x16x128xbf16> to vector<16x128xbf16>
    %c2_20 = arith.constant 2 : index
    %c0_21 = arith.constant 0 : index
    %c0_22 = arith.constant 0 : index
    %19 = vector.load %arg3[%c2_20, %c0_21, %c0_22] : memref<9x128x256xbf16, #tpu.memory_space<vmem>>, vector<1x128x256xbf16>
    %20 = vector.shape_cast %19 : vector<1x128x256xbf16> to vector<128x256xbf16>
    %cst_23 = arith.constant dense<0.000000e+00> : vector<16x256xf32>
    %21 = tpu.matmul %18, %20, %cst_23 {dimension_numbers = #tpu.dot_dimension_numbers<[1], [0], [0], [1], [0, 0, 1, 1], [], []>} : vector<16x128xbf16>, vector<128x256xbf16>, vector<16x256xf32> -> vector<16x256xf32>
    %22 = arith.addf %16, %21 : vector<16x256xf32>
    %c0_24 = arith.constant 0 : index
    %c8 = arith.constant 8 : index
    %c0_25 = arith.constant 0 : index
    %23 = vector.load %arg1[%c0_24, %c8, %c0_25] : memref<1x40x128xbf16, #tpu.memory_space<vmem>>, vector<1x16x128xbf16>
    %24 = vector.shape_cast %23 : vector<1x16x128xbf16> to vector<16x128xbf16>
    %c3 = arith.constant 3 : index
    %c0_26 = arith.constant 0 : index
    %c0_27 = arith.constant 0 : index
    %25 = vector.load %arg3[%c3, %c0_26, %c0_27] : memref<9x128x256xbf16, #tpu.memory_space<vmem>>, vector<1x128x256xbf16>
    %26 = vector.shape_cast %25 : vector<1x128x256xbf16> to vector<128x256xbf16>
    %cst_28 = arith.constant dense<0.000000e+00> : vector<16x256xf32>
    %27 = tpu.matmul %24, %26, %cst_28 {dimension_numbers = #tpu.dot_dimension_numbers<[1], [0], [0], [1], [0, 0, 1, 1], [], []>} : vector<16x128xbf16>, vector<128x256xbf16>, vector<16x256xf32> -> vector<16x256xf32>
    %28 = arith.addf %22, %27 : vector<16x256xf32>
    %c0_29 = arith.constant 0 : index
    %c9 = arith.constant 9 : index
    %c0_30 = arith.constant 0 : index
    %29 = vector.load %arg1[%c0_29, %c9, %c0_30] : memref<1x40x128xbf16, #tpu.memory_space<vmem>>, vector<1x16x128xbf16>
    %30 = vector.shape_cast %29 : vector<1x16x128xbf16> to vector<16x128xbf16>
    %c4 = arith.constant 4 : index
    %c0_31 = arith.constant 0 : index
    %c0_32 = arith.constant 0 : index
    %31 = vector.load %arg3[%c4, %c0_31, %c0_32] : memref<9x128x256xbf16, #tpu.memory_space<vmem>>, vector<1x128x256xbf16>
    %32 = vector.shape_cast %31 : vector<1x128x256xbf16> to vector<128x256xbf16>
    %cst_33 = arith.constant dense<0.000000e+00> : vector<16x256xf32>
    %33 = tpu.matmul %30, %32, %cst_33 {dimension_numbers = #tpu.dot_dimension_numbers<[1], [0], [0], [1], [0, 0, 1, 1], [], []>} : vector<16x128xbf16>, vector<128x256xbf16>, vector<16x256xf32> -> vector<16x256xf32>
    %34 = arith.addf %28, %33 : vector<16x256xf32>
    %c0_34 = arith.constant 0 : index
    %c10 = arith.constant 10 : index
    %c0_35 = arith.constant 0 : index
    %35 = vector.load %arg1[%c0_34, %c10, %c0_35] : memref<1x40x128xbf16, #tpu.memory_space<vmem>>, vector<1x16x128xbf16>
    %36 = vector.shape_cast %35 : vector<1x16x128xbf16> to vector<16x128xbf16>
    %c5 = arith.constant 5 : index
    %c0_36 = arith.constant 0 : index
    %c0_37 = arith.constant 0 : index
    %37 = vector.load %arg3[%c5, %c0_36, %c0_37] : memref<9x128x256xbf16, #tpu.memory_space<vmem>>, vector<1x128x256xbf16>
    %38 = vector.shape_cast %37 : vector<1x128x256xbf16> to vector<128x256xbf16>
    %cst_38 = arith.constant dense<0.000000e+00> : vector<16x256xf32>
    %39 = tpu.matmul %36, %38, %cst_38 {dimension_numbers = #tpu.dot_dimension_numbers<[1], [0], [0], [1], [0, 0, 1, 1], [], []>} : vector<16x128xbf16>, vector<128x256xbf16>, vector<16x256xf32> -> vector<16x256xf32>
    %40 = arith.addf %34, %39 : vector<16x256xf32>
    %c0_39 = arith.constant 0 : index
    %c16 = arith.constant 16 : index
    %c0_40 = arith.constant 0 : index
    %41 = vector.load %arg1[%c0_39, %c16, %c0_40] : memref<1x40x128xbf16, #tpu.memory_space<vmem>>, vector<1x16x128xbf16>
    %42 = vector.shape_cast %41 : vector<1x16x128xbf16> to vector<16x128xbf16>
    %c6 = arith.constant 6 : index
    %c0_41 = arith.constant 0 : index
    %c0_42 = arith.constant 0 : index
    %43 = vector.load %arg3[%c6, %c0_41, %c0_42] : memref<9x128x256xbf16, #tpu.memory_space<vmem>>, vector<1x128x256xbf16>
    %44 = vector.shape_cast %43 : vector<1x128x256xbf16> to vector<128x256xbf16>
    %cst_43 = arith.constant dense<0.000000e+00> : vector<16x256xf32>
    %45 = tpu.matmul %42, %44, %cst_43 {dimension_numbers = #tpu.dot_dimension_numbers<[1], [0], [0], [1], [0, 0, 1, 1], [], []>} : vector<16x128xbf16>, vector<128x256xbf16>, vector<16x256xf32> -> vector<16x256xf32>
    %46 = arith.addf %40, %45 : vector<16x256xf32>
    %c0_44 = arith.constant 0 : index
    %c17 = arith.constant 17 : index
    %c0_45 = arith.constant 0 : index
    %47 = vector.load %arg1[%c0_44, %c17, %c0_45] : memref<1x40x128xbf16, #tpu.memory_space<vmem>>, vector<1x16x128xbf16>
    %48 = vector.shape_cast %47 : vector<1x16x128xbf16> to vector<16x128xbf16>
    %c7 = arith.constant 7 : index
    %c0_46 = arith.constant 0 : index
    %c0_47 = arith.constant 0 : index
    %49 = vector.load %arg3[%c7, %c0_46, %c0_47] : memref<9x128x256xbf16, #tpu.memory_space<vmem>>, vector<1x128x256xbf16>
    %50 = vector.shape_cast %49 : vector<1x128x256xbf16> to vector<128x256xbf16>
    %cst_48 = arith.constant dense<0.000000e+00> : vector<16x256xf32>
    %51 = tpu.matmul %48, %50, %cst_48 {dimension_numbers = #tpu.dot_dimension_numbers<[1], [0], [0], [1], [0, 0, 1, 1], [], []>} : vector<16x128xbf16>, vector<128x256xbf16>, vector<16x256xf32> -> vector<16x256xf32>
    %52 = arith.addf %46, %51 : vector<16x256xf32>
    %c0_49 = arith.constant 0 : index
    %c18 = arith.constant 18 : index
    %c0_50 = arith.constant 0 : index
    %53 = vector.load %arg1[%c0_49, %c18, %c0_50] : memref<1x40x128xbf16, #tpu.memory_space<vmem>>, vector<1x16x128xbf16>
    %54 = vector.shape_cast %53 : vector<1x16x128xbf16> to vector<16x128xbf16>
    %c8_51 = arith.constant 8 : index
    %c0_52 = arith.constant 0 : index
    %c0_53 = arith.constant 0 : index
    %55 = vector.load %arg3[%c8_51, %c0_52, %c0_53] : memref<9x128x256xbf16, #tpu.memory_space<vmem>>, vector<1x128x256xbf16>
    %56 = vector.shape_cast %55 : vector<1x128x256xbf16> to vector<128x256xbf16>
    %cst_54 = arith.constant dense<0.000000e+00> : vector<16x256xf32>
    %57 = tpu.matmul %54, %56, %cst_54 {dimension_numbers = #tpu.dot_dimension_numbers<[1], [0], [0], [1], [0, 0, 1, 1], [], []>} : vector<16x128xbf16>, vector<128x256xbf16>, vector<16x256xf32> -> vector<16x256xf32>
    %58 = arith.addf %52, %57 : vector<16x256xf32>
    %c0_55 = arith.constant 0 : index
    %c0_56 = arith.constant 0 : index
    %59 = vector.load %arg4[%c0_55, %c0_56] : memref<1x256xf32, #tpu.memory_space<vmem>>, vector<1x256xf32>
    %60 = vector.broadcast %59 : vector<1x256xf32> to vector<16x256xf32>
    %61 = arith.addf %58, %60 : vector<16x256xf32>
    %cst_57 = arith.constant 2.000000e-01 : f32
    %62 = vector.broadcast %cst_57 : f32 to vector<16x256xf32>
    %63 = arith.mulf %62, %61 : vector<16x256xf32>
    %64 = arith.maximumf %61, %63 : vector<16x256xf32>
    %c0_58 = arith.constant 0 : index
    %c0_59 = arith.constant 0 : index
    %65 = vector.load %arg2[%c0_58, %c0_59] : memref<16x1xf32, #tpu.memory_space<vmem>>, vector<16x1xf32>
    %66 = vector.broadcast %65 : vector<16x1xf32> to vector<16x256xf32>
    %67 = arith.mulf %64, %66 : vector<16x256xf32>
    %68 = arith.truncf %67 : vector<16x256xf32> to vector<16x256xbf16>
    %c9_60 = arith.constant 9 : index
    %c0_61 = arith.constant 0 : index
    %69 = vector.load %arg15[%c9_60, %c0_61] : memref<40x256xbf16, #tpu.memory_space<vmem>>, vector<16x256xbf16>
    tpu.vector_store %arg15[%c9_60, %c0_61], %68 {strides = array<i32>} : memref<40x256xbf16, #tpu.memory_space<vmem>>, vector<16x256xbf16>,
    %cst_62 = arith.constant 0.000000e+00 : f32
    %70 = vector.broadcast %cst_62 : f32 to vector<16x256xf32>
    %c0_63 = arith.constant 0 : index
    %c0_64 = arith.constant 0 : index
    %71 = vector.load %arg15[%c0_63, %c0_64] : memref<40x256xbf16, #tpu.memory_space<vmem>>, vector<16x256xbf16>
    %c0_65 = arith.constant 0 : index
    %c0_66 = arith.constant 0 : index
    %c0_67 = arith.constant 0 : index
    %72 = vector.load %arg6[%c0_65, %c0_66, %c0_67] : memref<9x256x256xbf16, #tpu.memory_space<vmem>>, vector<1x256x256xbf16>
    %73 = vector.shape_cast %72 : vector<1x256x256xbf16> to vector<256x256xbf16>
    %cst_68 = arith.constant dense<0.000000e+00> : vector<16x256xf32>
    %74 = tpu.matmul %71, %73, %cst_68 {dimension_numbers = #tpu.dot_dimension_numbers<[1], [0], [0], [1], [0, 0, 1, 1], [], []>} : vector<16x256xbf16>, vector<256x256xbf16>, vector<16x256xf32> -> vector<16x256xf32>
    %75 = arith.addf %70, %74 : vector<16x256xf32>
    %c1_69 = arith.constant 1 : index
    %c0_70 = arith.constant 0 : index
    %76 = vector.load %arg15[%c1_69, %c0_70] : memref<40x256xbf16, #tpu.memory_space<vmem>>, vector<16x256xbf16>
    %c1_71 = arith.constant 1 : index
    %c0_72 = arith.constant 0 : index
    %c0_73 = arith.constant 0 : index
    %77 = vector.load %arg6[%c1_71, %c0_72, %c0_73] : memref<9x256x256xbf16, #tpu.memory_space<vmem>>, vector<1x256x256xbf16>
    %78 = vector.shape_cast %77 : vector<1x256x256xbf16> to vector<256x256xbf16>
    %cst_74 = arith.constant dense<0.000000e+00> : vector<16x256xf32>
    %79 = tpu.matmul %76, %78, %cst_74 {dimension_numbers = #tpu.dot_dimension_numbers<[1], [0], [0], [1], [0, 0, 1, 1], [], []>} : vector<16x256xbf16>, vector<256x256xbf16>, vector<16x256xf32> -> vector<16x256xf32>
    %80 = arith.addf %75, %79 : vector<16x256xf32>
    %c2_75 = arith.constant 2 : index
    %c0_76 = arith.constant 0 : index
    %81 = vector.load %arg15[%c2_75, %c0_76] : memref<40x256xbf16, #tpu.memory_space<vmem>>, vector<16x256xbf16>
    %c2_77 = arith.constant 2 : index
    %c0_78 = arith.constant 0 : index
    %c0_79 = arith.constant 0 : index
    %82 = vector.load %arg6[%c2_77, %c0_78, %c0_79] : memref<9x256x256xbf16, #tpu.memory_space<vmem>>, vector<1x256x256xbf16>
    %83 = vector.shape_cast %82 : vector<1x256x256xbf16> to vector<256x256xbf16>
    %cst_80 = arith.constant dense<0.000000e+00> : vector<16x256xf32>
    %84 = tpu.matmul %81, %83, %cst_80 {dimension_numbers = #tpu.dot_dimension_numbers<[1], [0], [0], [1], [0, 0, 1, 1], [], []>} : vector<16x256xbf16>, vector<256x256xbf16>, vector<16x256xf32> -> vector<16x256xf32>
    %85 = arith.addf %80, %84 : vector<16x256xf32>
    %c8_81 = arith.constant 8 : index
    %c0_82 = arith.constant 0 : index
    %86 = vector.load %arg15[%c8_81, %c0_82] : memref<40x256xbf16, #tpu.memory_space<vmem>>, vector<16x256xbf16>
    %c3_83 = arith.constant 3 : index
    %c0_84 = arith.constant 0 : index
    %c0_85 = arith.constant 0 : index
    %87 = vector.load %arg6[%c3_83, %c0_84, %c0_85] : memref<9x256x256xbf16, #tpu.memory_space<vmem>>, vector<1x256x256xbf16>
    %88 = vector.shape_cast %87 : vector<1x256x256xbf16> to vector<256x256xbf16>
    %cst_86 = arith.constant dense<0.000000e+00> : vector<16x256xf32>
    %89 = tpu.matmul %86, %88, %cst_86 {dimension_numbers = #tpu.dot_dimension_numbers<[1], [0], [0], [1], [0, 0, 1, 1], [], []>} : vector<16x256xbf16>, vector<256x256xbf16>, vector<16x256xf32> -> vector<16x256xf32>
    %90 = arith.addf %85, %89 : vector<16x256xf32>
    %c9_87 = arith.constant 9 : index
    %c0_88 = arith.constant 0 : index
    %91 = vector.load %arg15[%c9_87, %c0_88] : memref<40x256xbf16, #tpu.memory_space<vmem>>, vector<16x256xbf16>
    %c4_89 = arith.constant 4 : index
    %c0_90 = arith.constant 0 : index
    %c0_91 = arith.constant 0 : index
    %92 = vector.load %arg6[%c4_89, %c0_90, %c0_91] : memref<9x256x256xbf16, #tpu.memory_space<vmem>>, vector<1x256x256xbf16>
    %93 = vector.shape_cast %92 : vector<1x256x256xbf16> to vector<256x256xbf16>
    %cst_92 = arith.constant dense<0.000000e+00> : vector<16x256xf32>
    %94 = tpu.matmul %91, %93, %cst_92 {dimension_numbers = #tpu.dot_dimension_numbers<[1], [0], [0], [1], [0, 0, 1, 1], [], []>} : vector<16x256xbf16>, vector<256x256xbf16>, vector<16x256xf32> -> vector<16x256xf32>
    %95 = arith.addf %90, %94 : vector<16x256xf32>
    %c10_93 = arith.constant 10 : index
    %c0_94 = arith.constant 0 : index
    %96 = vector.load %arg15[%c10_93, %c0_94] : memref<40x256xbf16, #tpu.memory_space<vmem>>, vector<16x256xbf16>
    %c5_95 = arith.constant 5 : index
    %c0_96 = arith.constant 0 : index
    %c0_97 = arith.constant 0 : index
    %97 = vector.load %arg6[%c5_95, %c0_96, %c0_97] : memref<9x256x256xbf16, #tpu.memory_space<vmem>>, vector<1x256x256xbf16>
    %98 = vector.shape_cast %97 : vector<1x256x256xbf16> to vector<256x256xbf16>
    %cst_98 = arith.constant dense<0.000000e+00> : vector<16x256xf32>
    %99 = tpu.matmul %96, %98, %cst_98 {dimension_numbers = #tpu.dot_dimension_numbers<[1], [0], [0], [1], [0, 0, 1, 1], [], []>} : vector<16x256xbf16>, vector<256x256xbf16>, vector<16x256xf32> -> vector<16x256xf32>
    %100 = arith.addf %95, %99 : vector<16x256xf32>
    %c16_99 = arith.constant 16 : index
    %c0_100 = arith.constant 0 : index
    %101 = vector.load %arg15[%c16_99, %c0_100] : memref<40x256xbf16, #tpu.memory_space<vmem>>, vector<16x256xbf16>
    %c6_101 = arith.constant 6 : index
    %c0_102 = arith.constant 0 : index
    %c0_103 = arith.constant 0 : index
    %102 = vector.load %arg6[%c6_101, %c0_102, %c0_103] : memref<9x256x256xbf16, #tpu.memory_space<vmem>>, vector<1x256x256xbf16>
    %103 = vector.shape_cast %102 : vector<1x256x256xbf16> to vector<256x256xbf16>
    %cst_104 = arith.constant dense<0.000000e+00> : vector<16x256xf32>
    %104 = tpu.matmul %101, %103, %cst_104 {dimension_numbers = #tpu.dot_dimension_numbers<[1], [0], [0], [1], [0, 0, 1, 1], [], []>} : vector<16x256xbf16>, vector<256x256xbf16>, vector<16x256xf32> -> vector<16x256xf32>
    %105 = arith.addf %100, %104 : vector<16x256xf32>
    %c17_105 = arith.constant 17 : index
    %c0_106 = arith.constant 0 : index
    %106 = vector.load %arg15[%c17_105, %c0_106] : memref<40x256xbf16, #tpu.memory_space<vmem>>, vector<16x256xbf16>
    %c7_107 = arith.constant 7 : index
    %c0_108 = arith.constant 0 : index
    %c0_109 = arith.constant 0 : index
    %107 = vector.load %arg6[%c7_107, %c0_108, %c0_109] : memref<9x256x256xbf16, #tpu.memory_space<vmem>>, vector<1x256x256xbf16>
    %108 = vector.shape_cast %107 : vector<1x256x256xbf16> to vector<256x256xbf16>
    %cst_110 = arith.constant dense<0.000000e+00> : vector<16x256xf32>
    %109 = tpu.matmul %106, %108, %cst_110 {dimension_numbers = #tpu.dot_dimension_numbers<[1], [0], [0], [1], [0, 0, 1, 1], [], []>} : vector<16x256xbf16>, vector<256x256xbf16>, vector<16x256xf32> -> vector<16x256xf32>
    %110 = arith.addf %105, %109 : vector<16x256xf32>
    %c18_111 = arith.constant 18 : index
    %c0_112 = arith.constant 0 : index
    %111 = vector.load %arg15[%c18_111, %c0_112] : memref<40x256xbf16, #tpu.memory_space<vmem>>, vector<16x256xbf16>
    %c8_113 = arith.constant 8 : index
    %c0_114 = arith.constant 0 : index
    %c0_115 = arith.constant 0 : index
    %112 = vector.load %arg6[%c8_113, %c0_114, %c0_115] : memref<9x256x256xbf16, #tpu.memory_space<vmem>>, vector<1x256x256xbf16>
    %113 = vector.shape_cast %112 : vector<1x256x256xbf16> to vector<256x256xbf16>
    %cst_116 = arith.constant dense<0.000000e+00> : vector<16x256xf32>
    %114 = tpu.matmul %111, %113, %cst_116 {dimension_numbers = #tpu.dot_dimension_numbers<[1], [0], [0], [1], [0, 0, 1, 1], [], []>} : vector<16x256xbf16>, vector<256x256xbf16>, vector<16x256xf32> -> vector<16x256xf32>
    %115 = arith.addf %110, %114 : vector<16x256xf32>
    %c0_117 = arith.constant 0 : index
    %c0_118 = arith.constant 0 : index
    %116 = vector.load %arg7[%c0_117, %c0_118] : memref<1x256xf32, #tpu.memory_space<vmem>>, vector<1x256xf32>
    %117 = vector.broadcast %116 : vector<1x256xf32> to vector<16x256xf32>
    %118 = arith.addf %115, %117 : vector<16x256xf32>
    %c0_119 = arith.constant 0 : index
    %c9_120 = arith.constant 9 : index
    %c0_121 = arith.constant 0 : index
    %119 = vector.load %arg1[%c0_119, %c9_120, %c0_121] : memref<1x40x128xbf16, #tpu.memory_space<vmem>>, vector<1x16x128xbf16>
    %120 = vector.shape_cast %119 : vector<1x16x128xbf16> to vector<16x128xbf16>
    %c0_122 = arith.constant 0 : index
    %c0_123 = arith.constant 0 : index
    %121 = vector.load %arg5[%c0_122, %c0_123] : memref<128x256xbf16, #tpu.memory_space<vmem>>, vector<128x256xbf16>
    %cst_124 = arith.constant dense<0.000000e+00> : vector<16x256xf32>
    %122 = tpu.matmul %120, %121, %cst_124 {dimension_numbers = #tpu.dot_dimension_numbers<[1], [0], [0], [1], [0, 0, 1, 1], [], []>} : vector<16x128xbf16>, vector<128x256xbf16>, vector<16x256xf32> -> vector<16x256xf32>
    %123 = arith.addf %118, %122 : vector<16x256xf32>
    %cst_125 = arith.constant 2.000000e-01 : f32
    %124 = vector.broadcast %cst_125 : f32 to vector<16x256xf32>
    %125 = arith.mulf %124, %123 : vector<16x256xf32>
    %126 = arith.maximumf %123, %125 : vector<16x256xf32>
    %c0_126 = arith.constant 0 : index
    %c0_127 = arith.constant 0 : index
    %127 = vector.load %arg2[%c0_126, %c0_127] : memref<16x1xf32, #tpu.memory_space<vmem>>, vector<16x1xf32>
    %128 = vector.broadcast %127 : vector<16x1xf32> to vector<16x256xf32>
    %129 = arith.mulf %126, %128 : vector<16x256xf32>
    %130 = arith.truncf %129 : vector<16x256xf32> to vector<16x256xbf16>
    %c9_128 = arith.constant 9 : index
    %c0_129 = arith.constant 0 : index
    %131 = vector.load %arg16[%c9_128, %c0_129] : memref<40x256xbf16, #tpu.memory_space<vmem>>, vector<16x256xbf16>
    tpu.vector_store %arg16[%c9_128, %c0_129], %130 {strides = array<i32>} : memref<40x256xbf16, #tpu.memory_space<vmem>>, vector<16x256xbf16>,
    %cst_130 = arith.constant 0.000000e+00 : f32
    %132 = vector.broadcast %cst_130 : f32 to vector<16x256xf32>
    %c0_131 = arith.constant 0 : index
    %c0_132 = arith.constant 0 : index
    %133 = vector.load %arg16[%c0_131, %c0_132] : memref<40x256xbf16, #tpu.memory_space<vmem>>, vector<16x256xbf16>
    %c0_133 = arith.constant 0 : index
    %c0_134 = arith.constant 0 : index
    %c0_135 = arith.constant 0 : index
    %134 = vector.load %arg8[%c0_133, %c0_134, %c0_135] : memref<9x256x256xbf16, #tpu.memory_space<vmem>>, vector<1x256x256xbf16>
    %135 = vector.shape_cast %134 : vector<1x256x256xbf16> to vector<256x256xbf16>
    %cst_136 = arith.constant dense<0.000000e+00> : vector<16x256xf32>
    %136 = tpu.matmul %133, %135, %cst_136 {dimension_numbers = #tpu.dot_dimension_numbers<[1], [0], [0], [1], [0, 0, 1, 1], [], []>} : vector<16x256xbf16>, vector<256x256xbf16>, vector<16x256xf32> -> vector<16x256xf32>
    %137 = arith.addf %132, %136 : vector<16x256xf32>
    %c1_137 = arith.constant 1 : index
    %c0_138 = arith.constant 0 : index
    %138 = vector.load %arg16[%c1_137, %c0_138] : memref<40x256xbf16, #tpu.memory_space<vmem>>, vector<16x256xbf16>
    %c1_139 = arith.constant 1 : index
    %c0_140 = arith.constant 0 : index
    %c0_141 = arith.constant 0 : index
    %139 = vector.load %arg8[%c1_139, %c0_140, %c0_141] : memref<9x256x256xbf16, #tpu.memory_space<vmem>>, vector<1x256x256xbf16>
    %140 = vector.shape_cast %139 : vector<1x256x256xbf16> to vector<256x256xbf16>
    %cst_142 = arith.constant dense<0.000000e+00> : vector<16x256xf32>
    %141 = tpu.matmul %138, %140, %cst_142 {dimension_numbers = #tpu.dot_dimension_numbers<[1], [0], [0], [1], [0, 0, 1, 1], [], []>} : vector<16x256xbf16>, vector<256x256xbf16>, vector<16x256xf32> -> vector<16x256xf32>
    %142 = arith.addf %137, %141 : vector<16x256xf32>
    %c2_143 = arith.constant 2 : index
    %c0_144 = arith.constant 0 : index
    %143 = vector.load %arg16[%c2_143, %c0_144] : memref<40x256xbf16, #tpu.memory_space<vmem>>, vector<16x256xbf16>
    %c2_145 = arith.constant 2 : index
    %c0_146 = arith.constant 0 : index
    %c0_147 = arith.constant 0 : index
    %144 = vector.load %arg8[%c2_145, %c0_146, %c0_147] : memref<9x256x256xbf16, #tpu.memory_space<vmem>>, vector<1x256x256xbf16>
    %145 = vector.shape_cast %144 : vector<1x256x256xbf16> to vector<256x256xbf16>
    %cst_148 = arith.constant dense<0.000000e+00> : vector<16x256xf32>
    %146 = tpu.matmul %143, %145, %cst_148 {dimension_numbers = #tpu.dot_dimension_numbers<[1], [0], [0], [1], [0, 0, 1, 1], [], []>} : vector<16x256xbf16>, vector<256x256xbf16>, vector<16x256xf32> -> vector<16x256xf32>
    %147 = arith.addf %142, %146 : vector<16x256xf32>
    %c8_149 = arith.constant 8 : index
    %c0_150 = arith.constant 0 : index
    %148 = vector.load %arg16[%c8_149, %c0_150] : memref<40x256xbf16, #tpu.memory_space<vmem>>, vector<16x256xbf16>
    %c3_151 = arith.constant 3 : index
    %c0_152 = arith.constant 0 : index
    %c0_153 = arith.constant 0 : index
    %149 = vector.load %arg8[%c3_151, %c0_152, %c0_153] : memref<9x256x256xbf16, #tpu.memory_space<vmem>>, vector<1x256x256xbf16>
    %150 = vector.shape_cast %149 : vector<1x256x256xbf16> to vector<256x256xbf16>
    %cst_154 = arith.constant dense<0.000000e+00> : vector<16x256xf32>
    %151 = tpu.matmul %148, %150, %cst_154 {dimension_numbers = #tpu.dot_dimension_numbers<[1], [0], [0], [1], [0, 0, 1, 1], [], []>} : vector<16x256xbf16>, vector<256x256xbf16>, vector<16x256xf32> -> vector<16x256xf32>
    %152 = arith.addf %147, %151 : vector<16x256xf32>
    %c9_155 = arith.constant 9 : index
    %c0_156 = arith.constant 0 : index
    %153 = vector.load %arg16[%c9_155, %c0_156] : memref<40x256xbf16, #tpu.memory_space<vmem>>, vector<16x256xbf16>
    %c4_157 = arith.constant 4 : index
    %c0_158 = arith.constant 0 : index
    %c0_159 = arith.constant 0 : index
    %154 = vector.load %arg8[%c4_157, %c0_158, %c0_159] : memref<9x256x256xbf16, #tpu.memory_space<vmem>>, vector<1x256x256xbf16>
    %155 = vector.shape_cast %154 : vector<1x256x256xbf16> to vector<256x256xbf16>
    %cst_160 = arith.constant dense<0.000000e+00> : vector<16x256xf32>
    %156 = tpu.matmul %153, %155, %cst_160 {dimension_numbers = #tpu.dot_dimension_numbers<[1], [0], [0], [1], [0, 0, 1, 1], [], []>} : vector<16x256xbf16>, vector<256x256xbf16>, vector<16x256xf32> -> vector<16x256xf32>
    %157 = arith.addf %152, %156 : vector<16x256xf32>
    %c10_161 = arith.constant 10 : index
    %c0_162 = arith.constant 0 : index
    %158 = vector.load %arg16[%c10_161, %c0_162] : memref<40x256xbf16, #tpu.memory_space<vmem>>, vector<16x256xbf16>
    %c5_163 = arith.constant 5 : index
    %c0_164 = arith.constant 0 : index
    %c0_165 = arith.constant 0 : index
    %159 = vector.load %arg8[%c5_163, %c0_164, %c0_165] : memref<9x256x256xbf16, #tpu.memory_space<vmem>>, vector<1x256x256xbf16>
    %160 = vector.shape_cast %159 : vector<1x256x256xbf16> to vector<256x256xbf16>
    %cst_166 = arith.constant dense<0.000000e+00> : vector<16x256xf32>
    %161 = tpu.matmul %158, %160, %cst_166 {dimension_numbers = #tpu.dot_dimension_numbers<[1], [0], [0], [1], [0, 0, 1, 1], [], []>} : vector<16x256xbf16>, vector<256x256xbf16>, vector<16x256xf32> -> vector<16x256xf32>
    %162 = arith.addf %157, %161 : vector<16x256xf32>
    %c16_167 = arith.constant 16 : index
    %c0_168 = arith.constant 0 : index
    %163 = vector.load %arg16[%c16_167, %c0_168] : memref<40x256xbf16, #tpu.memory_space<vmem>>, vector<16x256xbf16>
    %c6_169 = arith.constant 6 : index
    %c0_170 = arith.constant 0 : index
    %c0_171 = arith.constant 0 : index
    %164 = vector.load %arg8[%c6_169, %c0_170, %c0_171] : memref<9x256x256xbf16, #tpu.memory_space<vmem>>, vector<1x256x256xbf16>
    %165 = vector.shape_cast %164 : vector<1x256x256xbf16> to vector<256x256xbf16>
    %cst_172 = arith.constant dense<0.000000e+00> : vector<16x256xf32>
    %166 = tpu.matmul %163, %165, %cst_172 {dimension_numbers = #tpu.dot_dimension_numbers<[1], [0], [0], [1], [0, 0, 1, 1], [], []>} : vector<16x256xbf16>, vector<256x256xbf16>, vector<16x256xf32> -> vector<16x256xf32>
    %167 = arith.addf %162, %166 : vector<16x256xf32>
    %c17_173 = arith.constant 17 : index
    %c0_174 = arith.constant 0 : index
    %168 = vector.load %arg16[%c17_173, %c0_174] : memref<40x256xbf16, #tpu.memory_space<vmem>>, vector<16x256xbf16>
    %c7_175 = arith.constant 7 : index
    %c0_176 = arith.constant 0 : index
    %c0_177 = arith.constant 0 : index
    %169 = vector.load %arg8[%c7_175, %c0_176, %c0_177] : memref<9x256x256xbf16, #tpu.memory_space<vmem>>, vector<1x256x256xbf16>
    %170 = vector.shape_cast %169 : vector<1x256x256xbf16> to vector<256x256xbf16>
    %cst_178 = arith.constant dense<0.000000e+00> : vector<16x256xf32>
    %171 = tpu.matmul %168, %170, %cst_178 {dimension_numbers = #tpu.dot_dimension_numbers<[1], [0], [0], [1], [0, 0, 1, 1], [], []>} : vector<16x256xbf16>, vector<256x256xbf16>, vector<16x256xf32> -> vector<16x256xf32>
    %172 = arith.addf %167, %171 : vector<16x256xf32>
    %c18_179 = arith.constant 18 : index
    %c0_180 = arith.constant 0 : index
    %173 = vector.load %arg16[%c18_179, %c0_180] : memref<40x256xbf16, #tpu.memory_space<vmem>>, vector<16x256xbf16>
    %c8_181 = arith.constant 8 : index
    %c0_182 = arith.constant 0 : index
    %c0_183 = arith.constant 0 : index
    %174 = vector.load %arg8[%c8_181, %c0_182, %c0_183] : memref<9x256x256xbf16, #tpu.memory_space<vmem>>, vector<1x256x256xbf16>
    %175 = vector.shape_cast %174 : vector<1x256x256xbf16> to vector<256x256xbf16>
    %cst_184 = arith.constant dense<0.000000e+00> : vector<16x256xf32>
    %176 = tpu.matmul %173, %175, %cst_184 {dimension_numbers = #tpu.dot_dimension_numbers<[1], [0], [0], [1], [0, 0, 1, 1], [], []>} : vector<16x256xbf16>, vector<256x256xbf16>, vector<16x256xf32> -> vector<16x256xf32>
    %177 = arith.addf %172, %176 : vector<16x256xf32>
    %c0_185 = arith.constant 0 : index
    %c0_186 = arith.constant 0 : index
    %178 = vector.load %arg9[%c0_185, %c0_186] : memref<1x256xf32, #tpu.memory_space<vmem>>, vector<1x256xf32>
    %179 = vector.broadcast %178 : vector<1x256xf32> to vector<16x256xf32>
    %180 = arith.addf %177, %179 : vector<16x256xf32>
    %cst_187 = arith.constant 2.000000e-01 : f32
    %181 = vector.broadcast %cst_187 : f32 to vector<16x256xf32>
    %182 = arith.mulf %181, %180 : vector<16x256xf32>
    %183 = arith.maximumf %180, %182 : vector<16x256xf32>
    %c0_188 = arith.constant 0 : index
    %c0_189 = arith.constant 0 : index
    %184 = vector.load %arg2[%c0_188, %c0_189] : memref<16x1xf32, #tpu.memory_space<vmem>>, vector<16x1xf32>
    %185 = vector.broadcast %184 : vector<16x1xf32> to vector<16x256xf32>
    %186 = arith.mulf %183, %185 : vector<16x256xf32>
    %187 = arith.truncf %186 : vector<16x256xf32> to vector<16x256xbf16>
    %c9_190 = arith.constant 9 : index
    %c0_191 = arith.constant 0 : index
    %188 = vector.load %arg15[%c9_190, %c0_191] : memref<40x256xbf16, #tpu.memory_space<vmem>>, vector<16x256xbf16>
    tpu.vector_store %arg15[%c9_190, %c0_191], %187 {strides = array<i32>} : memref<40x256xbf16, #tpu.memory_space<vmem>>, vector<16x256xbf16>,
    %cst_192 = arith.constant 0.000000e+00 : f32
    %189 = vector.broadcast %cst_192 : f32 to vector<16x256xf32>
    %c0_193 = arith.constant 0 : index
    %c0_194 = arith.constant 0 : index
    %190 = vector.load %arg15[%c0_193, %c0_194] : memref<40x256xbf16, #tpu.memory_space<vmem>>, vector<16x256xbf16>
    %c0_195 = arith.constant 0 : index
    %c0_196 = arith.constant 0 : index
    %c0_197 = arith.constant 0 : index
    %191 = vector.load %arg10[%c0_195, %c0_196, %c0_197] : memref<9x256x256xbf16, #tpu.memory_space<vmem>>, vector<1x256x256xbf16>
    %192 = vector.shape_cast %191 : vector<1x256x256xbf16> to vector<256x256xbf16>
    %cst_198 = arith.constant dense<0.000000e+00> : vector<16x256xf32>
    %193 = tpu.matmul %190, %192, %cst_198 {dimension_numbers = #tpu.dot_dimension_numbers<[1], [0], [0], [1], [0, 0, 1, 1], [], []>} : vector<16x256xbf16>, vector<256x256xbf16>, vector<16x256xf32> -> vector<16x256xf32>
    %194 = arith.addf %189, %193 : vector<16x256xf32>
    %c1_199 = arith.constant 1 : index
    %c0_200 = arith.constant 0 : index
    %195 = vector.load %arg15[%c1_199, %c0_200] : memref<40x256xbf16, #tpu.memory_space<vmem>>, vector<16x256xbf16>
    %c1_201 = arith.constant 1 : index
    %c0_202 = arith.constant 0 : index
    %c0_203 = arith.constant 0 : index
    %196 = vector.load %arg10[%c1_201, %c0_202, %c0_203] : memref<9x256x256xbf16, #tpu.memory_space<vmem>>, vector<1x256x256xbf16>
    %197 = vector.shape_cast %196 : vector<1x256x256xbf16> to vector<256x256xbf16>
    %cst_204 = arith.constant dense<0.000000e+00> : vector<16x256xf32>
    %198 = tpu.matmul %195, %197, %cst_204 {dimension_numbers = #tpu.dot_dimension_numbers<[1], [0], [0], [1], [0, 0, 1, 1], [], []>} : vector<16x256xbf16>, vector<256x256xbf16>, vector<16x256xf32> -> vector<16x256xf32>
    %199 = arith.addf %194, %198 : vector<16x256xf32>
    %c2_205 = arith.constant 2 : index
    %c0_206 = arith.constant 0 : index
    %200 = vector.load %arg15[%c2_205, %c0_206] : memref<40x256xbf16, #tpu.memory_space<vmem>>, vector<16x256xbf16>
    %c2_207 = arith.constant 2 : index
    %c0_208 = arith.constant 0 : index
    %c0_209 = arith.constant 0 : index
    %201 = vector.load %arg10[%c2_207, %c0_208, %c0_209] : memref<9x256x256xbf16, #tpu.memory_space<vmem>>, vector<1x256x256xbf16>
    %202 = vector.shape_cast %201 : vector<1x256x256xbf16> to vector<256x256xbf16>
    %cst_210 = arith.constant dense<0.000000e+00> : vector<16x256xf32>
    %203 = tpu.matmul %200, %202, %cst_210 {dimension_numbers = #tpu.dot_dimension_numbers<[1], [0], [0], [1], [0, 0, 1, 1], [], []>} : vector<16x256xbf16>, vector<256x256xbf16>, vector<16x256xf32> -> vector<16x256xf32>
    %204 = arith.addf %199, %203 : vector<16x256xf32>
    %c8_211 = arith.constant 8 : index
    %c0_212 = arith.constant 0 : index
    %205 = vector.load %arg15[%c8_211, %c0_212] : memref<40x256xbf16, #tpu.memory_space<vmem>>, vector<16x256xbf16>
    %c3_213 = arith.constant 3 : index
    %c0_214 = arith.constant 0 : index
    %c0_215 = arith.constant 0 : index
    %206 = vector.load %arg10[%c3_213, %c0_214, %c0_215] : memref<9x256x256xbf16, #tpu.memory_space<vmem>>, vector<1x256x256xbf16>
    %207 = vector.shape_cast %206 : vector<1x256x256xbf16> to vector<256x256xbf16>
    %cst_216 = arith.constant dense<0.000000e+00> : vector<16x256xf32>
    %208 = tpu.matmul %205, %207, %cst_216 {dimension_numbers = #tpu.dot_dimension_numbers<[1], [0], [0], [1], [0, 0, 1, 1], [], []>} : vector<16x256xbf16>, vector<256x256xbf16>, vector<16x256xf32> -> vector<16x256xf32>
    %209 = arith.addf %204, %208 : vector<16x256xf32>
    %c9_217 = arith.constant 9 : index
    %c0_218 = arith.constant 0 : index
    %210 = vector.load %arg15[%c9_217, %c0_218] : memref<40x256xbf16, #tpu.memory_space<vmem>>, vector<16x256xbf16>
    %c4_219 = arith.constant 4 : index
    %c0_220 = arith.constant 0 : index
    %c0_221 = arith.constant 0 : index
    %211 = vector.load %arg10[%c4_219, %c0_220, %c0_221] : memref<9x256x256xbf16, #tpu.memory_space<vmem>>, vector<1x256x256xbf16>
    %212 = vector.shape_cast %211 : vector<1x256x256xbf16> to vector<256x256xbf16>
    %cst_222 = arith.constant dense<0.000000e+00> : vector<16x256xf32>
    %213 = tpu.matmul %210, %212, %cst_222 {dimension_numbers = #tpu.dot_dimension_numbers<[1], [0], [0], [1], [0, 0, 1, 1], [], []>} : vector<16x256xbf16>, vector<256x256xbf16>, vector<16x256xf32> -> vector<16x256xf32>
    %214 = arith.addf %209, %213 : vector<16x256xf32>
    %c10_223 = arith.constant 10 : index
    %c0_224 = arith.constant 0 : index
    %215 = vector.load %arg15[%c10_223, %c0_224] : memref<40x256xbf16, #tpu.memory_space<vmem>>, vector<16x256xbf16>
    %c5_225 = arith.constant 5 : index
    %c0_226 = arith.constant 0 : index
    %c0_227 = arith.constant 0 : index
    %216 = vector.load %arg10[%c5_225, %c0_226, %c0_227] : memref<9x256x256xbf16, #tpu.memory_space<vmem>>, vector<1x256x256xbf16>
    %217 = vector.shape_cast %216 : vector<1x256x256xbf16> to vector<256x256xbf16>
    %cst_228 = arith.constant dense<0.000000e+00> : vector<16x256xf32>
    %218 = tpu.matmul %215, %217, %cst_228 {dimension_numbers = #tpu.dot_dimension_numbers<[1], [0], [0], [1], [0, 0, 1, 1], [], []>} : vector<16x256xbf16>, vector<256x256xbf16>, vector<16x256xf32> -> vector<16x256xf32>
    %219 = arith.addf %214, %218 : vector<16x256xf32>
    %c16_229 = arith.constant 16 : index
    %c0_230 = arith.constant 0 : index
    %220 = vector.load %arg15[%c16_229, %c0_230] : memref<40x256xbf16, #tpu.memory_space<vmem>>, vector<16x256xbf16>
    %c6_231 = arith.constant 6 : index
    %c0_232 = arith.constant 0 : index
    %c0_233 = arith.constant 0 : index
    %221 = vector.load %arg10[%c6_231, %c0_232, %c0_233] : memref<9x256x256xbf16, #tpu.memory_space<vmem>>, vector<1x256x256xbf16>
    %222 = vector.shape_cast %221 : vector<1x256x256xbf16> to vector<256x256xbf16>
    %cst_234 = arith.constant dense<0.000000e+00> : vector<16x256xf32>
    %223 = tpu.matmul %220, %222, %cst_234 {dimension_numbers = #tpu.dot_dimension_numbers<[1], [0], [0], [1], [0, 0, 1, 1], [], []>} : vector<16x256xbf16>, vector<256x256xbf16>, vector<16x256xf32> -> vector<16x256xf32>
    %224 = arith.addf %219, %223 : vector<16x256xf32>
    %c17_235 = arith.constant 17 : index
    %c0_236 = arith.constant 0 : index
    %225 = vector.load %arg15[%c17_235, %c0_236] : memref<40x256xbf16, #tpu.memory_space<vmem>>, vector<16x256xbf16>
    %c7_237 = arith.constant 7 : index
    %c0_238 = arith.constant 0 : index
    %c0_239 = arith.constant 0 : index
    %226 = vector.load %arg10[%c7_237, %c0_238, %c0_239] : memref<9x256x256xbf16, #tpu.memory_space<vmem>>, vector<1x256x256xbf16>
    %227 = vector.shape_cast %226 : vector<1x256x256xbf16> to vector<256x256xbf16>
    %cst_240 = arith.constant dense<0.000000e+00> : vector<16x256xf32>
    %228 = tpu.matmul %225, %227, %cst_240 {dimension_numbers = #tpu.dot_dimension_numbers<[1], [0], [0], [1], [0, 0, 1, 1], [], []>} : vector<16x256xbf16>, vector<256x256xbf16>, vector<16x256xf32> -> vector<16x256xf32>
    %229 = arith.addf %224, %228 : vector<16x256xf32>
    %c18_241 = arith.constant 18 : index
    %c0_242 = arith.constant 0 : index
    %230 = vector.load %arg15[%c18_241, %c0_242] : memref<40x256xbf16, #tpu.memory_space<vmem>>, vector<16x256xbf16>
    %c8_243 = arith.constant 8 : index
    %c0_244 = arith.constant 0 : index
    %c0_245 = arith.constant 0 : index
    %231 = vector.load %arg10[%c8_243, %c0_244, %c0_245] : memref<9x256x256xbf16, #tpu.memory_space<vmem>>, vector<1x256x256xbf16>
    %232 = vector.shape_cast %231 : vector<1x256x256xbf16> to vector<256x256xbf16>
    %cst_246 = arith.constant dense<0.000000e+00> : vector<16x256xf32>
    %233 = tpu.matmul %230, %232, %cst_246 {dimension_numbers = #tpu.dot_dimension_numbers<[1], [0], [0], [1], [0, 0, 1, 1], [], []>} : vector<16x256xbf16>, vector<256x256xbf16>, vector<16x256xf32> -> vector<16x256xf32>
    %234 = arith.addf %229, %233 : vector<16x256xf32>
    %c0_247 = arith.constant 0 : index
    %c0_248 = arith.constant 0 : index
    %235 = vector.load %arg11[%c0_247, %c0_248] : memref<1x256xf32, #tpu.memory_space<vmem>>, vector<1x256xf32>
    %236 = vector.broadcast %235 : vector<1x256xf32> to vector<16x256xf32>
    %237 = arith.addf %234, %236 : vector<16x256xf32>
    %c9_249 = arith.constant 9 : index
    %c0_250 = arith.constant 0 : index
    %238 = vector.load %arg16[%c9_249, %c0_250] : memref<40x256xbf16, #tpu.memory_space<vmem>>, vector<16x256xbf16>
    %239 = arith.extf %238 : vector<16x256xbf16> to vector<16x256xf32>
    %240 = arith.addf %237, %239 : vector<16x256xf32>
    %cst_251 = arith.constant 2.000000e-01 : f32
    %241 = vector.broadcast %cst_251 : f32 to vector<16x256xf32>
    %242 = arith.mulf %241, %240 : vector<16x256xf32>
    %243 = arith.maximumf %240, %242 : vector<16x256xf32>
    %c0_252 = arith.constant 0 : index
    %c0_253 = arith.constant 0 : index
    %244 = vector.load %arg2[%c0_252, %c0_253] : memref<16x1xf32, #tpu.memory_space<vmem>>, vector<16x1xf32>
    %245 = vector.broadcast %244 : vector<16x1xf32> to vector<16x256xf32>
    %246 = arith.mulf %243, %245 : vector<16x256xf32>
    %247 = arith.truncf %246 : vector<16x256xf32> to vector<16x256xbf16>
    %c9_254 = arith.constant 9 : index
    %c0_255 = arith.constant 0 : index
    %248 = vector.load %arg16[%c9_254, %c0_255] : memref<40x256xbf16, #tpu.memory_space<vmem>>, vector<16x256xbf16>
    tpu.vector_store %arg16[%c9_254, %c0_255], %247 {strides = array<i32>} : memref<40x256xbf16, #tpu.memory_space<vmem>>, vector<16x256xbf16>,
    %cst_256 = arith.constant 0.000000e+00 : f32
    %249 = vector.broadcast %cst_256 : f32 to vector<16x256xf32>
    %c0_257 = arith.constant 0 : index
    %c0_258 = arith.constant 0 : index
    %250 = vector.load %arg16[%c0_257, %c0_258] : memref<40x256xbf16, #tpu.memory_space<vmem>>, vector<16x256xbf16>
    %251 = arith.extf %250 : vector<16x256xbf16> to vector<16x256xf32>
    %c0_259 = arith.constant 0 : index
    %c0_260 = arith.constant 0 : index
    %c0_261 = arith.constant 0 : index
    %252 = vector.load %arg12[%c0_259, %c0_260, %c0_261] : memref<9x1x256xf32, #tpu.memory_space<vmem>>, vector<1x1x256xf32>
    %253 = vector.shape_cast %252 : vector<1x1x256xf32> to vector<1x256xf32>
    %254 = vector.broadcast %253 : vector<1x256xf32> to vector<16x256xf32>
    %255 = arith.mulf %251, %254 : vector<16x256xf32>
    %256 = arith.addf %249, %255 : vector<16x256xf32>
    %c1_262 = arith.constant 1 : index
    %c0_263 = arith.constant 0 : index
    %257 = vector.load %arg16[%c1_262, %c0_263] : memref<40x256xbf16, #tpu.memory_space<vmem>>, vector<16x256xbf16>
    %258 = arith.extf %257 : vector<16x256xbf16> to vector<16x256xf32>
    %c1_264 = arith.constant 1 : index
    %c0_265 = arith.constant 0 : index
    %c0_266 = arith.constant 0 : index
    %259 = vector.load %arg12[%c1_264, %c0_265, %c0_266] : memref<9x1x256xf32, #tpu.memory_space<vmem>>, vector<1x1x256xf32>
    %260 = vector.shape_cast %259 : vector<1x1x256xf32> to vector<1x256xf32>
    %261 = vector.broadcast %260 : vector<1x256xf32> to vector<16x256xf32>
    %262 = arith.mulf %258, %261 : vector<16x256xf32>
    %263 = arith.addf %256, %262 : vector<16x256xf32>
    %c2_267 = arith.constant 2 : index
    %c0_268 = arith.constant 0 : index
    %264 = vector.load %arg16[%c2_267, %c0_268] : memref<40x256xbf16, #tpu.memory_space<vmem>>, vector<16x256xbf16>
    %265 = arith.extf %264 : vector<16x256xbf16> to vector<16x256xf32>
    %c2_269 = arith.constant 2 : index
    %c0_270 = arith.constant 0 : index
    %c0_271 = arith.constant 0 : index
    %266 = vector.load %arg12[%c2_269, %c0_270, %c0_271] : memref<9x1x256xf32, #tpu.memory_space<vmem>>, vector<1x1x256xf32>
    %267 = vector.shape_cast %266 : vector<1x1x256xf32> to vector<1x256xf32>
    %268 = vector.broadcast %267 : vector<1x256xf32> to vector<16x256xf32>
    %269 = arith.mulf %265, %268 : vector<16x256xf32>
    %270 = arith.addf %263, %269 : vector<16x256xf32>
    %c8_272 = arith.constant 8 : index
    %c0_273 = arith.constant 0 : index
    %271 = vector.load %arg16[%c8_272, %c0_273] : memref<40x256xbf16, #tpu.memory_space<vmem>>, vector<16x256xbf16>
    %272 = arith.extf %271 : vector<16x256xbf16> to vector<16x256xf32>
    %c3_274 = arith.constant 3 : index
    %c0_275 = arith.constant 0 : index
    %c0_276 = arith.constant 0 : index
    %273 = vector.load %arg12[%c3_274, %c0_275, %c0_276] : memref<9x1x256xf32, #tpu.memory_space<vmem>>, vector<1x1x256xf32>
    %274 = vector.shape_cast %273 : vector<1x1x256xf32> to vector<1x256xf32>
    %275 = vector.broadcast %274 : vector<1x256xf32> to vector<16x256xf32>
    %276 = arith.mulf %272, %275 : vector<16x256xf32>
    %277 = arith.addf %270, %276 : vector<16x256xf32>
    %c9_277 = arith.constant 9 : index
    %c0_278 = arith.constant 0 : index
    %278 = vector.load %arg16[%c9_277, %c0_278] : memref<40x256xbf16, #tpu.memory_space<vmem>>, vector<16x256xbf16>
    %279 = arith.extf %278 : vector<16x256xbf16> to vector<16x256xf32>
    %c4_279 = arith.constant 4 : index
    %c0_280 = arith.constant 0 : index
    %c0_281 = arith.constant 0 : index
    %280 = vector.load %arg12[%c4_279, %c0_280, %c0_281] : memref<9x1x256xf32, #tpu.memory_space<vmem>>, vector<1x1x256xf32>
    %281 = vector.shape_cast %280 : vector<1x1x256xf32> to vector<1x256xf32>
    %282 = vector.broadcast %281 : vector<1x256xf32> to vector<16x256xf32>
    %283 = arith.mulf %279, %282 : vector<16x256xf32>
    %284 = arith.addf %277, %283 : vector<16x256xf32>
    %c10_282 = arith.constant 10 : index
    %c0_283 = arith.constant 0 : index
    %285 = vector.load %arg16[%c10_282, %c0_283] : memref<40x256xbf16, #tpu.memory_space<vmem>>, vector<16x256xbf16>
    %286 = arith.extf %285 : vector<16x256xbf16> to vector<16x256xf32>
    %c5_284 = arith.constant 5 : index
    %c0_285 = arith.constant 0 : index
    %c0_286 = arith.constant 0 : index
    %287 = vector.load %arg12[%c5_284, %c0_285, %c0_286] : memref<9x1x256xf32, #tpu.memory_space<vmem>>, vector<1x1x256xf32>
    %288 = vector.shape_cast %287 : vector<1x1x256xf32> to vector<1x256xf32>
    %289 = vector.broadcast %288 : vector<1x256xf32> to vector<16x256xf32>
    %290 = arith.mulf %286, %289 : vector<16x256xf32>
    %291 = arith.addf %284, %290 : vector<16x256xf32>
    %c16_287 = arith.constant 16 : index
    %c0_288 = arith.constant 0 : index
    %292 = vector.load %arg16[%c16_287, %c0_288] : memref<40x256xbf16, #tpu.memory_space<vmem>>, vector<16x256xbf16>
    %293 = arith.extf %292 : vector<16x256xbf16> to vector<16x256xf32>
    %c6_289 = arith.constant 6 : index
    %c0_290 = arith.constant 0 : index
    %c0_291 = arith.constant 0 : index
    %294 = vector.load %arg12[%c6_289, %c0_290, %c0_291] : memref<9x1x256xf32, #tpu.memory_space<vmem>>, vector<1x1x256xf32>
    %295 = vector.shape_cast %294 : vector<1x1x256xf32> to vector<1x256xf32>
    %296 = vector.broadcast %295 : vector<1x256xf32> to vector<16x256xf32>
    %297 = arith.mulf %293, %296 : vector<16x256xf32>
    %298 = arith.addf %291, %297 : vector<16x256xf32>
    %c17_292 = arith.constant 17 : index
    %c0_293 = arith.constant 0 : index
    %299 = vector.load %arg16[%c17_292, %c0_293] : memref<40x256xbf16, #tpu.memory_space<vmem>>, vector<16x256xbf16>
    %300 = arith.extf %299 : vector<16x256xbf16> to vector<16x256xf32>
    %c7_294 = arith.constant 7 : index
    %c0_295 = arith.constant 0 : index
    %c0_296 = arith.constant 0 : index
    %301 = vector.load %arg12[%c7_294, %c0_295, %c0_296] : memref<9x1x256xf32, #tpu.memory_space<vmem>>, vector<1x1x256xf32>
    %302 = vector.shape_cast %301 : vector<1x1x256xf32> to vector<1x256xf32>
    %303 = vector.broadcast %302 : vector<1x256xf32> to vector<16x256xf32>
    %304 = arith.mulf %300, %303 : vector<16x256xf32>
    %305 = arith.addf %298, %304 : vector<16x256xf32>
    %c18_297 = arith.constant 18 : index
    %c0_298 = arith.constant 0 : index
    %306 = vector.load %arg16[%c18_297, %c0_298] : memref<40x256xbf16, #tpu.memory_space<vmem>>, vector<16x256xbf16>
    %307 = arith.extf %306 : vector<16x256xbf16> to vector<16x256xf32>
    %c8_299 = arith.constant 8 : index
    %c0_300 = arith.constant 0 : index
    %c0_301 = arith.constant 0 : index
    %308 = vector.load %arg12[%c8_299, %c0_300, %c0_301] : memref<9x1x256xf32, #tpu.memory_space<vmem>>, vector<1x1x256xf32>
    %309 = vector.shape_cast %308 : vector<1x1x256xf32> to vector<1x256xf32>
    %310 = vector.broadcast %309 : vector<1x256xf32> to vector<16x256xf32>
    %311 = arith.mulf %307, %310 : vector<16x256xf32>
    %312 = arith.addf %305, %311 : vector<16x256xf32>
    %cst_302 = arith.constant dense<0.000000e+00> : vector<16xf32>
    %313 = vector.multi_reduction <add>, %312, %cst_302 [1] : vector<16x256xf32> to vector<16xf32>
    %314 = vector.shape_cast %313 : vector<16xf32> to vector<16x1xf32>
    %c0_303 = arith.constant 0 : index
    %c0_304 = arith.constant 0 : index
    %315 = vector.load %arg13[%c0_303, %c0_304] : memref<1x1xf32, #tpu.memory_space<vmem>>, vector<1x1xf32>
    %316 = vector.broadcast %315 : vector<1x1xf32> to vector<16x1xf32>
    %317 = arith.addf %314, %316 : vector<16x1xf32>
    %c0_305 = arith.constant 0 : index
    %c0_306 = arith.constant 0 : index
    %c0_307 = arith.constant 0 : index
    %318 = vector.load %arg14[%c0_305, %c0_306, %c0_307] : memref<1x16x1xf32, #tpu.memory_space<vmem>>, vector<1x16x1xf32>
    %319 = vector.shape_cast %318 : vector<1x16x1xf32> to vector<16x1xf32>
    %320 = vector.shape_cast %317 : vector<16x1xf32> to vector<1x16x1xf32>
    tpu.vector_store %arg14[%c0_305, %c0_306, %c0_307], %320 {strides = array<i32>} : memref<1x16x1xf32, #tpu.memory_space<vmem>>, vector<1x16x1xf32>,
    return
  }
  func.func @transform_0(%arg0: i32) -> (i32, i32, i32) {
    %c0_i32 = arith.constant 0 : i32
    %c0_i32_0 = arith.constant 0 : i32
    %c0_i32_1 = arith.constant 0 : i32
    return %arg0, %c0_i32, %c0_i32_0 : i32, i32, i32
  }
  func.func @transform_1(%arg0: i32) -> (i32, i32) {
    %c0_i32 = arith.constant 0 : i32
    %c0_i32_0 = arith.constant 0 : i32
    %c0_i32_1 = arith.constant 0 : i32
    return %c0_i32, %c0_i32_0 : i32, i32
  }
  func.func @transform_2(%arg0: i32) -> (i32, i32, i32) {
    %c0_i32 = arith.constant 0 : i32
    %c0_i32_0 = arith.constant 0 : i32
    %c0_i32_1 = arith.constant 0 : i32
    %c0_i32_2 = arith.constant 0 : i32
    return %c0_i32, %c0_i32_0, %c0_i32_1 : i32, i32, i32
  }
  func.func @transform_3(%arg0: i32) -> (i32, i32) {
    %c0_i32 = arith.constant 0 : i32
    %c0_i32_0 = arith.constant 0 : i32
    %c0_i32_1 = arith.constant 0 : i32
    return %c0_i32, %c0_i32_0 : i32, i32
  }
  func.func @transform_4(%arg0: i32) -> (i32, i32) {
    %c0_i32 = arith.constant 0 : i32
    %c0_i32_0 = arith.constant 0 : i32
    %c0_i32_1 = arith.constant 0 : i32
    return %c0_i32, %c0_i32_0 : i32, i32
  }
  func.func @transform_5(%arg0: i32) -> (i32, i32, i32) {
    %c0_i32 = arith.constant 0 : i32
    %c0_i32_0 = arith.constant 0 : i32
    %c0_i32_1 = arith.constant 0 : i32
    %c0_i32_2 = arith.constant 0 : i32
    return %c0_i32, %c0_i32_0, %c0_i32_1 : i32, i32, i32
  }
  func.func @transform_6(%arg0: i32) -> (i32, i32) {
    %c0_i32 = arith.constant 0 : i32
    %c0_i32_0 = arith.constant 0 : i32
    %c0_i32_1 = arith.constant 0 : i32
    return %c0_i32, %c0_i32_0 : i32, i32
  }
  func.func @transform_7(%arg0: i32) -> (i32, i32, i32) {
    %c0_i32 = arith.constant 0 : i32
    %c0_i32_0 = arith.constant 0 : i32
    %c0_i32_1 = arith.constant 0 : i32
    %c0_i32_2 = arith.constant 0 : i32
    return %c0_i32, %c0_i32_0, %c0_i32_1 : i32, i32, i32
  }
  func.func @transform_8(%arg0: i32) -> (i32, i32) {
    %c0_i32 = arith.constant 0 : i32
    %c0_i32_0 = arith.constant 0 : i32
    %c0_i32_1 = arith.constant 0 : i32
    return %c0_i32, %c0_i32_0 : i32, i32
  }
  func.func @transform_9(%arg0: i32) -> (i32, i32, i32) {
    %c0_i32 = arith.constant 0 : i32
    %c0_i32_0 = arith.constant 0 : i32
    %c0_i32_1 = arith.constant 0 : i32
    %c0_i32_2 = arith.constant 0 : i32
    return %c0_i32, %c0_i32_0, %c0_i32_1 : i32, i32, i32
  }
  func.func @transform_10(%arg0: i32) -> (i32, i32) {
    %c0_i32 = arith.constant 0 : i32
    %c0_i32_0 = arith.constant 0 : i32
    %c0_i32_1 = arith.constant 0 : i32
    return %c0_i32, %c0_i32_0 : i32, i32
  }
  func.func @transform_11(%arg0: i32) -> (i32, i32, i32) {
    %c0_i32 = arith.constant 0 : i32
    %c0_i32_0 = arith.constant 0 : i32
    %c0_i32_1 = arith.constant 0 : i32
    %c0_i32_2 = arith.constant 0 : i32
    return %c0_i32, %c0_i32_0, %c0_i32_1 : i32, i32, i32
  }
  func.func @transform_12(%arg0: i32) -> (i32, i32) {
    %c0_i32 = arith.constant 0 : i32
    %c0_i32_0 = arith.constant 0 : i32
    %c0_i32_1 = arith.constant 0 : i32
    return %c0_i32, %c0_i32_0 : i32, i32
  }
  func.func @transform_13(%arg0: i32) -> (i32, i32, i32) {
    %c0_i32 = arith.constant 0 : i32
    %c0_i32_0 = arith.constant 0 : i32
    %c0_i32_1 = arith.constant 0 : i32
    return %arg0, %c0_i32, %c0_i32_0 : i32, i32, i32
  }
}

</mosaic_0001>

<llo_original>
// kernel: discriminator_forward.4
$region0: #{discriminator_forward.4}
  #allocation0 [shape = 'u32[]', space=smem, size = 0x4, offset = 0x4, fixed_abs, tag = 'smem constant byte address 0x4 - core index']
  #allocation1 [shape = 'u32[144,128]{1,0:T(1,128)}', space=vmem, size = 0x12000, scoped, tag = 'internal scratch']
  %s0 = inlined_call_operand.hbm [shape: bf16[128,128], index: 0, kind: input, shape index: {}]
  %s1 = inlined_call_operand.hbm [shape: bf16[128,128], index: 1, kind: input, shape index: {}]
  %s2 = inlined_call_operand.hbm [shape: f32[1,128], index: 2, kind: input, shape index: {}]
  %s3 = inlined_call_operand.hbm [shape: bf16[128,128], index: 3, kind: output, shape index: {}]
  %s4 = sld [smem:[#allocation0]]
  $region57: #{discriminator_forward.4} parent=0
    _
  %s6 = ssub.s32 1, %s4
  %s7 = scalar_select 0, %s6, %s4
  $region1: #{discriminator_forward.4} parent=0
    #allocation2 [shape = 'u8[32768]{0}', space=vmem, size = 0x8000, scoped, tag = 'input window, operand 0']
    #allocation3 [shape = 's32[2]{0}', space=sflag, size = 0x8, scoped, tag = 'scoped memory for discriminator_forward.4']
    #allocation4 [shape = 's32[2]{0}', space=sflag, size = 0x8, scoped, tag = 'scoped memory for discriminator_forward.4']
    #allocation5 [shape = 'u8[32768]{0}', space=vmem, size = 0x8000, scoped, tag = 'input window, operand 1, single buffered']
    #allocation6 [shape = 's32[1]{0}', space=sflag, size = 0x4, scoped, tag = 'scoped memory for discriminator_forward.4']
    #allocation7 [shape = 'u8[512]{0}', space=vmem, size = 0x400, scoped, tag = 'input window, operand 2, single buffered']
    #allocation8 [shape = 'u8[32768]{0}', space=vmem, size = 0x8000, scoped, tag = 'output window, operand 0']
    %8 = vsyncpa [#allocation3], 0
    %s9 = scalar_lea.sflag [#allocation3], 1
    %10 = vsyncpa %s9, 0
    %11 = vsyncpa [#allocation6], 0
    %12 = vsyncpa [#allocation4], 0
    %s13 = scalar_lea.sflag [#allocation4], 1
    %14 = vsyncpa %s13, 0
    loop: start=0, step=1, limit=4
    $region2: #{discriminator_forward.4} parent=1 // loop_pre_header
      _
    $region3: #{discriminator_forward.4} parent=1 // loop_header
      %s16 = sphi 0, %s20
      %p17 = scmp.ge.s32.totalorder %s16, 4
      %s23 = sphi 0, %s35
      %s24 = sphi 0, %s31
      %s25 = sphi 0, %s23
      %s26 = sphi 0, %s24
      %s27 = sphi 0, %s25
      %s28 = sphi 0, %s26
      %s38 = sphi 0, %s40
      %s41 = sphi 0, %s38
      %s42 = sphi 0, %s41
      %s58 = sphi 0, %s42
      %s64 = sphi 0, %s66
      %s67 = sphi 0, %s64
      %s68 = sphi 0, %s67
      %s84 = sphi 0, %s68
      %s90 = sphi 0, %s92
      %s93 = sphi 0, %s90
      %s94 = sphi 0, %s93
      %s110 = sphi 0, %s94
      %s118 = sphi 0, %s120
      %s121 = sphi 0, %s118
      %s122 = sphi 0, %s121
      %s138 = sphi 0, %s122
    $region4: #{discriminator_forward.4} parent=1 // loop_header_branch
      %19 = sbr.rel (%p17) target = $region8
    $region5: #{discriminator_forward.4} parent=1 // loop_body
      %s21 = ssub.s32 %s16, 1
      %s22 = ssub.s32 %s16, 2
      %s29 = sadd.s32 1, %s24
      %p30 = scmp.ge.s32.totalorder %s29, 1
      %s31 = scalar_select %p30, 0, %s29
      %s32 = sadd.s32 1, %s23
      %s33 = scalar_select %p30, %s32, %s23
      %p34 = scmp.ge.s32.totalorder %s33, 2
      %s35 = scalar_select %p34, 0, %s33
      %s36 = ssub.s32 %s23, %s35
      %p37 = scmp.eq.s32.totalorder %s36, 0
      %s39 = sadd.s32 %s38, 1
      %s40 = scalar_select %p37, %s38, %s39
      %p43 = pneg %p37
      %p44 = scmp.eq.s32.totalorder %s16, 1
      %p45 = por %p43, %p44
      %p46 = scmp.ne.s32.totalorder %s38, %s41
      %p47 = scmp.eq.s32.totalorder %s16, 0
      %p48 = por %p46, %p47
      %p49 = scmp.ne.s32.totalorder %s38, %s41
      %p50 = scmp.eq.s32.totalorder %s21, 1
      %p51 = por %p49, %p50
      %p52 = scmp.ne.s32.totalorder %s41, %s42
      %p53 = scmp.eq.s32.totalorder %s21, 0
      %p54 = por %p52, %p53
      %p55 = scmp.ne.s32.totalorder %s41, %s42
      %p56 = scmp.eq.s32.totalorder %s22, 1
      %p57 = por %p55, %p56
      %p59 = scmp.ne.s32.totalorder %s42, %s58
      %p60 = scmp.eq.s32.totalorder %s22, 0
      %p61 = por %p59, %p60
      %s62 = ssub.s32 %s24, %s31
      %p63 = scmp.eq.s32.totalorder %s62, 0
      %s65 = sadd.s32 %s64, 1
      %s66 = scalar_select %p63, %s64, %s65
      %p69 = pneg %p63
      %p70 = scmp.eq.s32.totalorder %s16, 1
      %p71 = por %p69, %p70
      %p72 = scmp.ne.s32.totalorder %s64, %s67
      %p73 = scmp.eq.s32.totalorder %s16, 0
      %p74 = por %p72, %p73
      %p75 = scmp.ne.s32.totalorder %s64, %s67
      %p76 = scmp.eq.s32.totalorder %s21, 1
      %p77 = por %p75, %p76
      %p78 = scmp.ne.s32.totalorder %s67, %s68
      %p79 = scmp.eq.s32.totalorder %s21, 0
      %p80 = por %p78, %p79
      %p81 = scmp.ne.s32.totalorder %s67, %s68
      %p82 = scmp.eq.s32.totalorder %s22, 1
      %p83 = por %p81, %p82
      %p85 = scmp.ne.s32.totalorder %s68, %s84
      %p86 = scmp.eq.s32.totalorder %s22, 0
      %p87 = por %p85, %p86
      %s88 = ssub.s32 %s24, %s31
      %p89 = scmp.eq.s32.totalorder %s88, 0
      %s91 = sadd.s32 %s90, 1
      %s92 = scalar_select %p89, %s90, %s91
      %p95 = pneg %p89
      %p96 = scmp.eq.s32.totalorder %s16, 1
      %p97 = por %p95, %p96
      %p98 = scmp.ne.s32.totalorder %s90, %s93
      %p99 = scmp.eq.s32.totalorder %s16, 0
      %p100 = por %p98, %p99
      %p101 = scmp.ne.s32.totalorder %s90, %s93
      %p102 = scmp.eq.s32.totalorder %s21, 1
      %p103 = por %p101, %p102
      %p104 = scmp.ne.s32.totalorder %s93, %s94
      %p105 = scmp.eq.s32.totalorder %s21, 0
      %p106 = por %p104, %p105
      %p107 = scmp.ne.s32.totalorder %s93, %s94
      %p108 = scmp.eq.s32.totalorder %s22, 1
      %p109 = por %p107, %p108
      %p111 = scmp.ne.s32.totalorder %s94, %s110
      %p112 = scmp.eq.s32.totalorder %s22, 0
      %p113 = por %p111, %p112
      %s114 = ssub.s32 %s23, %s35
      %s115 = ssub.s32 %s24, %s31
      %s116 = sor.u32 %s114, %s115
      %p117 = scmp.eq.s32.totalorder %s116, 0
      %s119 = sadd.s32 %s118, 1
      %s120 = scalar_select %p117, %s118, %s119
      %p123 = pneg %p117
      %p124 = scmp.eq.s32.totalorder %s16, 1
      %p125 = por %p123, %p124
      %p126 = scmp.ne.s32.totalorder %s118, %s121
      %p127 = scmp.eq.s32.totalorder %s16, 0
      %p128 = por %p126, %p127
      %p129 = scmp.ne.s32.totalorder %s118, %s121
      %p130 = scmp.eq.s32.totalorder %s21, 1
      %p131 = por %p129, %p130
      %p132 = scmp.ne.s32.totalorder %s121, %s122
      %p133 = scmp.eq.s32.totalorder %s21, 0
      %p134 = por %p132, %p133
      %p135 = scmp.ne.s32.totalorder %s121, %s122
      %p136 = scmp.eq.s32.totalorder %s22, 1
      %p137 = por %p135, %p136
      %p139 = scmp.ne.s32.totalorder %s122, %s138
      %p140 = scmp.eq.s32.totalorder %s22, 0
      %p141 = por %p139, %p140
      %p142 = scmp.le.s32.totalorder 1, %s16
      %p143 = scmp.lt.s32.totalorder %s16, 3
      %p144 = pnand %p142, %p143
      %p145 = pneg %p144
      // Predicated region
      $region9: #{discriminator_forward.4} parent=5 // pred_check
        _
      $region10: #{discriminator_forward.4} parent=5 // pred_check_branch
        %147 = sbr.rel (%p144) target = $region12
      $region11: #{discriminator_forward.4} parent=5 // pred_region
        %s148 = ssub.s32 %s16, 1
        // Predicated region
        $region13: #{discriminator_forward.4} parent=11 // pred_check
          %p149 = pneg %p80
        $region14: #{discriminator_forward.4} parent=11 // pred_check_branch
          %151 = sbr.rel (%p149) target = $region16
        $region15: #{discriminator_forward.4} parent=11 // pred_region
          %s153 = ssub.s32 1024, 1024
          %154 = vsyncadd [#allocation6], %s153
          %s155 = smul.addr %s26, 64
          %s156 = scalar_lea.hbm %s1, %s155
          %s157 = sshll.u32 [#allocation5], 4
          %s158 = int_to_ptr.vmem [resolvable:$true] %s157
          %163 = dma.hbm_to_vmem [thread:$0]  %s156, 1024, %s158, [#allocation6], 64, 64, 4
        $region16: #{discriminator_forward.4} parent=11 // pred_fallthru
          _
        // Predicated region
        $region17: #{discriminator_forward.4} parent=11 // pred_check
          %p164 = pneg %p106
        $region18: #{discriminator_forward.4} parent=11 // pred_check_branch
          %166 = sbr.rel (%p164) target = $region20
        $region19: #{discriminator_forward.4} parent=11 // pred_region
          %s168 = ssub.s32 16, 16
          %169 = vsyncadd [#allocation6], %s168
          %s170 = smul.addr %s26, 16
          %s171 = scalar_lea.hbm %s2, %s170
          %s173 = sshll.u32 [#allocation7], 4
          %s174 = int_to_ptr.vmem [resolvable:$true] %s173
          %176 = dma.hbm_to_vmem [thread:$0]  %s171, 16, %s174, [#allocation6]
        $region20: #{discriminator_forward.4} parent=11 // pred_fallthru
          _
      $region12: #{discriminator_forward.4} parent=5 // pred_fallthru
        _
      %p177 = scmp.lt.s32.totalorder %s16, 2
      // Predicated region
      $region21: #{discriminator_forward.4} parent=5 // pred_check
        %p178 = pneg %p177
      $region22: #{discriminator_forward.4} parent=5 // pred_check_branch
        %180 = sbr.rel (%p178) target = $region24
      $region23: #{discriminator_forward.4} parent=5 // pred_region
        // Predicated region
        $region25: #{discriminator_forward.4} parent=23 // pred_check
          %p181 = pneg %p48
        $region26: #{discriminator_forward.4} parent=23 // pred_check_branch
          %183 = sbr.rel (%p181) target = $region28
        $region27: #{discriminator_forward.4} parent=23 // pred_region
          %s184 = sand.u32 %s38, 1
          %s185 = scalar_lea.sflag [#allocation3], %s184
          %s186 = sand.u32 %s38, 1
          %s187 = smul.addr %s186, 32
          %s188 = scalar_lea.vmem [#allocation2], %s187
          %s189 = smul.u32 8, %s23
          %s191 = ssub.s32 512, 512
          %192 = vsyncadd %s185, %s191
          %s193 = smul.addr %s189, 64
          %s194 = scalar_lea.hbm %s0, %s193
          %s195 = sshll.u32 %s188, 4
          %s196 = int_to_ptr.vmem [resolvable:$true] %s195
          %201 = dma.hbm_to_vmem [thread:$0]  %s194, 512, %s196, %s185, 64, 64, 4
        $region28: #{discriminator_forward.4} parent=23 // pred_fallthru
          _
      $region24: #{discriminator_forward.4} parent=5 // pred_fallthru
        _
      %p202 = scmp.le.s32.totalorder 1, %s16
      %p203 = scmp.lt.s32.totalorder %s16, 3
      %p204 = pnand %p202, %p203
      %p205 = pneg %p204
      // Predicated region
      $region29: #{discriminator_forward.4} parent=5 // pred_check
        _
      $region30: #{discriminator_forward.4} parent=5 // pred_check_branch
        %207 = sbr.rel (%p204) target = $region32
      $region31: #{discriminator_forward.4} parent=5 // pred_region
        %s208 = ssub.s32 %s16, 1
        %s209 = sand.u32 %s41, 1
        %s210 = scalar_lea.sflag [#allocation3], %s209
        %s211 = sand.u32 %s41, 1
        %s212 = smul.addr %s211, 32
        %s213 = scalar_lea.vmem [#allocation2], %s212
        // Predicated region
        $region33: #{discriminator_forward.4} parent=31 // pred_check
          %p214 = pneg %p54
        $region34: #{discriminator_forward.4} parent=31 // pred_check_branch
          %216 = sbr.rel (%p214) target = $region36
        $region35: #{discriminator_forward.4} parent=31 // pred_region
          %217 = dma.done %s210, 512
        $region36: #{discriminator_forward.4} parent=31 // pred_fallthru
          _
        // Predicated region
        $region37: #{discriminator_forward.4} parent=31 // pred_check
          %p218 = pneg %p80
        $region38: #{discriminator_forward.4} parent=31 // pred_check_branch
          %220 = sbr.rel (%p218) target = $region40
        $region39: #{discriminator_forward.4} parent=31 // pred_region
          %221 = dma.done [#allocation6], 1024
        $region40: #{discriminator_forward.4} parent=31 // pred_fallthru
          _
        // Predicated region
        $region41: #{discriminator_forward.4} parent=31 // pred_check
          %p222 = pneg %p106
        $region42: #{discriminator_forward.4} parent=31 // pred_check_branch
          %224 = sbr.rel (%p222) target = $region44
        $region43: #{discriminator_forward.4} parent=31 // pred_region
          %225 = dma.done [#allocation6], 16
        $region44: #{discriminator_forward.4} parent=31 // pred_fallthru
          _
        %s226 = sand.u32 %s41, 1
        %s227 = scalar_lea.sflag [#allocation3], %s226
        %s228 = sand.u32 %s41, 1
        %s229 = smul.addr %s228, 32
        %s230 = scalar_lea.vmem [#allocation2], %s229
        %p231 = pneg %p54
        %p232 = pneg %p51
        %p233 = pneg %p80
        %p234 = pneg %p77
        %p235 = pneg %p106
        %p236 = pneg %p103
        %p237 = pneg %p134
        %p238 = pneg %p131
        %s239 = sand.u32 %s121, 1
        %s240 = scalar_lea.sflag [#allocation4], %s239
        %s241 = sand.u32 %s121, 1
        %s242 = smul.addr %s241, 32
        %s243 = scalar_lea.vmem [#allocation8], %s242
        %s244 = smul.u32 8, %s25
        %s245 = smul.u32 8, %s25
        %v247 = vld [vmem:[%s213] sm:$0xf]
        %v248 = vld [vmem:[%s213 + $0x4] sm:$0xf]
        %v249 = vld [vmem:[%s213 + $0x8] sm:$0xf]
        %v250 = vld [vmem:[%s213 + $0xc] sm:$0xf]
        %v251 = vld [vmem:[%s213 + $0x10] sm:$0xf]
        %v252 = vld [vmem:[%s213 + $0x14] sm:$0xf]
        %v253 = vld [vmem:[%s213 + $0x18] sm:$0xf]
        %v254 = vld [vmem:[%s213 + $0x1c] sm:$0xf]
        %v255 = vld [vmem:[#allocation5] sm:$0xf]
        %v256 = vld [vmem:[#allocation5 + $0x4] sm:$0xf]
        %v257 = vld [vmem:[#allocation5 + $0x8] sm:$0xf]
        %v258 = vld [vmem:[#allocation5 + $0xc] sm:$0xf]
        %v259 = vld [vmem:[#allocation5 + $0x10] sm:$0xf]
        %v260 = vld [vmem:[#allocation5 + $0x14] sm:$0xf]
        %v261 = vld [vmem:[#allocation5 + $0x18] sm:$0xf]
        %v262 = vld [vmem:[#allocation5 + $0x1c] sm:$0xf]
        %v263 = vld [vmem:[#allocation5 + $0x20] sm:$0xf]
        %v264 = vld [vmem:[#allocation5 + $0x24] sm:$0xf]
        %v265 = vld [vmem:[#allocation5 + $0x28] sm:$0xf]
        %v266 = vld [vmem:[#allocation5 + $0x2c] sm:$0xf]
        %v267 = vld [vmem:[#allocation5 + $0x30] sm:$0xf]
        %v268 = vld [vmem:[#allocation5 + $0x34] sm:$0xf]
        %v269 = vld [vmem:[#allocation5 + $0x38] sm:$0xf]
        %v270 = vld [vmem:[#allocation5 + $0x3c] sm:$0xf]
        %v271 = vld [vmem:[#allocation7] sm:$0x1]
        %v273 = vlaneseq
        %v274 = vshrl.u32 %v273, 7
        %v275 = vsub.s32 0, %v274
        %v276 = vrot.slane %v271, %v275
        %v286 = vunpack.c.l.b16 %v247
        %v287 = vunpack.c.l.b16 %v248
        %v288 = vunpack.c.l.b16 %v249
        %v289 = vunpack.c.l.b16 %v250
        %v290 = vunpack.c.l.b16 %v251
        %v291 = vunpack.c.l.b16 %v252
        %v292 = vunpack.c.l.b16 %v253
        %v293 = vunpack.c.l.b16 %v254
        %v294 = vpack.c.b16 %v287, %v286
        %v295 = vpack.c.b16 %v289, %v288
        %v296 = vpack.c.b16 %v291, %v290
        %v297 = vpack.c.b16 %v293, %v292
        %v318 = vunpack.c.l.b16 %v255
        %v319 = vunpack.c.l.b16 %v256
        %v320 = vunpack.c.l.b16 %v257
        %v321 = vunpack.c.l.b16 %v258
        %v322 = vunpack.c.l.b16 %v259
        %v323 = vunpack.c.l.b16 %v260
        %v324 = vunpack.c.l.b16 %v261
        %v325 = vunpack.c.l.b16 %v262
        %v326 = vunpack.c.l.b16 %v263
        %v327 = vunpack.c.l.b16 %v264
        %v328 = vunpack.c.l.b16 %v265
        %v329 = vunpack.c.l.b16 %v266
        %v330 = vunpack.c.l.b16 %v267
        %v331 = vunpack.c.l.b16 %v268
        %v332 = vunpack.c.l.b16 %v269
        %v333 = vunpack.c.l.b16 %v270
        %v334 = vpack.c.b16 %v319, %v318
        %v335 = vpack.c.b16 %v321, %v320
        %v336 = vpack.c.b16 %v323, %v322
        %v337 = vpack.c.b16 %v325, %v324
        %v338 = vpack.c.b16 %v327, %v326
        %v339 = vpack.c.b16 %v329, %v328
        %v340 = vpack.c.b16 %v331, %v330
        %v341 = vpack.c.b16 %v333, %v332
        %350 = vmatprep.subr.bf16.mxu0 0
        %351 = vmatpush1.bf16.msra.mxu0 %v334
        %352 = vmatprep.subr.bf16.mxu0 0
        %353 = vmatpush1.bf16.msra.mxu0 %v335
        %354 = vmatprep.subr.bf16.mxu0 0
        %355 = vmatpush1.bf16.msra.mxu0 %v336
        %356 = vmatprep.subr.bf16.mxu0 0
        %357 = vmatpush1.bf16.msra.mxu0 %v337
        %358 = vmatprep.subr.bf16.mxu0 0
        %359 = vmatpush1.bf16.msra.mxu0 %v338
        %360 = vmatprep.subr.bf16.mxu0 0
        %361 = vmatpush1.bf16.msra.mxu0 %v339
        %362 = vmatprep.subr.bf16.mxu0 0
        %363 = vmatpush1.bf16.msra.mxu0 %v340
        %364 = vmatprep.subr.bf16.mxu0 0
        %365 = vmatpush1.bf16.msra.mxu0 %v341
        %366 = vmatprep.subr.bf16.mxu0 0
        %367 = vmatpush1.bf16.msra.mxu0 0
        %368 = vmatprep.subr.bf16.mxu0 0
        %369 = vmatpush1.bf16.msra.mxu0 0
        %370 = vmatprep.subr.bf16.mxu0 0
        %371 = vmatpush1.bf16.msra.mxu0 0
        %372 = vmatprep.subr.bf16.mxu0 0
        %373 = vmatpush1.bf16.msra.mxu0 0
        %374 = vmatprep.subr.bf16.mxu0 0
        %375 = vmatpush1.bf16.msra.mxu0 0
        %376 = vmatprep.subr.bf16.mxu0 0
        %377 = vmatpush1.bf16.msra.mxu0 0
        %378 = vmatprep.subr.bf16.mxu0 0
        %379 = vmatpush1.bf16.msra.mxu0 0
        %380 = vmatprep.subr.bf16.mxu0 0
        %381 = vmatpush1.bf16.msra.mxu0 0
        %382 = vmatprep.mubr.bf16.mxu0 0
        %383 = vmatmul.mubr.bf16.gmra.mrb[0].mxu0 %v294
        %v384 = vpop.f32.mrb[0].mxu0
        %v385 = vadd.f32 %v276, %v384
        %v386 = vpop.f32.mrb[0].mxu0
        %v387 = vpop.f32.mrb[0].mxu0
        %v388 = vadd.f32 %v276, %v387
        %v389 = vpop.f32.mrb[0].mxu0
        %390 = vmatprep.mubr.bf16.mxu0 0
        %391 = vmatmul.mubr.bf16.gmra.mrb[0].mxu0 %v295
        %v392 = vpop.f32.mrb[0].mxu0
        %v393 = vadd.f32 %v276, %v392
        %v394 = vpop.f32.mrb[0].mxu0
        %v395 = vpop.f32.mrb[0].mxu0
        %v396 = vadd.f32 %v276, %v395
        %v397 = vpop.f32.mrb[0].mxu0
        %398 = vmatprep.mubr.bf16.mxu0 0
        %399 = vmatmul.mubr.bf16.gmra.mrb[0].mxu0 %v296
        %v400 = vpop.f32.mrb[0].mxu0
        %v401 = vadd.f32 %v276, %v400
        %v402 = vpop.f32.mrb[0].mxu0
        %v403 = vpop.f32.mrb[0].mxu0
        %v404 = vadd.f32 %v276, %v403
        %v405 = vpop.f32.mrb[0].mxu0
        %406 = vmatprep.mubr.bf16.mxu0 0
        %407 = vmatmul.mubr.bf16.gmra.mrb[0].mxu0 %v297
        %v408 = vpop.f32.mrb[0].mxu0
        %v409 = vadd.f32 %v276, %v408
        %v410 = vpop.f32.mrb[0].mxu0
        %v411 = vpop.f32.mrb[0].mxu0
        %v412 = vadd.f32 %v276, %v411
        %v413 = vpop.f32.mrb[0].mxu0
        %414 = vdwg.mxu0
        %v415 = vmul.f32 %v385, 0.2
        %v416 = vmul.f32 %v388, 0.2
        %v417 = vmul.f32 %v393, 0.2
        %v418 = vmul.f32 %v396, 0.2
        %v419 = vmul.f32 %v401, 0.2
        %v420 = vmul.f32 %v404, 0.2
        %v421 = vmul.f32 %v409, 0.2
        %v422 = vmul.f32 %v412, 0.2
        %v423 = vmax.f32 %v385, %v415
        %v424 = vmax.f32 %v388, %v416
        %v425 = vmax.f32 %v393, %v417
        %v426 = vmax.f32 %v396, %v418
        %v427 = vmax.f32 %v401, %v419
        %v428 = vmax.f32 %v404, %v420
        %v429 = vmax.f32 %v409, %v421
        %v430 = vmax.f32 %v412, %v422
        %v431 = vpack.c.bf16 %v424, %v423
        %v432 = vpack.c.bf16 %v426, %v425
        %v433 = vpack.c.bf16 %v428, %v427
        %v434 = vpack.c.bf16 %v430, %v429
        %v439 = vunpack.c.l.b16 %v431
        %v440 = vunpack.c.h.b16 %v431
        %v441 = vunpack.c.l.b16 %v432
        %v442 = vunpack.c.h.b16 %v432
        %v443 = vunpack.c.l.b16 %v433
        %v444 = vunpack.c.h.b16 %v433
        %v445 = vunpack.c.l.b16 %v434
        %v446 = vunpack.c.h.b16 %v434
        %v447 = vpack.c.b16 %v439, %v439
        %v448 = vpack.c.b16 %v440, %v440
        %v449 = vpack.c.b16 %v441, %v441
        %v450 = vpack.c.b16 %v442, %v442
        %v451 = vpack.c.b16 %v443, %v443
        %v452 = vpack.c.b16 %v444, %v444
        %v453 = vpack.c.b16 %v445, %v445
        %v454 = vpack.c.b16 %v446, %v446
        %463 = vst [vmem:[%s243] sm:$0xf] %v447
        %464 = vst [vmem:[%s243 + $0x4] sm:$0xf] %v448
        %465 = vst [vmem:[%s243 + $0x8] sm:$0xf] %v449
        %466 = vst [vmem:[%s243 + $0xc] sm:$0xf] %v450
        %467 = vst [vmem:[%s243 + $0x10] sm:$0xf] %v451
        %468 = vst [vmem:[%s243 + $0x14] sm:$0xf] %v452
        %469 = vst [vmem:[%s243 + $0x18] sm:$0xf] %v453
        %470 = vst [vmem:[%s243 + $0x1c] sm:$0xf] %v454
        %s471 = sand.u32 %s121, 1
        %s472 = scalar_lea.sflag [#allocation4], %s471
        %s473 = sand.u32 %s121, 1
        %s474 = smul.addr %s473, 32
        %s475 = scalar_lea.vmem [#allocation8], %s474
        // Predicated region
        $region45: #{discriminator_forward.4} parent=31 // pred_check
          %p476 = pneg %p131
        $region46: #{discriminator_forward.4} parent=31 // pred_check_branch
          %478 = sbr.rel (%p476) target = $region48
        $region47: #{discriminator_forward.4} parent=31 // pred_region
          %s479 = smul.u32 8, %s25
          %s481 = ssub.s32 512, 512
          %482 = vsyncadd %s472, %s481
          %s483 = sadd.s32 %s26, %s479
          %s484 = smul.addr %s483, 64
          %s485 = scalar_lea.hbm %s3, %s484
          %s486 = sshll.u32 %s475, 4
          %s487 = int_to_ptr.vmem [resolvable:$true] %s486
          %492 = dma.vmem_to_hbm [thread:$0]  %s487, 512, %s485, %s472, 64, 64, 4
        $region48: #{discriminator_forward.4} parent=31 // pred_fallthru
          _
      $region32: #{discriminator_forward.4} parent=5 // pred_fallthru
        _
      %p493 = scmp.le.s32.totalorder 2, %s16
      // Predicated region
      $region49: #{discriminator_forward.4} parent=5 // pred_check
        %p494 = pneg %p493
      $region50: #{discriminator_forward.4} parent=5 // pred_check_branch
        %496 = sbr.rel (%p494) target = $region52
      $region51: #{discriminator_forward.4} parent=5 // pred_region
        %s497 = ssub.s32 %s16, 2
        // Predicated region
        $region53: #{discriminator_forward.4} parent=51 // pred_check
          %p498 = pneg %p137
        $region54: #{discriminator_forward.4} parent=51 // pred_check_branch
          %500 = sbr.rel (%p498) target = $region56
        $region55: #{discriminator_forward.4} parent=51 // pred_region
          %s501 = sand.u32 %s122, 1
          %s502 = scalar_lea.sflag [#allocation4], %s501
          %s503 = sand.u32 %s122, 1
          %s504 = smul.addr %s503, 32
          %s505 = scalar_lea.vmem [#allocation8], %s504
          %506 = dma.done %s502, 512
        $region56: #{discriminator_forward.4} parent=51 // pred_fallthru
          _
      $region52: #{discriminator_forward.4} parent=5 // pred_fallthru
        _
    $region6: #{discriminator_forward.4} parent=1 // loop_footer
      %s20 = sadd.s32 1, %s16
    $region7: #{discriminator_forward.4} parent=1 // loop_footer_branch
      %15 = sbr.rel target = $region3
    $region8: #{discriminator_forward.4} parent=1 // loop_exit
      _
    %507 = vsyncpa [#allocation3], 1
    %s508 = scalar_lea.sflag [#allocation3], 1
    %509 = vsyncpa %s508, 1
    %510 = vsyncpa [#allocation6], 1
    %511 = vsyncpa [#allocation4], 1
    %s512 = scalar_lea.sflag [#allocation4], 1
    %513 = vsyncpa %s512, 1

// kernel: discriminator_forward.5
$region0: #{discriminator_forward.5}
  #allocation0 [shape = 'u32[]', space=smem, size = 0x4, offset = 0x4, fixed_abs, tag = 'smem constant byte address 0x4 - core index']
  #allocation1 [shape = 'u32[144,128]{1,0:T(1,128)}', space=vmem, size = 0x12000, scoped, tag = 'internal scratch']
  %s0 = inlined_call_operand.hbm [shape: bf16[32,384], index: 0, kind: input, shape index: {}]
  %s1 = inlined_call_operand.hbm [shape: bf16[384,128], index: 1, kind: input, shape index: {}]
  %s2 = inlined_call_operand.hbm [shape: f32[1,128], index: 2, kind: input, shape index: {}]
  %s3 = inlined_call_operand.hbm [shape: bf16[32,128], index: 3, kind: output, shape index: {}]
  %s4 = sld [smem:[#allocation0]]
  $region57: #{discriminator_forward.5} parent=0
    _
  %s6 = ssub.s32 1, %s4
  %s7 = scalar_select 0, %s6, %s4
  $region1: #{discriminator_forward.5} parent=0
    #allocation2 [shape = 'u8[24576]{0}', space=vmem, size = 0x6000, scoped, tag = 'input window, operand 0']
    #allocation3 [shape = 's32[2]{0}', space=sflag, size = 0x8, scoped, tag = 'scoped memory for discriminator_forward.5']
    #allocation4 [shape = 's32[2]{0}', space=sflag, size = 0x8, scoped, tag = 'scoped memory for discriminator_forward.5']
    #allocation5 [shape = 'u8[98304]{0}', space=vmem, size = 0x18000, scoped, tag = 'input window, operand 1, single buffered']
    #allocation6 [shape = 's32[1]{0}', space=sflag, size = 0x4, scoped, tag = 'scoped memory for discriminator_forward.5']
    #allocation7 [shape = 'u8[512]{0}', space=vmem, size = 0x400, scoped, tag = 'input window, operand 2, single buffered']
    #allocation8 [shape = 'u8[8192]{0}', space=vmem, size = 0x2000, scoped, tag = 'output window, operand 0']
    %8 = vsyncpa [#allocation3], 0
    %s9 = scalar_lea.sflag [#allocation3], 1
    %10 = vsyncpa %s9, 0
    %11 = vsyncpa [#allocation6], 0
    %12 = vsyncpa [#allocation4], 0
    %s13 = scalar_lea.sflag [#allocation4], 1
    %14 = vsyncpa %s13, 0
    loop: start=0, step=1, limit=4
    $region2: #{discriminator_forward.5} parent=1 // loop_pre_header
      _
    $region3: #{discriminator_forward.5} parent=1 // loop_header
      %s16 = sphi 0, %s20
      %p17 = scmp.ge.s32.totalorder %s16, 4
      %s23 = sphi 0, %s35
      %s24 = sphi 0, %s31
      %s25 = sphi 0, %s23
      %s26 = sphi 0, %s24
      %s27 = sphi 0, %s25
      %s28 = sphi 0, %s26
      %s38 = sphi 0, %s40
      %s41 = sphi 0, %s38
      %s42 = sphi 0, %s41
      %s58 = sphi 0, %s42
      %s64 = sphi 0, %s66
      %s67 = sphi 0, %s64
      %s68 = sphi 0, %s67
      %s84 = sphi 0, %s68
      %s90 = sphi 0, %s92
      %s93 = sphi 0, %s90
      %s94 = sphi 0, %s93
      %s110 = sphi 0, %s94
      %s118 = sphi 0, %s120
      %s121 = sphi 0, %s118
      %s122 = sphi 0, %s121
      %s138 = sphi 0, %s122
    $region4: #{discriminator_forward.5} parent=1 // loop_header_branch
      %19 = sbr.rel (%p17) target = $region8
    $region5: #{discriminator_forward.5} parent=1 // loop_body
      %s21 = ssub.s32 %s16, 1
      %s22 = ssub.s32 %s16, 2
      %s29 = sadd.s32 1, %s24
      %p30 = scmp.ge.s32.totalorder %s29, 1
      %s31 = scalar_select %p30, 0, %s29
      %s32 = sadd.s32 1, %s23
      %s33 = scalar_select %p30, %s32, %s23
      %p34 = scmp.ge.s32.totalorder %s33, 2
      %s35 = scalar_select %p34, 0, %s33
      %s36 = ssub.s32 %s23, %s35
      %p37 = scmp.eq.s32.totalorder %s36, 0
      %s39 = sadd.s32 %s38, 1
      %s40 = scalar_select %p37, %s38, %s39
      %p43 = pneg %p37
      %p44 = scmp.eq.s32.totalorder %s16, 1
      %p45 = por %p43, %p44
      %p46 = scmp.ne.s32.totalorder %s38, %s41
      %p47 = scmp.eq.s32.totalorder %s16, 0
      %p48 = por %p46, %p47
      %p49 = scmp.ne.s32.totalorder %s38, %s41
      %p50 = scmp.eq.s32.totalorder %s21, 1
      %p51 = por %p49, %p50
      %p52 = scmp.ne.s32.totalorder %s41, %s42
      %p53 = scmp.eq.s32.totalorder %s21, 0
      %p54 = por %p52, %p53
      %p55 = scmp.ne.s32.totalorder %s41, %s42
      %p56 = scmp.eq.s32.totalorder %s22, 1
      %p57 = por %p55, %p56
      %p59 = scmp.ne.s32.totalorder %s42, %s58
      %p60 = scmp.eq.s32.totalorder %s22, 0
      %p61 = por %p59, %p60
      %s62 = ssub.s32 %s24, %s31
      %p63 = scmp.eq.s32.totalorder %s62, 0
      %s65 = sadd.s32 %s64, 1
      %s66 = scalar_select %p63, %s64, %s65
      %p69 = pneg %p63
      %p70 = scmp.eq.s32.totalorder %s16, 1
      %p71 = por %p69, %p70
      %p72 = scmp.ne.s32.totalorder %s64, %s67
      %p73 = scmp.eq.s32.totalorder %s16, 0
      %p74 = por %p72, %p73
      %p75 = scmp.ne.s32.totalorder %s64, %s67
      %p76 = scmp.eq.s32.totalorder %s21, 1
      %p77 = por %p75, %p76
      %p78 = scmp.ne.s32.totalorder %s67, %s68
      %p79 = scmp.eq.s32.totalorder %s21, 0
      %p80 = por %p78, %p79
      %p81 = scmp.ne.s32.totalorder %s67, %s68
      %p82 = scmp.eq.s32.totalorder %s22, 1
      %p83 = por %p81, %p82
      %p85 = scmp.ne.s32.totalorder %s68, %s84
      %p86 = scmp.eq.s32.totalorder %s22, 0
      %p87 = por %p85, %p86
      %s88 = ssub.s32 %s24, %s31
      %p89 = scmp.eq.s32.totalorder %s88, 0
      %s91 = sadd.s32 %s90, 1
      %s92 = scalar_select %p89, %s90, %s91
      %p95 = pneg %p89
      %p96 = scmp.eq.s32.totalorder %s16, 1
      %p97 = por %p95, %p96
      %p98 = scmp.ne.s32.totalorder %s90, %s93
      %p99 = scmp.eq.s32.totalorder %s16, 0
      %p100 = por %p98, %p99
      %p101 = scmp.ne.s32.totalorder %s90, %s93
      %p102 = scmp.eq.s32.totalorder %s21, 1
      %p103 = por %p101, %p102
      %p104 = scmp.ne.s32.totalorder %s93, %s94
      %p105 = scmp.eq.s32.totalorder %s21, 0
      %p106 = por %p104, %p105
      %p107 = scmp.ne.s32.totalorder %s93, %s94
      %p108 = scmp.eq.s32.totalorder %s22, 1
      %p109 = por %p107, %p108
      %p111 = scmp.ne.s32.totalorder %s94, %s110
      %p112 = scmp.eq.s32.totalorder %s22, 0
      %p113 = por %p111, %p112
      %s114 = ssub.s32 %s23, %s35
      %s115 = ssub.s32 %s24, %s31
      %s116 = sor.u32 %s114, %s115
      %p117 = scmp.eq.s32.totalorder %s116, 0
      %s119 = sadd.s32 %s118, 1
      %s120 = scalar_select %p117, %s118, %s119
      %p123 = pneg %p117
      %p124 = scmp.eq.s32.totalorder %s16, 1
      %p125 = por %p123, %p124
      %p126 = scmp.ne.s32.totalorder %s118, %s121
      %p127 = scmp.eq.s32.totalorder %s16, 0
      %p128 = por %p126, %p127
      %p129 = scmp.ne.s32.totalorder %s118, %s121
      %p130 = scmp.eq.s32.totalorder %s21, 1
      %p131 = por %p129, %p130
      %p132 = scmp.ne.s32.totalorder %s121, %s122
      %p133 = scmp.eq.s32.totalorder %s21, 0
      %p134 = por %p132, %p133
      %p135 = scmp.ne.s32.totalorder %s121, %s122
      %p136 = scmp.eq.s32.totalorder %s22, 1
      %p137 = por %p135, %p136
      %p139 = scmp.ne.s32.totalorder %s122, %s138
      %p140 = scmp.eq.s32.totalorder %s22, 0
      %p141 = por %p139, %p140
      %p142 = scmp.le.s32.totalorder 1, %s16
      %p143 = scmp.lt.s32.totalorder %s16, 3
      %p144 = pnand %p142, %p143
      %p145 = pneg %p144
      // Predicated region
      $region9: #{discriminator_forward.5} parent=5 // pred_check
        _
      $region10: #{discriminator_forward.5} parent=5 // pred_check_branch
        %147 = sbr.rel (%p144) target = $region12
      $region11: #{discriminator_forward.5} parent=5 // pred_region
        %s148 = ssub.s32 %s16, 1
        // Predicated region
        $region13: #{discriminator_forward.5} parent=11 // pred_check
          %p149 = pneg %p80
        $region14: #{discriminator_forward.5} parent=11 // pred_check_branch
          %151 = sbr.rel (%p149) target = $region16
        $region15: #{discriminator_forward.5} parent=11 // pred_region
          %s153 = ssub.s32 3072, 3072
          %154 = vsyncadd [#allocation6], %s153
          %s155 = smul.addr %s26, 64
          %s156 = scalar_lea.hbm %s1, %s155
          %s157 = sshll.u32 [#allocation5], 4
          %s158 = int_to_ptr.vmem [resolvable:$true] %s157
          %163 = dma.hbm_to_vmem [thread:$0]  %s156, 3072, %s158, [#allocation6], 64, 64, 4
        $region16: #{discriminator_forward.5} parent=11 // pred_fallthru
          _
        // Predicated region
        $region17: #{discriminator_forward.5} parent=11 // pred_check
          %p164 = pneg %p106
        $region18: #{discriminator_forward.5} parent=11 // pred_check_branch
          %166 = sbr.rel (%p164) target = $region20
        $region19: #{discriminator_forward.5} parent=11 // pred_region
          %s168 = ssub.s32 16, 16
          %169 = vsyncadd [#allocation6], %s168
          %s170 = smul.addr %s26, 16
          %s171 = scalar_lea.hbm %s2, %s170
          %s173 = sshll.u32 [#allocation7], 4
          %s174 = int_to_ptr.vmem [resolvable:$true] %s173
          %176 = dma.hbm_to_vmem [thread:$0]  %s171, 16, %s174, [#allocation6]
        $region20: #{discriminator_forward.5} parent=11 // pred_fallthru
          _
      $region12: #{discriminator_forward.5} parent=5 // pred_fallthru
        _
      %p177 = scmp.lt.s32.totalorder %s16, 2
      // Predicated region
      $region21: #{discriminator_forward.5} parent=5 // pred_check
        %p178 = pneg %p177
      $region22: #{discriminator_forward.5} parent=5 // pred_check_branch
        %180 = sbr.rel (%p178) target = $region24
      $region23: #{discriminator_forward.5} parent=5 // pred_region
        // Predicated region
        $region25: #{discriminator_forward.5} parent=23 // pred_check
          %p181 = pneg %p48
        $region26: #{discriminator_forward.5} parent=23 // pred_check_branch
          %183 = sbr.rel (%p181) target = $region28
        $region27: #{discriminator_forward.5} parent=23 // pred_region
          %s184 = sand.u32 %s38, 1
          %s185 = scalar_lea.sflag [#allocation3], %s184
          %s186 = sand.u32 %s38, 1
          %s187 = smul.addr %s186, 24
          %s188 = scalar_lea.vmem [#allocation2], %s187
          %s189 = smul.u32 2, %s23
          %s191 = ssub.s32 384, 384
          %192 = vsyncadd %s185, %s191
          %s193 = smul.addr %s189, 3
          %s194 = smul.addr %s193, 64
          %s195 = scalar_lea.hbm %s0, %s194
          %s196 = sshll.u32 %s188, 4
          %s197 = int_to_ptr.vmem [resolvable:$true] %s196
          %202 = dma.hbm_to_vmem [thread:$0]  %s195, 384, %s197, %s185, 192, 192, 12
        $region28: #{discriminator_forward.5} parent=23 // pred_fallthru
          _
      $region24: #{discriminator_forward.5} parent=5 // pred_fallthru
        _
      %p203 = scmp.le.s32.totalorder 1, %s16
      %p204 = scmp.lt.s32.totalorder %s16, 3
      %p205 = pnand %p203, %p204
      %p206 = pneg %p205
      // Predicated region
      $region29: #{discriminator_forward.5} parent=5 // pred_check
        _
      $region30: #{discriminator_forward.5} parent=5 // pred_check_branch
        %208 = sbr.rel (%p205) target = $region32
      $region31: #{discriminator_forward.5} parent=5 // pred_region
        %s209 = ssub.s32 %s16, 1
        %s210 = sand.u32 %s41, 1
        %s211 = scalar_lea.sflag [#allocation3], %s210
        %s212 = sand.u32 %s41, 1
        %s213 = smul.addr %s212, 24
        %s214 = scalar_lea.vmem [#allocation2], %s213
        // Predicated region
        $region33: #{discriminator_forward.5} parent=31 // pred_check
          %p215 = pneg %p54
        $region34: #{discriminator_forward.5} parent=31 // pred_check_branch
          %217 = sbr.rel (%p215) target = $region36
        $region35: #{discriminator_forward.5} parent=31 // pred_region
          %218 = dma.done %s211, 384
        $region36: #{discriminator_forward.5} parent=31 // pred_fallthru
          _
        // Predicated region
        $region37: #{discriminator_forward.5} parent=31 // pred_check
          %p219 = pneg %p80
        $region38: #{discriminator_forward.5} parent=31 // pred_check_branch
          %221 = sbr.rel (%p219) target = $region40
        $region39: #{discriminator_forward.5} parent=31 // pred_region
          %222 = dma.done [#allocation6], 3072
        $region40: #{discriminator_forward.5} parent=31 // pred_fallthru
          _
        // Predicated region
        $region41: #{discriminator_forward.5} parent=31 // pred_check
          %p223 = pneg %p106
        $region42: #{discriminator_forward.5} parent=31 // pred_check_branch
          %225 = sbr.rel (%p223) target = $region44
        $region43: #{discriminator_forward.5} parent=31 // pred_region
          %226 = dma.done [#allocation6], 16
        $region44: #{discriminator_forward.5} parent=31 // pred_fallthru
          _
        %s227 = sand.u32 %s41, 1
        %s228 = scalar_lea.sflag [#allocation3], %s227
        %s229 = sand.u32 %s41, 1
        %s230 = smul.addr %s229, 24
        %s231 = scalar_lea.vmem [#allocation2], %s230
        %p232 = pneg %p54
        %p233 = pneg %p51
        %p234 = pneg %p80
        %p235 = pneg %p77
        %p236 = pneg %p106
        %p237 = pneg %p103
        %p238 = pneg %p134
        %p239 = pneg %p131
        %s240 = sand.u32 %s121, 1
        %s241 = scalar_lea.sflag [#allocation4], %s240
        %s242 = sand.u32 %s121, 1
        %s243 = smul.addr %s242, 8
        %s244 = scalar_lea.vmem [#allocation8], %s243
        %s245 = smul.u32 2, %s25
        %s246 = smul.u32 2, %s25
        %v248 = vld [vmem:[%s214] sm:$0xff]
        %v249 = vld [vmem:[%s214 + $0x8] sm:$0xf]
        %v250 = vld [vmem:[%s214 + $0xc] sm:$0xff]
        %v251 = vld [vmem:[%s214 + $0x14] sm:$0xf]
        %v252 = vld [vmem:[#allocation5] sm:$0xf]
        %v253 = vld [vmem:[#allocation5 + $0x4] sm:$0xf]
        %v254 = vld [vmem:[#allocation5 + $0x8] sm:$0xf]
        %v255 = vld [vmem:[#allocation5 + $0xc] sm:$0xf]
        %v256 = vld [vmem:[#allocation5 + $0x10] sm:$0xf]
        %v257 = vld [vmem:[#allocation5 + $0x14] sm:$0xf]
        %v258 = vld [vmem:[#allocation5 + $0x18] sm:$0xf]
        %v259 = vld [vmem:[#allocation5 + $0x1c] sm:$0xf]
        %v260 = vld [vmem:[#allocation5 + $0x20] sm:$0xf]
        %v261 = vld [vmem:[#allocation5 + $0x24] sm:$0xf]
        %v262 = vld [vmem:[#allocation5 + $0x28] sm:$0xf]
        %v263 = vld [vmem:[#allocation5 + $0x2c] sm:$0xf]
        %v264 = vld [vmem:[#allocation5 + $0x30] sm:$0xf]
        %v265 = vld [vmem:[#allocation5 + $0x34] sm:$0xf]
        %v266 = vld [vmem:[#allocation5 + $0x38] sm:$0xf]
        %v267 = vld [vmem:[#allocation5 + $0x3c] sm:$0xf]
        %v268 = vld [vmem:[#allocation5 + $0x40] sm:$0xf]
        %v269 = vld [vmem:[#allocation5 + $0x44] sm:$0xf]
        %v270 = vld [vmem:[#allocation5 + $0x48] sm:$0xf]
        %v271 = vld [vmem:[#allocation5 + $0x4c] sm:$0xf]
        %v272 = vld [vmem:[#allocation5 + $0x50] sm:$0xf]
        %v273 = vld [vmem:[#allocation5 + $0x54] sm:$0xf]
        %v274 = vld [vmem:[#allocation5 + $0x58] sm:$0xf]
        %v275 = vld [vmem:[#allocation5 + $0x5c] sm:$0xf]
        %v276 = vld [vmem:[#allocation5 + $0x60] sm:$0xf]
        %v277 = vld [vmem:[#allocation5 + $0x64] sm:$0xf]
        %v278 = vld [vmem:[#allocation5 + $0x68] sm:$0xf]
        %v279 = vld [vmem:[#allocation5 + $0x6c] sm:$0xf]
        %v280 = vld [vmem:[#allocation5 + $0x70] sm:$0xf]
        %v281 = vld [vmem:[#allocation5 + $0x74] sm:$0xf]
        %v282 = vld [vmem:[#allocation5 + $0x78] sm:$0xf]
        %v283 = vld [vmem:[#allocation5 + $0x7c] sm:$0xf]
        %v284 = vld [vmem:[#allocation5 + $0x80] sm:$0xf]
        %v285 = vld [vmem:[#allocation5 + $0x84] sm:$0xf]
        %v286 = vld [vmem:[#allocation5 + $0x88] sm:$0xf]
        %v287 = vld [vmem:[#allocation5 + $0x8c] sm:$0xf]
        %v288 = vld [vmem:[#allocation5 + $0x90] sm:$0xf]
        %v289 = vld [vmem:[#allocation5 + $0x94] sm:$0xf]
        %v290 = vld [vmem:[#allocation5 + $0x98] sm:$0xf]
        %v291 = vld [vmem:[#allocation5 + $0x9c] sm:$0xf]
        %v292 = vld [vmem:[#allocation5 + $0xa0] sm:$0xf]
        %v293 = vld [vmem:[#allocation5 + $0xa4] sm:$0xf]
        %v294 = vld [vmem:[#allocation5 + $0xa8] sm:$0xf]
        %v295 = vld [vmem:[#allocation5 + $0xac] sm:$0xf]
        %v296 = vld [vmem:[#allocation5 + $0xb0] sm:$0xf]
        %v297 = vld [vmem:[#allocation5 + $0xb4] sm:$0xf]
        %v298 = vld [vmem:[#allocation5 + $0xb8] sm:$0xf]
        %v299 = vld [vmem:[#allocation5 + $0xbc] sm:$0xf]
        %v300 = vld [vmem:[#allocation7] sm:$0x1]
        %v302 = vlaneseq
        %v303 = vshrl.u32 %v302, 7
        %v304 = vsub.s32 0, %v303
        %v305 = vrot.slane %v300, %v304
        %v311 = vunpack.c.l.b16 %v248
        %v312 = vunpack.c.h.b16 %v248
        %v313 = vunpack.c.l.b16 %v249
        %v314 = vunpack.c.l.b16 %v250
        %v315 = vunpack.c.h.b16 %v250
        %v316 = vunpack.c.l.b16 %v251
        %v317 = vpack.c.b16 %v314, %v311
        %v318 = vpack.c.b16 %v315, %v312
        %v319 = vpack.c.b16 %v316, %v313
        %v371 = vunpack.c.l.b16 %v252
        %v372 = vunpack.c.l.b16 %v253
        %v373 = vunpack.c.l.b16 %v254
        %v374 = vunpack.c.l.b16 %v255
        %v375 = vunpack.c.l.b16 %v256
        %v376 = vunpack.c.l.b16 %v257
        %v377 = vunpack.c.l.b16 %v258
        %v378 = vunpack.c.l.b16 %v259
        %v379 = vunpack.c.l.b16 %v260
        %v380 = vunpack.c.l.b16 %v261
        %v381 = vunpack.c.l.b16 %v262
        %v382 = vunpack.c.l.b16 %v263
        %v383 = vunpack.c.l.b16 %v264
        %v384 = vunpack.c.l.b16 %v265
        %v385 = vunpack.c.l.b16 %v266
        %v386 = vunpack.c.l.b16 %v267
        %v387 = vunpack.c.l.b16 %v268
        %v388 = vunpack.c.l.b16 %v269
        %v389 = vunpack.c.l.b16 %v270
        %v390 = vunpack.c.l.b16 %v271
        %v391 = vunpack.c.l.b16 %v272
        %v392 = vunpack.c.l.b16 %v273
        %v393 = vunpack.c.l.b16 %v274
        %v394 = vunpack.c.l.b16 %v275
        %v395 = vunpack.c.l.b16 %v276
        %v396 = vunpack.c.l.b16 %v277
        %v397 = vunpack.c.l.b16 %v278
        %v398 = vunpack.c.l.b16 %v279
        %v399 = vunpack.c.l.b16 %v280
        %v400 = vunpack.c.l.b16 %v281
        %v401 = vunpack.c.l.b16 %v282
        %v402 = vunpack.c.l.b16 %v283
        %v403 = vunpack.c.l.b16 %v284
        %v404 = vunpack.c.l.b16 %v285
        %v405 = vunpack.c.l.b16 %v286
        %v406 = vunpack.c.l.b16 %v287
        %v407 = vunpack.c.l.b16 %v288
        %v408 = vunpack.c.l.b16 %v289
        %v409 = vunpack.c.l.b16 %v290
        %v410 = vunpack.c.l.b16 %v291
        %v411 = vunpack.c.l.b16 %v292
        %v412 = vunpack.c.l.b16 %v293
        %v413 = vunpack.c.l.b16 %v294
        %v414 = vunpack.c.l.b16 %v295
        %v415 = vunpack.c.l.b16 %v296
        %v416 = vunpack.c.l.b16 %v297
        %v417 = vunpack.c.l.b16 %v298
        %v418 = vunpack.c.l.b16 %v299
        %v419 = vpack.c.b16 %v372, %v371
        %v420 = vpack.c.b16 %v374, %v373
        %v421 = vpack.c.b16 %v376, %v375
        %v422 = vpack.c.b16 %v378, %v377
        %v423 = vpack.c.b16 %v380, %v379
        %v424 = vpack.c.b16 %v382, %v381
        %v425 = vpack.c.b16 %v384, %v383
        %v426 = vpack.c.b16 %v386, %v385
        %v427 = vpack.c.b16 %v388, %v387
        %v428 = vpack.c.b16 %v390, %v389
        %v429 = vpack.c.b16 %v392, %v391
        %v430 = vpack.c.b16 %v394, %v393
        %v431 = vpack.c.b16 %v396, %v395
        %v432 = vpack.c.b16 %v398, %v397
        %v433 = vpack.c.b16 %v400, %v399
        %v434 = vpack.c.b16 %v402, %v401
        %v435 = vpack.c.b16 %v404, %v403
        %v436 = vpack.c.b16 %v406, %v405
        %v437 = vpack.c.b16 %v408, %v407
        %v438 = vpack.c.b16 %v410, %v409
        %v439 = vpack.c.b16 %v412, %v411
        %v440 = vpack.c.b16 %v414, %v413
        %v441 = vpack.c.b16 %v416, %v415
        %v442 = vpack.c.b16 %v418, %v417
        %467 = vmatprep.subr.bf16.mxu0 0
        %468 = vmatpush1.bf16.msra.mxu0 %v419
        %469 = vmatprep.subr.bf16.mxu0 0
        %470 = vmatpush1.bf16.msra.mxu0 %v420
        %471 = vmatprep.subr.bf16.mxu0 0
        %472 = vmatpush1.bf16.msra.mxu0 %v421
        %473 = vmatprep.subr.bf16.mxu0 0
        %474 = vmatpush1.bf16.msra.mxu0 %v422
        %475 = vmatprep.subr.bf16.mxu0 0
        %476 = vmatpush1.bf16.msra.mxu0 %v423
        %477 = vmatprep.subr.bf16.mxu0 0
        %478 = vmatpush1.bf16.msra.mxu0 %v424
        %479 = vmatprep.subr.bf16.mxu0 0
        %480 = vmatpush1.bf16.msra.mxu0 %v425
        %481 = vmatprep.subr.bf16.mxu0 0
        %482 = vmatpush1.bf16.msra.mxu0 %v426
        %483 = vmatprep.subr.bf16.mxu0 0
        %484 = vmatpush1.bf16.msra.mxu0 %v427
        %485 = vmatprep.subr.bf16.mxu0 0
        %486 = vmatpush1.bf16.msra.mxu0 %v428
        %487 = vmatprep.subr.bf16.mxu0 0
        %488 = vmatpush1.bf16.msra.mxu0 %v429
        %489 = vmatprep.subr.bf16.mxu0 0
        %490 = vmatpush1.bf16.msra.mxu0 %v430
        %491 = vmatprep.subr.bf16.mxu0 0
        %492 = vmatpush1.bf16.msra.mxu0 %v431
        %493 = vmatprep.subr.bf16.mxu0 0
        %494 = vmatpush1.bf16.msra.mxu0 %v432
        %495 = vmatprep.subr.bf16.mxu0 0
        %496 = vmatpush1.bf16.msra.mxu0 %v433
        %497 = vmatprep.subr.bf16.mxu0 0
        %498 = vmatpush1.bf16.msra.mxu0 %v434
        %499 = vmatprep.mubr.bf16.mxu0 %v318
        %500 = vmatmul.mubr.bf16.gmra.mrb[0].mxu0 %v317
        %v501 = vpop.f32.mrb[0].mxu0
        %v502 = vadd.f32 %v305, %v501
        %v503 = vpop.f32.mrb[0].mxu0
        %v504 = vpop.f32.mrb[0].mxu0
        %v505 = vadd.f32 %v305, %v504
        %v506 = vpop.f32.mrb[0].mxu0
        %507 = vdwg.mxu0
        %508 = vmatprep.subr.bf16.mxu0 0
        %509 = vmatpush1.bf16.msra.mxu0 %v435
        %510 = vmatprep.subr.bf16.mxu0 0
        %511 = vmatpush1.bf16.msra.mxu0 %v436
        %512 = vmatprep.subr.bf16.mxu0 0
        %513 = vmatpush1.bf16.msra.mxu0 %v437
        %514 = vmatprep.subr.bf16.mxu0 0
        %515 = vmatpush1.bf16.msra.mxu0 %v438
        %516 = vmatprep.subr.bf16.mxu0 0
        %517 = vmatpush1.bf16.msra.mxu0 %v439
        %518 = vmatprep.subr.bf16.mxu0 0
        %519 = vmatpush1.bf16.msra.mxu0 %v440
        %520 = vmatprep.subr.bf16.mxu0 0
        %521 = vmatpush1.bf16.msra.mxu0 %v441
        %522 = vmatprep.subr.bf16.mxu0 0
        %523 = vmatpush1.bf16.msra.mxu0 %v442
        %524 = vmatprep.subr.bf16.mxu0 0
        %525 = vmatpush1.bf16.msra.mxu0 0
        %526 = vmatprep.subr.bf16.mxu0 0
        %527 = vmatpush1.bf16.msra.mxu0 0
        %528 = vmatprep.subr.bf16.mxu0 0
        %529 = vmatpush1.bf16.msra.mxu0 0
        %530 = vmatprep.subr.bf16.mxu0 0
        %531 = vmatpush1.bf16.msra.mxu0 0
        %532 = vmatprep.subr.bf16.mxu0 0
        %533 = vmatpush1.bf16.msra.mxu0 0
        %534 = vmatprep.subr.bf16.mxu0 0
        %535 = vmatpush1.bf16.msra.mxu0 0
        %536 = vmatprep.subr.bf16.mxu0 0
        %537 = vmatpush1.bf16.msra.mxu0 0
        %538 = vmatprep.subr.bf16.mxu0 0
        %539 = vmatpush1.bf16.msra.mxu0 0
        %540 = vmatprep.mubr.bf16.mxu0 0
        %541 = vmatmul.mubr.bf16.gmra.mrb[0].mxu0 %v319
        %v542 = vpop.f32.mrb[0].mxu0
        %v543 = vadd.f32 %v502, %v542
        %v544 = vpop.f32.mrb[0].mxu0
        %v545 = vpop.f32.mrb[0].mxu0
        %v546 = vadd.f32 %v505, %v545
        %v547 = vpop.f32.mrb[0].mxu0
        %548 = vdwg.mxu0
        %v549 = vmul.f32 %v543, 0.2
        %v550 = vmul.f32 %v546, 0.2
        %v551 = vmax.f32 %v543, %v549
        %v552 = vmax.f32 %v546, %v550
        %v553 = vpack.c.bf16 %v552, %v551
        %v555 = vunpack.c.l.b16 %v553
        %v556 = vunpack.c.h.b16 %v553
        %v557 = vpack.c.b16 %v555, %v555
        %v558 = vpack.c.b16 %v556, %v556
        %561 = vst [vmem:[%s244] sm:$0xf] %v557
        %562 = vst [vmem:[%s244 + $0x4] sm:$0xf] %v558
        %s563 = sand.u32 %s121, 1
        %s564 = scalar_lea.sflag [#allocation4], %s563
        %s565 = sand.u32 %s121, 1
        %s566 = smul.addr %s565, 8
        %s567 = scalar_lea.vmem [#allocation8], %s566
        // Predicated region
        $region45: #{discriminator_forward.5} parent=31 // pred_check
          %p568 = pneg %p131
        $region46: #{discriminator_forward.5} parent=31 // pred_check_branch
          %570 = sbr.rel (%p568) target = $region48
        $region47: #{discriminator_forward.5} parent=31 // pred_region
          %s571 = smul.u32 2, %s25
          %s573 = ssub.s32 128, 128
          %574 = vsyncadd %s564, %s573
          %s575 = sadd.s32 %s26, %s571
          %s576 = smul.addr %s575, 64
          %s577 = scalar_lea.hbm %s3, %s576
          %s578 = sshll.u32 %s567, 4
          %s579 = int_to_ptr.vmem [resolvable:$true] %s578
          %584 = dma.vmem_to_hbm [thread:$0]  %s579, 128, %s577, %s564, 64, 64, 4
        $region48: #{discriminator_forward.5} parent=31 // pred_fallthru
          _
      $region32: #{discriminator_forward.5} parent=5 // pred_fallthru
        _
      %p585 = scmp.le.s32.totalorder 2, %s16
      // Predicated region
      $region49: #{discriminator_forward.5} parent=5 // pred_check
        %p586 = pneg %p585
      $region50: #{discriminator_forward.5} parent=5 // pred_check_branch
        %588 = sbr.rel (%p586) target = $region52
      $region51: #{discriminator_forward.5} parent=5 // pred_region
        %s589 = ssub.s32 %s16, 2
        // Predicated region
        $region53: #{discriminator_forward.5} parent=51 // pred_check
          %p590 = pneg %p137
        $region54: #{discriminator_forward.5} parent=51 // pred_check_branch
          %592 = sbr.rel (%p590) target = $region56
        $region55: #{discriminator_forward.5} parent=51 // pred_region
          %s593 = sand.u32 %s122, 1
          %s594 = scalar_lea.sflag [#allocation4], %s593
          %s595 = sand.u32 %s122, 1
          %s596 = smul.addr %s595, 8
          %s597 = scalar_lea.vmem [#allocation8], %s596
          %598 = dma.done %s594, 128
        $region56: #{discriminator_forward.5} parent=51 // pred_fallthru
          _
      $region52: #{discriminator_forward.5} parent=5 // pred_fallthru
        _
    $region6: #{discriminator_forward.5} parent=1 // loop_footer
      %s20 = sadd.s32 1, %s16
    $region7: #{discriminator_forward.5} parent=1 // loop_footer_branch
      %15 = sbr.rel target = $region3
    $region8: #{discriminator_forward.5} parent=1 // loop_exit
      _
    %599 = vsyncpa [#allocation3], 1
    %s600 = scalar_lea.sflag [#allocation3], 1
    %601 = vsyncpa %s600, 1
    %602 = vsyncpa [#allocation6], 1
    %603 = vsyncpa [#allocation4], 1
    %s604 = scalar_lea.sflag [#allocation4], 1
    %605 = vsyncpa %s604, 1

// kernel: discriminator_forward.6
$region0: #{discriminator_forward.6}
  #allocation0 [shape = 'u32[]', space=smem, size = 0x4, offset = 0x4, fixed_abs, tag = 'smem constant byte address 0x4 - core index']
  #allocation1 [shape = 'u32[144,128]{1,0:T(1,128)}', space=vmem, size = 0x12000, scoped, tag = 'internal scratch']
  %s0 = inlined_call_operand.hbm [shape: bf16[8,640], index: 0, kind: input, shape index: {}]
  %s1 = inlined_call_operand.hbm [shape: bf16[640,128], index: 1, kind: input, shape index: {}]
  %s2 = inlined_call_operand.hbm [shape: f32[1,128], index: 2, kind: input, shape index: {}]
  %s3 = inlined_call_operand.hbm [shape: bf16[8,128], index: 3, kind: output, shape index: {}]
  %s4 = sld [smem:[#allocation0]]
  $region34: #{discriminator_forward.6} parent=0
    _
  %s6 = ssub.s32 1, %s4
  %s7 = scalar_select 0, %s6, %s4
  $region1: #{discriminator_forward.6} parent=0
    #allocation2 [shape = 'u8[10240]{0}', space=vmem, size = 0x2800, scoped, tag = 'input window, operand 0, single buffered']
    #allocation3 [shape = 's32[1]{0}', space=sflag, size = 0x4, scoped, tag = 'scoped memory for discriminator_forward.6']
    #allocation4 [shape = 's32[1]{0}', space=sflag, size = 0x4, scoped, tag = 'scoped memory for discriminator_forward.6']
    #allocation5 [shape = 'u8[163840]{0}', space=vmem, size = 0x28000, scoped, tag = 'input window, operand 1, single buffered']
    #allocation6 [shape = 's32[1]{0}', space=sflag, size = 0x4, scoped, tag = 'scoped memory for discriminator_forward.6']
    #allocation7 [shape = 'u8[512]{0}', space=vmem, size = 0x400, scoped, tag = 'input window, operand 2, single buffered']
    #allocation8 [shape = 'u8[2048]{0}', space=vmem, size = 0x800, scoped, tag = 'output window, operand 0, single buffered']
    %8 = vsyncpa [#allocation3], 0
    %9 = vsyncpa [#allocation6], 0
    %10 = vsyncpa [#allocation4], 0
    // Predicated region
    $region2: #{discriminator_forward.6} parent=1 // pred_check
      _
    $region3: #{discriminator_forward.6} parent=1 // pred_check_branch
      %12 = sbr.rel (0) target = $region5
    $region4: #{discriminator_forward.6} parent=1 // pred_region
      %s14 = ssub.s32 320, 320
      %15 = vsyncadd [#allocation3], %s14
      %s17 = sshll.u32 [#allocation2], 4
      %s18 = int_to_ptr.vmem [resolvable:$true] %s17
      %20 = dma.hbm_to_vmem [thread:$0]  %s0, 320, %s18, [#allocation3]
    $region5: #{discriminator_forward.6} parent=1 // pred_fallthru
      _
    // Predicated region
    $region6: #{discriminator_forward.6} parent=1 // pred_check
      _
    $region7: #{discriminator_forward.6} parent=1 // pred_check_branch
      %22 = sbr.rel (0) target = $region9
    $region8: #{discriminator_forward.6} parent=1 // pred_region
      %s24 = ssub.s32 5120, 5120
      %25 = vsyncadd [#allocation6], %s24
      %s26 = sshll.u32 [#allocation5], 4
      %s27 = int_to_ptr.vmem [resolvable:$true] %s26
      %32 = dma.hbm_to_vmem [thread:$0]  %s1, 5120, %s27, [#allocation6], 64, 64, 4
    $region9: #{discriminator_forward.6} parent=1 // pred_fallthru
      _
    // Predicated region
    $region10: #{discriminator_forward.6} parent=1 // pred_check
      _
    $region11: #{discriminator_forward.6} parent=1 // pred_check_branch
      %34 = sbr.rel (0) target = $region13
    $region12: #{discriminator_forward.6} parent=1 // pred_region
      %s36 = ssub.s32 16, 16
      %37 = vsyncadd [#allocation6], %s36
      %s39 = sshll.u32 [#allocation7], 4
      %s40 = int_to_ptr.vmem [resolvable:$true] %s39
      %42 = dma.hbm_to_vmem [thread:$0]  %s2, 16, %s40, [#allocation6]
    $region13: #{discriminator_forward.6} parent=1 // pred_fallthru
      _
    // Predicated region
    $region14: #{discriminator_forward.6} parent=1 // pred_check
      _
    $region15: #{discriminator_forward.6} parent=1 // pred_check_branch
      %44 = sbr.rel (0) target = $region17
    $region16: #{discriminator_forward.6} parent=1 // pred_region
      %45 = dma.done [#allocation3], 320
    $region17: #{discriminator_forward.6} parent=1 // pred_fallthru
      _
    // Predicated region
    $region18: #{discriminator_forward.6} parent=1 // pred_check
      _
    $region19: #{discriminator_forward.6} parent=1 // pred_check_branch
      %47 = sbr.rel (0) target = $region21
    $region20: #{discriminator_forward.6} parent=1 // pred_region
      %48 = dma.done [#allocation6], 5120
    $region21: #{discriminator_forward.6} parent=1 // pred_fallthru
      _
    // Predicated region
    $region22: #{discriminator_forward.6} parent=1 // pred_check
      _
    $region23: #{discriminator_forward.6} parent=1 // pred_check_branch
      %50 = sbr.rel (0) target = $region25
    $region24: #{discriminator_forward.6} parent=1 // pred_region
      %51 = dma.done [#allocation6], 16
    $region25: #{discriminator_forward.6} parent=1 // pred_fallthru
      _
    %v53 = vld [vmem:[#allocation2] sm:$0xff]
    %v54 = vld [vmem:[#allocation2 + $0x8] sm:$0xff]
    %v55 = vld [vmem:[#allocation2 + $0x10] sm:$0xf]
    %v56 = vld [vmem:[#allocation5] sm:$0xf]
    %v57 = vld [vmem:[#allocation5 + $0x4] sm:$0xf]
    %v58 = vld [vmem:[#allocation5 + $0x8] sm:$0xf]
    %v59 = vld [vmem:[#allocation5 + $0xc] sm:$0xf]
    %v60 = vld [vmem:[#allocation5 + $0x10] sm:$0xf]
    %v61 = vld [vmem:[#allocation5 + $0x14] sm:$0xf]
    %v62 = vld [vmem:[#allocation5 + $0x18] sm:$0xf]
    %v63 = vld [vmem:[#allocation5 + $0x1c] sm:$0xf]
    %v64 = vld [vmem:[#allocation5 + $0x20] sm:$0xf]
    %v65 = vld [vmem:[#allocation5 + $0x24] sm:$0xf]
    %v66 = vld [vmem:[#allocation5 + $0x28] sm:$0xf]
    %v67 = vld [vmem:[#allocation5 + $0x2c] sm:$0xf]
    %v68 = vld [vmem:[#allocation5 + $0x30] sm:$0xf]
    %v69 = vld [vmem:[#allocation5 + $0x34] sm:$0xf]
    %v70 = vld [vmem:[#allocation5 + $0x38] sm:$0xf]
    %v71 = vld [vmem:[#allocation5 + $0x3c] sm:$0xf]
    %v72 = vld [vmem:[#allocation5 + $0x40] sm:$0xf]
    %v73 = vld [vmem:[#allocation5 + $0x44] sm:$0xf]
    %v74 = vld [vmem:[#allocation5 + $0x48] sm:$0xf]
    %v75 = vld [vmem:[#allocation5 + $0x4c] sm:$0xf]
    %v76 = vld [vmem:[#allocation5 + $0x50] sm:$0xf]
    %v77 = vld [vmem:[#allocation5 + $0x54] sm:$0xf]
    %v78 = vld [vmem:[#allocation5 + $0x58] sm:$0xf]
    %v79 = vld [vmem:[#allocation5 + $0x5c] sm:$0xf]
    %v80 = vld [vmem:[#allocation5 + $0x60] sm:$0xf]
    %v81 = vld [vmem:[#allocation5 + $0x64] sm:$0xf]
    %v82 = vld [vmem:[#allocation5 + $0x68] sm:$0xf]
    %v83 = vld [vmem:[#allocation5 + $0x6c] sm:$0xf]
    %v84 = vld [vmem:[#allocation5 + $0x70] sm:$0xf]
    %v85 = vld [vmem:[#allocation5 + $0x74] sm:$0xf]
    %v86 = vld [vmem:[#allocation5 + $0x78] sm:$0xf]
    %v87 = vld [vmem:[#allocation5 + $0x7c] sm:$0xf]
    %v88 = vld [vmem:[#allocation5 + $0x80] sm:$0xf]
    %v89 = vld [vmem:[#allocation5 + $0x84] sm:$0xf]
    %v90 = vld [vmem:[#allocation5 + $0x88] sm:$0xf]
    %v91 = vld [vmem:[#allocation5 + $0x8c] sm:$0xf]
    %v92 = vld [vmem:[#allocation5 + $0x90] sm:$0xf]
    %v93 = vld [vmem:[#allocation5 + $0x94] sm:$0xf]
    %v94 = vld [vmem:[#allocation5 + $0x98] sm:$0xf]
    %v95 = vld [vmem:[#allocation5 + $0x9c] sm:$0xf]
    %v96 = vld [vmem:[#allocation5 + $0xa0] sm:$0xf]
    %v97 = vld [vmem:[#allocation5 + $0xa4] sm:$0xf]
    %v98 = vld [vmem:[#allocation5 + $0xa8] sm:$0xf]
    %v99 = vld [vmem:[#allocation5 + $0xac] sm:$0xf]
    %v100 = vld [vmem:[#allocation5 + $0xb0] sm:$0xf]
    %v101 = vld [vmem:[#allocation5 + $0xb4] sm:$0xf]
    %v102 = vld [vmem:[#allocation5 + $0xb8] sm:$0xf]
    %v103 = vld [vmem:[#allocation5 + $0xbc] sm:$0xf]
    %v104 = vld [vmem:[#allocation5 + $0xc0] sm:$0xf]
    %v105 = vld [vmem:[#allocation5 + $0xc4] sm:$0xf]
    %v106 = vld [vmem:[#allocation5 + $0xc8] sm:$0xf]
    %v107 = vld [vmem:[#allocation5 + $0xcc] sm:$0xf]
    %v108 = vld [vmem:[#allocation5 + $0xd0] sm:$0xf]
    %v109 = vld [vmem:[#allocation5 + $0xd4] sm:$0xf]
    %v110 = vld [vmem:[#allocation5 + $0xd8] sm:$0xf]
    %v111 = vld [vmem:[#allocation5 + $0xdc] sm:$0xf]
    %v112 = vld [vmem:[#allocation5 + $0xe0] sm:$0xf]
    %v113 = vld [vmem:[#allocation5 + $0xe4] sm:$0xf]
    %v114 = vld [vmem:[#allocation5 + $0xe8] sm:$0xf]
    %v115 = vld [vmem:[#allocation5 + $0xec] sm:$0xf]
    %v116 = vld [vmem:[#allocation5 + $0xf0] sm:$0xf]
    %v117 = vld [vmem:[#allocation5 + $0xf4] sm:$0xf]
    %v118 = vld [vmem:[#allocation5 + $0xf8] sm:$0xf]
    %v119 = vld [vmem:[#allocation5 + $0xfc] sm:$0xf]
    %v120 = vld [vmem:[#allocation5 + $0x100] sm:$0xf]
    %v121 = vld [vmem:[#allocation5 + $0x104] sm:$0xf]
    %v122 = vld [vmem:[#allocation5 + $0x108] sm:$0xf]
    %v123 = vld [vmem:[#allocation5 + $0x10c] sm:$0xf]
    %v124 = vld [vmem:[#allocation5 + $0x110] sm:$0xf]
    %v125 = vld [vmem:[#allocation5 + $0x114] sm:$0xf]
    %v126 = vld [vmem:[#allocation5 + $0x118] sm:$0xf]
    %v127 = vld [vmem:[#allocation5 + $0x11c] sm:$0xf]
    %v128 = vld [vmem:[#allocation5 + $0x120] sm:$0xf]
    %v129 = vld [vmem:[#allocation5 + $0x124] sm:$0xf]
    %v130 = vld [vmem:[#allocation5 + $0x128] sm:$0xf]
    %v131 = vld [vmem:[#allocation5 + $0x12c] sm:$0xf]
    %v132 = vld [vmem:[#allocation5 + $0x130] sm:$0xf]
    %v133 = vld [vmem:[#allocation5 + $0x134] sm:$0xf]
    %v134 = vld [vmem:[#allocation5 + $0x138] sm:$0xf]
    %v135 = vld [vmem:[#allocation5 + $0x13c] sm:$0xf]
    %v136 = vld [vmem:[#allocation7] sm:$0x1]
    %v138 = vlaneseq
    %v139 = vshrl.u32 %v138, 7
    %v140 = vsub.s32 0, %v139
    %v141 = vrot.slane %v136, %v140
    %v146 = vunpack.c.l.b16 %v53
    %v147 = vunpack.c.h.b16 %v53
    %v148 = vunpack.c.l.b16 %v54
    %v149 = vunpack.c.h.b16 %v54
    %v150 = vunpack.c.l.b16 %v55
    %v151 = vpack.c.b16 %v146, %v146
    %v152 = vpack.c.b16 %v147, %v147
    %v153 = vpack.c.b16 %v148, %v148
    %v154 = vpack.c.b16 %v149, %v149
    %v155 = vpack.c.b16 %v150, %v150
    %v241 = vunpack.c.l.b16 %v56
    %v242 = vunpack.c.l.b16 %v57
    %v243 = vunpack.c.l.b16 %v58
    %v244 = vunpack.c.l.b16 %v59
    %v245 = vunpack.c.l.b16 %v60
    %v246 = vunpack.c.l.b16 %v61
    %v247 = vunpack.c.l.b16 %v62
    %v248 = vunpack.c.l.b16 %v63
    %v249 = vunpack.c.l.b16 %v64
    %v250 = vunpack.c.l.b16 %v65
    %v251 = vunpack.c.l.b16 %v66
    %v252 = vunpack.c.l.b16 %v67
    %v253 = vunpack.c.l.b16 %v68
    %v254 = vunpack.c.l.b16 %v69
    %v255 = vunpack.c.l.b16 %v70
    %v256 = vunpack.c.l.b16 %v71
    %v257 = vunpack.c.l.b16 %v72
    %v258 = vunpack.c.l.b16 %v73
    %v259 = vunpack.c.l.b16 %v74
    %v260 = vunpack.c.l.b16 %v75
    %v261 = vunpack.c.l.b16 %v76
    %v262 = vunpack.c.l.b16 %v77
    %v263 = vunpack.c.l.b16 %v78
    %v264 = vunpack.c.l.b16 %v79
    %v265 = vunpack.c.l.b16 %v80
    %v266 = vunpack.c.l.b16 %v81
    %v267 = vunpack.c.l.b16 %v82
    %v268 = vunpack.c.l.b16 %v83
    %v269 = vunpack.c.l.b16 %v84
    %v270 = vunpack.c.l.b16 %v85
    %v271 = vunpack.c.l.b16 %v86
    %v272 = vunpack.c.l.b16 %v87
    %v273 = vunpack.c.l.b16 %v88
    %v274 = vunpack.c.l.b16 %v89
    %v275 = vunpack.c.l.b16 %v90
    %v276 = vunpack.c.l.b16 %v91
    %v277 = vunpack.c.l.b16 %v92
    %v278 = vunpack.c.l.b16 %v93
    %v279 = vunpack.c.l.b16 %v94
    %v280 = vunpack.c.l.b16 %v95
    %v281 = vunpack.c.l.b16 %v96
    %v282 = vunpack.c.l.b16 %v97
    %v283 = vunpack.c.l.b16 %v98
    %v284 = vunpack.c.l.b16 %v99
    %v285 = vunpack.c.l.b16 %v100
    %v286 = vunpack.c.l.b16 %v101
    %v287 = vunpack.c.l.b16 %v102
    %v288 = vunpack.c.l.b16 %v103
    %v289 = vunpack.c.l.b16 %v104
    %v290 = vunpack.c.l.b16 %v105
    %v291 = vunpack.c.l.b16 %v106
    %v292 = vunpack.c.l.b16 %v107
    %v293 = vunpack.c.l.b16 %v108
    %v294 = vunpack.c.l.b16 %v109
    %v295 = vunpack.c.l.b16 %v110
    %v296 = vunpack.c.l.b16 %v111
    %v297 = vunpack.c.l.b16 %v112
    %v298 = vunpack.c.l.b16 %v113
    %v299 = vunpack.c.l.b16 %v114
    %v300 = vunpack.c.l.b16 %v115
    %v301 = vunpack.c.l.b16 %v116
    %v302 = vunpack.c.l.b16 %v117
    %v303 = vunpack.c.l.b16 %v118
    %v304 = vunpack.c.l.b16 %v119
    %v305 = vunpack.c.l.b16 %v120
    %v306 = vunpack.c.l.b16 %v121
    %v307 = vunpack.c.l.b16 %v122
    %v308 = vunpack.c.l.b16 %v123
    %v309 = vunpack.c.l.b16 %v124
    %v310 = vunpack.c.l.b16 %v125
    %v311 = vunpack.c.l.b16 %v126
    %v312 = vunpack.c.l.b16 %v127
    %v313 = vunpack.c.l.b16 %v128
    %v314 = vunpack.c.l.b16 %v129
    %v315 = vunpack.c.l.b16 %v130
    %v316 = vunpack.c.l.b16 %v131
    %v317 = vunpack.c.l.b16 %v132
    %v318 = vunpack.c.l.b16 %v133
    %v319 = vunpack.c.l.b16 %v134
    %v320 = vunpack.c.l.b16 %v135
    %v321 = vpack.c.b16 %v242, %v241
    %v322 = vpack.c.b16 %v244, %v243
    %v323 = vpack.c.b16 %v246, %v245
    %v324 = vpack.c.b16 %v248, %v247
    %v325 = vpack.c.b16 %v250, %v249
    %v326 = vpack.c.b16 %v252, %v251
    %v327 = vpack.c.b16 %v254, %v253
    %v328 = vpack.c.b16 %v256, %v255
    %v329 = vpack.c.b16 %v258, %v257
    %v330 = vpack.c.b16 %v260, %v259
    %v331 = vpack.c.b16 %v262, %v261
    %v332 = vpack.c.b16 %v264, %v263
    %v333 = vpack.c.b16 %v266, %v265
    %v334 = vpack.c.b16 %v268, %v267
    %v335 = vpack.c.b16 %v270, %v269
    %v336 = vpack.c.b16 %v272, %v271
    %v337 = vpack.c.b16 %v274, %v273
    %v338 = vpack.c.b16 %v276, %v275
    %v339 = vpack.c.b16 %v278, %v277
    %v340 = vpack.c.b16 %v280, %v279
    %v341 = vpack.c.b16 %v282, %v281
    %v342 = vpack.c.b16 %v284, %v283
    %v343 = vpack.c.b16 %v286, %v285
    %v344 = vpack.c.b16 %v288, %v287
    %v345 = vpack.c.b16 %v290, %v289
    %v346 = vpack.c.b16 %v292, %v291
    %v347 = vpack.c.b16 %v294, %v293
    %v348 = vpack.c.b16 %v296, %v295
    %v349 = vpack.c.b16 %v298, %v297
    %v350 = vpack.c.b16 %v300, %v299
    %v351 = vpack.c.b16 %v302, %v301
    %v352 = vpack.c.b16 %v304, %v303
    %v353 = vpack.c.b16 %v306, %v305
    %v354 = vpack.c.b16 %v308, %v307
    %v355 = vpack.c.b16 %v310, %v309
    %v356 = vpack.c.b16 %v312, %v311
    %v357 = vpack.c.b16 %v314, %v313
    %v358 = vpack.c.b16 %v316, %v315
    %v359 = vpack.c.b16 %v318, %v317
    %v360 = vpack.c.b16 %v320, %v319
    %401 = vmatprep.subr.bf16.mxu0 0
    %402 = vmatpush1.bf16.msra.mxu0 %v321
    %403 = vmatprep.subr.bf16.mxu0 0
    %404 = vmatpush1.bf16.msra.mxu0 %v322
    %405 = vmatprep.subr.bf16.mxu0 0
    %406 = vmatpush1.bf16.msra.mxu0 %v323
    %407 = vmatprep.subr.bf16.mxu0 0
    %408 = vmatpush1.bf16.msra.mxu0 %v324
    %409 = vmatprep.subr.bf16.mxu0 0
    %410 = vmatpush1.bf16.msra.mxu0 %v325
    %411 = vmatprep.subr.bf16.mxu0 0
    %412 = vmatpush1.bf16.msra.mxu0 %v326
    %413 = vmatprep.subr.bf16.mxu0 0
    %414 = vmatpush1.bf16.msra.mxu0 %v327
    %415 = vmatprep.subr.bf16.mxu0 0
    %416 = vmatpush1.bf16.msra.mxu0 %v328
    %417 = vmatprep.subr.bf16.mxu0 0
    %418 = vmatpush1.bf16.msra.mxu0 %v329
    %419 = vmatprep.subr.bf16.mxu0 0
    %420 = vmatpush1.bf16.msra.mxu0 %v330
    %421 = vmatprep.subr.bf16.mxu0 0
    %422 = vmatpush1.bf16.msra.mxu0 %v331
    %423 = vmatprep.subr.bf16.mxu0 0
    %424 = vmatpush1.bf16.msra.mxu0 %v332
    %425 = vmatprep.subr.bf16.mxu0 0
    %426 = vmatpush1.bf16.msra.mxu0 %v333
    %427 = vmatprep.subr.bf16.mxu0 0
    %428 = vmatpush1.bf16.msra.mxu0 %v334
    %429 = vmatprep.subr.bf16.mxu0 0
    %430 = vmatpush1.bf16.msra.mxu0 %v335
    %431 = vmatprep.subr.bf16.mxu0 0
    %432 = vmatpush1.bf16.msra.mxu0 %v336
    %433 = vmatprep.mubr.bf16.mxu0 %v152
    %434 = vmatmul.mubr.bf16.gmra.mrb[0].mxu0 %v151
    %v435 = vpop.f32.mrb[0].mxu0
    %v436 = vadd.f32 %v141, %v435
    %v437 = vpop.f32.mrb[0].mxu0
    %v438 = vpop.f32.mrb[0].mxu0
    %v439 = vpop.f32.mrb[0].mxu0
    %440 = vdwg.mxu0
    %441 = vmatprep.subr.bf16.mxu0 0
    %442 = vmatpush1.bf16.msra.mxu0 %v337
    %443 = vmatprep.subr.bf16.mxu0 0
    %444 = vmatpush1.bf16.msra.mxu0 %v338
    %445 = vmatprep.subr.bf16.mxu0 0
    %446 = vmatpush1.bf16.msra.mxu0 %v339
    %447 = vmatprep.subr.bf16.mxu0 0
    %448 = vmatpush1.bf16.msra.mxu0 %v340
    %449 = vmatprep.subr.bf16.mxu0 0
    %450 = vmatpush1.bf16.msra.mxu0 %v341
    %451 = vmatprep.subr.bf16.mxu0 0
    %452 = vmatpush1.bf16.msra.mxu0 %v342
    %453 = vmatprep.subr.bf16.mxu0 0
    %454 = vmatpush1.bf16.msra.mxu0 %v343
    %455 = vmatprep.subr.bf16.mxu0 0
    %456 = vmatpush1.bf16.msra.mxu0 %v344
    %457 = vmatprep.subr.bf16.mxu0 0
    %458 = vmatpush1.bf16.msra.mxu0 %v345
    %459 = vmatprep.subr.bf16.mxu0 0
    %460 = vmatpush1.bf16.msra.mxu0 %v346
    %461 = vmatprep.subr.bf16.mxu0 0
    %462 = vmatpush1.bf16.msra.mxu0 %v347
    %463 = vmatprep.subr.bf16.mxu0 0
    %464 = vmatpush1.bf16.msra.mxu0 %v348
    %465 = vmatprep.subr.bf16.mxu0 0
    %466 = vmatpush1.bf16.msra.mxu0 %v349
    %467 = vmatprep.subr.bf16.mxu0 0
    %468 = vmatpush1.bf16.msra.mxu0 %v350
    %469 = vmatprep.subr.bf16.mxu0 0
    %470 = vmatpush1.bf16.msra.mxu0 %v351
    %471 = vmatprep.subr.bf16.mxu0 0
    %472 = vmatpush1.bf16.msra.mxu0 %v352
    %473 = vmatprep.mubr.bf16.mxu0 %v154
    %474 = vmatmul.mubr.bf16.gmra.mrb[0].mxu0 %v153
    %v475 = vpop.f32.mrb[0].mxu0
    %v476 = vadd.f32 %v436, %v475
    %v477 = vpop.f32.mrb[0].mxu0
    %v478 = vpop.f32.mrb[0].mxu0
    %v479 = vpop.f32.mrb[0].mxu0
    %480 = vdwg.mxu0
    %481 = vmatprep.subr.bf16.mxu0 0
    %482 = vmatpush1.bf16.msra.mxu0 %v353
    %483 = vmatprep.subr.bf16.mxu0 0
    %484 = vmatpush1.bf16.msra.mxu0 %v354
    %485 = vmatprep.subr.bf16.mxu0 0
    %486 = vmatpush1.bf16.msra.mxu0 %v355
    %487 = vmatprep.subr.bf16.mxu0 0
    %488 = vmatpush1.bf16.msra.mxu0 %v356
    %489 = vmatprep.subr.bf16.mxu0 0
    %490 = vmatpush1.bf16.msra.mxu0 %v357
    %491 = vmatprep.subr.bf16.mxu0 0
    %492 = vmatpush1.bf16.msra.mxu0 %v358
    %493 = vmatprep.subr.bf16.mxu0 0
    %494 = vmatpush1.bf16.msra.mxu0 %v359
    %495 = vmatprep.subr.bf16.mxu0 0
    %496 = vmatpush1.bf16.msra.mxu0 %v360
    %497 = vmatprep.subr.bf16.mxu0 0
    %498 = vmatpush1.bf16.msra.mxu0 0
    %499 = vmatprep.subr.bf16.mxu0 0
    %500 = vmatpush1.bf16.msra.mxu0 0
    %501 = vmatprep.subr.bf16.mxu0 0
    %502 = vmatpush1.bf16.msra.mxu0 0
    %503 = vmatprep.subr.bf16.mxu0 0
    %504 = vmatpush1.bf16.msra.mxu0 0
    %505 = vmatprep.subr.bf16.mxu0 0
    %506 = vmatpush1.bf16.msra.mxu0 0
    %507 = vmatprep.subr.bf16.mxu0 0
    %508 = vmatpush1.bf16.msra.mxu0 0
    %509 = vmatprep.subr.bf16.mxu0 0
    %510 = vmatpush1.bf16.msra.mxu0 0
    %511 = vmatprep.subr.bf16.mxu0 0
    %512 = vmatpush1.bf16.msra.mxu0 0
    %513 = vmatprep.mubr.bf16.mxu0 0
    %514 = vmatmul.mubr.bf16.gmra.mrb[0].mxu0 %v155
    %v515 = vpop.f32.mrb[0].mxu0
    %v516 = vadd.f32 %v476, %v515
    %v517 = vpop.f32.mrb[0].mxu0
    %v518 = vpop.f32.mrb[0].mxu0
    %v519 = vpop.f32.mrb[0].mxu0
    %520 = vdwg.mxu0
    %v521 = vmul.f32 %v516, 0.2
    %v522 = vmax.f32 %v516, %v521
    %v523 = vpack.c.bf16 %v522, %v522
    %524 = vst [vmem:[#allocation8] sm:$0xf] %v523
    // Predicated region
    $region26: #{discriminator_forward.6} parent=1 // pred_check
      _
    $region27: #{discriminator_forward.6} parent=1 // pred_check_branch
      %526 = sbr.rel (0) target = $region29
    $region28: #{discriminator_forward.6} parent=1 // pred_region
      %s528 = ssub.s32 64, 64
      %529 = vsyncadd [#allocation4], %s528
      %s531 = sshll.u32 [#allocation8], 4
      %s532 = int_to_ptr.vmem [resolvable:$true] %s531
      %534 = dma.vmem_to_hbm [thread:$0]  %s532, 64, %s3, [#allocation4]
    $region29: #{discriminator_forward.6} parent=1 // pred_fallthru
      _
    // Predicated region
    $region30: #{discriminator_forward.6} parent=1 // pred_check
      _
    $region31: #{discriminator_forward.6} parent=1 // pred_check_branch
      %536 = sbr.rel (0) target = $region33
    $region32: #{discriminator_forward.6} parent=1 // pred_region
      %537 = dma.done [#allocation4], 64
    $region33: #{discriminator_forward.6} parent=1 // pred_fallthru
      _
    %538 = vsyncpa [#allocation3], 1
    %539 = vsyncpa [#allocation6], 1
    %540 = vsyncpa [#allocation4], 1

// kernel: tile.8
$region0: #{tile.8}
  #allocation0 [shape = 's32[1]{0}', space=sflag, size = 0x4, scoped, tag = 'scoped memory for tile.8']
  %s0 = inlined_call_operand.vmem [shape: f32[8], index: 0, kind: input, shape index: {}]
  %s1 = inlined_call_operand.vmem [shape: f32[2,8], index: 1, kind: output, shape index: {}]
  // Predicated region
  $region2: #{tile.8} parent=0 // pred_check
    _
  $region3: #{tile.8} parent=0 // pred_check_branch
    %3 = sbr.rel (0) target = $region5
  $region4: #{tile.8} parent=0 // pred_region
    _
  $region5: #{tile.8} parent=0 // pred_fallthru
    _
  %v4 = vld [vmem:[%s0] ss:$0 sm:$0xff]
  %5 = vst [vmem:[%s1] sm:$0x3] %v4

// kernel: tile.0
$region0: #{tile.0}
  %s0 = inlined_call_operand.vmem [shape: f32[2,8], index: 0, kind: input, shape index: {}]
  %s1 = inlined_call_operand.hbm [shape: f32[16,1], index: 1, kind: output, shape index: {}]
  $region1: #{tile.0} parent=0
    #allocation0 [shape = 'u8[8192]{0}', space=vmem, size = 0x2000, scoped, tag = 'operand span for operand 1']
    #allocation1 [shape = 's32[1]{0}', space=sflag, size = 0x4, scoped, tag = 'scoped memory for tile.0']
    #allocation2 [shape = 'u8[4096]{0}', space=vmem, size = 0x1000, scoped, tag = 'scoped mem for input reshape']
    %2 = vsyncpa [#allocation1], 0
    %s4 = sshllo.u32 0, 2
    %v5 = vld [vmem:[%s0] sm:%s4]
    %6 = vst [vmem:[#allocation2] sm:%s4] %v5
    %v7 = vld [vmem:[#allocation2] sm:$0x3]
    %vm8 = vcmask 7168
    %9 = vst.msk [vmem:[#allocation0] ss:$8 sm:$0x3] %vm8, %v7
    %v10 = vld [vmem:[#allocation2] sm:$0x3]
    %11 = vrot.lane.b32.xlu0 %v10, 127
    %v12 = vpop.permute.xlu0 %11
    %vm13 = vcmask 7168
    %s14 = scalar_lea.vmem [#allocation0], 1
    %15 = vst.msk [vmem:[%s14] ss:$8 sm:$0x3] %vm13, %v12
    %v16 = vld [vmem:[#allocation2] sm:$0x3]
    %17 = vrot.lane.b32.xlu0 %v16, 126
    %v18 = vpop.permute.xlu0 %17
    %vm19 = vcmask 7168
    %s20 = scalar_lea.vmem [#allocation0], 2
    %21 = vst.msk [vmem:[%s20] ss:$8 sm:$0x3] %vm19, %v18
    %v22 = vld [vmem:[#allocation2] sm:$0x3]
    %23 = vrot.lane.b32.xlu0 %v22, 125
    %v24 = vpop.permute.xlu0 %23
    %vm25 = vcmask 7168
    %s26 = scalar_lea.vmem [#allocation0], 3
    %27 = vst.msk [vmem:[%s26] ss:$8 sm:$0x3] %vm25, %v24
    %v28 = vld [vmem:[#allocation2] sm:$0x3]
    %29 = vrot.lane.b32.xlu0 %v28, 124
    %v30 = vpop.permute.xlu0 %29
    %vm31 = vcmask 7168
    %s32 = scalar_lea.vmem [#allocation0], 4
    %33 = vst.msk [vmem:[%s32] ss:$8 sm:$0x3] %vm31, %v30
    %v34 = vld [vmem:[#allocation2] sm:$0x3]
    %35 = vrot.lane.b32.xlu0 %v34, 123
    %v36 = vpop.permute.xlu0 %35
    %vm37 = vcmask 7168
    %s38 = scalar_lea.vmem [#allocation0], 5
    %39 = vst.msk [vmem:[%s38] ss:$8 sm:$0x3] %vm37, %v36
    %v40 = vld [vmem:[#allocation2] sm:$0x3]
    %41 = vrot.lane.b32.xlu0 %v40, 122
    %v42 = vpop.permute.xlu0 %41
    %vm43 = vcmask 7168
    %s44 = scalar_lea.vmem [#allocation0], 6
    %45 = vst.msk [vmem:[%s44] ss:$8 sm:$0x3] %vm43, %v42
    %v46 = vld [vmem:[#allocation2] sm:$0x3]
    %47 = vrot.lane.b32.xlu0 %v46, 121
    %v48 = vpop.permute.xlu0 %47
    %vm49 = vcmask 7168
    %s50 = scalar_lea.vmem [#allocation0], 7
    %51 = vst.msk [vmem:[%s50] ss:$8 sm:$0x3] %vm49, %v48
    %s53 = ssub.s32 256, 256
    %54 = vsyncadd [#allocation1], %s53
    %s56 = sshll.u32 [#allocation0], 4
    %s57 = int_to_ptr.vmem [resolvable:$true] %s56
    %59 = dma.vmem_to_hbm [thread:$0]  %s57, 256, %s1, [#allocation1]
    %60 = dma.done [#allocation1], 256
    %61 = vsyncpa [#allocation1], 1

// kernel: discriminator_forward.7
$region0: #{discriminator_forward.7}
  #allocation0 [shape = 'u32[]', space=smem, size = 0x4, offset = 0x4, fixed_abs, tag = 'smem constant byte address 0x4 - core index']
  #allocation1 [shape = 'u32[144,128]{1,0:T(1,128)}', space=vmem, size = 0x12000, scoped, tag = 'internal scratch']
  #allocation2 [shape = 'bf16[40,256]{1,0:T(8,128)(2,1)}', space=vmem, size = 0x5000, scoped, tag = 'scratch operand']
  #allocation3 [shape = 'bf16[40,256]{1,0:T(8,128)(2,1)}', space=vmem, size = 0x5000, scoped, tag = 'scratch operand']
  #allocation4 [shape = 'f32[1,1]{1,0:T(1,128)S(1)}', space=vmem, size = 0x200, scoped, tag = 'scoped memory for discriminator_forward.7']
  %s0 = inlined_call_operand.hbm [shape: bf16[2,40,128], index: 0, kind: input, shape index: {}]
  %s1 = inlined_call_operand.hbm [shape: f32[16,1], index: 1, kind: input, shape index: {}]
  %s2 = inlined_call_operand.hbm [shape: bf16[9,128,256], index: 2, kind: input, shape index: {}]
  %s3 = inlined_call_operand.hbm [shape: f32[1,256], index: 3, kind: input, shape index: {}]
  %s4 = inlined_call_operand.hbm [shape: bf16[128,256], index: 4, kind: input, shape index: {}]
  %s5 = inlined_call_operand.hbm [shape: bf16[9,256,256], index: 5, kind: input, shape index: {}]
  %s6 = inlined_call_operand.hbm [shape: f32[1,256], index: 6, kind: input, shape index: {}]
  %s7 = inlined_call_operand.hbm [shape: bf16[9,256,256], index: 7, kind: input, shape index: {}]
  %s8 = inlined_call_operand.hbm [shape: f32[1,256], index: 8, kind: input, shape index: {}]
  %s9 = inlined_call_operand.hbm [shape: bf16[9,256,256], index: 9, kind: input, shape index: {}]
  %s10 = inlined_call_operand.hbm [shape: f32[1,256], index: 10, kind: input, shape index: {}]
  %s11 = inlined_call_operand.hbm [shape: f32[9,1,256], index: 11, kind: input, shape index: {}]
  %s12 = inlined_call_operand.<no memory space> [shape: f32[1,1], index: 12, kind: input, shape index: {}]
  %s13 = inlined_call_operand.hbm [shape: f32[2,16,1], index: 13, kind: output, shape index: {}]
  %s14 = sld [smem:[#allocation0]]
  $region133: #{discriminator_forward.7} parent=0
    _
  %s16 = ssub.s32 1, %s14
  %s17 = scalar_select 0, %s16, %s14
  %v18 = vstv %s12
  %19 = vst [vmem:[#allocation4] sm:$0x1] %v18
  $region1: #{discriminator_forward.7} parent=0
    #allocation5 [shape = 'u8[20480]{0}', space=vmem, size = 0x5000, scoped, tag = 'input window, operand 0']
    #allocation6 [shape = 's32[2]{0}', space=sflag, size = 0x8, scoped, tag = 'scoped memory for discriminator_forward.7']
    #allocation7 [shape = 's32[2]{0}', space=sflag, size = 0x8, scoped, tag = 'scoped memory for discriminator_forward.7']
    #allocation8 [shape = 'u8[8192]{0}', space=vmem, size = 0x2000, scoped, tag = 'input window, operand 1, single buffered']
    #allocation9 [shape = 's32[1]{0}', space=sflag, size = 0x4, scoped, tag = 'scoped memory for discriminator_forward.7']
    #allocation10 [shape = 'u8[589824]{0}', space=vmem, size = 0x90000, scoped, tag = 'input window, operand 2, single buffered']
    #allocation11 [shape = 'u8[1024]{0}', space=vmem, size = 0x400, scoped, tag = 'input window, operand 3, single buffered']
    #allocation12 [shape = 's32[1]{0}', space=sflag, size = 0x4, scoped, tag = 'scoped memory for discriminator_forward.7']
    #allocation13 [shape = 'u8[65536]{0}', space=vmem, size = 0x10000, scoped, tag = 'input window, operand 4, single buffered']
    #allocation14 [shape = 'u8[1179648]{0}', space=vmem, size = 0x120000, scoped, tag = 'input window, operand 5, single buffered']
    #allocation15 [shape = 's32[1]{0}', space=sflag, size = 0x4, scoped, tag = 'scoped memory for discriminator_forward.7']
    #allocation16 [shape = 'u8[1024]{0}', space=vmem, size = 0x400, scoped, tag = 'input window, operand 6, single buffered']
    #allocation17 [shape = 'u8[1179648]{0}', space=vmem, size = 0x120000, scoped, tag = 'input window, operand 7, single buffered']
    #allocation18 [shape = 's32[1]{0}', space=sflag, size = 0x4, scoped, tag = 'scoped memory for discriminator_forward.7']
    #allocation19 [shape = 'u8[1024]{0}', space=vmem, size = 0x400, scoped, tag = 'input window, operand 8, single buffered']
    #allocation20 [shape = 'u8[1179648]{0}', space=vmem, size = 0x120000, scoped, tag = 'input window, operand 9, single buffered']
    #allocation21 [shape = 's32[1]{0}', space=sflag, size = 0x4, scoped, tag = 'scoped memory for discriminator_forward.7']
    #allocation22 [shape = 'u8[1024]{0}', space=vmem, size = 0x400, scoped, tag = 'input window, operand 10, single buffered']
    #allocation23 [shape = 'u8[9216]{0}', space=vmem, size = 0x2400, scoped, tag = 'input window, operand 11, single buffered']
    #allocation24 [shape = 's32[1]{0}', space=sflag, size = 0x4, scoped, tag = 'scoped memory for discriminator_forward.7']
    #allocation25 [shape = 'u8[16384]{0}', space=vmem, size = 0x4000, scoped, tag = 'output window, operand 0']
    %20 = vsyncpa [#allocation6], 0
    %s21 = scalar_lea.sflag [#allocation6], 1
    %22 = vsyncpa %s21, 0
    %23 = vsyncpa [#allocation9], 0
    %24 = vsyncpa [#allocation12], 0
    %25 = vsyncpa [#allocation15], 0
    %26 = vsyncpa [#allocation18], 0
    %27 = vsyncpa [#allocation21], 0
    %28 = vsyncpa [#allocation24], 0
    %29 = vsyncpa [#allocation7], 0
    %s30 = scalar_lea.sflag [#allocation7], 1
    %31 = vsyncpa %s30, 0
    loop: start=0, step=1, limit=4
    $region2: #{discriminator_forward.7} parent=1 // loop_pre_header
      _
    $region3: #{discriminator_forward.7} parent=1 // loop_header
      %s33 = sphi 0, %s37
      %p34 = scmp.ge.s32.totalorder %s33, 4
      %s43 = sphi 0, %s45
      %s46 = sphi 0, %s43
      %s47 = sphi 0, %s46
      %s63 = sphi 0, %s47
      %s67 = sphi 0, %s67
      %s69 = sphi 0, %s67
      %s70 = sphi 0, %s69
      %s84 = sphi 0, %s70
      %s88 = sphi 0, %s88
      %s90 = sphi 0, %s88
      %s91 = sphi 0, %s90
      %s105 = sphi 0, %s91
      %s109 = sphi 0, %s109
      %s111 = sphi 0, %s109
      %s112 = sphi 0, %s111
      %s126 = sphi 0, %s112
      %s130 = sphi 0, %s130
      %s132 = sphi 0, %s130
      %s133 = sphi 0, %s132
      %s147 = sphi 0, %s133
      %s151 = sphi 0, %s151
      %s153 = sphi 0, %s151
      %s154 = sphi 0, %s153
      %s168 = sphi 0, %s154
      %s172 = sphi 0, %s172
      %s174 = sphi 0, %s172
      %s175 = sphi 0, %s174
      %s189 = sphi 0, %s175
      %s193 = sphi 0, %s193
      %s195 = sphi 0, %s193
      %s196 = sphi 0, %s195
      %s210 = sphi 0, %s196
      %s214 = sphi 0, %s214
      %s216 = sphi 0, %s214
      %s217 = sphi 0, %s216
      %s231 = sphi 0, %s217
      %s235 = sphi 0, %s235
      %s237 = sphi 0, %s235
      %s238 = sphi 0, %s237
      %s252 = sphi 0, %s238
      %s256 = sphi 0, %s256
      %s258 = sphi 0, %s256
      %s259 = sphi 0, %s258
      %s273 = sphi 0, %s259
      %s277 = sphi 0, %s277
      %s279 = sphi 0, %s277
      %s280 = sphi 0, %s279
      %s294 = sphi 0, %s280
      %s298 = sphi 0, %s298
      %s300 = sphi 0, %s298
      %s301 = sphi 0, %s300
      %s315 = sphi 0, %s301
      %s321 = sphi 0, %s323
      %s324 = sphi 0, %s321
      %s325 = sphi 0, %s324
      %s341 = sphi 0, %s325
    $region4: #{discriminator_forward.7} parent=1 // loop_header_branch
      %36 = sbr.rel (%p34) target = $region8
    $region5: #{discriminator_forward.7} parent=1 // loop_body
      %s38 = ssub.s32 %s33, 1
      %s39 = ssub.s32 %s33, 2
      %s40 = sadd.s32 %s33, 1
      %s41 = ssub.s32 %s33, %s40
      %p42 = scmp.eq.s32.totalorder %s41, 0
      %s44 = sadd.s32 %s43, 1
      %s45 = scalar_select %p42, %s43, %s44
      %p48 = pneg %p42
      %p49 = scmp.eq.s32.totalorder %s33, 1
      %p50 = por %p48, %p49
      %p51 = scmp.ne.s32.totalorder %s43, %s46
      %p52 = scmp.eq.s32.totalorder %s33, 0
      %p53 = por %p51, %p52
      %p54 = scmp.ne.s32.totalorder %s43, %s46
      %p55 = scmp.eq.s32.totalorder %s38, 1
      %p56 = por %p54, %p55
      %p57 = scmp.ne.s32.totalorder %s46, %s47
      %p58 = scmp.eq.s32.totalorder %s38, 0
      %p59 = por %p57, %p58
      %p60 = scmp.ne.s32.totalorder %s46, %s47
      %p61 = scmp.eq.s32.totalorder %s39, 1
      %p62 = por %p60, %p61
      %p64 = scmp.ne.s32.totalorder %s47, %s63
      %p65 = scmp.eq.s32.totalorder %s39, 0
      %p66 = por %p64, %p65
      %s68 = sadd.s32 %s67, 1
      %p71 = scmp.eq.s32.totalorder %s33, 1
      %p72 = scmp.ne.s32.totalorder %s67, %s69
      %p73 = scmp.eq.s32.totalorder %s33, 0
      %p74 = por %p72, %p73
      %p75 = scmp.ne.s32.totalorder %s67, %s69
      %p76 = scmp.eq.s32.totalorder %s38, 1
      %p77 = por %p75, %p76
      %p78 = scmp.ne.s32.totalorder %s69, %s70
      %p79 = scmp.eq.s32.totalorder %s38, 0
      %p80 = por %p78, %p79
      %p81 = scmp.ne.s32.totalorder %s69, %s70
      %p82 = scmp.eq.s32.totalorder %s39, 1
      %p83 = por %p81, %p82
      %p85 = scmp.ne.s32.totalorder %s70, %s84
      %p86 = scmp.eq.s32.totalorder %s39, 0
      %p87 = por %p85, %p86
      %s89 = sadd.s32 %s88, 1
      %p92 = scmp.eq.s32.totalorder %s33, 1
      %p93 = scmp.ne.s32.totalorder %s88, %s90
      %p94 = scmp.eq.s32.totalorder %s33, 0
      %p95 = por %p93, %p94
      %p96 = scmp.ne.s32.totalorder %s88, %s90
      %p97 = scmp.eq.s32.totalorder %s38, 1
      %p98 = por %p96, %p97
      %p99 = scmp.ne.s32.totalorder %s90, %s91
      %p100 = scmp.eq.s32.totalorder %s38, 0
      %p101 = por %p99, %p100
      %p102 = scmp.ne.s32.totalorder %s90, %s91
      %p103 = scmp.eq.s32.totalorder %s39, 1
      %p104 = por %p102, %p103
      %p106 = scmp.ne.s32.totalorder %s91, %s105
      %p107 = scmp.eq.s32.totalorder %s39, 0
      %p108 = por %p106, %p107
      %s110 = sadd.s32 %s109, 1
      %p113 = scmp.eq.s32.totalorder %s33, 1
      %p114 = scmp.ne.s32.totalorder %s109, %s111
      %p115 = scmp.eq.s32.totalorder %s33, 0
      %p116 = por %p114, %p115
      %p117 = scmp.ne.s32.totalorder %s109, %s111
      %p118 = scmp.eq.s32.totalorder %s38, 1
      %p119 = por %p117, %p118
      %p120 = scmp.ne.s32.totalorder %s111, %s112
      %p121 = scmp.eq.s32.totalorder %s38, 0
      %p122 = por %p120, %p121
      %p123 = scmp.ne.s32.totalorder %s111, %s112
      %p124 = scmp.eq.s32.totalorder %s39, 1
      %p125 = por %p123, %p124
      %p127 = scmp.ne.s32.totalorder %s112, %s126
      %p128 = scmp.eq.s32.totalorder %s39, 0
      %p129 = por %p127, %p128
      %s131 = sadd.s32 %s130, 1
      %p134 = scmp.eq.s32.totalorder %s33, 1
      %p135 = scmp.ne.s32.totalorder %s130, %s132
      %p136 = scmp.eq.s32.totalorder %s33, 0
      %p137 = por %p135, %p136
      %p138 = scmp.ne.s32.totalorder %s130, %s132
      %p139 = scmp.eq.s32.totalorder %s38, 1
      %p140 = por %p138, %p139
      %p141 = scmp.ne.s32.totalorder %s132, %s133
      %p142 = scmp.eq.s32.totalorder %s38, 0
      %p143 = por %p141, %p142
      %p144 = scmp.ne.s32.totalorder %s132, %s133
      %p145 = scmp.eq.s32.totalorder %s39, 1
      %p146 = por %p144, %p145
      %p148 = scmp.ne.s32.totalorder %s133, %s147
      %p149 = scmp.eq.s32.totalorder %s39, 0
      %p150 = por %p148, %p149
      %s152 = sadd.s32 %s151, 1
      %p155 = scmp.eq.s32.totalorder %s33, 1
      %p156 = scmp.ne.s32.totalorder %s151, %s153
      %p157 = scmp.eq.s32.totalorder %s33, 0
      %p158 = por %p156, %p157
      %p159 = scmp.ne.s32.totalorder %s151, %s153
      %p160 = scmp.eq.s32.totalorder %s38, 1
      %p161 = por %p159, %p160
      %p162 = scmp.ne.s32.totalorder %s153, %s154
      %p163 = scmp.eq.s32.totalorder %s38, 0
      %p164 = por %p162, %p163
      %p165 = scmp.ne.s32.totalorder %s153, %s154
      %p166 = scmp.eq.s32.totalorder %s39, 1
      %p167 = por %p165, %p166
      %p169 = scmp.ne.s32.totalorder %s154, %s168
      %p170 = scmp.eq.s32.totalorder %s39, 0
      %p171 = por %p169, %p170
      %s173 = sadd.s32 %s172, 1
      %p176 = scmp.eq.s32.totalorder %s33, 1
      %p177 = scmp.ne.s32.totalorder %s172, %s174
      %p178 = scmp.eq.s32.totalorder %s33, 0
      %p179 = por %p177, %p178
      %p180 = scmp.ne.s32.totalorder %s172, %s174
      %p181 = scmp.eq.s32.totalorder %s38, 1
      %p182 = por %p180, %p181
      %p183 = scmp.ne.s32.totalorder %s174, %s175
      %p184 = scmp.eq.s32.totalorder %s38, 0
      %p185 = por %p183, %p184
      %p186 = scmp.ne.s32.totalorder %s174, %s175
      %p187 = scmp.eq.s32.totalorder %s39, 1
      %p188 = por %p186, %p187
      %p190 = scmp.ne.s32.totalorder %s175, %s189
      %p191 = scmp.eq.s32.totalorder %s39, 0
      %p192 = por %p190, %p191
      %s194 = sadd.s32 %s193, 1
      %p197 = scmp.eq.s32.totalorder %s33, 1
      %p198 = scmp.ne.s32.totalorder %s193, %s195
      %p199 = scmp.eq.s32.totalorder %s33, 0
      %p200 = por %p198, %p199
      %p201 = scmp.ne.s32.totalorder %s193, %s195
      %p202 = scmp.eq.s32.totalorder %s38, 1
      %p203 = por %p201, %p202
      %p204 = scmp.ne.s32.totalorder %s195, %s196
      %p205 = scmp.eq.s32.totalorder %s38, 0
      %p206 = por %p204, %p205
      %p207 = scmp.ne.s32.totalorder %s195, %s196
      %p208 = scmp.eq.s32.totalorder %s39, 1
      %p209 = por %p207, %p208
      %p211 = scmp.ne.s32.totalorder %s196, %s210
      %p212 = scmp.eq.s32.totalorder %s39, 0
      %p213 = por %p211, %p212
      %s215 = sadd.s32 %s214, 1
      %p218 = scmp.eq.s32.totalorder %s33, 1
      %p219 = scmp.ne.s32.totalorder %s214, %s216
      %p220 = scmp.eq.s32.totalorder %s33, 0
      %p221 = por %p219, %p220
      %p222 = scmp.ne.s32.totalorder %s214, %s216
      %p223 = scmp.eq.s32.totalorder %s38, 1
      %p224 = por %p222, %p223
      %p225 = scmp.ne.s32.totalorder %s216, %s217
      %p226 = scmp.eq.s32.totalorder %s38, 0
      %p227 = por %p225, %p226
      %p228 = scmp.ne.s32.totalorder %s216, %s217
      %p229 = scmp.eq.s32.totalorder %s39, 1
      %p230 = por %p228, %p229
      %p232 = scmp.ne.s32.totalorder %s217, %s231
      %p233 = scmp.eq.s32.totalorder %s39, 0
      %p234 = por %p232, %p233
      %s236 = sadd.s32 %s235, 1
      %p239 = scmp.eq.s32.totalorder %s33, 1
      %p240 = scmp.ne.s32.totalorder %s235, %s237
      %p241 = scmp.eq.s32.totalorder %s33, 0
      %p242 = por %p240, %p241
      %p243 = scmp.ne.s32.totalorder %s235, %s237
      %p244 = scmp.eq.s32.totalorder %s38, 1
      %p245 = por %p243, %p244
      %p246 = scmp.ne.s32.totalorder %s237, %s238
      %p247 = scmp.eq.s32.totalorder %s38, 0
      %p248 = por %p246, %p247
      %p249 = scmp.ne.s32.totalorder %s237, %s238
      %p250 = scmp.eq.s32.totalorder %s39, 1
      %p251 = por %p249, %p250
      %p253 = scmp.ne.s32.totalorder %s238, %s252
      %p254 = scmp.eq.s32.totalorder %s39, 0
      %p255 = por %p253, %p254
      %s257 = sadd.s32 %s256, 1
      %p260 = scmp.eq.s32.totalorder %s33, 1
      %p261 = scmp.ne.s32.totalorder %s256, %s258
      %p262 = scmp.eq.s32.totalorder %s33, 0
      %p263 = por %p261, %p262
      %p264 = scmp.ne.s32.totalorder %s256, %s258
      %p265 = scmp.eq.s32.totalorder %s38, 1
      %p266 = por %p264, %p265
      %p267 = scmp.ne.s32.totalorder %s258, %s259
      %p268 = scmp.eq.s32.totalorder %s38, 0
      %p269 = por %p267, %p268
      %p270 = scmp.ne.s32.totalorder %s258, %s259
      %p271 = scmp.eq.s32.totalorder %s39, 1
      %p272 = por %p270, %p271
      %p274 = scmp.ne.s32.totalorder %s259, %s273
      %p275 = scmp.eq.s32.totalorder %s39, 0
      %p276 = por %p274, %p275
      %s278 = sadd.s32 %s277, 1
      %p281 = scmp.eq.s32.totalorder %s33, 1
      %p282 = scmp.ne.s32.totalorder %s277, %s279
      %p283 = scmp.eq.s32.totalorder %s33, 0
      %p284 = por %p282, %p283
      %p285 = scmp.ne.s32.totalorder %s277, %s279
      %p286 = scmp.eq.s32.totalorder %s38, 1
      %p287 = por %p285, %p286
      %p288 = scmp.ne.s32.totalorder %s279, %s280
      %p289 = scmp.eq.s32.totalorder %s38, 0
      %p290 = por %p288, %p289
      %p291 = scmp.ne.s32.totalorder %s279, %s280
      %p292 = scmp.eq.s32.totalorder %s39, 1
      %p293 = por %p291, %p292
      %p295 = scmp.ne.s32.totalorder %s280, %s294
      %p296 = scmp.eq.s32.totalorder %s39, 0
      %p297 = por %p295, %p296
      %s299 = sadd.s32 %s298, 1
      %p302 = scmp.eq.s32.totalorder %s33, 1
      %p303 = scmp.ne.s32.totalorder %s298, %s300
      %p304 = scmp.eq.s32.totalorder %s33, 0
      %p305 = por %p303, %p304
      %p306 = scmp.ne.s32.totalorder %s298, %s300
      %p307 = scmp.eq.s32.totalorder %s38, 1
      %p308 = por %p306, %p307
      %p309 = scmp.ne.s32.totalorder %s300, %s301
      %p310 = scmp.eq.s32.totalorder %s38, 0
      %p311 = por %p309, %p310
      %p312 = scmp.ne.s32.totalorder %s300, %s301
      %p313 = scmp.eq.s32.totalorder %s39, 1
      %p314 = por %p312, %p313
      %p316 = scmp.ne.s32.totalorder %s301, %s315
      %p317 = scmp.eq.s32.totalorder %s39, 0
      %p318 = por %p316, %p317
      %s319 = ssub.s32 %s33, %s40
      %p320 = scmp.eq.s32.totalorder %s319, 0
      %s322 = sadd.s32 %s321, 1
      %s323 = scalar_select %p320, %s321, %s322
      %p326 = pneg %p320
      %p327 = scmp.eq.s32.totalorder %s33, 1
      %p328 = por %p326, %p327
      %p329 = scmp.ne.s32.totalorder %s321, %s324
      %p330 = scmp.eq.s32.totalorder %s33, 0
      %p331 = por %p329, %p330
      %p332 = scmp.ne.s32.totalorder %s321, %s324
      %p333 = scmp.eq.s32.totalorder %s38, 1
      %p334 = por %p332, %p333
      %p335 = scmp.ne.s32.totalorder %s324, %s325
      %p336 = scmp.eq.s32.totalorder %s38, 0
      %p337 = por %p335, %p336
      %p338 = scmp.ne.s32.totalorder %s324, %s325
      %p339 = scmp.eq.s32.totalorder %s39, 1
      %p340 = por %p338, %p339
      %p342 = scmp.ne.s32.totalorder %s325, %s341
      %p343 = scmp.eq.s32.totalorder %s39, 0
      %p344 = por %p342, %p343
      %p345 = scmp.le.s32.totalorder 1, %s33
      %p346 = scmp.lt.s32.totalorder %s33, 3
      %p347 = pnand %p345, %p346
      %p348 = pneg %p347
      // Predicated region
      $region9: #{discriminator_forward.7} parent=5 // pred_check
        _
      $region10: #{discriminator_forward.7} parent=5 // pred_check_branch
        %350 = sbr.rel (%p347) target = $region12
      $region11: #{discriminator_forward.7} parent=5 // pred_region
        %s351 = ssub.s32 %s33, 1
        // Predicated region
        $region13: #{discriminator_forward.7} parent=11 // pred_check
          %p352 = pneg %p80
        $region14: #{discriminator_forward.7} parent=11 // pred_check_branch
          %354 = sbr.rel (%p352) target = $region16
        $region15: #{discriminator_forward.7} parent=11 // pred_region
          %s356 = ssub.s32 256, 256
          %357 = vsyncadd [#allocation9], %s356
          %s358 = sshll.u32 [#allocation8], 4
          %s359 = int_to_ptr.vmem [resolvable:$true] %s358
          %364 = dma.hbm_to_vmem [thread:$0]  %s1, 256, %s359, [#allocation9], 128, 128, 8
        $region16: #{discriminator_forward.7} parent=11 // pred_fallthru
          _
        // Predicated region
        $region17: #{discriminator_forward.7} parent=11 // pred_check
          %p365 = pneg %p101
        $region18: #{discriminator_forward.7} parent=11 // pred_check_branch
          %367 = sbr.rel (%p365) target = $region20
        $region19: #{discriminator_forward.7} parent=11 // pred_region
          %s369 = ssub.s32 18432, 18432
          %370 = vsyncadd [#allocation9], %s369
          %s371 = sshll.u32 [#allocation10], 4
          %s372 = int_to_ptr.vmem [resolvable:$true] %s371
          %377 = dma.hbm_to_vmem [thread:$0]  %s2, 18432, %s372, [#allocation9], 128, 128, 8
        $region20: #{discriminator_forward.7} parent=11 // pred_fallthru
          _
        // Predicated region
        $region21: #{discriminator_forward.7} parent=11 // pred_check
          %p378 = pneg %p122
        $region22: #{discriminator_forward.7} parent=11 // pred_check_branch
          %380 = sbr.rel (%p378) target = $region24
        $region23: #{discriminator_forward.7} parent=11 // pred_region
          %s382 = ssub.s32 32, 32
          %383 = vsyncadd [#allocation12], %s382
          %s385 = sshll.u32 [#allocation11], 4
          %s386 = int_to_ptr.vmem [resolvable:$true] %s385
          %388 = dma.hbm_to_vmem [thread:$0]  %s3, 32, %s386, [#allocation12]
        $region24: #{discriminator_forward.7} parent=11 // pred_fallthru
          _
        // Predicated region
        $region25: #{discriminator_forward.7} parent=11 // pred_check
          %p389 = pneg %p143
        $region26: #{discriminator_forward.7} parent=11 // pred_check_branch
          %391 = sbr.rel (%p389) target = $region28
        $region27: #{discriminator_forward.7} parent=11 // pred_region
          %s393 = ssub.s32 2048, 2048
          %394 = vsyncadd [#allocation12], %s393
          %s395 = sshll.u32 [#allocation13], 4
          %s396 = int_to_ptr.vmem [resolvable:$true] %s395
          %401 = dma.hbm_to_vmem [thread:$0]  %s4, 2048, %s396, [#allocation12], 128, 128, 8
        $region28: #{discriminator_forward.7} parent=11 // pred_fallthru
          _
        // Predicated region
        $region29: #{discriminator_forward.7} parent=11 // pred_check
          %p402 = pneg %p164
        $region30: #{discriminator_forward.7} parent=11 // pred_check_branch
          %404 = sbr.rel (%p402) target = $region32
        $region31: #{discriminator_forward.7} parent=11 // pred_region
          %s406 = ssub.s32 36864, 36864
          %407 = vsyncadd [#allocation15], %s406
          %s408 = sshll.u32 [#allocation14], 4
          %s409 = int_to_ptr.vmem [resolvable:$true] %s408
          %414 = dma.hbm_to_vmem [thread:$0]  %s5, 36864, %s409, [#allocation15], 128, 128, 8
        $region32: #{discriminator_forward.7} parent=11 // pred_fallthru
          _
        // Predicated region
        $region33: #{discriminator_forward.7} parent=11 // pred_check
          %p415 = pneg %p185
        $region34: #{discriminator_forward.7} parent=11 // pred_check_branch
          %417 = sbr.rel (%p415) target = $region36
        $region35: #{discriminator_forward.7} parent=11 // pred_region
          %s419 = ssub.s32 32, 32
          %420 = vsyncadd [#allocation15], %s419
          %s422 = sshll.u32 [#allocation16], 4
          %s423 = int_to_ptr.vmem [resolvable:$true] %s422
          %425 = dma.hbm_to_vmem [thread:$0]  %s6, 32, %s423, [#allocation15]
        $region36: #{discriminator_forward.7} parent=11 // pred_fallthru
          _
        // Predicated region
        $region37: #{discriminator_forward.7} parent=11 // pred_check
          %p426 = pneg %p206
        $region38: #{discriminator_forward.7} parent=11 // pred_check_branch
          %428 = sbr.rel (%p426) target = $region40
        $region39: #{discriminator_forward.7} parent=11 // pred_region
          %s430 = ssub.s32 36864, 36864
          %431 = vsyncadd [#allocation18], %s430
          %s432 = sshll.u32 [#allocation17], 4
          %s433 = int_to_ptr.vmem [resolvable:$true] %s432
          %438 = dma.hbm_to_vmem [thread:$0]  %s7, 36864, %s433, [#allocation18], 128, 128, 8
        $region40: #{discriminator_forward.7} parent=11 // pred_fallthru
          _
        // Predicated region
        $region41: #{discriminator_forward.7} parent=11 // pred_check
          %p439 = pneg %p227
        $region42: #{discriminator_forward.7} parent=11 // pred_check_branch
          %441 = sbr.rel (%p439) target = $region44
        $region43: #{discriminator_forward.7} parent=11 // pred_region
          %s443 = ssub.s32 32, 32
          %444 = vsyncadd [#allocation18], %s443
          %s446 = sshll.u32 [#allocation19], 4
          %s447 = int_to_ptr.vmem [resolvable:$true] %s446
          %449 = dma.hbm_to_vmem [thread:$0]  %s8, 32, %s447, [#allocation18]
        $region44: #{discriminator_forward.7} parent=11 // pred_fallthru
          _
        // Predicated region
        $region45: #{discriminator_forward.7} parent=11 // pred_check
          %p450 = pneg %p248
        $region46: #{discriminator_forward.7} parent=11 // pred_check_branch
          %452 = sbr.rel (%p450) target = $region48
        $region47: #{discriminator_forward.7} parent=11 // pred_region
          %s454 = ssub.s32 36864, 36864
          %455 = vsyncadd [#allocation21], %s454
          %s456 = sshll.u32 [#allocation20], 4
          %s457 = int_to_ptr.vmem [resolvable:$true] %s456
          %462 = dma.hbm_to_vmem [thread:$0]  %s9, 36864, %s457, [#allocation21], 128, 128, 8
        $region48: #{discriminator_forward.7} parent=11 // pred_fallthru
          _
        // Predicated region
        $region49: #{discriminator_forward.7} parent=11 // pred_check
          %p463 = pneg %p269
        $region50: #{discriminator_forward.7} parent=11 // pred_check_branch
          %465 = sbr.rel (%p463) target = $region52
        $region51: #{discriminator_forward.7} parent=11 // pred_region
          %s467 = ssub.s32 32, 32
          %468 = vsyncadd [#allocation21], %s467
          %s470 = sshll.u32 [#allocation22], 4
          %s471 = int_to_ptr.vmem [resolvable:$true] %s470
          %473 = dma.hbm_to_vmem [thread:$0]  %s10, 32, %s471, [#allocation21]
        $region52: #{discriminator_forward.7} parent=11 // pred_fallthru
          _
        // Predicated region
        $region53: #{discriminator_forward.7} parent=11 // pred_check
          %p474 = pneg %p290
        $region54: #{discriminator_forward.7} parent=11 // pred_check_branch
          %476 = sbr.rel (%p474) target = $region56
        $region55: #{discriminator_forward.7} parent=11 // pred_region
          %s478 = ssub.s32 288, 288
          %479 = vsyncadd [#allocation24], %s478
          %s480 = sshll.u32 [#allocation23], 4
          %s481 = int_to_ptr.vmem [resolvable:$true] %s480
          %486 = dma.hbm_to_vmem [thread:$0]  %s11, 288, %s481, [#allocation24], 32, 32, 2
        $region56: #{discriminator_forward.7} parent=11 // pred_fallthru
          _
        // Predicated region
        $region57: #{discriminator_forward.7} parent=11 // pred_check
          %p487 = pneg %p311
        $region58: #{discriminator_forward.7} parent=11 // pred_check_branch
          %489 = sbr.rel (%p487) target = $region60
        $region59: #{discriminator_forward.7} parent=11 // pred_region
          _
        $region60: #{discriminator_forward.7} parent=11 // pred_fallthru
          _
      $region12: #{discriminator_forward.7} parent=5 // pred_fallthru
        _
      %p490 = scmp.lt.s32.totalorder %s33, 2
      // Predicated region
      $region61: #{discriminator_forward.7} parent=5 // pred_check
        %p491 = pneg %p490
      $region62: #{discriminator_forward.7} parent=5 // pred_check_branch
        %493 = sbr.rel (%p491) target = $region64
      $region63: #{discriminator_forward.7} parent=5 // pred_region
        // Predicated region
        $region65: #{discriminator_forward.7} parent=63 // pred_check
          %p494 = pneg %p53
        $region66: #{discriminator_forward.7} parent=63 // pred_check_branch
          %496 = sbr.rel (%p494) target = $region68
        $region67: #{discriminator_forward.7} parent=63 // pred_region
          %s497 = sand.u32 %s43, 1
          %s498 = scalar_lea.sflag [#allocation6], %s497
          %s499 = sand.u32 %s43, 1
          %s500 = smul.addr %s499, 20
          %s501 = scalar_lea.vmem [#allocation5], %s500
          %s503 = ssub.s32 320, 320
          %504 = vsyncadd %s498, %s503
          %s505 = smul.addr %s33, 5
          %s506 = smul.addr %s505, 64
          %s507 = scalar_lea.hbm %s0, %s506
          %s508 = sshll.u32 %s501, 4
          %s509 = int_to_ptr.vmem [resolvable:$true] %s508
          %514 = dma.hbm_to_vmem [thread:$0]  %s507, 320, %s509, %s498, 64, 64, 4
        $region68: #{discriminator_forward.7} parent=63 // pred_fallthru
          _
      $region64: #{discriminator_forward.7} parent=5 // pred_fallthru
        _
      %p515 = scmp.le.s32.totalorder 1, %s33
      %p516 = scmp.lt.s32.totalorder %s33, 3
      %p517 = pnand %p515, %p516
      %p518 = pneg %p517
      // Predicated region
      $region69: #{discriminator_forward.7} parent=5 // pred_check
        _
      $region70: #{discriminator_forward.7} parent=5 // pred_check_branch
        %520 = sbr.rel (%p517) target = $region72
      $region71: #{discriminator_forward.7} parent=5 // pred_region
        %s521 = ssub.s32 %s33, 1
        %s522 = sand.u32 %s46, 1
        %s523 = scalar_lea.sflag [#allocation6], %s522
        %s524 = sand.u32 %s46, 1
        %s525 = smul.addr %s524, 20
        %s526 = scalar_lea.vmem [#allocation5], %s525
        // Predicated region
        $region73: #{discriminator_forward.7} parent=71 // pred_check
          %p527 = pneg %p59
        $region74: #{discriminator_forward.7} parent=71 // pred_check_branch
          %529 = sbr.rel (%p527) target = $region76
        $region75: #{discriminator_forward.7} parent=71 // pred_region
          %530 = dma.done %s523, 320
        $region76: #{discriminator_forward.7} parent=71 // pred_fallthru
          _
        // Predicated region
        $region77: #{discriminator_forward.7} parent=71 // pred_check
          %p531 = pneg %p80
        $region78: #{discriminator_forward.7} parent=71 // pred_check_branch
          %533 = sbr.rel (%p531) target = $region80
        $region79: #{discriminator_forward.7} parent=71 // pred_region
          %534 = dma.done [#allocation9], 256
        $region80: #{discriminator_forward.7} parent=71 // pred_fallthru
          _
        // Predicated region
        $region81: #{discriminator_forward.7} parent=71 // pred_check
          %p535 = pneg %p101
        $region82: #{discriminator_forward.7} parent=71 // pred_check_branch
          %537 = sbr.rel (%p535) target = $region84
        $region83: #{discriminator_forward.7} parent=71 // pred_region
          %538 = dma.done [#allocation9], 18432
        $region84: #{discriminator_forward.7} parent=71 // pred_fallthru
          _
        // Predicated region
        $region85: #{discriminator_forward.7} parent=71 // pred_check
          %p539 = pneg %p122
        $region86: #{discriminator_forward.7} parent=71 // pred_check_branch
          %541 = sbr.rel (%p539) target = $region88
        $region87: #{discriminator_forward.7} parent=71 // pred_region
          %542 = dma.done [#allocation12], 32
        $region88: #{discriminator_forward.7} parent=71 // pred_fallthru
          _
        // Predicated region
        $region89: #{discriminator_forward.7} parent=71 // pred_check
          %p543 = pneg %p143
        $region90: #{discriminator_forward.7} parent=71 // pred_check_branch
          %545 = sbr.rel (%p543) target = $region92
        $region91: #{discriminator_forward.7} parent=71 // pred_region
          %546 = dma.done [#allocation12], 2048
        $region92: #{discriminator_forward.7} parent=71 // pred_fallthru
          _
        // Predicated region
        $region93: #{discriminator_forward.7} parent=71 // pred_check
          %p547 = pneg %p164
        $region94: #{discriminator_forward.7} parent=71 // pred_check_branch
          %549 = sbr.rel (%p547) target = $region96
        $region95: #{discriminator_forward.7} parent=71 // pred_region
          %550 = dma.done [#allocation15], 36864
        $region96: #{discriminator_forward.7} parent=71 // pred_fallthru
          _
        // Predicated region
        $region97: #{discriminator_forward.7} parent=71 // pred_check
          %p551 = pneg %p185
        $region98: #{discriminator_forward.7} parent=71 // pred_check_branch
          %553 = sbr.rel (%p551) target = $region100
        $region99: #{discriminator_forward.7} parent=71 // pred_region
          %554 = dma.done [#allocation15], 32
        $region100: #{discriminator_forward.7} parent=71 // pred_fallthru
          _
        // Predicated region
        $region101: #{discriminator_forward.7} parent=71 // pred_check
          %p555 = pneg %p206
        $region102: #{discriminator_forward.7} parent=71 // pred_check_branch
          %557 = sbr.rel (%p555) target = $region104
        $region103: #{discriminator_forward.7} parent=71 // pred_region
          %558 = dma.done [#allocation18], 36864
        $region104: #{discriminator_forward.7} parent=71 // pred_fallthru
          _
        // Predicated region
        $region105: #{discriminator_forward.7} parent=71 // pred_check
          %p559 = pneg %p227
        $region106: #{discriminator_forward.7} parent=71 // pred_check_branch
          %561 = sbr.rel (%p559) target = $region108
        $region107: #{discriminator_forward.7} parent=71 // pred_region
          %562 = dma.done [#allocation18], 32
        $region108: #{discriminator_forward.7} parent=71 // pred_fallthru
          _
        // Predicated region
        $region109: #{discriminator_forward.7} parent=71 // pred_check
          %p563 = pneg %p248
        $region110: #{discriminator_forward.7} parent=71 // pred_check_branch
          %565 = sbr.rel (%p563) target = $region112
        $region111: #{discriminator_forward.7} parent=71 // pred_region
          %566 = dma.done [#allocation21], 36864
        $region112: #{discriminator_forward.7} parent=71 // pred_fallthru
          _
        // Predicated region
        $region113: #{discriminator_forward.7} parent=71 // pred_check
          %p567 = pneg %p269
        $region114: #{discriminator_forward.7} parent=71 // pred_check_branch
          %569 = sbr.rel (%p567) target = $region116
        $region115: #{discriminator_forward.7} parent=71 // pred_region
          %570 = dma.done [#allocation21], 32
        $region116: #{discriminator_forward.7} parent=71 // pred_fallthru
          _
        // Predicated region
        $region117: #{discriminator_forward.7} parent=71 // pred_check
          %p571 = pneg %p290
        $region118: #{discriminator_forward.7} parent=71 // pred_check_branch
          %573 = sbr.rel (%p571) target = $region120
        $region119: #{discriminator_forward.7} parent=71 // pred_region
          %574 = dma.done [#allocation24], 288
        $region120: #{discriminator_forward.7} parent=71 // pred_fallthru
          _
        %s575 = sand.u32 %s46, 1
        %s576 = scalar_lea.sflag [#allocation6], %s575
        %s577 = sand.u32 %s46, 1
        %s578 = smul.addr %s577, 20
        %s579 = scalar_lea.vmem [#allocation5], %s578
        %p580 = pneg %p59
        %p581 = pneg %p56
        %p582 = pneg %p80
        %p583 = pneg %p77
        %p584 = pneg %p101
        %p585 = pneg %p98
        %p586 = pneg %p122
        %p587 = pneg %p119
        %p588 = pneg %p143
        %p589 = pneg %p140
        %p590 = pneg %p164
        %p591 = pneg %p161
        %p592 = pneg %p185
        %p593 = pneg %p182
        %p594 = pneg %p206
        %p595 = pneg %p203
        %p596 = pneg %p227
        %p597 = pneg %p224
        %p598 = pneg %p248
        %p599 = pneg %p245
        %p600 = pneg %p269
        %p601 = pneg %p266
        %p602 = pneg %p290
        %p603 = pneg %p287
        %p604 = pneg %p311
        %p605 = pneg %p308
        %p606 = pneg %p337
        %p607 = pneg %p334
        %s608 = sand.u32 %s324, 1
        %s609 = scalar_lea.sflag [#allocation7], %s608
        %s610 = sand.u32 %s324, 1
        %s611 = smul.addr %s610, 16
        %s612 = scalar_lea.vmem [#allocation25], %s611
        %614 = vst [vmem:[#allocation2] sm:$0xff] 0
        %615 = vst [vmem:[#allocation2 + $0x8] sm:$0xff] 0
        %616 = vst [vmem:[#allocation2 + $0x10] sm:$0xff] 0
        %617 = vst [vmem:[#allocation2 + $0x18] sm:$0xff] 0
        %618 = vst [vmem:[#allocation2 + $0x20] sm:$0xff] 0
        %619 = vst [vmem:[#allocation3] sm:$0xff] 0
        %620 = vst [vmem:[#allocation3 + $0x8] sm:$0xff] 0
        %621 = vst [vmem:[#allocation3 + $0x10] sm:$0xff] 0
        %622 = vst [vmem:[#allocation3 + $0x18] sm:$0xff] 0
        %623 = vst [vmem:[#allocation3 + $0x20] sm:$0xff] 0
        %v624 = vld [vmem:[%s526] sm:$0xf]
        %v625 = vld [vmem:[%s526 + $0x4] sm:$0xf]
        %v626 = vld [vmem:[#allocation10] sm:$0xff]
        %v627 = vld [vmem:[#allocation10 + $0x8] sm:$0xff]
        %v628 = vld [vmem:[#allocation10 + $0x10] sm:$0xff]
        %v629 = vld [vmem:[#allocation10 + $0x18] sm:$0xff]
        %v630 = vld [vmem:[#allocation10 + $0x20] sm:$0xff]
        %v631 = vld [vmem:[#allocation10 + $0x28] sm:$0xff]
        %v632 = vld [vmem:[#allocation10 + $0x30] sm:$0xff]
        %v633 = vld [vmem:[#allocation10 + $0x38] sm:$0xff]
        %v634 = vld [vmem:[#allocation10 + $0x40] sm:$0xff]
        %v635 = vld [vmem:[#allocation10 + $0x48] sm:$0xff]
        %v636 = vld [vmem:[#allocation10 + $0x50] sm:$0xff]
        %v637 = vld [vmem:[#allocation10 + $0x58] sm:$0xff]
        %v638 = vld [vmem:[#allocation10 + $0x60] sm:$0xff]
        %v639 = vld [vmem:[#allocation10 + $0x68] sm:$0xff]
        %v640 = vld [vmem:[#allocation10 + $0x70] sm:$0xff]
        %v641 = vld [vmem:[#allocation10 + $0x78] sm:$0xff]
        %v642 = vld [vmem:[%s526 + $0x8] sm:$0x1]
        %s643 = scalar_lea.vmem [#allocation10], 128
        %v644 = vld [vmem:[%s643] sm:$0xff]
        %v645 = vld [vmem:[%s643 + $0x8] sm:$0xff]
        %v646 = vld [vmem:[%s643 + $0x10] sm:$0xff]
        %v647 = vld [vmem:[%s643 + $0x18] sm:$0xff]
        %v648 = vld [vmem:[%s643 + $0x20] sm:$0xff]
        %v649 = vld [vmem:[%s643 + $0x28] sm:$0xff]
        %v650 = vld [vmem:[%s643 + $0x30] sm:$0xff]
        %v651 = vld [vmem:[%s643 + $0x38] sm:$0xff]
        %v652 = vld [vmem:[%s643 + $0x40] sm:$0xff]
        %v653 = vld [vmem:[%s643 + $0x48] sm:$0xff]
        %v654 = vld [vmem:[%s643 + $0x50] sm:$0xff]
        %v655 = vld [vmem:[%s643 + $0x58] sm:$0xff]
        %v656 = vld [vmem:[%s643 + $0x60] sm:$0xff]
        %v657 = vld [vmem:[%s643 + $0x68] sm:$0xff]
        %v658 = vld [vmem:[%s643 + $0x70] sm:$0xff]
        %v659 = vld [vmem:[%s643 + $0x78] sm:$0xff]
        %v663 = vunpack.c.l.b16 %v624
        %v664 = vunpack.c.l.b16 %v625
        %v665 = vunpack.c.l.b16 %v642
        %v666 = vpack.c.b16 %v664, %v663
        %v667 = vpack.c.b16 %v665, %v665
        %vm668 = vsmask.f32 7424
        %v670 = vshrl.u32 %v666, 16
        %v672 = vshll.u32 %v666, 16
        %v674 = vrot.slane %v672, 1
        %v675 = vor.u32 %v670, %v674
        %v677 = vshll.u32 %v667, 16
        %v679 = vrot.slane %v677, 1
        %v680 = vsel %vm668, %v675, %v679
        %v698 = vunpack.c.l.b16 %v644
        %v699 = vunpack.c.h.b16 %v644
        %v700 = vunpack.c.l.b16 %v645
        %v701 = vunpack.c.h.b16 %v645
        %v702 = vunpack.c.l.b16 %v646
        %v703 = vunpack.c.h.b16 %v646
        %v704 = vunpack.c.l.b16 %v647
        %v705 = vunpack.c.h.b16 %v647
        %v706 = vunpack.c.l.b16 %v648
        %v707 = vunpack.c.h.b16 %v648
        %v708 = vunpack.c.l.b16 %v649
        %v709 = vunpack.c.h.b16 %v649
        %v710 = vunpack.c.l.b16 %v650
        %v711 = vunpack.c.h.b16 %v650
        %v712 = vunpack.c.l.b16 %v651
        %v713 = vunpack.c.h.b16 %v651
        %v714 = vunpack.c.l.b16 %v652
        %v715 = vunpack.c.h.b16 %v652
        %v716 = vunpack.c.l.b16 %v653
        %v717 = vunpack.c.h.b16 %v653
        %v718 = vunpack.c.l.b16 %v654
        %v719 = vunpack.c.h.b16 %v654
        %v720 = vunpack.c.l.b16 %v655
        %v721 = vunpack.c.h.b16 %v655
        %v722 = vunpack.c.l.b16 %v656
        %v723 = vunpack.c.h.b16 %v656
        %v724 = vunpack.c.l.b16 %v657
        %v725 = vunpack.c.h.b16 %v657
        %v726 = vunpack.c.l.b16 %v658
        %v727 = vunpack.c.h.b16 %v658
        %v728 = vunpack.c.l.b16 %v659
        %v729 = vunpack.c.h.b16 %v659
        %v730 = vpack.c.b16 %v700, %v698
        %v731 = vpack.c.b16 %v701, %v699
        %v732 = vpack.c.b16 %v704, %v702
        %v733 = vpack.c.b16 %v705, %v703
        %v734 = vpack.c.b16 %v708, %v706
        %v735 = vpack.c.b16 %v709, %v707
        %v736 = vpack.c.b16 %v712, %v710
        %v737 = vpack.c.b16 %v713, %v711
        %v738 = vpack.c.b16 %v716, %v714
        %v739 = vpack.c.b16 %v717, %v715
        %v740 = vpack.c.b16 %v720, %v718
        %v741 = vpack.c.b16 %v721, %v719
        %v742 = vpack.c.b16 %v724, %v722
        %v743 = vpack.c.b16 %v725, %v723
        %v744 = vpack.c.b16 %v728, %v726
        %v745 = vpack.c.b16 %v729, %v727
        %762 = vmatprep.subr.bf16.mxu0 %v731
        %763 = vmatpush1.bf16.msra.mxu0 %v730
        %764 = vmatprep.subr.bf16.mxu0 %v733
        %765 = vmatpush1.bf16.msra.mxu0 %v732
        %766 = vmatprep.subr.bf16.mxu0 %v735
        %767 = vmatpush1.bf16.msra.mxu0 %v734
        %768 = vmatprep.subr.bf16.mxu0 %v737
        %769 = vmatpush1.bf16.msra.mxu0 %v736
        %770 = vmatprep.subr.bf16.mxu0 %v739
        %771 = vmatpush1.bf16.msra.mxu0 %v738
        %772 = vmatprep.subr.bf16.mxu0 %v741
        %773 = vmatpush1.bf16.msra.mxu0 %v740
        %774 = vmatprep.subr.bf16.mxu0 %v743
        %775 = vmatpush1.bf16.msra.mxu0 %v742
        %776 = vmatprep.subr.bf16.mxu0 %v745
        %777 = vmatpush1.bf16.msra.mxu0 %v744
        %778 = vmatprep.subr.bf16.mxu0 0
        %779 = vmatpush1.bf16.msra.mxu0 0
        %780 = vmatprep.subr.bf16.mxu0 0
        %781 = vmatpush1.bf16.msra.mxu0 0
        %782 = vmatprep.subr.bf16.mxu0 0
        %783 = vmatpush1.bf16.msra.mxu0 0
        %784 = vmatprep.subr.bf16.mxu0 0
        %785 = vmatpush1.bf16.msra.mxu0 0
        %786 = vmatprep.subr.bf16.mxu0 0
        %787 = vmatpush1.bf16.msra.mxu0 0
        %788 = vmatprep.subr.bf16.mxu0 0
        %789 = vmatpush1.bf16.msra.mxu0 0
        %790 = vmatprep.subr.bf16.mxu0 0
        %791 = vmatpush1.bf16.msra.mxu0 0
        %792 = vmatprep.subr.bf16.mxu0 0
        %793 = vmatpush1.bf16.msra.mxu0 0
        %794 = vmatprep.mubr.bf16.mxu0 0
        %795 = vmatmul.mubr.bf16.gmra.mrb[0].mxu0 %v680
        %v796 = vpop.f32.mrb[0].mxu0
        %v797 = vadd.f32 0.0, %v796
        %v798 = vpop.f32.mrb[0].mxu0
        %v799 = vadd.f32 0.0, %v798
        %v800 = vpop.f32.mrb[0].mxu0
        %v801 = vadd.f32 0.0, %v800
        %v802 = vpop.f32.mrb[0].mxu0
        %v803 = vadd.f32 0.0, %v802
        %804 = vdwg.mxu0
        %v822 = vunpack.c.l.b16 %v626
        %v823 = vunpack.c.h.b16 %v626
        %v824 = vunpack.c.l.b16 %v627
        %v825 = vunpack.c.h.b16 %v627
        %v826 = vunpack.c.l.b16 %v628
        %v827 = vunpack.c.h.b16 %v628
        %v828 = vunpack.c.l.b16 %v629
        %v829 = vunpack.c.h.b16 %v629
        %v830 = vunpack.c.l.b16 %v630
        %v831 = vunpack.c.h.b16 %v630
        %v832 = vunpack.c.l.b16 %v631
        %v833 = vunpack.c.h.b16 %v631
        %v834 = vunpack.c.l.b16 %v632
        %v835 = vunpack.c.h.b16 %v632
        %v836 = vunpack.c.l.b16 %v633
        %v837 = vunpack.c.h.b16 %v633
        %v838 = vunpack.c.l.b16 %v634
        %v839 = vunpack.c.h.b16 %v634
        %v840 = vunpack.c.l.b16 %v635
        %v841 = vunpack.c.h.b16 %v635
        %v842 = vunpack.c.l.b16 %v636
        %v843 = vunpack.c.h.b16 %v636
        %v844 = vunpack.c.l.b16 %v637
        %v845 = vunpack.c.h.b16 %v637
        %v846 = vunpack.c.l.b16 %v638
        %v847 = vunpack.c.h.b16 %v638
        %v848 = vunpack.c.l.b16 %v639
        %v849 = vunpack.c.h.b16 %v639
        %v850 = vunpack.c.l.b16 %v640
        %v851 = vunpack.c.h.b16 %v640
        %v852 = vunpack.c.l.b16 %v641
        %v853 = vunpack.c.h.b16 %v641
        %v854 = vpack.c.b16 %v824, %v822
        %v855 = vpack.c.b16 %v825, %v823
        %v856 = vpack.c.b16 %v828, %v826
        %v857 = vpack.c.b16 %v829, %v827
        %v858 = vpack.c.b16 %v832, %v830
        %v859 = vpack.c.b16 %v833, %v831
        %v860 = vpack.c.b16 %v836, %v834
        %v861 = vpack.c.b16 %v837, %v835
        %v862 = vpack.c.b16 %v840, %v838
        %v863 = vpack.c.b16 %v841, %v839
        %v864 = vpack.c.b16 %v844, %v842
        %v865 = vpack.c.b16 %v845, %v843
        %v866 = vpack.c.b16 %v848, %v846
        %v867 = vpack.c.b16 %v849, %v847
        %v868 = vpack.c.b16 %v852, %v850
        %v869 = vpack.c.b16 %v853, %v851
        %886 = vmatprep.subr.bf16.mxu0 %v855
        %887 = vmatpush1.bf16.msra.mxu0 %v854
        %888 = vmatprep.subr.bf16.mxu0 %v857
        %889 = vmatpush1.bf16.msra.mxu0 %v856
        %890 = vmatprep.subr.bf16.mxu0 %v859
        %891 = vmatpush1.bf16.msra.mxu0 %v858
        %892 = vmatprep.subr.bf16.mxu0 %v861
        %893 = vmatpush1.bf16.msra.mxu0 %v860
        %894 = vmatprep.subr.bf16.mxu0 %v863
        %895 = vmatpush1.bf16.msra.mxu0 %v862
        %896 = vmatprep.subr.bf16.mxu0 %v865
        %897 = vmatpush1.bf16.msra.mxu0 %v864
        %898 = vmatprep.subr.bf16.mxu0 %v867
        %899 = vmatpush1.bf16.msra.mxu0 %v866
        %900 = vmatprep.subr.bf16.mxu0 %v869
        %901 = vmatpush1.bf16.msra.mxu0 %v868
        %902 = vmatprep.subr.bf16.mxu0 0
        %903 = vmatpush1.bf16.msra.mxu0 0
        %904 = vmatprep.subr.bf16.mxu0 0
        %905 = vmatpush1.bf16.msra.mxu0 0
        %906 = vmatprep.subr.bf16.mxu0 0
        %907 = vmatpush1.bf16.msra.mxu0 0
        %908 = vmatprep.subr.bf16.mxu0 0
        %909 = vmatpush1.bf16.msra.mxu0 0
        %910 = vmatprep.subr.bf16.mxu0 0
        %911 = vmatpush1.bf16.msra.mxu0 0
        %912 = vmatprep.subr.bf16.mxu0 0
        %913 = vmatpush1.bf16.msra.mxu0 0
        %914 = vmatprep.subr.bf16.mxu0 0
        %915 = vmatpush1.bf16.msra.mxu0 0
        %916 = vmatprep.subr.bf16.mxu0 0
        %917 = vmatpush1.bf16.msra.mxu0 0
        %918 = vmatprep.mubr.bf16.mxu0 0
        %919 = vmatmul.mubr.bf16.gmra.mrb[0].mxu0 %v666
        %v920 = vpop.f32.mrb[0].mxu0
        %v921 = vadd.f32 %v797, %v920
        %v922 = vpop.f32.mrb[0].mxu0
        %v923 = vadd.f32 %v799, %v922
        %v924 = vpop.f32.mrb[0].mxu0
        %v925 = vadd.f32 %v801, %v924
        %v926 = vpop.f32.mrb[0].mxu0
        %v927 = vadd.f32 %v803, %v926
        %928 = vdwg.mxu0
        %v929 = vld [vmem:[%s526] sm:$0xe]
        %s930 = scalar_lea.vmem [#allocation10], 256
        %v931 = vld [vmem:[%s930] sm:$0xff]
        %v932 = vld [vmem:[%s930 + $0x8] sm:$0xff]
        %v933 = vld [vmem:[%s930 + $0x10] sm:$0xff]
        %v934 = vld [vmem:[%s930 + $0x18] sm:$0xff]
        %v935 = vld [vmem:[%s930 + $0x20] sm:$0xff]
        %v936 = vld [vmem:[%s930 + $0x28] sm:$0xff]
        %v937 = vld [vmem:[%s930 + $0x30] sm:$0xff]
        %v938 = vld [vmem:[%s930 + $0x38] sm:$0xff]
        %v939 = vld [vmem:[%s930 + $0x40] sm:$0xff]
        %v940 = vld [vmem:[%s930 + $0x48] sm:$0xff]
        %v941 = vld [vmem:[%s930 + $0x50] sm:$0xff]
        %v942 = vld [vmem:[%s930 + $0x58] sm:$0xff]
        %v943 = vld [vmem:[%s930 + $0x60] sm:$0xff]
        %v944 = vld [vmem:[%s930 + $0x68] sm:$0xff]
        %v945 = vld [vmem:[%s930 + $0x70] sm:$0xff]
        %v946 = vld [vmem:[%s930 + $0x78] sm:$0xff]
        %v948 = vunpack.c.l.b16 %v929
        %v949 = vpack.c.b16 %v664, %v948
        %vm950 = vcmask 1046528
        %v951 = vrot.slane %v949, 1
        %v952 = vrot.slane %v667, 1
        %v953 = vsel %vm950, %v951, %v952
        %v971 = vunpack.c.l.b16 %v931
        %v972 = vunpack.c.h.b16 %v931
        %v973 = vunpack.c.l.b16 %v932
        %v974 = vunpack.c.h.b16 %v932
        %v975 = vunpack.c.l.b16 %v933
        %v976 = vunpack.c.h.b16 %v933
        %v977 = vunpack.c.l.b16 %v934
        %v978 = vunpack.c.h.b16 %v934
        %v979 = vunpack.c.l.b16 %v935
        %v980 = vunpack.c.h.b16 %v935
        %v981 = vunpack.c.l.b16 %v936
        %v982 = vunpack.c.h.b16 %v936
        %v983 = vunpack.c.l.b16 %v937
        %v984 = vunpack.c.h.b16 %v937
        %v985 = vunpack.c.l.b16 %v938
        %v986 = vunpack.c.h.b16 %v938
        %v987 = vunpack.c.l.b16 %v939
        %v988 = vunpack.c.h.b16 %v939
        %v989 = vunpack.c.l.b16 %v940
        %v990 = vunpack.c.h.b16 %v940
        %v991 = vunpack.c.l.b16 %v941
        %v992 = vunpack.c.h.b16 %v941
        %v993 = vunpack.c.l.b16 %v942
        %v994 = vunpack.c.h.b16 %v942
        %v995 = vunpack.c.l.b16 %v943
        %v996 = vunpack.c.h.b16 %v943
        %v997 = vunpack.c.l.b16 %v944
        %v998 = vunpack.c.h.b16 %v944
        %v999 = vunpack.c.l.b16 %v945
        %v1000 = vunpack.c.h.b16 %v945
        %v1001 = vunpack.c.l.b16 %v946
        %v1002 = vunpack.c.h.b16 %v946
        %v1003 = vpack.c.b16 %v973, %v971
        %v1004 = vpack.c.b16 %v974, %v972
        %v1005 = vpack.c.b16 %v977, %v975
        %v1006 = vpack.c.b16 %v978, %v976
        %v1007 = vpack.c.b16 %v981, %v979
        %v1008 = vpack.c.b16 %v982, %v980
        %v1009 = vpack.c.b16 %v985, %v983
        %v1010 = vpack.c.b16 %v986, %v984
        %v1011 = vpack.c.b16 %v989, %v987
        %v1012 = vpack.c.b16 %v990, %v988
        %v1013 = vpack.c.b16 %v993, %v991
        %v1014 = vpack.c.b16 %v994, %v992
        %v1015 = vpack.c.b16 %v997, %v995
        %v1016 = vpack.c.b16 %v998, %v996
        %v1017 = vpack.c.b16 %v1001, %v999
        %v1018 = vpack.c.b16 %v1002, %v1000
        %1035 = vmatprep.subr.bf16.mxu0 %v1004
        %1036 = vmatpush1.bf16.msra.mxu0 %v1003
        %1037 = vmatprep.subr.bf16.mxu0 %v1006
        %1038 = vmatpush1.bf16.msra.mxu0 %v1005
        %1039 = vmatprep.subr.bf16.mxu0 %v1008
        %1040 = vmatpush1.bf16.msra.mxu0 %v1007
        %1041 = vmatprep.subr.bf16.mxu0 %v1010
        %1042 = vmatpush1.bf16.msra.mxu0 %v1009
        %1043 = vmatprep.subr.bf16.mxu0 %v1012
        %1044 = vmatpush1.bf16.msra.mxu0 %v1011
        %1045 = vmatprep.subr.bf16.mxu0 %v1014
        %1046 = vmatpush1.bf16.msra.mxu0 %v1013
        %1047 = vmatprep.subr.bf16.mxu0 %v1016
        %1048 = vmatpush1.bf16.msra.mxu0 %v1015
        %1049 = vmatprep.subr.bf16.mxu0 %v1018
        %1050 = vmatpush1.bf16.msra.mxu0 %v1017
        %1051 = vmatprep.subr.bf16.mxu0 0
        %1052 = vmatpush1.bf16.msra.mxu0 0
        %1053 = vmatprep.subr.bf16.mxu0 0
        %1054 = vmatpush1.bf16.msra.mxu0 0
        %1055 = vmatprep.subr.bf16.mxu0 0
        %1056 = vmatpush1.bf16.msra.mxu0 0
        %1057 = vmatprep.subr.bf16.mxu0 0
        %1058 = vmatpush1.bf16.msra.mxu0 0
        %1059 = vmatprep.subr.bf16.mxu0 0
        %1060 = vmatpush1.bf16.msra.mxu0 0
        %1061 = vmatprep.subr.bf16.mxu0 0
        %1062 = vmatpush1.bf16.msra.mxu0 0
        %1063 = vmatprep.subr.bf16.mxu0 0
        %1064 = vmatpush1.bf16.msra.mxu0 0
        %1065 = vmatprep.subr.bf16.mxu0 0
        %1066 = vmatpush1.bf16.msra.mxu0 0
        %1067 = vmatprep.mubr.bf16.mxu0 0
        %1068 = vmatmul.mubr.bf16.gmra.mrb[0].mxu0 %v953
        %v1069 = vpop.f32.mrb[0].mxu0
        %v1070 = vadd.f32 0.0, %v1069
        %v1071 = vpop.f32.mrb[0].mxu0
        %v1072 = vadd.f32 0.0, %v1071
        %v1073 = vpop.f32.mrb[0].mxu0
        %v1074 = vadd.f32 0.0, %v1073
        %v1075 = vpop.f32.mrb[0].mxu0
        %v1076 = vadd.f32 0.0, %v1075
        %1077 = vdwg.mxu0
        %v1078 = vadd.f32 %v921, %v1070
        %v1079 = vadd.f32 %v923, %v1072
        %v1080 = vadd.f32 %v925, %v1074
        %v1081 = vadd.f32 %v927, %v1076
        %v1082 = vld [vmem:[%s526 + $0x8] sm:$0xf]
        %s1083 = scalar_lea.vmem [#allocation10], 384
        %v1084 = vld [vmem:[%s1083] sm:$0xff]
        %v1085 = vld [vmem:[%s1083 + $0x8] sm:$0xff]
        %v1086 = vld [vmem:[%s1083 + $0x10] sm:$0xff]
        %v1087 = vld [vmem:[%s1083 + $0x18] sm:$0xff]
        %v1088 = vld [vmem:[%s1083 + $0x20] sm:$0xff]
        %v1089 = vld [vmem:[%s1083 + $0x28] sm:$0xff]
        %v1090 = vld [vmem:[%s1083 + $0x30] sm:$0xff]
        %v1091 = vld [vmem:[%s1083 + $0x38] sm:$0xff]
        %v1092 = vld [vmem:[%s1083 + $0x40] sm:$0xff]
        %v1093 = vld [vmem:[%s1083 + $0x48] sm:$0xff]
        %v1094 = vld [vmem:[%s1083 + $0x50] sm:$0xff]
        %v1095 = vld [vmem:[%s1083 + $0x58] sm:$0xff]
        %v1096 = vld [vmem:[%s1083 + $0x60] sm:$0xff]
        %v1097 = vld [vmem:[%s1083 + $0x68] sm:$0xff]
        %v1098 = vld [vmem:[%s1083 + $0x70] sm:$0xff]
        %v1099 = vld [vmem:[%s1083 + $0x78] sm:$0xff]
        %v1101 = vunpack.c.l.b16 %v1082
        %v1102 = vpack.c.b16 %v1101, %v664
        %v1120 = vunpack.c.l.b16 %v1084
        %v1121 = vunpack.c.h.b16 %v1084
        %v1122 = vunpack.c.l.b16 %v1085
        %v1123 = vunpack.c.h.b16 %v1085
        %v1124 = vunpack.c.l.b16 %v1086
        %v1125 = vunpack.c.h.b16 %v1086
        %v1126 = vunpack.c.l.b16 %v1087
        %v1127 = vunpack.c.h.b16 %v1087
        %v1128 = vunpack.c.l.b16 %v1088
        %v1129 = vunpack.c.h.b16 %v1088
        %v1130 = vunpack.c.l.b16 %v1089
        %v1131 = vunpack.c.h.b16 %v1089
        %v1132 = vunpack.c.l.b16 %v1090
        %v1133 = vunpack.c.h.b16 %v1090
        %v1134 = vunpack.c.l.b16 %v1091
        %v1135 = vunpack.c.h.b16 %v1091
        %v1136 = vunpack.c.l.b16 %v1092
        %v1137 = vunpack.c.h.b16 %v1092
        %v1138 = vunpack.c.l.b16 %v1093
        %v1139 = vunpack.c.h.b16 %v1093
        %v1140 = vunpack.c.l.b16 %v1094
        %v1141 = vunpack.c.h.b16 %v1094
        %v1142 = vunpack.c.l.b16 %v1095
        %v1143 = vunpack.c.h.b16 %v1095
        %v1144 = vunpack.c.l.b16 %v1096
        %v1145 = vunpack.c.h.b16 %v1096
        %v1146 = vunpack.c.l.b16 %v1097
        %v1147 = vunpack.c.h.b16 %v1097
        %v1148 = vunpack.c.l.b16 %v1098
        %v1149 = vunpack.c.h.b16 %v1098
        %v1150 = vunpack.c.l.b16 %v1099
        %v1151 = vunpack.c.h.b16 %v1099
        %v1152 = vpack.c.b16 %v1122, %v1120
        %v1153 = vpack.c.b16 %v1123, %v1121
        %v1154 = vpack.c.b16 %v1126, %v1124
        %v1155 = vpack.c.b16 %v1127, %v1125
        %v1156 = vpack.c.b16 %v1130, %v1128
        %v1157 = vpack.c.b16 %v1131, %v1129
        %v1158 = vpack.c.b16 %v1134, %v1132
        %v1159 = vpack.c.b16 %v1135, %v1133
        %v1160 = vpack.c.b16 %v1138, %v1136
        %v1161 = vpack.c.b16 %v1139, %v1137
        %v1162 = vpack.c.b16 %v1142, %v1140
        %v1163 = vpack.c.b16 %v1143, %v1141
        %v1164 = vpack.c.b16 %v1146, %v1144
        %v1165 = vpack.c.b16 %v1147, %v1145
        %v1166 = vpack.c.b16 %v1150, %v1148
        %v1167 = vpack.c.b16 %v1151, %v1149
        %1184 = vmatprep.subr.bf16.mxu0 %v1153
        %1185 = vmatpush1.bf16.msra.mxu0 %v1152
        %1186 = vmatprep.subr.bf16.mxu0 %v1155
        %1187 = vmatpush1.bf16.msra.mxu0 %v1154
        %1188 = vmatprep.subr.bf16.mxu0 %v1157
        %1189 = vmatpush1.bf16.msra.mxu0 %v1156
        %1190 = vmatprep.subr.bf16.mxu0 %v1159
        %1191 = vmatpush1.bf16.msra.mxu0 %v1158
        %1192 = vmatprep.subr.bf16.mxu0 %v1161
        %1193 = vmatpush1.bf16.msra.mxu0 %v1160
        %1194 = vmatprep.subr.bf16.mxu0 %v1163
        %1195 = vmatpush1.bf16.msra.mxu0 %v1162
        %1196 = vmatprep.subr.bf16.mxu0 %v1165
        %1197 = vmatpush1.bf16.msra.mxu0 %v1164
        %1198 = vmatprep.subr.bf16.mxu0 %v1167
        %1199 = vmatpush1.bf16.msra.mxu0 %v1166
        %1200 = vmatprep.subr.bf16.mxu0 0
        %1201 = vmatpush1.bf16.msra.mxu0 0
        %1202 = vmatprep.subr.bf16.mxu0 0
        %1203 = vmatpush1.bf16.msra.mxu0 0
        %1204 = vmatprep.subr.bf16.mxu0 0
        %1205 = vmatpush1.bf16.msra.mxu0 0
        %1206 = vmatprep.subr.bf16.mxu0 0
        %1207 = vmatpush1.bf16.msra.mxu0 0
        %1208 = vmatprep.subr.bf16.mxu0 0
        %1209 = vmatpush1.bf16.msra.mxu0 0
        %1210 = vmatprep.subr.bf16.mxu0 0
        %1211 = vmatpush1.bf16.msra.mxu0 0
        %1212 = vmatprep.subr.bf16.mxu0 0
        %1213 = vmatpush1.bf16.msra.mxu0 0
        %1214 = vmatprep.subr.bf16.mxu0 0
        %1215 = vmatpush1.bf16.msra.mxu0 0
        %1216 = vmatprep.mubr.bf16.mxu0 0
        %1217 = vmatmul.mubr.bf16.gmra.mrb[0].mxu0 %v1102
        %v1218 = vpop.f32.mrb[0].mxu0
        %v1219 = vadd.f32 0.0, %v1218
        %v1220 = vpop.f32.mrb[0].mxu0
        %v1221 = vadd.f32 0.0, %v1220
        %v1222 = vpop.f32.mrb[0].mxu0
        %v1223 = vadd.f32 0.0, %v1222
        %v1224 = vpop.f32.mrb[0].mxu0
        %v1225 = vadd.f32 0.0, %v1224
        %1226 = vdwg.mxu0
        %v1227 = vadd.f32 %v1078, %v1219
        %v1228 = vadd.f32 %v1079, %v1221
        %v1229 = vadd.f32 %v1080, %v1223
        %v1230 = vadd.f32 %v1081, %v1225
        %v1231 = vld [vmem:[%s526 + $0x4] sm:$0xf]
        %v1232 = vld [vmem:[%s526 + $0x8] sm:$0xf]
        %v1233 = vld [vmem:[%s526 + $0xc] sm:$0x1]
        %s1234 = scalar_lea.vmem [#allocation10], 512
        %v1235 = vld [vmem:[%s1234] sm:$0xff]
        %v1236 = vld [vmem:[%s1234 + $0x8] sm:$0xff]
        %v1237 = vld [vmem:[%s1234 + $0x10] sm:$0xff]
        %v1238 = vld [vmem:[%s1234 + $0x18] sm:$0xff]
        %v1239 = vld [vmem:[%s1234 + $0x20] sm:$0xff]
        %v1240 = vld [vmem:[%s1234 + $0x28] sm:$0xff]
        %v1241 = vld [vmem:[%s1234 + $0x30] sm:$0xff]
        %v1242 = vld [vmem:[%s1234 + $0x38] sm:$0xff]
        %v1243 = vld [vmem:[%s1234 + $0x40] sm:$0xff]
        %v1244 = vld [vmem:[%s1234 + $0x48] sm:$0xff]
        %v1245 = vld [vmem:[%s1234 + $0x50] sm:$0xff]
        %v1246 = vld [vmem:[%s1234 + $0x58] sm:$0xff]
        %v1247 = vld [vmem:[%s1234 + $0x60] sm:$0xff]
        %v1248 = vld [vmem:[%s1234 + $0x68] sm:$0xff]
        %v1249 = vld [vmem:[%s1234 + $0x70] sm:$0xff]
        %v1250 = vld [vmem:[%s1234 + $0x78] sm:$0xff]
        %v1254 = vunpack.c.l.b16 %v1231
        %v1255 = vunpack.c.l.b16 %v1232
        %v1256 = vunpack.c.l.b16 %v1233
        %v1257 = vpack.c.b16 %v1255, %v1254
        %v1258 = vpack.c.b16 %v1256, %v1256
        %v1260 = vshrl.u32 %v1257, 16
        %v1262 = vshll.u32 %v1257, 16
        %v1264 = vrot.slane %v1262, 1
        %v1265 = vor.u32 %v1260, %v1264
        %v1267 = vshll.u32 %v1258, 16
        %v1269 = vrot.slane %v1267, 1
        %v1270 = vsel %vm668, %v1265, %v1269
        %v1288 = vunpack.c.l.b16 %v1235
        %v1289 = vunpack.c.h.b16 %v1235
        %v1290 = vunpack.c.l.b16 %v1236
        %v1291 = vunpack.c.h.b16 %v1236
        %v1292 = vunpack.c.l.b16 %v1237
        %v1293 = vunpack.c.h.b16 %v1237
        %v1294 = vunpack.c.l.b16 %v1238
        %v1295 = vunpack.c.h.b16 %v1238
        %v1296 = vunpack.c.l.b16 %v1239
        %v1297 = vunpack.c.h.b16 %v1239
        %v1298 = vunpack.c.l.b16 %v1240
        %v1299 = vunpack.c.h.b16 %v1240
        %v1300 = vunpack.c.l.b16 %v1241
        %v1301 = vunpack.c.h.b16 %v1241
        %v1302 = vunpack.c.l.b16 %v1242
        %v1303 = vunpack.c.h.b16 %v1242
        %v1304 = vunpack.c.l.b16 %v1243
        %v1305 = vunpack.c.h.b16 %v1243
        %v1306 = vunpack.c.l.b16 %v1244
        %v1307 = vunpack.c.h.b16 %v1244
        %v1308 = vunpack.c.l.b16 %v1245
        %v1309 = vunpack.c.h.b16 %v1245
        %v1310 = vunpack.c.l.b16 %v1246
        %v1311 = vunpack.c.h.b16 %v1246
        %v1312 = vunpack.c.l.b16 %v1247
        %v1313 = vunpack.c.h.b16 %v1247
        %v1314 = vunpack.c.l.b16 %v1248
        %v1315 = vunpack.c.h.b16 %v1248
        %v1316 = vunpack.c.l.b16 %v1249
        %v1317 = vunpack.c.h.b16 %v1249
        %v1318 = vunpack.c.l.b16 %v1250
        %v1319 = vunpack.c.h.b16 %v1250
        %v1320 = vpack.c.b16 %v1290, %v1288
        %v1321 = vpack.c.b16 %v1291, %v1289
        %v1322 = vpack.c.b16 %v1294, %v1292
        %v1323 = vpack.c.b16 %v1295, %v1293
        %v1324 = vpack.c.b16 %v1298, %v1296
        %v1325 = vpack.c.b16 %v1299, %v1297
        %v1326 = vpack.c.b16 %v1302, %v1300
        %v1327 = vpack.c.b16 %v1303, %v1301
        %v1328 = vpack.c.b16 %v1306, %v1304
        %v1329 = vpack.c.b16 %v1307, %v1305
        %v1330 = vpack.c.b16 %v1310, %v1308
        %v1331 = vpack.c.b16 %v1311, %v1309
        %v1332 = vpack.c.b16 %v1314, %v1312
        %v1333 = vpack.c.b16 %v1315, %v1313
        %v1334 = vpack.c.b16 %v1318, %v1316
        %v1335 = vpack.c.b16 %v1319, %v1317
        %1352 = vmatprep.subr.bf16.mxu0 %v1321
        %1353 = vmatpush1.bf16.msra.mxu0 %v1320
        %1354 = vmatprep.subr.bf16.mxu0 %v1323
        %1355 = vmatpush1.bf16.msra.mxu0 %v1322
        %1356 = vmatprep.subr.bf16.mxu0 %v1325
        %1357 = vmatpush1.bf16.msra.mxu0 %v1324
        %1358 = vmatprep.subr.bf16.mxu0 %v1327
        %1359 = vmatpush1.bf16.msra.mxu0 %v1326
        %1360 = vmatprep.subr.bf16.mxu0 %v1329
        %1361 = vmatpush1.bf16.msra.mxu0 %v1328
        %1362 = vmatprep.subr.bf16.mxu0 %v1331
        %1363 = vmatpush1.bf16.msra.mxu0 %v1330
        %1364 = vmatprep.subr.bf16.mxu0 %v1333
        %1365 = vmatpush1.bf16.msra.mxu0 %v1332
        %1366 = vmatprep.subr.bf16.mxu0 %v1335
        %1367 = vmatpush1.bf16.msra.mxu0 %v1334
        %1368 = vmatprep.subr.bf16.mxu0 0
        %1369 = vmatpush1.bf16.msra.mxu0 0
        %1370 = vmatprep.subr.bf16.mxu0 0
        %1371 = vmatpush1.bf16.msra.mxu0 0
        %1372 = vmatprep.subr.bf16.mxu0 0
        %1373 = vmatpush1.bf16.msra.mxu0 0
        %1374 = vmatprep.subr.bf16.mxu0 0
        %1375 = vmatpush1.bf16.msra.mxu0 0
        %1376 = vmatprep.subr.bf16.mxu0 0
        %1377 = vmatpush1.bf16.msra.mxu0 0
        %1378 = vmatprep.subr.bf16.mxu0 0
        %1379 = vmatpush1.bf16.msra.mxu0 0
        %1380 = vmatprep.subr.bf16.mxu0 0
        %1381 = vmatpush1.bf16.msra.mxu0 0
        %1382 = vmatprep.subr.bf16.mxu0 0
        %1383 = vmatpush1.bf16.msra.mxu0 0
        %1384 = vmatprep.mubr.bf16.mxu0 0
        %1385 = vmatmul.mubr.bf16.gmra.mrb[0].mxu0 %v1270
        %v1386 = vpop.f32.mrb[0].mxu0
        %v1387 = vadd.f32 0.0, %v1386
        %v1388 = vpop.f32.mrb[0].mxu0
        %v1389 = vadd.f32 0.0, %v1388
        %v1390 = vpop.f32.mrb[0].mxu0
        %v1391 = vadd.f32 0.0, %v1390
        %v1392 = vpop.f32.mrb[0].mxu0
        %v1393 = vadd.f32 0.0, %v1392
        %1394 = vdwg.mxu0
        %v1395 = vadd.f32 %v1227, %v1387
        %v1396 = vadd.f32 %v1228, %v1389
        %v1397 = vadd.f32 %v1229, %v1391
        %v1398 = vadd.f32 %v1230, %v1393
        %v1399 = vld [vmem:[%s526 + $0x4] sm:$0xe]
        %s1400 = scalar_lea.vmem [#allocation10], 640
        %v1401 = vld [vmem:[%s1400] sm:$0xff]
        %v1402 = vld [vmem:[%s1400 + $0x8] sm:$0xff]
        %v1403 = vld [vmem:[%s1400 + $0x10] sm:$0xff]
        %v1404 = vld [vmem:[%s1400 + $0x18] sm:$0xff]
        %v1405 = vld [vmem:[%s1400 + $0x20] sm:$0xff]
        %v1406 = vld [vmem:[%s1400 + $0x28] sm:$0xff]
        %v1407 = vld [vmem:[%s1400 + $0x30] sm:$0xff]
        %v1408 = vld [vmem:[%s1400 + $0x38] sm:$0xff]
        %v1409 = vld [vmem:[%s1400 + $0x40] sm:$0xff]
        %v1410 = vld [vmem:[%s1400 + $0x48] sm:$0xff]
        %v1411 = vld [vmem:[%s1400 + $0x50] sm:$0xff]
        %v1412 = vld [vmem:[%s1400 + $0x58] sm:$0xff]
        %v1413 = vld [vmem:[%s1400 + $0x60] sm:$0xff]
        %v1414 = vld [vmem:[%s1400 + $0x68] sm:$0xff]
        %v1415 = vld [vmem:[%s1400 + $0x70] sm:$0xff]
        %v1416 = vld [vmem:[%s1400 + $0x78] sm:$0xff]
        %v1418 = vunpack.c.l.b16 %v1399
        %v1419 = vpack.c.b16 %v1255, %v1418
        %v1420 = vrot.slane %v1419, 1
        %v1421 = vrot.slane %v1258, 1
        %v1422 = vsel %vm950, %v1420, %v1421
        %v1440 = vunpack.c.l.b16 %v1401
        %v1441 = vunpack.c.h.b16 %v1401
        %v1442 = vunpack.c.l.b16 %v1402
        %v1443 = vunpack.c.h.b16 %v1402
        %v1444 = vunpack.c.l.b16 %v1403
        %v1445 = vunpack.c.h.b16 %v1403
        %v1446 = vunpack.c.l.b16 %v1404
        %v1447 = vunpack.c.h.b16 %v1404
        %v1448 = vunpack.c.l.b16 %v1405
        %v1449 = vunpack.c.h.b16 %v1405
        %v1450 = vunpack.c.l.b16 %v1406
        %v1451 = vunpack.c.h.b16 %v1406
        %v1452 = vunpack.c.l.b16 %v1407
        %v1453 = vunpack.c.h.b16 %v1407
        %v1454 = vunpack.c.l.b16 %v1408
        %v1455 = vunpack.c.h.b16 %v1408
        %v1456 = vunpack.c.l.b16 %v1409
        %v1457 = vunpack.c.h.b16 %v1409
        %v1458 = vunpack.c.l.b16 %v1410
        %v1459 = vunpack.c.h.b16 %v1410
        %v1460 = vunpack.c.l.b16 %v1411
        %v1461 = vunpack.c.h.b16 %v1411
        %v1462 = vunpack.c.l.b16 %v1412
        %v1463 = vunpack.c.h.b16 %v1412
        %v1464 = vunpack.c.l.b16 %v1413
        %v1465 = vunpack.c.h.b16 %v1413
        %v1466 = vunpack.c.l.b16 %v1414
        %v1467 = vunpack.c.h.b16 %v1414
        %v1468 = vunpack.c.l.b16 %v1415
        %v1469 = vunpack.c.h.b16 %v1415
        %v1470 = vunpack.c.l.b16 %v1416
        %v1471 = vunpack.c.h.b16 %v1416
        %v1472 = vpack.c.b16 %v1442, %v1440
        %v1473 = vpack.c.b16 %v1443, %v1441
        %v1474 = vpack.c.b16 %v1446, %v1444
        %v1475 = vpack.c.b16 %v1447, %v1445
        %v1476 = vpack.c.b16 %v1450, %v1448
        %v1477 = vpack.c.b16 %v1451, %v1449
        %v1478 = vpack.c.b16 %v1454, %v1452
        %v1479 = vpack.c.b16 %v1455, %v1453
        %v1480 = vpack.c.b16 %v1458, %v1456
        %v1481 = vpack.c.b16 %v1459, %v1457
        %v1482 = vpack.c.b16 %v1462, %v1460
        %v1483 = vpack.c.b16 %v1463, %v1461
        %v1484 = vpack.c.b16 %v1466, %v1464
        %v1485 = vpack.c.b16 %v1467, %v1465
        %v1486 = vpack.c.b16 %v1470, %v1468
        %v1487 = vpack.c.b16 %v1471, %v1469
        %1504 = vmatprep.subr.bf16.mxu0 %v1473
        %1505 = vmatpush1.bf16.msra.mxu0 %v1472
        %1506 = vmatprep.subr.bf16.mxu0 %v1475
        %1507 = vmatpush1.bf16.msra.mxu0 %v1474
        %1508 = vmatprep.subr.bf16.mxu0 %v1477
        %1509 = vmatpush1.bf16.msra.mxu0 %v1476
        %1510 = vmatprep.subr.bf16.mxu0 %v1479
        %1511 = vmatpush1.bf16.msra.mxu0 %v1478
        %1512 = vmatprep.subr.bf16.mxu0 %v1481
        %1513 = vmatpush1.bf16.msra.mxu0 %v1480
        %1514 = vmatprep.subr.bf16.mxu0 %v1483
        %1515 = vmatpush1.bf16.msra.mxu0 %v1482
        %1516 = vmatprep.subr.bf16.mxu0 %v1485
        %1517 = vmatpush1.bf16.msra.mxu0 %v1484
        %1518 = vmatprep.subr.bf16.mxu0 %v1487
        %1519 = vmatpush1.bf16.msra.mxu0 %v1486
        %1520 = vmatprep.subr.bf16.mxu0 0
        %1521 = vmatpush1.bf16.msra.mxu0 0
        %1522 = vmatprep.subr.bf16.mxu0 0
        %1523 = vmatpush1.bf16.msra.mxu0 0
        %1524 = vmatprep.subr.bf16.mxu0 0
        %1525 = vmatpush1.bf16.msra.mxu0 0
        %1526 = vmatprep.subr.bf16.mxu0 0
        %1527 = vmatpush1.bf16.msra.mxu0 0
        %1528 = vmatprep.subr.bf16.mxu0 0
        %1529 = vmatpush1.bf16.msra.mxu0 0
        %1530 = vmatprep.subr.bf16.mxu0 0
        %1531 = vmatpush1.bf16.msra.mxu0 0
        %1532 = vmatprep.subr.bf16.mxu0 0
        %1533 = vmatpush1.bf16.msra.mxu0 0
        %1534 = vmatprep.subr.bf16.mxu0 0
        %1535 = vmatpush1.bf16.msra.mxu0 0
        %1536 = vmatprep.mubr.bf16.mxu0 0
        %1537 = vmatmul.mubr.bf16.gmra.mrb[0].mxu0 %v1422
        %v1538 = vpop.f32.mrb[0].mxu0
        %v1539 = vadd.f32 0.0, %v1538
        %v1540 = vpop.f32.mrb[0].mxu0
        %v1541 = vadd.f32 0.0, %v1540
        %v1542 = vpop.f32.mrb[0].mxu0
        %v1543 = vadd.f32 0.0, %v1542
        %v1544 = vpop.f32.mrb[0].mxu0
        %v1545 = vadd.f32 0.0, %v1544
        %1546 = vdwg.mxu0
        %v1547 = vadd.f32 %v1395, %v1539
        %v1548 = vadd.f32 %v1396, %v1541
        %v1549 = vadd.f32 %v1397, %v1543
        %v1550 = vadd.f32 %v1398, %v1545
        %v1551 = vld [vmem:[%s526 + $0xc] sm:$0xf]
        %s1552 = scalar_lea.vmem [#allocation10], 768
        %v1553 = vld [vmem:[%s1552] sm:$0xff]
        %v1554 = vld [vmem:[%s1552 + $0x8] sm:$0xff]
        %v1555 = vld [vmem:[%s1552 + $0x10] sm:$0xff]
        %v1556 = vld [vmem:[%s1552 + $0x18] sm:$0xff]
        %v1557 = vld [vmem:[%s1552 + $0x20] sm:$0xff]
        %v1558 = vld [vmem:[%s1552 + $0x28] sm:$0xff]
        %v1559 = vld [vmem:[%s1552 + $0x30] sm:$0xff]
        %v1560 = vld [vmem:[%s1552 + $0x38] sm:$0xff]
        %v1561 = vld [vmem:[%s1552 + $0x40] sm:$0xff]
        %v1562 = vld [vmem:[%s1552 + $0x48] sm:$0xff]
        %v1563 = vld [vmem:[%s1552 + $0x50] sm:$0xff]
        %v1564 = vld [vmem:[%s1552 + $0x58] sm:$0xff]
        %v1565 = vld [vmem:[%s1552 + $0x60] sm:$0xff]
        %v1566 = vld [vmem:[%s1552 + $0x68] sm:$0xff]
        %v1567 = vld [vmem:[%s1552 + $0x70] sm:$0xff]
        %v1568 = vld [vmem:[%s1552 + $0x78] sm:$0xff]
        %v1570 = vunpack.c.l.b16 %v1551
        %v1571 = vpack.c.b16 %v1570, %v1255
        %v1589 = vunpack.c.l.b16 %v1553
        %v1590 = vunpack.c.h.b16 %v1553
        %v1591 = vunpack.c.l.b16 %v1554
        %v1592 = vunpack.c.h.b16 %v1554
        %v1593 = vunpack.c.l.b16 %v1555
        %v1594 = vunpack.c.h.b16 %v1555
        %v1595 = vunpack.c.l.b16 %v1556
        %v1596 = vunpack.c.h.b16 %v1556
        %v1597 = vunpack.c.l.b16 %v1557
        %v1598 = vunpack.c.h.b16 %v1557
        %v1599 = vunpack.c.l.b16 %v1558
        %v1600 = vunpack.c.h.b16 %v1558
        %v1601 = vunpack.c.l.b16 %v1559
        %v1602 = vunpack.c.h.b16 %v1559
        %v1603 = vunpack.c.l.b16 %v1560
        %v1604 = vunpack.c.h.b16 %v1560
        %v1605 = vunpack.c.l.b16 %v1561
        %v1606 = vunpack.c.h.b16 %v1561
        %v1607 = vunpack.c.l.b16 %v1562
        %v1608 = vunpack.c.h.b16 %v1562
        %v1609 = vunpack.c.l.b16 %v1563
        %v1610 = vunpack.c.h.b16 %v1563
        %v1611 = vunpack.c.l.b16 %v1564
        %v1612 = vunpack.c.h.b16 %v1564
        %v1613 = vunpack.c.l.b16 %v1565
        %v1614 = vunpack.c.h.b16 %v1565
        %v1615 = vunpack.c.l.b16 %v1566
        %v1616 = vunpack.c.h.b16 %v1566
        %v1617 = vunpack.c.l.b16 %v1567
        %v1618 = vunpack.c.h.b16 %v1567
        %v1619 = vunpack.c.l.b16 %v1568
        %v1620 = vunpack.c.h.b16 %v1568
        %v1621 = vpack.c.b16 %v1591, %v1589
        %v1622 = vpack.c.b16 %v1592, %v1590
        %v1623 = vpack.c.b16 %v1595, %v1593
        %v1624 = vpack.c.b16 %v1596, %v1594
        %v1625 = vpack.c.b16 %v1599, %v1597
        %v1626 = vpack.c.b16 %v1600, %v1598
        %v1627 = vpack.c.b16 %v1603, %v1601
        %v1628 = vpack.c.b16 %v1604, %v1602
        %v1629 = vpack.c.b16 %v1607, %v1605
        %v1630 = vpack.c.b16 %v1608, %v1606
        %v1631 = vpack.c.b16 %v1611, %v1609
        %v1632 = vpack.c.b16 %v1612, %v1610
        %v1633 = vpack.c.b16 %v1615, %v1613
        %v1634 = vpack.c.b16 %v1616, %v1614
        %v1635 = vpack.c.b16 %v1619, %v1617
        %v1636 = vpack.c.b16 %v1620, %v1618
        %1653 = vmatprep.subr.bf16.mxu0 %v1622
        %1654 = vmatpush1.bf16.msra.mxu0 %v1621
        %1655 = vmatprep.subr.bf16.mxu0 %v1624
        %1656 = vmatpush1.bf16.msra.mxu0 %v1623
        %1657 = vmatprep.subr.bf16.mxu0 %v1626
        %1658 = vmatpush1.bf16.msra.mxu0 %v1625
        %1659 = vmatprep.subr.bf16.mxu0 %v1628
        %1660 = vmatpush1.bf16.msra.mxu0 %v1627
        %1661 = vmatprep.subr.bf16.mxu0 %v1630
        %1662 = vmatpush1.bf16.msra.mxu0 %v1629
        %1663 = vmatprep.subr.bf16.mxu0 %v1632
        %1664 = vmatpush1.bf16.msra.mxu0 %v1631
        %1665 = vmatprep.subr.bf16.mxu0 %v1634
        %1666 = vmatpush1.bf16.msra.mxu0 %v1633
        %1667 = vmatprep.subr.bf16.mxu0 %v1636
        %1668 = vmatpush1.bf16.msra.mxu0 %v1635
        %1669 = vmatprep.subr.bf16.mxu0 0
        %1670 = vmatpush1.bf16.msra.mxu0 0
        %1671 = vmatprep.subr.bf16.mxu0 0
        %1672 = vmatpush1.bf16.msra.mxu0 0
        %1673 = vmatprep.subr.bf16.mxu0 0
        %1674 = vmatpush1.bf16.msra.mxu0 0
        %1675 = vmatprep.subr.bf16.mxu0 0
        %1676 = vmatpush1.bf16.msra.mxu0 0
        %1677 = vmatprep.subr.bf16.mxu0 0
        %1678 = vmatpush1.bf16.msra.mxu0 0
        %1679 = vmatprep.subr.bf16.mxu0 0
        %1680 = vmatpush1.bf16.msra.mxu0 0
        %1681 = vmatprep.subr.bf16.mxu0 0
        %1682 = vmatpush1.bf16.msra.mxu0 0
        %1683 = vmatprep.subr.bf16.mxu0 0
        %1684 = vmatpush1.bf16.msra.mxu0 0
        %1685 = vmatprep.mubr.bf16.mxu0 0
        %1686 = vmatmul.mubr.bf16.gmra.mrb[0].mxu0 %v1571
        %v1687 = vpop.f32.mrb[0].mxu0
        %v1688 = vadd.f32 0.0, %v1687
        %v1689 = vpop.f32.mrb[0].mxu0
        %v1690 = vadd.f32 0.0, %v1689
        %v1691 = vpop.f32.mrb[0].mxu0
        %v1692 = vadd.f32 0.0, %v1691
        %v1693 = vpop.f32.mrb[0].mxu0
        %v1694 = vadd.f32 0.0, %v1693
        %1695 = vdwg.mxu0
        %v1696 = vadd.f32 %v1547, %v1688
        %v1697 = vadd.f32 %v1548, %v1690
        %v1698 = vadd.f32 %v1549, %v1692
        %v1699 = vadd.f32 %v1550, %v1694
        %v1700 = vld [vmem:[%s526 + $0x8] sm:$0xf]
        %v1701 = vld [vmem:[%s526 + $0xc] sm:$0xf]
        %v1702 = vld [vmem:[%s526 + $0x10] sm:$0x1]
        %s1703 = scalar_lea.vmem [#allocation10], 896
        %v1704 = vld [vmem:[%s1703] sm:$0xff]
        %v1705 = vld [vmem:[%s1703 + $0x8] sm:$0xff]
        %v1706 = vld [vmem:[%s1703 + $0x10] sm:$0xff]
        %v1707 = vld [vmem:[%s1703 + $0x18] sm:$0xff]
        %v1708 = vld [vmem:[%s1703 + $0x20] sm:$0xff]
        %v1709 = vld [vmem:[%s1703 + $0x28] sm:$0xff]
        %v1710 = vld [vmem:[%s1703 + $0x30] sm:$0xff]
        %v1711 = vld [vmem:[%s1703 + $0x38] sm:$0xff]
        %v1712 = vld [vmem:[%s1703 + $0x40] sm:$0xff]
        %v1713 = vld [vmem:[%s1703 + $0x48] sm:$0xff]
        %v1714 = vld [vmem:[%s1703 + $0x50] sm:$0xff]
        %v1715 = vld [vmem:[%s1703 + $0x58] sm:$0xff]
        %v1716 = vld [vmem:[%s1703 + $0x60] sm:$0xff]
        %v1717 = vld [vmem:[%s1703 + $0x68] sm:$0xff]
        %v1718 = vld [vmem:[%s1703 + $0x70] sm:$0xff]
        %v1719 = vld [vmem:[%s1703 + $0x78] sm:$0xff]
        %v1723 = vunpack.c.l.b16 %v1700
        %v1724 = vunpack.c.l.b16 %v1701
        %v1725 = vunpack.c.l.b16 %v1702
        %v1726 = vpack.c.b16 %v1724, %v1723
        %v1727 = vpack.c.b16 %v1725, %v1725
        %v1729 = vshrl.u32 %v1726, 16
        %v1731 = vshll.u32 %v1726, 16
        %v1733 = vrot.slane %v1731, 1
        %v1734 = vor.u32 %v1729, %v1733
        %v1736 = vshll.u32 %v1727, 16
        %v1738 = vrot.slane %v1736, 1
        %v1739 = vsel %vm668, %v1734, %v1738
        %v1757 = vunpack.c.l.b16 %v1704
        %v1758 = vunpack.c.h.b16 %v1704
        %v1759 = vunpack.c.l.b16 %v1705
        %v1760 = vunpack.c.h.b16 %v1705
        %v1761 = vunpack.c.l.b16 %v1706
        %v1762 = vunpack.c.h.b16 %v1706
        %v1763 = vunpack.c.l.b16 %v1707
        %v1764 = vunpack.c.h.b16 %v1707
        %v1765 = vunpack.c.l.b16 %v1708
        %v1766 = vunpack.c.h.b16 %v1708
        %v1767 = vunpack.c.l.b16 %v1709
        %v1768 = vunpack.c.h.b16 %v1709
        %v1769 = vunpack.c.l.b16 %v1710
        %v1770 = vunpack.c.h.b16 %v1710
        %v1771 = vunpack.c.l.b16 %v1711
        %v1772 = vunpack.c.h.b16 %v1711
        %v1773 = vunpack.c.l.b16 %v1712
        %v1774 = vunpack.c.h.b16 %v1712
        %v1775 = vunpack.c.l.b16 %v1713
        %v1776 = vunpack.c.h.b16 %v1713
        %v1777 = vunpack.c.l.b16 %v1714
        %v1778 = vunpack.c.h.b16 %v1714
        %v1779 = vunpack.c.l.b16 %v1715
        %v1780 = vunpack.c.h.b16 %v1715
        %v1781 = vunpack.c.l.b16 %v1716
        %v1782 = vunpack.c.h.b16 %v1716
        %v1783 = vunpack.c.l.b16 %v1717
        %v1784 = vunpack.c.h.b16 %v1717
        %v1785 = vunpack.c.l.b16 %v1718
        %v1786 = vunpack.c.h.b16 %v1718
        %v1787 = vunpack.c.l.b16 %v1719
        %v1788 = vunpack.c.h.b16 %v1719
        %v1789 = vpack.c.b16 %v1759, %v1757
        %v1790 = vpack.c.b16 %v1760, %v1758
        %v1791 = vpack.c.b16 %v1763, %v1761
        %v1792 = vpack.c.b16 %v1764, %v1762
        %v1793 = vpack.c.b16 %v1767, %v1765
        %v1794 = vpack.c.b16 %v1768, %v1766
        %v1795 = vpack.c.b16 %v1771, %v1769
        %v1796 = vpack.c.b16 %v1772, %v1770
        %v1797 = vpack.c.b16 %v1775, %v1773
        %v1798 = vpack.c.b16 %v1776, %v1774
        %v1799 = vpack.c.b16 %v1779, %v1777
        %v1800 = vpack.c.b16 %v1780, %v1778
        %v1801 = vpack.c.b16 %v1783, %v1781
        %v1802 = vpack.c.b16 %v1784, %v1782
        %v1803 = vpack.c.b16 %v1787, %v1785
        %v1804 = vpack.c.b16 %v1788, %v1786
        %1821 = vmatprep.subr.bf16.mxu0 %v1790
        %1822 = vmatpush1.bf16.msra.mxu0 %v1789
        %1823 = vmatprep.subr.bf16.mxu0 %v1792
        %1824 = vmatpush1.bf16.msra.mxu0 %v1791
        %1825 = vmatprep.subr.bf16.mxu0 %v1794
        %1826 = vmatpush1.bf16.msra.mxu0 %v1793
        %1827 = vmatprep.subr.bf16.mxu0 %v1796
        %1828 = vmatpush1.bf16.msra.mxu0 %v1795
        %1829 = vmatprep.subr.bf16.mxu0 %v1798
        %1830 = vmatpush1.bf16.msra.mxu0 %v1797
        %1831 = vmatprep.subr.bf16.mxu0 %v1800
        %1832 = vmatpush1.bf16.msra.mxu0 %v1799
        %1833 = vmatprep.subr.bf16.mxu0 %v1802
        %1834 = vmatpush1.bf16.msra.mxu0 %v1801
        %1835 = vmatprep.subr.bf16.mxu0 %v1804
        %1836 = vmatpush1.bf16.msra.mxu0 %v1803
        %1837 = vmatprep.subr.bf16.mxu0 0
        %1838 = vmatpush1.bf16.msra.mxu0 0
        %1839 = vmatprep.subr.bf16.mxu0 0
        %1840 = vmatpush1.bf16.msra.mxu0 0
        %1841 = vmatprep.subr.bf16.mxu0 0
        %1842 = vmatpush1.bf16.msra.mxu0 0
        %1843 = vmatprep.subr.bf16.mxu0 0
        %1844 = vmatpush1.bf16.msra.mxu0 0
        %1845 = vmatprep.subr.bf16.mxu0 0
        %1846 = vmatpush1.bf16.msra.mxu0 0
        %1847 = vmatprep.subr.bf16.mxu0 0
        %1848 = vmatpush1.bf16.msra.mxu0 0
        %1849 = vmatprep.subr.bf16.mxu0 0
        %1850 = vmatpush1.bf16.msra.mxu0 0
        %1851 = vmatprep.subr.bf16.mxu0 0
        %1852 = vmatpush1.bf16.msra.mxu0 0
        %1853 = vmatprep.mubr.bf16.mxu0 0
        %1854 = vmatmul.mubr.bf16.gmra.mrb[0].mxu0 %v1739
        %v1855 = vpop.f32.mrb[0].mxu0
        %v1856 = vadd.f32 0.0, %v1855
        %v1857 = vpop.f32.mrb[0].mxu0
        %v1858 = vadd.f32 0.0, %v1857
        %v1859 = vpop.f32.mrb[0].mxu0
        %v1860 = vadd.f32 0.0, %v1859
        %v1861 = vpop.f32.mrb[0].mxu0
        %v1862 = vadd.f32 0.0, %v1861
        %1863 = vdwg.mxu0
        %v1864 = vadd.f32 %v1696, %v1856
        %v1865 = vadd.f32 %v1697, %v1858
        %v1866 = vadd.f32 %v1698, %v1860
        %v1867 = vadd.f32 %v1699, %v1862
        %v1868 = vld [vmem:[%s526 + $0x8] sm:$0xe]
        %s1869 = scalar_lea.vmem [#allocation10], 1024
        %v1870 = vld [vmem:[%s1869] sm:$0xff]
        %v1871 = vld [vmem:[%s1869 + $0x8] sm:$0xff]
        %v1872 = vld [vmem:[%s1869 + $0x10] sm:$0xff]
        %v1873 = vld [vmem:[%s1869 + $0x18] sm:$0xff]
        %v1874 = vld [vmem:[%s1869 + $0x20] sm:$0xff]
        %v1875 = vld [vmem:[%s1869 + $0x28] sm:$0xff]
        %v1876 = vld [vmem:[%s1869 + $0x30] sm:$0xff]
        %v1877 = vld [vmem:[%s1869 + $0x38] sm:$0xff]
        %v1878 = vld [vmem:[%s1869 + $0x40] sm:$0xff]
        %v1879 = vld [vmem:[%s1869 + $0x48] sm:$0xff]
        %v1880 = vld [vmem:[%s1869 + $0x50] sm:$0xff]
        %v1881 = vld [vmem:[%s1869 + $0x58] sm:$0xff]
        %v1882 = vld [vmem:[%s1869 + $0x60] sm:$0xff]
        %v1883 = vld [vmem:[%s1869 + $0x68] sm:$0xff]
        %v1884 = vld [vmem:[%s1869 + $0x70] sm:$0xff]
        %v1885 = vld [vmem:[%s1869 + $0x78] sm:$0xff]
        %v1887 = vunpack.c.l.b16 %v1868
        %v1888 = vpack.c.b16 %v1724, %v1887
        %v1889 = vrot.slane %v1888, 1
        %v1890 = vrot.slane %v1727, 1
        %v1891 = vsel %vm950, %v1889, %v1890
        %v1909 = vunpack.c.l.b16 %v1870
        %v1910 = vunpack.c.h.b16 %v1870
        %v1911 = vunpack.c.l.b16 %v1871
        %v1912 = vunpack.c.h.b16 %v1871
        %v1913 = vunpack.c.l.b16 %v1872
        %v1914 = vunpack.c.h.b16 %v1872
        %v1915 = vunpack.c.l.b16 %v1873
        %v1916 = vunpack.c.h.b16 %v1873
        %v1917 = vunpack.c.l.b16 %v1874
        %v1918 = vunpack.c.h.b16 %v1874
        %v1919 = vunpack.c.l.b16 %v1875
        %v1920 = vunpack.c.h.b16 %v1875
        %v1921 = vunpack.c.l.b16 %v1876
        %v1922 = vunpack.c.h.b16 %v1876
        %v1923 = vunpack.c.l.b16 %v1877
        %v1924 = vunpack.c.h.b16 %v1877
        %v1925 = vunpack.c.l.b16 %v1878
        %v1926 = vunpack.c.h.b16 %v1878
        %v1927 = vunpack.c.l.b16 %v1879
        %v1928 = vunpack.c.h.b16 %v1879
        %v1929 = vunpack.c.l.b16 %v1880
        %v1930 = vunpack.c.h.b16 %v1880
        %v1931 = vunpack.c.l.b16 %v1881
        %v1932 = vunpack.c.h.b16 %v1881
        %v1933 = vunpack.c.l.b16 %v1882
        %v1934 = vunpack.c.h.b16 %v1882
        %v1935 = vunpack.c.l.b16 %v1883
        %v1936 = vunpack.c.h.b16 %v1883
        %v1937 = vunpack.c.l.b16 %v1884
        %v1938 = vunpack.c.h.b16 %v1884
        %v1939 = vunpack.c.l.b16 %v1885
        %v1940 = vunpack.c.h.b16 %v1885
        %v1941 = vpack.c.b16 %v1911, %v1909
        %v1942 = vpack.c.b16 %v1912, %v1910
        %v1943 = vpack.c.b16 %v1915, %v1913
        %v1944 = vpack.c.b16 %v1916, %v1914
        %v1945 = vpack.c.b16 %v1919, %v1917
        %v1946 = vpack.c.b16 %v1920, %v1918
        %v1947 = vpack.c.b16 %v1923, %v1921
        %v1948 = vpack.c.b16 %v1924, %v1922
        %v1949 = vpack.c.b16 %v1927, %v1925
        %v1950 = vpack.c.b16 %v1928, %v1926
        %v1951 = vpack.c.b16 %v1931, %v1929
        %v1952 = vpack.c.b16 %v1932, %v1930
        %v1953 = vpack.c.b16 %v1935, %v1933
        %v1954 = vpack.c.b16 %v1936, %v1934
        %v1955 = vpack.c.b16 %v1939, %v1937
        %v1956 = vpack.c.b16 %v1940, %v1938
        %1973 = vmatprep.subr.bf16.mxu0 %v1942
        %1974 = vmatpush1.bf16.msra.mxu0 %v1941
        %1975 = vmatprep.subr.bf16.mxu0 %v1944
        %1976 = vmatpush1.bf16.msra.mxu0 %v1943
        %1977 = vmatprep.subr.bf16.mxu0 %v1946
        %1978 = vmatpush1.bf16.msra.mxu0 %v1945
        %1979 = vmatprep.subr.bf16.mxu0 %v1948
        %1980 = vmatpush1.bf16.msra.mxu0 %v1947
        %1981 = vmatprep.subr.bf16.mxu0 %v1950
        %1982 = vmatpush1.bf16.msra.mxu0 %v1949
        %1983 = vmatprep.subr.bf16.mxu0 %v1952
        %1984 = vmatpush1.bf16.msra.mxu0 %v1951
        %1985 = vmatprep.subr.bf16.mxu0 %v1954
        %1986 = vmatpush1.bf16.msra.mxu0 %v1953
        %1987 = vmatprep.subr.bf16.mxu0 %v1956
        %1988 = vmatpush1.bf16.msra.mxu0 %v1955
        %1989 = vmatprep.subr.bf16.mxu0 0
        %1990 = vmatpush1.bf16.msra.mxu0 0
        %1991 = vmatprep.subr.bf16.mxu0 0
        %1992 = vmatpush1.bf16.msra.mxu0 0
        %1993 = vmatprep.subr.bf16.mxu0 0
        %1994 = vmatpush1.bf16.msra.mxu0 0
        %1995 = vmatprep.subr.bf16.mxu0 0
        %1996 = vmatpush1.bf16.msra.mxu0 0
        %1997 = vmatprep.subr.bf16.mxu0 0
        %1998 = vmatpush1.bf16.msra.mxu0 0
        %1999 = vmatprep.subr.bf16.mxu0 0
        %2000 = vmatpush1.bf16.msra.mxu0 0
        %2001 = vmatprep.subr.bf16.mxu0 0
        %2002 = vmatpush1.bf16.msra.mxu0 0
        %2003 = vmatprep.subr.bf16.mxu0 0
        %2004 = vmatpush1.bf16.msra.mxu0 0
        %2005 = vmatprep.mubr.bf16.mxu0 0
        %2006 = vmatmul.mubr.bf16.gmra.mrb[0].mxu0 %v1891
        %v2007 = vpop.f32.mrb[0].mxu0
        %v2008 = vadd.f32 0.0, %v2007
        %v2009 = vpop.f32.mrb[0].mxu0
        %v2010 = vadd.f32 0.0, %v2009
        %v2011 = vpop.f32.mrb[0].mxu0
        %v2012 = vadd.f32 0.0, %v2011
        %v2013 = vpop.f32.mrb[0].mxu0
        %v2014 = vadd.f32 0.0, %v2013
        %2015 = vdwg.mxu0
        %v2016 = vadd.f32 %v1864, %v2008
        %v2017 = vadd.f32 %v1865, %v2010
        %v2018 = vadd.f32 %v1866, %v2012
        %v2019 = vadd.f32 %v1867, %v2014
        %v2020 = vld [vmem:[#allocation11] sm:$0x3]
        %v2022 = vlaneseq
        %v2023 = vshrl.u32 %v2022, 7
        %v2024 = vsub.s32 0, %v2023
        %v2025 = vrot.slane %v2020, %v2024
        %v2026 = vlaneseq
        %v2027 = vshrl.u32 %v2026, 7
        %v2028 = vsub.s32 1, %v2027
        %v2029 = vrot.slane %v2020, %v2028
        %v2032 = vadd.f32 %v2016, %v2025
        %v2033 = vadd.f32 %v2017, %v2029
        %v2034 = vadd.f32 %v2018, %v2025
        %v2035 = vadd.f32 %v2019, %v2029
        %v2036 = vmul.f32 %v2032, 0.2
        %v2037 = vmul.f32 %v2033, 0.2
        %v2038 = vmul.f32 %v2034, 0.2
        %v2039 = vmul.f32 %v2035, 0.2
        %v2040 = vmax.f32 %v2032, %v2036
        %v2041 = vmax.f32 %v2033, %v2037
        %v2042 = vmax.f32 %v2034, %v2038
        %v2043 = vmax.f32 %v2035, %v2039
        %v2044 = vld [vmem:[#allocation8] sm:$0xff]
        %v2045 = vld [vmem:[#allocation8 + $0x8] sm:$0xff]
        %2047 = vset.pattern.permute.xlu0 0
        %2048 = vperm.xlu0 %2047, %v2044
        %v2049 = vpop.permute.xlu0 %2048
        %2052 = vset.pattern.permute.xlu0 0
        %2053 = vperm.xlu0 %2052, %v2045
        %v2054 = vpop.permute.xlu0 %2053
        %v2056 = vmul.f32 %v2040, %v2049
        %v2057 = vmul.f32 %v2041, %v2049
        %v2058 = vmul.f32 %v2042, %v2054
        %v2059 = vmul.f32 %v2043, %v2054
        %v2060 = vpack.c.bf16 %v2058, %v2056
        %v2061 = vpack.c.bf16 %v2059, %v2057
        %v2064 = vunpack.c.l.b16 %v2060
        %v2065 = vunpack.c.l.b16 %v2061
        %v2066 = vunpack.c.h.b16 %v2060
        %v2067 = vunpack.c.h.b16 %v2061
        %v2068 = vpack.c.b16 %v2065, %v2064
        %v2069 = vpack.c.b16 %v2067, %v2066
        %vm2070 = vsmask.f32 256
        %vm2071 = vsmask.f32 4368
        %vm2072 = vmor %vm2070, %vm2071
        %v2074 = vshrl.u32 %v2068, 16
        %v2076 = vrot.slane %v2074, 7
        %v2077 = vshll.u32 %v2068, 16
        %v2079 = vor.u32 %v2076, %v2077
        %v2080 = vrot.slane %v2076, 4
        %v2082 = vshrl.u32 %v2069, 16
        %v2084 = vrot.slane %v2082, 7
        %v2085 = vshll.u32 %v2069, 16
        %v2087 = vor.u32 %v2084, %v2085
        %v2088 = vsel %vm2072, %v2080, %v2087
        %v2089 = vrot.slane %v2084, 4
        %vm2093 = vcmask 1043456
        %vm2094 = vsmask.f32 7938
        %vm2095 = vmand %vm2093, %vm2094
        %vm2096 = vcmask 1047556
        %vm2097 = vsmask.f32 7954
        %vm2098 = vmand %vm2096, %vm2097
        %vm2099 = vmor %vm2098, %vm2095
        %v2100 = vld [vmem:[#allocation2 + $0x8] sm:$0xff]
        %v2101 = vsel %vm2099, %v2079, %v2100
        %2102 = vst [vmem:[#allocation2 + $0x8] sm:$0xff] %v2101
        %2103 = vst [vmem:[#allocation2 + $0x10] sm:$0xff] %v2088
        %vm2104 = vcmask 1040384
        %vm2105 = vmand %vm2104, %vm2070
        %vm2106 = vcmask 1044484
        %vm2107 = vsmask.f32 4352
        %vm2108 = vmand %vm2106, %vm2107
        %vm2109 = vmor %vm2108, %vm2105
        %v2110 = vld [vmem:[#allocation2 + $0x18] sm:$0x11]
        %v2111 = vsel %vm2109, %v2089, %v2110
        %2112 = vst [vmem:[#allocation2 + $0x18] sm:$0x11] %v2111
        %v2113 = vld [vmem:[#allocation2] sm:$0xff]
        %v2114 = vld [vmem:[#allocation2 + $0x8] sm:$0xff]
        %v2115 = vld [vmem:[#allocation14] sm:$0xff]
        %v2116 = vld [vmem:[#allocation14 + $0x8] sm:$0xff]
        %v2117 = vld [vmem:[#allocation14 + $0x10] sm:$0xff]
        %v2118 = vld [vmem:[#allocation14 + $0x18] sm:$0xff]
        %v2119 = vld [vmem:[#allocation14 + $0x20] sm:$0xff]
        %v2120 = vld [vmem:[#allocation14 + $0x28] sm:$0xff]
        %v2121 = vld [vmem:[#allocation14 + $0x30] sm:$0xff]
        %v2122 = vld [vmem:[#allocation14 + $0x38] sm:$0xff]
        %v2123 = vld [vmem:[#allocation14 + $0x40] sm:$0xff]
        %v2124 = vld [vmem:[#allocation14 + $0x48] sm:$0xff]
        %v2125 = vld [vmem:[#allocation14 + $0x50] sm:$0xff]
        %v2126 = vld [vmem:[#allocation14 + $0x58] sm:$0xff]
        %v2127 = vld [vmem:[#allocation14 + $0x60] sm:$0xff]
        %v2128 = vld [vmem:[#allocation14 + $0x68] sm:$0xff]
        %v2129 = vld [vmem:[#allocation14 + $0x70] sm:$0xff]
        %v2130 = vld [vmem:[#allocation14 + $0x78] sm:$0xff]
        %v2131 = vld [vmem:[#allocation14 + $0x80] sm:$0xff]
        %v2132 = vld [vmem:[#allocation14 + $0x88] sm:$0xff]
        %v2133 = vld [vmem:[#allocation14 + $0x90] sm:$0xff]
        %v2134 = vld [vmem:[#allocation14 + $0x98] sm:$0xff]
        %v2135 = vld [vmem:[#allocation14 + $0xa0] sm:$0xff]
        %v2136 = vld [vmem:[#allocation14 + $0xa8] sm:$0xff]
        %v2137 = vld [vmem:[#allocation14 + $0xb0] sm:$0xff]
        %v2138 = vld [vmem:[#allocation14 + $0xb8] sm:$0xff]
        %v2139 = vld [vmem:[#allocation14 + $0xc0] sm:$0xff]
        %v2140 = vld [vmem:[#allocation14 + $0xc8] sm:$0xff]
        %v2141 = vld [vmem:[#allocation14 + $0xd0] sm:$0xff]
        %v2142 = vld [vmem:[#allocation14 + $0xd8] sm:$0xff]
        %v2143 = vld [vmem:[#allocation14 + $0xe0] sm:$0xff]
        %v2144 = vld [vmem:[#allocation14 + $0xe8] sm:$0xff]
        %v2145 = vld [vmem:[#allocation14 + $0xf0] sm:$0xff]
        %v2146 = vld [vmem:[#allocation14 + $0xf8] sm:$0xff]
        %v2147 = vld [vmem:[#allocation2 + $0x10] sm:$0x11]
        %s2148 = scalar_lea.vmem [#allocation14], 256
        %v2149 = vld [vmem:[%s2148] sm:$0xff]
        %v2150 = vld [vmem:[%s2148 + $0x8] sm:$0xff]
        %v2151 = vld [vmem:[%s2148 + $0x10] sm:$0xff]
        %v2152 = vld [vmem:[%s2148 + $0x18] sm:$0xff]
        %v2153 = vld [vmem:[%s2148 + $0x20] sm:$0xff]
        %v2154 = vld [vmem:[%s2148 + $0x28] sm:$0xff]
        %v2155 = vld [vmem:[%s2148 + $0x30] sm:$0xff]
        %v2156 = vld [vmem:[%s2148 + $0x38] sm:$0xff]
        %v2157 = vld [vmem:[%s2148 + $0x40] sm:$0xff]
        %v2158 = vld [vmem:[%s2148 + $0x48] sm:$0xff]
        %v2159 = vld [vmem:[%s2148 + $0x50] sm:$0xff]
        %v2160 = vld [vmem:[%s2148 + $0x58] sm:$0xff]
        %v2161 = vld [vmem:[%s2148 + $0x60] sm:$0xff]
        %v2162 = vld [vmem:[%s2148 + $0x68] sm:$0xff]
        %v2163 = vld [vmem:[%s2148 + $0x70] sm:$0xff]
        %v2164 = vld [vmem:[%s2148 + $0x78] sm:$0xff]
        %v2165 = vld [vmem:[%s2148 + $0x80] sm:$0xff]
        %v2166 = vld [vmem:[%s2148 + $0x88] sm:$0xff]
        %v2167 = vld [vmem:[%s2148 + $0x90] sm:$0xff]
        %v2168 = vld [vmem:[%s2148 + $0x98] sm:$0xff]
        %v2169 = vld [vmem:[%s2148 + $0xa0] sm:$0xff]
        %v2170 = vld [vmem:[%s2148 + $0xa8] sm:$0xff]
        %v2171 = vld [vmem:[%s2148 + $0xb0] sm:$0xff]
        %v2172 = vld [vmem:[%s2148 + $0xb8] sm:$0xff]
        %v2173 = vld [vmem:[%s2148 + $0xc0] sm:$0xff]
        %v2174 = vld [vmem:[%s2148 + $0xc8] sm:$0xff]
        %v2175 = vld [vmem:[%s2148 + $0xd0] sm:$0xff]
        %v2176 = vld [vmem:[%s2148 + $0xd8] sm:$0xff]
        %v2177 = vld [vmem:[%s2148 + $0xe0] sm:$0xff]
        %v2178 = vld [vmem:[%s2148 + $0xe8] sm:$0xff]
        %v2179 = vld [vmem:[%s2148 + $0xf0] sm:$0xff]
        %v2180 = vld [vmem:[%s2148 + $0xf8] sm:$0xff]
        %v2184 = vunpack.c.l.b16 %v2113
        %v2185 = vunpack.c.h.b16 %v2113
        %v2186 = vunpack.c.l.b16 %v2114
        %v2187 = vunpack.c.h.b16 %v2114
        %v2188 = vunpack.c.l.b16 %v2147
        %v2189 = vunpack.c.h.b16 %v2147
        %v2190 = vpack.c.b16 %v2186, %v2184
        %v2191 = vpack.c.b16 %v2187, %v2185
        %v2192 = vpack.c.b16 %v2188, %v2188
        %v2193 = vpack.c.b16 %v2189, %v2189
        %v2195 = vshrl.u32 %v2190, 16
        %v2197 = vshll.u32 %v2190, 16
        %v2199 = vrot.slane %v2197, 1
        %v2200 = vor.u32 %v2195, %v2199
        %v2202 = vshll.u32 %v2192, 16
        %v2204 = vrot.slane %v2202, 1
        %v2205 = vsel %vm668, %v2200, %v2204
        %v2207 = vshrl.u32 %v2191, 16
        %v2209 = vshll.u32 %v2191, 16
        %v2211 = vrot.slane %v2209, 1
        %v2212 = vor.u32 %v2207, %v2211
        %v2214 = vshll.u32 %v2193, 16
        %v2216 = vrot.slane %v2214, 1
        %v2217 = vsel %vm668, %v2212, %v2216
        %v2252 = vunpack.c.l.b16 %v2149
        %v2253 = vunpack.c.h.b16 %v2149
        %v2254 = vunpack.c.l.b16 %v2150
        %v2255 = vunpack.c.h.b16 %v2150
        %v2256 = vunpack.c.l.b16 %v2151
        %v2257 = vunpack.c.h.b16 %v2151
        %v2258 = vunpack.c.l.b16 %v2152
        %v2259 = vunpack.c.h.b16 %v2152
        %v2260 = vunpack.c.l.b16 %v2153
        %v2261 = vunpack.c.h.b16 %v2153
        %v2262 = vunpack.c.l.b16 %v2154
        %v2263 = vunpack.c.h.b16 %v2154
        %v2264 = vunpack.c.l.b16 %v2155
        %v2265 = vunpack.c.h.b16 %v2155
        %v2266 = vunpack.c.l.b16 %v2156
        %v2267 = vunpack.c.h.b16 %v2156
        %v2268 = vunpack.c.l.b16 %v2157
        %v2269 = vunpack.c.h.b16 %v2157
        %v2270 = vunpack.c.l.b16 %v2158
        %v2271 = vunpack.c.h.b16 %v2158
        %v2272 = vunpack.c.l.b16 %v2159
        %v2273 = vunpack.c.h.b16 %v2159
        %v2274 = vunpack.c.l.b16 %v2160
        %v2275 = vunpack.c.h.b16 %v2160
        %v2276 = vunpack.c.l.b16 %v2161
        %v2277 = vunpack.c.h.b16 %v2161
        %v2278 = vunpack.c.l.b16 %v2162
        %v2279 = vunpack.c.h.b16 %v2162
        %v2280 = vunpack.c.l.b16 %v2163
        %v2281 = vunpack.c.h.b16 %v2163
        %v2282 = vunpack.c.l.b16 %v2164
        %v2283 = vunpack.c.h.b16 %v2164
        %v2284 = vunpack.c.l.b16 %v2165
        %v2285 = vunpack.c.h.b16 %v2165
        %v2286 = vunpack.c.l.b16 %v2166
        %v2287 = vunpack.c.h.b16 %v2166
        %v2288 = vunpack.c.l.b16 %v2167
        %v2289 = vunpack.c.h.b16 %v2167
        %v2290 = vunpack.c.l.b16 %v2168
        %v2291 = vunpack.c.h.b16 %v2168
        %v2292 = vunpack.c.l.b16 %v2169
        %v2293 = vunpack.c.h.b16 %v2169
        %v2294 = vunpack.c.l.b16 %v2170
        %v2295 = vunpack.c.h.b16 %v2170
        %v2296 = vunpack.c.l.b16 %v2171
        %v2297 = vunpack.c.h.b16 %v2171
        %v2298 = vunpack.c.l.b16 %v2172
        %v2299 = vunpack.c.h.b16 %v2172
        %v2300 = vunpack.c.l.b16 %v2173
        %v2301 = vunpack.c.h.b16 %v2173
        %v2302 = vunpack.c.l.b16 %v2174
        %v2303 = vunpack.c.h.b16 %v2174
        %v2304 = vunpack.c.l.b16 %v2175
        %v2305 = vunpack.c.h.b16 %v2175
        %v2306 = vunpack.c.l.b16 %v2176
        %v2307 = vunpack.c.h.b16 %v2176
        %v2308 = vunpack.c.l.b16 %v2177
        %v2309 = vunpack.c.h.b16 %v2177
        %v2310 = vunpack.c.l.b16 %v2178
        %v2311 = vunpack.c.h.b16 %v2178
        %v2312 = vunpack.c.l.b16 %v2179
        %v2313 = vunpack.c.h.b16 %v2179
        %v2314 = vunpack.c.l.b16 %v2180
        %v2315 = vunpack.c.h.b16 %v2180
        %v2316 = vpack.c.b16 %v2254, %v2252
        %v2317 = vpack.c.b16 %v2255, %v2253
        %v2318 = vpack.c.b16 %v2258, %v2256
        %v2319 = vpack.c.b16 %v2259, %v2257
        %v2320 = vpack.c.b16 %v2262, %v2260
        %v2321 = vpack.c.b16 %v2263, %v2261
        %v2322 = vpack.c.b16 %v2266, %v2264
        %v2323 = vpack.c.b16 %v2267, %v2265
        %v2324 = vpack.c.b16 %v2270, %v2268
        %v2325 = vpack.c.b16 %v2271, %v2269
        %v2326 = vpack.c.b16 %v2274, %v2272
        %v2327 = vpack.c.b16 %v2275, %v2273
        %v2328 = vpack.c.b16 %v2278, %v2276
        %v2329 = vpack.c.b16 %v2279, %v2277
        %v2330 = vpack.c.b16 %v2282, %v2280
        %v2331 = vpack.c.b16 %v2283, %v2281
        %v2332 = vpack.c.b16 %v2286, %v2284
        %v2333 = vpack.c.b16 %v2287, %v2285
        %v2334 = vpack.c.b16 %v2290, %v2288
        %v2335 = vpack.c.b16 %v2291, %v2289
        %v2336 = vpack.c.b16 %v2294, %v2292
        %v2337 = vpack.c.b16 %v2295, %v2293
        %v2338 = vpack.c.b16 %v2298, %v2296
        %v2339 = vpack.c.b16 %v2299, %v2297
        %v2340 = vpack.c.b16 %v2302, %v2300
        %v2341 = vpack.c.b16 %v2303, %v2301
        %v2342 = vpack.c.b16 %v2306, %v2304
        %v2343 = vpack.c.b16 %v2307, %v2305
        %v2344 = vpack.c.b16 %v2310, %v2308
        %v2345 = vpack.c.b16 %v2311, %v2309
        %v2346 = vpack.c.b16 %v2314, %v2312
        %v2347 = vpack.c.b16 %v2315, %v2313
        %2380 = vmatprep.subr.bf16.mxu0 %v2317
        %2381 = vmatpush1.bf16.msra.mxu0 %v2316
        %2382 = vmatprep.subr.bf16.mxu0 %v2319
        %2383 = vmatpush1.bf16.msra.mxu0 %v2318
        %2384 = vmatprep.subr.bf16.mxu0 %v2321
        %2385 = vmatpush1.bf16.msra.mxu0 %v2320
        %2386 = vmatprep.subr.bf16.mxu0 %v2323
        %2387 = vmatpush1.bf16.msra.mxu0 %v2322
        %2388 = vmatprep.subr.bf16.mxu0 %v2325
        %2389 = vmatpush1.bf16.msra.mxu0 %v2324
        %2390 = vmatprep.subr.bf16.mxu0 %v2327
        %2391 = vmatpush1.bf16.msra.mxu0 %v2326
        %2392 = vmatprep.subr.bf16.mxu0 %v2329
        %2393 = vmatpush1.bf16.msra.mxu0 %v2328
        %2394 = vmatprep.subr.bf16.mxu0 %v2331
        %2395 = vmatpush1.bf16.msra.mxu0 %v2330
        %2396 = vmatprep.subr.bf16.mxu0 %v2333
        %2397 = vmatpush1.bf16.msra.mxu0 %v2332
        %2398 = vmatprep.subr.bf16.mxu0 %v2335
        %2399 = vmatpush1.bf16.msra.mxu0 %v2334
        %2400 = vmatprep.subr.bf16.mxu0 %v2337
        %2401 = vmatpush1.bf16.msra.mxu0 %v2336
        %2402 = vmatprep.subr.bf16.mxu0 %v2339
        %2403 = vmatpush1.bf16.msra.mxu0 %v2338
        %2404 = vmatprep.subr.bf16.mxu0 %v2341
        %2405 = vmatpush1.bf16.msra.mxu0 %v2340
        %2406 = vmatprep.subr.bf16.mxu0 %v2343
        %2407 = vmatpush1.bf16.msra.mxu0 %v2342
        %2408 = vmatprep.subr.bf16.mxu0 %v2345
        %2409 = vmatpush1.bf16.msra.mxu0 %v2344
        %2410 = vmatprep.subr.bf16.mxu0 %v2347
        %2411 = vmatpush1.bf16.msra.mxu0 %v2346
        %2412 = vmatprep.mubr.bf16.mxu0 %v2217
        %2413 = vmatmul.mubr.bf16.gmra.mrb[0].mxu0 %v2205
        %v2414 = vpop.f32.mrb[0].mxu0
        %v2415 = vadd.f32 0.0, %v2414
        %v2416 = vpop.f32.mrb[0].mxu0
        %v2417 = vadd.f32 0.0, %v2416
        %v2418 = vpop.f32.mrb[0].mxu0
        %v2419 = vadd.f32 0.0, %v2418
        %v2420 = vpop.f32.mrb[0].mxu0
        %v2421 = vadd.f32 0.0, %v2420
        %2422 = vdwg.mxu0
        %v2457 = vunpack.c.l.b16 %v2115
        %v2458 = vunpack.c.h.b16 %v2115
        %v2459 = vunpack.c.l.b16 %v2116
        %v2460 = vunpack.c.h.b16 %v2116
        %v2461 = vunpack.c.l.b16 %v2117
        %v2462 = vunpack.c.h.b16 %v2117
        %v2463 = vunpack.c.l.b16 %v2118
        %v2464 = vunpack.c.h.b16 %v2118
        %v2465 = vunpack.c.l.b16 %v2119
        %v2466 = vunpack.c.h.b16 %v2119
        %v2467 = vunpack.c.l.b16 %v2120
        %v2468 = vunpack.c.h.b16 %v2120
        %v2469 = vunpack.c.l.b16 %v2121
        %v2470 = vunpack.c.h.b16 %v2121
        %v2471 = vunpack.c.l.b16 %v2122
        %v2472 = vunpack.c.h.b16 %v2122
        %v2473 = vunpack.c.l.b16 %v2123
        %v2474 = vunpack.c.h.b16 %v2123
        %v2475 = vunpack.c.l.b16 %v2124
        %v2476 = vunpack.c.h.b16 %v2124
        %v2477 = vunpack.c.l.b16 %v2125
        %v2478 = vunpack.c.h.b16 %v2125
        %v2479 = vunpack.c.l.b16 %v2126
        %v2480 = vunpack.c.h.b16 %v2126
        %v2481 = vunpack.c.l.b16 %v2127
        %v2482 = vunpack.c.h.b16 %v2127
        %v2483 = vunpack.c.l.b16 %v2128
        %v2484 = vunpack.c.h.b16 %v2128
        %v2485 = vunpack.c.l.b16 %v2129
        %v2486 = vunpack.c.h.b16 %v2129
        %v2487 = vunpack.c.l.b16 %v2130
        %v2488 = vunpack.c.h.b16 %v2130
        %v2489 = vunpack.c.l.b16 %v2131
        %v2490 = vunpack.c.h.b16 %v2131
        %v2491 = vunpack.c.l.b16 %v2132
        %v2492 = vunpack.c.h.b16 %v2132
        %v2493 = vunpack.c.l.b16 %v2133
        %v2494 = vunpack.c.h.b16 %v2133
        %v2495 = vunpack.c.l.b16 %v2134
        %v2496 = vunpack.c.h.b16 %v2134
        %v2497 = vunpack.c.l.b16 %v2135
        %v2498 = vunpack.c.h.b16 %v2135
        %v2499 = vunpack.c.l.b16 %v2136
        %v2500 = vunpack.c.h.b16 %v2136
        %v2501 = vunpack.c.l.b16 %v2137
        %v2502 = vunpack.c.h.b16 %v2137
        %v2503 = vunpack.c.l.b16 %v2138
        %v2504 = vunpack.c.h.b16 %v2138
        %v2505 = vunpack.c.l.b16 %v2139
        %v2506 = vunpack.c.h.b16 %v2139
        %v2507 = vunpack.c.l.b16 %v2140
        %v2508 = vunpack.c.h.b16 %v2140
        %v2509 = vunpack.c.l.b16 %v2141
        %v2510 = vunpack.c.h.b16 %v2141
        %v2511 = vunpack.c.l.b16 %v2142
        %v2512 = vunpack.c.h.b16 %v2142
        %v2513 = vunpack.c.l.b16 %v2143
        %v2514 = vunpack.c.h.b16 %v2143
        %v2515 = vunpack.c.l.b16 %v2144
        %v2516 = vunpack.c.h.b16 %v2144
        %v2517 = vunpack.c.l.b16 %v2145
        %v2518 = vunpack.c.h.b16 %v2145
        %v2519 = vunpack.c.l.b16 %v2146
        %v2520 = vunpack.c.h.b16 %v2146
        %v2521 = vpack.c.b16 %v2459, %v2457
        %v2522 = vpack.c.b16 %v2460, %v2458
        %v2523 = vpack.c.b16 %v2463, %v2461
        %v2524 = vpack.c.b16 %v2464, %v2462
        %v2525 = vpack.c.b16 %v2467, %v2465
        %v2526 = vpack.c.b16 %v2468, %v2466
        %v2527 = vpack.c.b16 %v2471, %v2469
        %v2528 = vpack.c.b16 %v2472, %v2470
        %v2529 = vpack.c.b16 %v2475, %v2473
        %v2530 = vpack.c.b16 %v2476, %v2474
        %v2531 = vpack.c.b16 %v2479, %v2477
        %v2532 = vpack.c.b16 %v2480, %v2478
        %v2533 = vpack.c.b16 %v2483, %v2481
        %v2534 = vpack.c.b16 %v2484, %v2482
        %v2535 = vpack.c.b16 %v2487, %v2485
        %v2536 = vpack.c.b16 %v2488, %v2486
        %v2537 = vpack.c.b16 %v2491, %v2489
        %v2538 = vpack.c.b16 %v2492, %v2490
        %v2539 = vpack.c.b16 %v2495, %v2493
        %v2540 = vpack.c.b16 %v2496, %v2494
        %v2541 = vpack.c.b16 %v2499, %v2497
        %v2542 = vpack.c.b16 %v2500, %v2498
        %v2543 = vpack.c.b16 %v2503, %v2501
        %v2544 = vpack.c.b16 %v2504, %v2502
        %v2545 = vpack.c.b16 %v2507, %v2505
        %v2546 = vpack.c.b16 %v2508, %v2506
        %v2547 = vpack.c.b16 %v2511, %v2509
        %v2548 = vpack.c.b16 %v2512, %v2510
        %v2549 = vpack.c.b16 %v2515, %v2513
        %v2550 = vpack.c.b16 %v2516, %v2514
        %v2551 = vpack.c.b16 %v2519, %v2517
        %v2552 = vpack.c.b16 %v2520, %v2518
        %2585 = vmatprep.subr.bf16.mxu0 %v2522
        %2586 = vmatpush1.bf16.msra.mxu0 %v2521
        %2587 = vmatprep.subr.bf16.mxu0 %v2524
        %2588 = vmatpush1.bf16.msra.mxu0 %v2523
        %2589 = vmatprep.subr.bf16.mxu0 %v2526
        %2590 = vmatpush1.bf16.msra.mxu0 %v2525
        %2591 = vmatprep.subr.bf16.mxu0 %v2528
        %2592 = vmatpush1.bf16.msra.mxu0 %v2527
        %2593 = vmatprep.subr.bf16.mxu0 %v2530
        %2594 = vmatpush1.bf16.msra.mxu0 %v2529
        %2595 = vmatprep.subr.bf16.mxu0 %v2532
        %2596 = vmatpush1.bf16.msra.mxu0 %v2531
        %2597 = vmatprep.subr.bf16.mxu0 %v2534
        %2598 = vmatpush1.bf16.msra.mxu0 %v2533
        %2599 = vmatprep.subr.bf16.mxu0 %v2536
        %2600 = vmatpush1.bf16.msra.mxu0 %v2535
        %2601 = vmatprep.subr.bf16.mxu0 %v2538
        %2602 = vmatpush1.bf16.msra.mxu0 %v2537
        %2603 = vmatprep.subr.bf16.mxu0 %v2540
        %2604 = vmatpush1.bf16.msra.mxu0 %v2539
        %2605 = vmatprep.subr.bf16.mxu0 %v2542
        %2606 = vmatpush1.bf16.msra.mxu0 %v2541
        %2607 = vmatprep.subr.bf16.mxu0 %v2544
        %2608 = vmatpush1.bf16.msra.mxu0 %v2543
        %2609 = vmatprep.subr.bf16.mxu0 %v2546
        %2610 = vmatpush1.bf16.msra.mxu0 %v2545
        %2611 = vmatprep.subr.bf16.mxu0 %v2548
        %2612 = vmatpush1.bf16.msra.mxu0 %v2547
        %2613 = vmatprep.subr.bf16.mxu0 %v2550
        %2614 = vmatpush1.bf16.msra.mxu0 %v2549
        %2615 = vmatprep.subr.bf16.mxu0 %v2552
        %2616 = vmatpush1.bf16.msra.mxu0 %v2551
        %2617 = vmatprep.mubr.bf16.mxu0 %v2191
        %2618 = vmatmul.mubr.bf16.gmra.mrb[0].mxu0 %v2190
        %v2619 = vpop.f32.mrb[0].mxu0
        %v2620 = vadd.f32 %v2415, %v2619
        %v2621 = vpop.f32.mrb[0].mxu0
        %v2622 = vadd.f32 %v2417, %v2621
        %v2623 = vpop.f32.mrb[0].mxu0
        %v2624 = vadd.f32 %v2419, %v2623
        %v2625 = vpop.f32.mrb[0].mxu0
        %v2626 = vadd.f32 %v2421, %v2625
        %2627 = vdwg.mxu0
        %v2628 = vld [vmem:[#allocation2] sm:$0xee]
        %s2629 = scalar_lea.vmem [#allocation14], 512
        %v2630 = vld [vmem:[%s2629] sm:$0xff]
        %v2631 = vld [vmem:[%s2629 + $0x8] sm:$0xff]
        %v2632 = vld [vmem:[%s2629 + $0x10] sm:$0xff]
        %v2633 = vld [vmem:[%s2629 + $0x18] sm:$0xff]
        %v2634 = vld [vmem:[%s2629 + $0x20] sm:$0xff]
        %v2635 = vld [vmem:[%s2629 + $0x28] sm:$0xff]
        %v2636 = vld [vmem:[%s2629 + $0x30] sm:$0xff]
        %v2637 = vld [vmem:[%s2629 + $0x38] sm:$0xff]
        %v2638 = vld [vmem:[%s2629 + $0x40] sm:$0xff]
        %v2639 = vld [vmem:[%s2629 + $0x48] sm:$0xff]
        %v2640 = vld [vmem:[%s2629 + $0x50] sm:$0xff]
        %v2641 = vld [vmem:[%s2629 + $0x58] sm:$0xff]
        %v2642 = vld [vmem:[%s2629 + $0x60] sm:$0xff]
        %v2643 = vld [vmem:[%s2629 + $0x68] sm:$0xff]
        %v2644 = vld [vmem:[%s2629 + $0x70] sm:$0xff]
        %v2645 = vld [vmem:[%s2629 + $0x78] sm:$0xff]
        %v2646 = vld [vmem:[%s2629 + $0x80] sm:$0xff]
        %v2647 = vld [vmem:[%s2629 + $0x88] sm:$0xff]
        %v2648 = vld [vmem:[%s2629 + $0x90] sm:$0xff]
        %v2649 = vld [vmem:[%s2629 + $0x98] sm:$0xff]
        %v2650 = vld [vmem:[%s2629 + $0xa0] sm:$0xff]
        %v2651 = vld [vmem:[%s2629 + $0xa8] sm:$0xff]
        %v2652 = vld [vmem:[%s2629 + $0xb0] sm:$0xff]
        %v2653 = vld [vmem:[%s2629 + $0xb8] sm:$0xff]
        %v2654 = vld [vmem:[%s2629 + $0xc0] sm:$0xff]
        %v2655 = vld [vmem:[%s2629 + $0xc8] sm:$0xff]
        %v2656 = vld [vmem:[%s2629 + $0xd0] sm:$0xff]
        %v2657 = vld [vmem:[%s2629 + $0xd8] sm:$0xff]
        %v2658 = vld [vmem:[%s2629 + $0xe0] sm:$0xff]
        %v2659 = vld [vmem:[%s2629 + $0xe8] sm:$0xff]
        %v2660 = vld [vmem:[%s2629 + $0xf0] sm:$0xff]
        %v2661 = vld [vmem:[%s2629 + $0xf8] sm:$0xff]
        %v2663 = vunpack.c.l.b16 %v2628
        %v2664 = vunpack.c.h.b16 %v2628
        %v2665 = vpack.c.b16 %v2186, %v2663
        %v2666 = vpack.c.b16 %v2187, %v2664
        %v2667 = vrot.slane %v2665, 1
        %v2668 = vrot.slane %v2192, 1
        %v2669 = vsel %vm950, %v2667, %v2668
        %v2670 = vrot.slane %v2666, 1
        %v2671 = vrot.slane %v2193, 1
        %v2672 = vsel %vm950, %v2670, %v2671
        %v2707 = vunpack.c.l.b16 %v2630
        %v2708 = vunpack.c.h.b16 %v2630
        %v2709 = vunpack.c.l.b16 %v2631
        %v2710 = vunpack.c.h.b16 %v2631
        %v2711 = vunpack.c.l.b16 %v2632
        %v2712 = vunpack.c.h.b16 %v2632
        %v2713 = vunpack.c.l.b16 %v2633
        %v2714 = vunpack.c.h.b16 %v2633
        %v2715 = vunpack.c.l.b16 %v2634
        %v2716 = vunpack.c.h.b16 %v2634
        %v2717 = vunpack.c.l.b16 %v2635
        %v2718 = vunpack.c.h.b16 %v2635
        %v2719 = vunpack.c.l.b16 %v2636
        %v2720 = vunpack.c.h.b16 %v2636
        %v2721 = vunpack.c.l.b16 %v2637
        %v2722 = vunpack.c.h.b16 %v2637
        %v2723 = vunpack.c.l.b16 %v2638
        %v2724 = vunpack.c.h.b16 %v2638
        %v2725 = vunpack.c.l.b16 %v2639
        %v2726 = vunpack.c.h.b16 %v2639
        %v2727 = vunpack.c.l.b16 %v2640
        %v2728 = vunpack.c.h.b16 %v2640
        %v2729 = vunpack.c.l.b16 %v2641
        %v2730 = vunpack.c.h.b16 %v2641
        %v2731 = vunpack.c.l.b16 %v2642
        %v2732 = vunpack.c.h.b16 %v2642
        %v2733 = vunpack.c.l.b16 %v2643
        %v2734 = vunpack.c.h.b16 %v2643
        %v2735 = vunpack.c.l.b16 %v2644
        %v2736 = vunpack.c.h.b16 %v2644
        %v2737 = vunpack.c.l.b16 %v2645
        %v2738 = vunpack.c.h.b16 %v2645
        %v2739 = vunpack.c.l.b16 %v2646
        %v2740 = vunpack.c.h.b16 %v2646
        %v2741 = vunpack.c.l.b16 %v2647
        %v2742 = vunpack.c.h.b16 %v2647
        %v2743 = vunpack.c.l.b16 %v2648
        %v2744 = vunpack.c.h.b16 %v2648
        %v2745 = vunpack.c.l.b16 %v2649
        %v2746 = vunpack.c.h.b16 %v2649
        %v2747 = vunpack.c.l.b16 %v2650
        %v2748 = vunpack.c.h.b16 %v2650
        %v2749 = vunpack.c.l.b16 %v2651
        %v2750 = vunpack.c.h.b16 %v2651
        %v2751 = vunpack.c.l.b16 %v2652
        %v2752 = vunpack.c.h.b16 %v2652
        %v2753 = vunpack.c.l.b16 %v2653
        %v2754 = vunpack.c.h.b16 %v2653
        %v2755 = vunpack.c.l.b16 %v2654
        %v2756 = vunpack.c.h.b16 %v2654
        %v2757 = vunpack.c.l.b16 %v2655
        %v2758 = vunpack.c.h.b16 %v2655
        %v2759 = vunpack.c.l.b16 %v2656
        %v2760 = vunpack.c.h.b16 %v2656
        %v2761 = vunpack.c.l.b16 %v2657
        %v2762 = vunpack.c.h.b16 %v2657
        %v2763 = vunpack.c.l.b16 %v2658
        %v2764 = vunpack.c.h.b16 %v2658
        %v2765 = vunpack.c.l.b16 %v2659
        %v2766 = vunpack.c.h.b16 %v2659
        %v2767 = vunpack.c.l.b16 %v2660
        %v2768 = vunpack.c.h.b16 %v2660
        %v2769 = vunpack.c.l.b16 %v2661
        %v2770 = vunpack.c.h.b16 %v2661
        %v2771 = vpack.c.b16 %v2709, %v2707
        %v2772 = vpack.c.b16 %v2710, %v2708
        %v2773 = vpack.c.b16 %v2713, %v2711
        %v2774 = vpack.c.b16 %v2714, %v2712
        %v2775 = vpack.c.b16 %v2717, %v2715
        %v2776 = vpack.c.b16 %v2718, %v2716
        %v2777 = vpack.c.b16 %v2721, %v2719
        %v2778 = vpack.c.b16 %v2722, %v2720
        %v2779 = vpack.c.b16 %v2725, %v2723
        %v2780 = vpack.c.b16 %v2726, %v2724
        %v2781 = vpack.c.b16 %v2729, %v2727
        %v2782 = vpack.c.b16 %v2730, %v2728
        %v2783 = vpack.c.b16 %v2733, %v2731
        %v2784 = vpack.c.b16 %v2734, %v2732
        %v2785 = vpack.c.b16 %v2737, %v2735
        %v2786 = vpack.c.b16 %v2738, %v2736
        %v2787 = vpack.c.b16 %v2741, %v2739
        %v2788 = vpack.c.b16 %v2742, %v2740
        %v2789 = vpack.c.b16 %v2745, %v2743
        %v2790 = vpack.c.b16 %v2746, %v2744
        %v2791 = vpack.c.b16 %v2749, %v2747
        %v2792 = vpack.c.b16 %v2750, %v2748
        %v2793 = vpack.c.b16 %v2753, %v2751
        %v2794 = vpack.c.b16 %v2754, %v2752
        %v2795 = vpack.c.b16 %v2757, %v2755
        %v2796 = vpack.c.b16 %v2758, %v2756
        %v2797 = vpack.c.b16 %v2761, %v2759
        %v2798 = vpack.c.b16 %v2762, %v2760
        %v2799 = vpack.c.b16 %v2765, %v2763
        %v2800 = vpack.c.b16 %v2766, %v2764
        %v2801 = vpack.c.b16 %v2769, %v2767
        %v2802 = vpack.c.b16 %v2770, %v2768
        %2835 = vmatprep.subr.bf16.mxu0 %v2772
        %2836 = vmatpush1.bf16.msra.mxu0 %v2771
        %2837 = vmatprep.subr.bf16.mxu0 %v2774
        %2838 = vmatpush1.bf16.msra.mxu0 %v2773
        %2839 = vmatprep.subr.bf16.mxu0 %v2776
        %2840 = vmatpush1.bf16.msra.mxu0 %v2775
        %2841 = vmatprep.subr.bf16.mxu0 %v2778
        %2842 = vmatpush1.bf16.msra.mxu0 %v2777
        %2843 = vmatprep.subr.bf16.mxu0 %v2780
        %2844 = vmatpush1.bf16.msra.mxu0 %v2779
        %2845 = vmatprep.subr.bf16.mxu0 %v2782
        %2846 = vmatpush1.bf16.msra.mxu0 %v2781
        %2847 = vmatprep.subr.bf16.mxu0 %v2784
        %2848 = vmatpush1.bf16.msra.mxu0 %v2783
        %2849 = vmatprep.subr.bf16.mxu0 %v2786
        %2850 = vmatpush1.bf16.msra.mxu0 %v2785
        %2851 = vmatprep.subr.bf16.mxu0 %v2788
        %2852 = vmatpush1.bf16.msra.mxu0 %v2787
        %2853 = vmatprep.subr.bf16.mxu0 %v2790
        %2854 = vmatpush1.bf16.msra.mxu0 %v2789
        %2855 = vmatprep.subr.bf16.mxu0 %v2792
        %2856 = vmatpush1.bf16.msra.mxu0 %v2791
        %2857 = vmatprep.subr.bf16.mxu0 %v2794
        %2858 = vmatpush1.bf16.msra.mxu0 %v2793
        %2859 = vmatprep.subr.bf16.mxu0 %v2796
        %2860 = vmatpush1.bf16.msra.mxu0 %v2795
        %2861 = vmatprep.subr.bf16.mxu0 %v2798
        %2862 = vmatpush1.bf16.msra.mxu0 %v2797
        %2863 = vmatprep.subr.bf16.mxu0 %v2800
        %2864 = vmatpush1.bf16.msra.mxu0 %v2799
        %2865 = vmatprep.subr.bf16.mxu0 %v2802
        %2866 = vmatpush1.bf16.msra.mxu0 %v2801
        %2867 = vmatprep.mubr.bf16.mxu0 %v2672
        %2868 = vmatmul.mubr.bf16.gmra.mrb[0].mxu0 %v2669
        %v2869 = vpop.f32.mrb[0].mxu0
        %v2870 = vadd.f32 0.0, %v2869
        %v2871 = vpop.f32.mrb[0].mxu0
        %v2872 = vadd.f32 0.0, %v2871
        %v2873 = vpop.f32.mrb[0].mxu0
        %v2874 = vadd.f32 0.0, %v2873
        %v2875 = vpop.f32.mrb[0].mxu0
        %v2876 = vadd.f32 0.0, %v2875
        %2877 = vdwg.mxu0
        %v2878 = vadd.f32 %v2620, %v2870
        %v2879 = vadd.f32 %v2622, %v2872
        %v2880 = vadd.f32 %v2624, %v2874
        %v2881 = vadd.f32 %v2626, %v2876
        %v2882 = vld [vmem:[#allocation2 + $0x10] sm:$0xff]
        %s2883 = scalar_lea.vmem [#allocation14], 768
        %v2884 = vld [vmem:[%s2883] sm:$0xff]
        %v2885 = vld [vmem:[%s2883 + $0x8] sm:$0xff]
        %v2886 = vld [vmem:[%s2883 + $0x10] sm:$0xff]
        %v2887 = vld [vmem:[%s2883 + $0x18] sm:$0xff]
        %v2888 = vld [vmem:[%s2883 + $0x20] sm:$0xff]
        %v2889 = vld [vmem:[%s2883 + $0x28] sm:$0xff]
        %v2890 = vld [vmem:[%s2883 + $0x30] sm:$0xff]
        %v2891 = vld [vmem:[%s2883 + $0x38] sm:$0xff]
        %v2892 = vld [vmem:[%s2883 + $0x40] sm:$0xff]
        %v2893 = vld [vmem:[%s2883 + $0x48] sm:$0xff]
        %v2894 = vld [vmem:[%s2883 + $0x50] sm:$0xff]
        %v2895 = vld [vmem:[%s2883 + $0x58] sm:$0xff]
        %v2896 = vld [vmem:[%s2883 + $0x60] sm:$0xff]
        %v2897 = vld [vmem:[%s2883 + $0x68] sm:$0xff]
        %v2898 = vld [vmem:[%s2883 + $0x70] sm:$0xff]
        %v2899 = vld [vmem:[%s2883 + $0x78] sm:$0xff]
        %v2900 = vld [vmem:[%s2883 + $0x80] sm:$0xff]
        %v2901 = vld [vmem:[%s2883 + $0x88] sm:$0xff]
        %v2902 = vld [vmem:[%s2883 + $0x90] sm:$0xff]
        %v2903 = vld [vmem:[%s2883 + $0x98] sm:$0xff]
        %v2904 = vld [vmem:[%s2883 + $0xa0] sm:$0xff]
        %v2905 = vld [vmem:[%s2883 + $0xa8] sm:$0xff]
        %v2906 = vld [vmem:[%s2883 + $0xb0] sm:$0xff]
        %v2907 = vld [vmem:[%s2883 + $0xb8] sm:$0xff]
        %v2908 = vld [vmem:[%s2883 + $0xc0] sm:$0xff]
        %v2909 = vld [vmem:[%s2883 + $0xc8] sm:$0xff]
        %v2910 = vld [vmem:[%s2883 + $0xd0] sm:$0xff]
        %v2911 = vld [vmem:[%s2883 + $0xd8] sm:$0xff]
        %v2912 = vld [vmem:[%s2883 + $0xe0] sm:$0xff]
        %v2913 = vld [vmem:[%s2883 + $0xe8] sm:$0xff]
        %v2914 = vld [vmem:[%s2883 + $0xf0] sm:$0xff]
        %v2915 = vld [vmem:[%s2883 + $0xf8] sm:$0xff]
        %v2917 = vunpack.c.l.b16 %v2882
        %v2918 = vunpack.c.h.b16 %v2882
        %v2919 = vpack.c.b16 %v2917, %v2186
        %v2920 = vpack.c.b16 %v2918, %v2187
        %v2955 = vunpack.c.l.b16 %v2884
        %v2956 = vunpack.c.h.b16 %v2884
        %v2957 = vunpack.c.l.b16 %v2885
        %v2958 = vunpack.c.h.b16 %v2885
        %v2959 = vunpack.c.l.b16 %v2886
        %v2960 = vunpack.c.h.b16 %v2886
        %v2961 = vunpack.c.l.b16 %v2887
        %v2962 = vunpack.c.h.b16 %v2887
        %v2963 = vunpack.c.l.b16 %v2888
        %v2964 = vunpack.c.h.b16 %v2888
        %v2965 = vunpack.c.l.b16 %v2889
        %v2966 = vunpack.c.h.b16 %v2889
        %v2967 = vunpack.c.l.b16 %v2890
        %v2968 = vunpack.c.h.b16 %v2890
        %v2969 = vunpack.c.l.b16 %v2891
        %v2970 = vunpack.c.h.b16 %v2891
        %v2971 = vunpack.c.l.b16 %v2892
        %v2972 = vunpack.c.h.b16 %v2892
        %v2973 = vunpack.c.l.b16 %v2893
        %v2974 = vunpack.c.h.b16 %v2893
        %v2975 = vunpack.c.l.b16 %v2894
        %v2976 = vunpack.c.h.b16 %v2894
        %v2977 = vunpack.c.l.b16 %v2895
        %v2978 = vunpack.c.h.b16 %v2895
        %v2979 = vunpack.c.l.b16 %v2896
        %v2980 = vunpack.c.h.b16 %v2896
        %v2981 = vunpack.c.l.b16 %v2897
        %v2982 = vunpack.c.h.b16 %v2897
        %v2983 = vunpack.c.l.b16 %v2898
        %v2984 = vunpack.c.h.b16 %v2898
        %v2985 = vunpack.c.l.b16 %v2899
        %v2986 = vunpack.c.h.b16 %v2899
        %v2987 = vunpack.c.l.b16 %v2900
        %v2988 = vunpack.c.h.b16 %v2900
        %v2989 = vunpack.c.l.b16 %v2901
        %v2990 = vunpack.c.h.b16 %v2901
        %v2991 = vunpack.c.l.b16 %v2902
        %v2992 = vunpack.c.h.b16 %v2902
        %v2993 = vunpack.c.l.b16 %v2903
        %v2994 = vunpack.c.h.b16 %v2903
        %v2995 = vunpack.c.l.b16 %v2904
        %v2996 = vunpack.c.h.b16 %v2904
        %v2997 = vunpack.c.l.b16 %v2905
        %v2998 = vunpack.c.h.b16 %v2905
        %v2999 = vunpack.c.l.b16 %v2906
        %v3000 = vunpack.c.h.b16 %v2906
        %v3001 = vunpack.c.l.b16 %v2907
        %v3002 = vunpack.c.h.b16 %v2907
        %v3003 = vunpack.c.l.b16 %v2908
        %v3004 = vunpack.c.h.b16 %v2908
        %v3005 = vunpack.c.l.b16 %v2909
        %v3006 = vunpack.c.h.b16 %v2909
        %v3007 = vunpack.c.l.b16 %v2910
        %v3008 = vunpack.c.h.b16 %v2910
        %v3009 = vunpack.c.l.b16 %v2911
        %v3010 = vunpack.c.h.b16 %v2911
        %v3011 = vunpack.c.l.b16 %v2912
        %v3012 = vunpack.c.h.b16 %v2912
        %v3013 = vunpack.c.l.b16 %v2913
        %v3014 = vunpack.c.h.b16 %v2913
        %v3015 = vunpack.c.l.b16 %v2914
        %v3016 = vunpack.c.h.b16 %v2914
        %v3017 = vunpack.c.l.b16 %v2915
        %v3018 = vunpack.c.h.b16 %v2915
        %v3019 = vpack.c.b16 %v2957, %v2955
        %v3020 = vpack.c.b16 %v2958, %v2956
        %v3021 = vpack.c.b16 %v2961, %v2959
        %v3022 = vpack.c.b16 %v2962, %v2960
        %v3023 = vpack.c.b16 %v2965, %v2963
        %v3024 = vpack.c.b16 %v2966, %v2964
        %v3025 = vpack.c.b16 %v2969, %v2967
        %v3026 = vpack.c.b16 %v2970, %v2968
        %v3027 = vpack.c.b16 %v2973, %v2971
        %v3028 = vpack.c.b16 %v2974, %v2972
        %v3029 = vpack.c.b16 %v2977, %v2975
        %v3030 = vpack.c.b16 %v2978, %v2976
        %v3031 = vpack.c.b16 %v2981, %v2979
        %v3032 = vpack.c.b16 %v2982, %v2980
        %v3033 = vpack.c.b16 %v2985, %v2983
        %v3034 = vpack.c.b16 %v2986, %v2984
        %v3035 = vpack.c.b16 %v2989, %v2987
        %v3036 = vpack.c.b16 %v2990, %v2988
        %v3037 = vpack.c.b16 %v2993, %v2991
        %v3038 = vpack.c.b16 %v2994, %v2992
        %v3039 = vpack.c.b16 %v2997, %v2995
        %v3040 = vpack.c.b16 %v2998, %v2996
        %v3041 = vpack.c.b16 %v3001, %v2999
        %v3042 = vpack.c.b16 %v3002, %v3000
        %v3043 = vpack.c.b16 %v3005, %v3003
        %v3044 = vpack.c.b16 %v3006, %v3004
        %v3045 = vpack.c.b16 %v3009, %v3007
        %v3046 = vpack.c.b16 %v3010, %v3008
        %v3047 = vpack.c.b16 %v3013, %v3011
        %v3048 = vpack.c.b16 %v3014, %v3012
        %v3049 = vpack.c.b16 %v3017, %v3015
        %v3050 = vpack.c.b16 %v3018, %v3016
        %3083 = vmatprep.subr.bf16.mxu0 %v3020
        %3084 = vmatpush1.bf16.msra.mxu0 %v3019
        %3085 = vmatprep.subr.bf16.mxu0 %v3022
        %3086 = vmatpush1.bf16.msra.mxu0 %v3021
        %3087 = vmatprep.subr.bf16.mxu0 %v3024
        %3088 = vmatpush1.bf16.msra.mxu0 %v3023
        %3089 = vmatprep.subr.bf16.mxu0 %v3026
        %3090 = vmatpush1.bf16.msra.mxu0 %v3025
        %3091 = vmatprep.subr.bf16.mxu0 %v3028
        %3092 = vmatpush1.bf16.msra.mxu0 %v3027
        %3093 = vmatprep.subr.bf16.mxu0 %v3030
        %3094 = vmatpush1.bf16.msra.mxu0 %v3029
        %3095 = vmatprep.subr.bf16.mxu0 %v3032
        %3096 = vmatpush1.bf16.msra.mxu0 %v3031
        %3097 = vmatprep.subr.bf16.mxu0 %v3034
        %3098 = vmatpush1.bf16.msra.mxu0 %v3033
        %3099 = vmatprep.subr.bf16.mxu0 %v3036
        %3100 = vmatpush1.bf16.msra.mxu0 %v3035
        %3101 = vmatprep.subr.bf16.mxu0 %v3038
        %3102 = vmatpush1.bf16.msra.mxu0 %v3037
        %3103 = vmatprep.subr.bf16.mxu0 %v3040
        %3104 = vmatpush1.bf16.msra.mxu0 %v3039
        %3105 = vmatprep.subr.bf16.mxu0 %v3042
        %3106 = vmatpush1.bf16.msra.mxu0 %v3041
        %3107 = vmatprep.subr.bf16.mxu0 %v3044
        %3108 = vmatpush1.bf16.msra.mxu0 %v3043
        %3109 = vmatprep.subr.bf16.mxu0 %v3046
        %3110 = vmatpush1.bf16.msra.mxu0 %v3045
        %3111 = vmatprep.subr.bf16.mxu0 %v3048
        %3112 = vmatpush1.bf16.msra.mxu0 %v3047
        %3113 = vmatprep.subr.bf16.mxu0 %v3050
        %3114 = vmatpush1.bf16.msra.mxu0 %v3049
        %3115 = vmatprep.mubr.bf16.mxu0 %v2920
        %3116 = vmatmul.mubr.bf16.gmra.mrb[0].mxu0 %v2919
        %v3117 = vpop.f32.mrb[0].mxu0
        %v3118 = vadd.f32 0.0, %v3117
        %v3119 = vpop.f32.mrb[0].mxu0
        %v3120 = vadd.f32 0.0, %v3119
        %v3121 = vpop.f32.mrb[0].mxu0
        %v3122 = vadd.f32 0.0, %v3121
        %v3123 = vpop.f32.mrb[0].mxu0
        %v3124 = vadd.f32 0.0, %v3123
        %3125 = vdwg.mxu0
        %v3126 = vadd.f32 %v2878, %v3118
        %v3127 = vadd.f32 %v2879, %v3120
        %v3128 = vadd.f32 %v2880, %v3122
        %v3129 = vadd.f32 %v2881, %v3124
        %v3130 = vld [vmem:[#allocation2 + $0x8] sm:$0xff]
        %v3131 = vld [vmem:[#allocation2 + $0x10] sm:$0xff]
        %v3132 = vld [vmem:[#allocation2 + $0x18] sm:$0x11]
        %s3133 = scalar_lea.vmem [#allocation14], 1024
        %v3134 = vld [vmem:[%s3133] sm:$0xff]
        %v3135 = vld [vmem:[%s3133 + $0x8] sm:$0xff]
        %v3136 = vld [vmem:[%s3133 + $0x10] sm:$0xff]
        %v3137 = vld [vmem:[%s3133 + $0x18] sm:$0xff]
        %v3138 = vld [vmem:[%s3133 + $0x20] sm:$0xff]
        %v3139 = vld [vmem:[%s3133 + $0x28] sm:$0xff]
        %v3140 = vld [vmem:[%s3133 + $0x30] sm:$0xff]
        %v3141 = vld [vmem:[%s3133 + $0x38] sm:$0xff]
        %v3142 = vld [vmem:[%s3133 + $0x40] sm:$0xff]
        %v3143 = vld [vmem:[%s3133 + $0x48] sm:$0xff]
        %v3144 = vld [vmem:[%s3133 + $0x50] sm:$0xff]
        %v3145 = vld [vmem:[%s3133 + $0x58] sm:$0xff]
        %v3146 = vld [vmem:[%s3133 + $0x60] sm:$0xff]
        %v3147 = vld [vmem:[%s3133 + $0x68] sm:$0xff]
        %v3148 = vld [vmem:[%s3133 + $0x70] sm:$0xff]
        %v3149 = vld [vmem:[%s3133 + $0x78] sm:$0xff]
        %v3150 = vld [vmem:[%s3133 + $0x80] sm:$0xff]
        %v3151 = vld [vmem:[%s3133 + $0x88] sm:$0xff]
        %v3152 = vld [vmem:[%s3133 + $0x90] sm:$0xff]
        %v3153 = vld [vmem:[%s3133 + $0x98] sm:$0xff]
        %v3154 = vld [vmem:[%s3133 + $0xa0] sm:$0xff]
        %v3155 = vld [vmem:[%s3133 + $0xa8] sm:$0xff]
        %v3156 = vld [vmem:[%s3133 + $0xb0] sm:$0xff]
        %v3157 = vld [vmem:[%s3133 + $0xb8] sm:$0xff]
        %v3158 = vld [vmem:[%s3133 + $0xc0] sm:$0xff]
        %v3159 = vld [vmem:[%s3133 + $0xc8] sm:$0xff]
        %v3160 = vld [vmem:[%s3133 + $0xd0] sm:$0xff]
        %v3161 = vld [vmem:[%s3133 + $0xd8] sm:$0xff]
        %v3162 = vld [vmem:[%s3133 + $0xe0] sm:$0xff]
        %v3163 = vld [vmem:[%s3133 + $0xe8] sm:$0xff]
        %v3164 = vld [vmem:[%s3133 + $0xf0] sm:$0xff]
        %v3165 = vld [vmem:[%s3133 + $0xf8] sm:$0xff]
        %v3169 = vunpack.c.l.b16 %v3130
        %v3170 = vunpack.c.h.b16 %v3130
        %v3171 = vunpack.c.l.b16 %v3131
        %v3172 = vunpack.c.h.b16 %v3131
        %v3173 = vunpack.c.l.b16 %v3132
        %v3174 = vunpack.c.h.b16 %v3132
        %v3175 = vpack.c.b16 %v3171, %v3169
        %v3176 = vpack.c.b16 %v3172, %v3170
        %v3177 = vpack.c.b16 %v3173, %v3173
        %v3178 = vpack.c.b16 %v3174, %v3174
        %v3180 = vshrl.u32 %v3175, 16
        %v3182 = vshll.u32 %v3175, 16
        %v3184 = vrot.slane %v3182, 1
        %v3185 = vor.u32 %v3180, %v3184
        %v3187 = vshll.u32 %v3177, 16
        %v3189 = vrot.slane %v3187, 1
        %v3190 = vsel %vm668, %v3185, %v3189
        %v3192 = vshrl.u32 %v3176, 16
        %v3194 = vshll.u32 %v3176, 16
        %v3196 = vrot.slane %v3194, 1
        %v3197 = vor.u32 %v3192, %v3196
        %v3199 = vshll.u32 %v3178, 16
        %v3201 = vrot.slane %v3199, 1
        %v3202 = vsel %vm668, %v3197, %v3201
        %v3237 = vunpack.c.l.b16 %v3134
        %v3238 = vunpack.c.h.b16 %v3134
        %v3239 = vunpack.c.l.b16 %v3135
        %v3240 = vunpack.c.h.b16 %v3135
        %v3241 = vunpack.c.l.b16 %v3136
        %v3242 = vunpack.c.h.b16 %v3136
        %v3243 = vunpack.c.l.b16 %v3137
        %v3244 = vunpack.c.h.b16 %v3137
        %v3245 = vunpack.c.l.b16 %v3138
        %v3246 = vunpack.c.h.b16 %v3138
        %v3247 = vunpack.c.l.b16 %v3139
        %v3248 = vunpack.c.h.b16 %v3139
        %v3249 = vunpack.c.l.b16 %v3140
        %v3250 = vunpack.c.h.b16 %v3140
        %v3251 = vunpack.c.l.b16 %v3141
        %v3252 = vunpack.c.h.b16 %v3141
        %v3253 = vunpack.c.l.b16 %v3142
        %v3254 = vunpack.c.h.b16 %v3142
        %v3255 = vunpack.c.l.b16 %v3143
        %v3256 = vunpack.c.h.b16 %v3143
        %v3257 = vunpack.c.l.b16 %v3144
        %v3258 = vunpack.c.h.b16 %v3144
        %v3259 = vunpack.c.l.b16 %v3145
        %v3260 = vunpack.c.h.b16 %v3145
        %v3261 = vunpack.c.l.b16 %v3146
        %v3262 = vunpack.c.h.b16 %v3146
        %v3263 = vunpack.c.l.b16 %v3147
        %v3264 = vunpack.c.h.b16 %v3147
        %v3265 = vunpack.c.l.b16 %v3148
        %v3266 = vunpack.c.h.b16 %v3148
        %v3267 = vunpack.c.l.b16 %v3149
        %v3268 = vunpack.c.h.b16 %v3149
        %v3269 = vunpack.c.l.b16 %v3150
        %v3270 = vunpack.c.h.b16 %v3150
        %v3271 = vunpack.c.l.b16 %v3151
        %v3272 = vunpack.c.h.b16 %v3151
        %v3273 = vunpack.c.l.b16 %v3152
        %v3274 = vunpack.c.h.b16 %v3152
        %v3275 = vunpack.c.l.b16 %v3153
        %v3276 = vunpack.c.h.b16 %v3153
        %v3277 = vunpack.c.l.b16 %v3154
        %v3278 = vunpack.c.h.b16 %v3154
        %v3279 = vunpack.c.l.b16 %v3155
        %v3280 = vunpack.c.h.b16 %v3155
        %v3281 = vunpack.c.l.b16 %v3156
        %v3282 = vunpack.c.h.b16 %v3156
        %v3283 = vunpack.c.l.b16 %v3157
        %v3284 = vunpack.c.h.b16 %v3157
        %v3285 = vunpack.c.l.b16 %v3158
        %v3286 = vunpack.c.h.b16 %v3158
        %v3287 = vunpack.c.l.b16 %v3159
        %v3288 = vunpack.c.h.b16 %v3159
        %v3289 = vunpack.c.l.b16 %v3160
        %v3290 = vunpack.c.h.b16 %v3160
        %v3291 = vunpack.c.l.b16 %v3161
        %v3292 = vunpack.c.h.b16 %v3161
        %v3293 = vunpack.c.l.b16 %v3162
        %v3294 = vunpack.c.h.b16 %v3162
        %v3295 = vunpack.c.l.b16 %v3163
        %v3296 = vunpack.c.h.b16 %v3163
        %v3297 = vunpack.c.l.b16 %v3164
        %v3298 = vunpack.c.h.b16 %v3164
        %v3299 = vunpack.c.l.b16 %v3165
        %v3300 = vunpack.c.h.b16 %v3165
        %v3301 = vpack.c.b16 %v3239, %v3237
        %v3302 = vpack.c.b16 %v3240, %v3238
        %v3303 = vpack.c.b16 %v3243, %v3241
        %v3304 = vpack.c.b16 %v3244, %v3242
        %v3305 = vpack.c.b16 %v3247, %v3245
        %v3306 = vpack.c.b16 %v3248, %v3246
        %v3307 = vpack.c.b16 %v3251, %v3249
        %v3308 = vpack.c.b16 %v3252, %v3250
        %v3309 = vpack.c.b16 %v3255, %v3253
        %v3310 = vpack.c.b16 %v3256, %v3254
        %v3311 = vpack.c.b16 %v3259, %v3257
        %v3312 = vpack.c.b16 %v3260, %v3258
        %v3313 = vpack.c.b16 %v3263, %v3261
        %v3314 = vpack.c.b16 %v3264, %v3262
        %v3315 = vpack.c.b16 %v3267, %v3265
        %v3316 = vpack.c.b16 %v3268, %v3266
        %v3317 = vpack.c.b16 %v3271, %v3269
        %v3318 = vpack.c.b16 %v3272, %v3270
        %v3319 = vpack.c.b16 %v3275, %v3273
        %v3320 = vpack.c.b16 %v3276, %v3274
        %v3321 = vpack.c.b16 %v3279, %v3277
        %v3322 = vpack.c.b16 %v3280, %v3278
        %v3323 = vpack.c.b16 %v3283, %v3281
        %v3324 = vpack.c.b16 %v3284, %v3282
        %v3325 = vpack.c.b16 %v3287, %v3285
        %v3326 = vpack.c.b16 %v3288, %v3286
        %v3327 = vpack.c.b16 %v3291, %v3289
        %v3328 = vpack.c.b16 %v3292, %v3290
        %v3329 = vpack.c.b16 %v3295, %v3293
        %v3330 = vpack.c.b16 %v3296, %v3294
        %v3331 = vpack.c.b16 %v3299, %v3297
        %v3332 = vpack.c.b16 %v3300, %v3298
        %3365 = vmatprep.subr.bf16.mxu0 %v3302
        %3366 = vmatpush1.bf16.msra.mxu0 %v3301
        %3367 = vmatprep.subr.bf16.mxu0 %v3304
        %3368 = vmatpush1.bf16.msra.mxu0 %v3303
        %3369 = vmatprep.subr.bf16.mxu0 %v3306
        %3370 = vmatpush1.bf16.msra.mxu0 %v3305
        %3371 = vmatprep.subr.bf16.mxu0 %v3308
        %3372 = vmatpush1.bf16.msra.mxu0 %v3307
        %3373 = vmatprep.subr.bf16.mxu0 %v3310
        %3374 = vmatpush1.bf16.msra.mxu0 %v3309
        %3375 = vmatprep.subr.bf16.mxu0 %v3312
        %3376 = vmatpush1.bf16.msra.mxu0 %v3311
        %3377 = vmatprep.subr.bf16.mxu0 %v3314
        %3378 = vmatpush1.bf16.msra.mxu0 %v3313
        %3379 = vmatprep.subr.bf16.mxu0 %v3316
        %3380 = vmatpush1.bf16.msra.mxu0 %v3315
        %3381 = vmatprep.subr.bf16.mxu0 %v3318
        %3382 = vmatpush1.bf16.msra.mxu0 %v3317
        %3383 = vmatprep.subr.bf16.mxu0 %v3320
        %3384 = vmatpush1.bf16.msra.mxu0 %v3319
        %3385 = vmatprep.subr.bf16.mxu0 %v3322
        %3386 = vmatpush1.bf16.msra.mxu0 %v3321
        %3387 = vmatprep.subr.bf16.mxu0 %v3324
        %3388 = vmatpush1.bf16.msra.mxu0 %v3323
        %3389 = vmatprep.subr.bf16.mxu0 %v3326
        %3390 = vmatpush1.bf16.msra.mxu0 %v3325
        %3391 = vmatprep.subr.bf16.mxu0 %v3328
        %3392 = vmatpush1.bf16.msra.mxu0 %v3327
        %3393 = vmatprep.subr.bf16.mxu0 %v3330
        %3394 = vmatpush1.bf16.msra.mxu0 %v3329
        %3395 = vmatprep.subr.bf16.mxu0 %v3332
        %3396 = vmatpush1.bf16.msra.mxu0 %v3331
        %3397 = vmatprep.mubr.bf16.mxu0 %v3202
        %3398 = vmatmul.mubr.bf16.gmra.mrb[0].mxu0 %v3190
        %v3399 = vpop.f32.mrb[0].mxu0
        %v3400 = vadd.f32 0.0, %v3399
        %v3401 = vpop.f32.mrb[0].mxu0
        %v3402 = vadd.f32 0.0, %v3401
        %v3403 = vpop.f32.mrb[0].mxu0
        %v3404 = vadd.f32 0.0, %v3403
        %v3405 = vpop.f32.mrb[0].mxu0
        %v3406 = vadd.f32 0.0, %v3405
        %3407 = vdwg.mxu0
        %v3408 = vadd.f32 %v3126, %v3400
        %v3409 = vadd.f32 %v3127, %v3402
        %v3410 = vadd.f32 %v3128, %v3404
        %v3411 = vadd.f32 %v3129, %v3406
        %v3412 = vld [vmem:[#allocation2 + $0x8] sm:$0xee]
        %s3413 = scalar_lea.vmem [#allocation14], 1280
        %v3414 = vld [vmem:[%s3413] sm:$0xff]
        %v3415 = vld [vmem:[%s3413 + $0x8] sm:$0xff]
        %v3416 = vld [vmem:[%s3413 + $0x10] sm:$0xff]
        %v3417 = vld [vmem:[%s3413 + $0x18] sm:$0xff]
        %v3418 = vld [vmem:[%s3413 + $0x20] sm:$0xff]
        %v3419 = vld [vmem:[%s3413 + $0x28] sm:$0xff]
        %v3420 = vld [vmem:[%s3413 + $0x30] sm:$0xff]
        %v3421 = vld [vmem:[%s3413 + $0x38] sm:$0xff]
        %v3422 = vld [vmem:[%s3413 + $0x40] sm:$0xff]
        %v3423 = vld [vmem:[%s3413 + $0x48] sm:$0xff]
        %v3424 = vld [vmem:[%s3413 + $0x50] sm:$0xff]
        %v3425 = vld [vmem:[%s3413 + $0x58] sm:$0xff]
        %v3426 = vld [vmem:[%s3413 + $0x60] sm:$0xff]
        %v3427 = vld [vmem:[%s3413 + $0x68] sm:$0xff]
        %v3428 = vld [vmem:[%s3413 + $0x70] sm:$0xff]
        %v3429 = vld [vmem:[%s3413 + $0x78] sm:$0xff]
        %v3430 = vld [vmem:[%s3413 + $0x80] sm:$0xff]
        %v3431 = vld [vmem:[%s3413 + $0x88] sm:$0xff]
        %v3432 = vld [vmem:[%s3413 + $0x90] sm:$0xff]
        %v3433 = vld [vmem:[%s3413 + $0x98] sm:$0xff]
        %v3434 = vld [vmem:[%s3413 + $0xa0] sm:$0xff]
        %v3435 = vld [vmem:[%s3413 + $0xa8] sm:$0xff]
        %v3436 = vld [vmem:[%s3413 + $0xb0] sm:$0xff]
        %v3437 = vld [vmem:[%s3413 + $0xb8] sm:$0xff]
        %v3438 = vld [vmem:[%s3413 + $0xc0] sm:$0xff]
        %v3439 = vld [vmem:[%s3413 + $0xc8] sm:$0xff]
        %v3440 = vld [vmem:[%s3413 + $0xd0] sm:$0xff]
        %v3441 = vld [vmem:[%s3413 + $0xd8] sm:$0xff]
        %v3442 = vld [vmem:[%s3413 + $0xe0] sm:$0xff]
        %v3443 = vld [vmem:[%s3413 + $0xe8] sm:$0xff]
        %v3444 = vld [vmem:[%s3413 + $0xf0] sm:$0xff]
        %v3445 = vld [vmem:[%s3413 + $0xf8] sm:$0xff]
        %v3447 = vunpack.c.l.b16 %v3412
        %v3448 = vunpack.c.h.b16 %v3412
        %v3449 = vpack.c.b16 %v3171, %v3447
        %v3450 = vpack.c.b16 %v3172, %v3448
        %v3451 = vrot.slane %v3449, 1
        %v3452 = vrot.slane %v3177, 1
        %v3453 = vsel %vm950, %v3451, %v3452
        %v3454 = vrot.slane %v3450, 1
        %v3455 = vrot.slane %v3178, 1
        %v3456 = vsel %vm950, %v3454, %v3455
        %v3491 = vunpack.c.l.b16 %v3414
        %v3492 = vunpack.c.h.b16 %v3414
        %v3493 = vunpack.c.l.b16 %v3415
        %v3494 = vunpack.c.h.b16 %v3415
        %v3495 = vunpack.c.l.b16 %v3416
        %v3496 = vunpack.c.h.b16 %v3416
        %v3497 = vunpack.c.l.b16 %v3417
        %v3498 = vunpack.c.h.b16 %v3417
        %v3499 = vunpack.c.l.b16 %v3418
        %v3500 = vunpack.c.h.b16 %v3418
        %v3501 = vunpack.c.l.b16 %v3419
        %v3502 = vunpack.c.h.b16 %v3419
        %v3503 = vunpack.c.l.b16 %v3420
        %v3504 = vunpack.c.h.b16 %v3420
        %v3505 = vunpack.c.l.b16 %v3421
        %v3506 = vunpack.c.h.b16 %v3421
        %v3507 = vunpack.c.l.b16 %v3422
        %v3508 = vunpack.c.h.b16 %v3422
        %v3509 = vunpack.c.l.b16 %v3423
        %v3510 = vunpack.c.h.b16 %v3423
        %v3511 = vunpack.c.l.b16 %v3424
        %v3512 = vunpack.c.h.b16 %v3424
        %v3513 = vunpack.c.l.b16 %v3425
        %v3514 = vunpack.c.h.b16 %v3425
        %v3515 = vunpack.c.l.b16 %v3426
        %v3516 = vunpack.c.h.b16 %v3426
        %v3517 = vunpack.c.l.b16 %v3427
        %v3518 = vunpack.c.h.b16 %v3427
        %v3519 = vunpack.c.l.b16 %v3428
        %v3520 = vunpack.c.h.b16 %v3428
        %v3521 = vunpack.c.l.b16 %v3429
        %v3522 = vunpack.c.h.b16 %v3429
        %v3523 = vunpack.c.l.b16 %v3430
        %v3524 = vunpack.c.h.b16 %v3430
        %v3525 = vunpack.c.l.b16 %v3431
        %v3526 = vunpack.c.h.b16 %v3431
        %v3527 = vunpack.c.l.b16 %v3432
        %v3528 = vunpack.c.h.b16 %v3432
        %v3529 = vunpack.c.l.b16 %v3433
        %v3530 = vunpack.c.h.b16 %v3433
        %v3531 = vunpack.c.l.b16 %v3434
        %v3532 = vunpack.c.h.b16 %v3434
        %v3533 = vunpack.c.l.b16 %v3435
        %v3534 = vunpack.c.h.b16 %v3435
        %v3535 = vunpack.c.l.b16 %v3436
        %v3536 = vunpack.c.h.b16 %v3436
        %v3537 = vunpack.c.l.b16 %v3437
        %v3538 = vunpack.c.h.b16 %v3437
        %v3539 = vunpack.c.l.b16 %v3438
        %v3540 = vunpack.c.h.b16 %v3438
        %v3541 = vunpack.c.l.b16 %v3439
        %v3542 = vunpack.c.h.b16 %v3439
        %v3543 = vunpack.c.l.b16 %v3440
        %v3544 = vunpack.c.h.b16 %v3440
        %v3545 = vunpack.c.l.b16 %v3441
        %v3546 = vunpack.c.h.b16 %v3441
        %v3547 = vunpack.c.l.b16 %v3442
        %v3548 = vunpack.c.h.b16 %v3442
        %v3549 = vunpack.c.l.b16 %v3443
        %v3550 = vunpack.c.h.b16 %v3443
        %v3551 = vunpack.c.l.b16 %v3444
        %v3552 = vunpack.c.h.b16 %v3444
        %v3553 = vunpack.c.l.b16 %v3445
        %v3554 = vunpack.c.h.b16 %v3445
        %v3555 = vpack.c.b16 %v3493, %v3491
        %v3556 = vpack.c.b16 %v3494, %v3492
        %v3557 = vpack.c.b16 %v3497, %v3495
        %v3558 = vpack.c.b16 %v3498, %v3496
        %v3559 = vpack.c.b16 %v3501, %v3499
        %v3560 = vpack.c.b16 %v3502, %v3500
        %v3561 = vpack.c.b16 %v3505, %v3503
        %v3562 = vpack.c.b16 %v3506, %v3504
        %v3563 = vpack.c.b16 %v3509, %v3507
        %v3564 = vpack.c.b16 %v3510, %v3508
        %v3565 = vpack.c.b16 %v3513, %v3511
        %v3566 = vpack.c.b16 %v3514, %v3512
        %v3567 = vpack.c.b16 %v3517, %v3515
        %v3568 = vpack.c.b16 %v3518, %v3516
        %v3569 = vpack.c.b16 %v3521, %v3519
        %v3570 = vpack.c.b16 %v3522, %v3520
        %v3571 = vpack.c.b16 %v3525, %v3523
        %v3572 = vpack.c.b16 %v3526, %v3524
        %v3573 = vpack.c.b16 %v3529, %v3527
        %v3574 = vpack.c.b16 %v3530, %v3528
        %v3575 = vpack.c.b16 %v3533, %v3531
        %v3576 = vpack.c.b16 %v3534, %v3532
        %v3577 = vpack.c.b16 %v3537, %v3535
        %v3578 = vpack.c.b16 %v3538, %v3536
        %v3579 = vpack.c.b16 %v3541, %v3539
        %v3580 = vpack.c.b16 %v3542, %v3540
        %v3581 = vpack.c.b16 %v3545, %v3543
        %v3582 = vpack.c.b16 %v3546, %v3544
        %v3583 = vpack.c.b16 %v3549, %v3547
        %v3584 = vpack.c.b16 %v3550, %v3548
        %v3585 = vpack.c.b16 %v3553, %v3551
        %v3586 = vpack.c.b16 %v3554, %v3552
        %3619 = vmatprep.subr.bf16.mxu0 %v3556
        %3620 = vmatpush1.bf16.msra.mxu0 %v3555
        %3621 = vmatprep.subr.bf16.mxu0 %v3558
        %3622 = vmatpush1.bf16.msra.mxu0 %v3557
        %3623 = vmatprep.subr.bf16.mxu0 %v3560
        %3624 = vmatpush1.bf16.msra.mxu0 %v3559
        %3625 = vmatprep.subr.bf16.mxu0 %v3562
        %3626 = vmatpush1.bf16.msra.mxu0 %v3561
        %3627 = vmatprep.subr.bf16.mxu0 %v3564
        %3628 = vmatpush1.bf16.msra.mxu0 %v3563
        %3629 = vmatprep.subr.bf16.mxu0 %v3566
        %3630 = vmatpush1.bf16.msra.mxu0 %v3565
        %3631 = vmatprep.subr.bf16.mxu0 %v3568
        %3632 = vmatpush1.bf16.msra.mxu0 %v3567
        %3633 = vmatprep.subr.bf16.mxu0 %v3570
        %3634 = vmatpush1.bf16.msra.mxu0 %v3569
        %3635 = vmatprep.subr.bf16.mxu0 %v3572
        %3636 = vmatpush1.bf16.msra.mxu0 %v3571
        %3637 = vmatprep.subr.bf16.mxu0 %v3574
        %3638 = vmatpush1.bf16.msra.mxu0 %v3573
        %3639 = vmatprep.subr.bf16.mxu0 %v3576
        %3640 = vmatpush1.bf16.msra.mxu0 %v3575
        %3641 = vmatprep.subr.bf16.mxu0 %v3578
        %3642 = vmatpush1.bf16.msra.mxu0 %v3577
        %3643 = vmatprep.subr.bf16.mxu0 %v3580
        %3644 = vmatpush1.bf16.msra.mxu0 %v3579
        %3645 = vmatprep.subr.bf16.mxu0 %v3582
        %3646 = vmatpush1.bf16.msra.mxu0 %v3581
        %3647 = vmatprep.subr.bf16.mxu0 %v3584
        %3648 = vmatpush1.bf16.msra.mxu0 %v3583
        %3649 = vmatprep.subr.bf16.mxu0 %v3586
        %3650 = vmatpush1.bf16.msra.mxu0 %v3585
        %3651 = vmatprep.mubr.bf16.mxu0 %v3456
        %3652 = vmatmul.mubr.bf16.gmra.mrb[0].mxu0 %v3453
        %v3653 = vpop.f32.mrb[0].mxu0
        %v3654 = vadd.f32 0.0, %v3653
        %v3655 = vpop.f32.mrb[0].mxu0
        %v3656 = vadd.f32 0.0, %v3655
        %v3657 = vpop.f32.mrb[0].mxu0
        %v3658 = vadd.f32 0.0, %v3657
        %v3659 = vpop.f32.mrb[0].mxu0
        %v3660 = vadd.f32 0.0, %v3659
        %3661 = vdwg.mxu0
        %v3662 = vadd.f32 %v3408, %v3654
        %v3663 = vadd.f32 %v3409, %v3656
        %v3664 = vadd.f32 %v3410, %v3658
        %v3665 = vadd.f32 %v3411, %v3660
        %v3666 = vld [vmem:[#allocation2 + $0x18] sm:$0xff]
        %s3667 = scalar_lea.vmem [#allocation14], 1536
        %v3668 = vld [vmem:[%s3667] sm:$0xff]
        %v3669 = vld [vmem:[%s3667 + $0x8] sm:$0xff]
        %v3670 = vld [vmem:[%s3667 + $0x10] sm:$0xff]
        %v3671 = vld [vmem:[%s3667 + $0x18] sm:$0xff]
        %v3672 = vld [vmem:[%s3667 + $0x20] sm:$0xff]
        %v3673 = vld [vmem:[%s3667 + $0x28] sm:$0xff]
        %v3674 = vld [vmem:[%s3667 + $0x30] sm:$0xff]
        %v3675 = vld [vmem:[%s3667 + $0x38] sm:$0xff]
        %v3676 = vld [vmem:[%s3667 + $0x40] sm:$0xff]
        %v3677 = vld [vmem:[%s3667 + $0x48] sm:$0xff]
        %v3678 = vld [vmem:[%s3667 + $0x50] sm:$0xff]
        %v3679 = vld [vmem:[%s3667 + $0x58] sm:$0xff]
        %v3680 = vld [vmem:[%s3667 + $0x60] sm:$0xff]
        %v3681 = vld [vmem:[%s3667 + $0x68] sm:$0xff]
        %v3682 = vld [vmem:[%s3667 + $0x70] sm:$0xff]
        %v3683 = vld [vmem:[%s3667 + $0x78] sm:$0xff]
        %v3684 = vld [vmem:[%s3667 + $0x80] sm:$0xff]
        %v3685 = vld [vmem:[%s3667 + $0x88] sm:$0xff]
        %v3686 = vld [vmem:[%s3667 + $0x90] sm:$0xff]
        %v3687 = vld [vmem:[%s3667 + $0x98] sm:$0xff]
        %v3688 = vld [vmem:[%s3667 + $0xa0] sm:$0xff]
        %v3689 = vld [vmem:[%s3667 + $0xa8] sm:$0xff]
        %v3690 = vld [vmem:[%s3667 + $0xb0] sm:$0xff]
        %v3691 = vld [vmem:[%s3667 + $0xb8] sm:$0xff]
        %v3692 = vld [vmem:[%s3667 + $0xc0] sm:$0xff]
        %v3693 = vld [vmem:[%s3667 + $0xc8] sm:$0xff]
        %v3694 = vld [vmem:[%s3667 + $0xd0] sm:$0xff]
        %v3695 = vld [vmem:[%s3667 + $0xd8] sm:$0xff]
        %v3696 = vld [vmem:[%s3667 + $0xe0] sm:$0xff]
        %v3697 = vld [vmem:[%s3667 + $0xe8] sm:$0xff]
        %v3698 = vld [vmem:[%s3667 + $0xf0] sm:$0xff]
        %v3699 = vld [vmem:[%s3667 + $0xf8] sm:$0xff]
        %v3701 = vunpack.c.l.b16 %v3666
        %v3702 = vunpack.c.h.b16 %v3666
        %v3703 = vpack.c.b16 %v3701, %v3171
        %v3704 = vpack.c.b16 %v3702, %v3172
        %v3739 = vunpack.c.l.b16 %v3668
        %v3740 = vunpack.c.h.b16 %v3668
        %v3741 = vunpack.c.l.b16 %v3669
        %v3742 = vunpack.c.h.b16 %v3669
        %v3743 = vunpack.c.l.b16 %v3670
        %v3744 = vunpack.c.h.b16 %v3670
        %v3745 = vunpack.c.l.b16 %v3671
        %v3746 = vunpack.c.h.b16 %v3671
        %v3747 = vunpack.c.l.b16 %v3672
        %v3748 = vunpack.c.h.b16 %v3672
        %v3749 = vunpack.c.l.b16 %v3673
        %v3750 = vunpack.c.h.b16 %v3673
        %v3751 = vunpack.c.l.b16 %v3674
        %v3752 = vunpack.c.h.b16 %v3674
        %v3753 = vunpack.c.l.b16 %v3675
        %v3754 = vunpack.c.h.b16 %v3675
        %v3755 = vunpack.c.l.b16 %v3676
        %v3756 = vunpack.c.h.b16 %v3676
        %v3757 = vunpack.c.l.b16 %v3677
        %v3758 = vunpack.c.h.b16 %v3677
        %v3759 = vunpack.c.l.b16 %v3678
        %v3760 = vunpack.c.h.b16 %v3678
        %v3761 = vunpack.c.l.b16 %v3679
        %v3762 = vunpack.c.h.b16 %v3679
        %v3763 = vunpack.c.l.b16 %v3680
        %v3764 = vunpack.c.h.b16 %v3680
        %v3765 = vunpack.c.l.b16 %v3681
        %v3766 = vunpack.c.h.b16 %v3681
        %v3767 = vunpack.c.l.b16 %v3682
        %v3768 = vunpack.c.h.b16 %v3682
        %v3769 = vunpack.c.l.b16 %v3683
        %v3770 = vunpack.c.h.b16 %v3683
        %v3771 = vunpack.c.l.b16 %v3684
        %v3772 = vunpack.c.h.b16 %v3684
        %v3773 = vunpack.c.l.b16 %v3685
        %v3774 = vunpack.c.h.b16 %v3685
        %v3775 = vunpack.c.l.b16 %v3686
        %v3776 = vunpack.c.h.b16 %v3686
        %v3777 = vunpack.c.l.b16 %v3687
        %v3778 = vunpack.c.h.b16 %v3687
        %v3779 = vunpack.c.l.b16 %v3688
        %v3780 = vunpack.c.h.b16 %v3688
        %v3781 = vunpack.c.l.b16 %v3689
        %v3782 = vunpack.c.h.b16 %v3689
        %v3783 = vunpack.c.l.b16 %v3690
        %v3784 = vunpack.c.h.b16 %v3690
        %v3785 = vunpack.c.l.b16 %v3691
        %v3786 = vunpack.c.h.b16 %v3691
        %v3787 = vunpack.c.l.b16 %v3692
        %v3788 = vunpack.c.h.b16 %v3692
        %v3789 = vunpack.c.l.b16 %v3693
        %v3790 = vunpack.c.h.b16 %v3693
        %v3791 = vunpack.c.l.b16 %v3694
        %v3792 = vunpack.c.h.b16 %v3694
        %v3793 = vunpack.c.l.b16 %v3695
        %v3794 = vunpack.c.h.b16 %v3695
        %v3795 = vunpack.c.l.b16 %v3696
        %v3796 = vunpack.c.h.b16 %v3696
        %v3797 = vunpack.c.l.b16 %v3697
        %v3798 = vunpack.c.h.b16 %v3697
        %v3799 = vunpack.c.l.b16 %v3698
        %v3800 = vunpack.c.h.b16 %v3698
        %v3801 = vunpack.c.l.b16 %v3699
        %v3802 = vunpack.c.h.b16 %v3699
        %v3803 = vpack.c.b16 %v3741, %v3739
        %v3804 = vpack.c.b16 %v3742, %v3740
        %v3805 = vpack.c.b16 %v3745, %v3743
        %v3806 = vpack.c.b16 %v3746, %v3744
        %v3807 = vpack.c.b16 %v3749, %v3747
        %v3808 = vpack.c.b16 %v3750, %v3748
        %v3809 = vpack.c.b16 %v3753, %v3751
        %v3810 = vpack.c.b16 %v3754, %v3752
        %v3811 = vpack.c.b16 %v3757, %v3755
        %v3812 = vpack.c.b16 %v3758, %v3756
        %v3813 = vpack.c.b16 %v3761, %v3759
        %v3814 = vpack.c.b16 %v3762, %v3760
        %v3815 = vpack.c.b16 %v3765, %v3763
        %v3816 = vpack.c.b16 %v3766, %v3764
        %v3817 = vpack.c.b16 %v3769, %v3767
        %v3818 = vpack.c.b16 %v3770, %v3768
        %v3819 = vpack.c.b16 %v3773, %v3771
        %v3820 = vpack.c.b16 %v3774, %v3772
        %v3821 = vpack.c.b16 %v3777, %v3775
        %v3822 = vpack.c.b16 %v3778, %v3776
        %v3823 = vpack.c.b16 %v3781, %v3779
        %v3824 = vpack.c.b16 %v3782, %v3780
        %v3825 = vpack.c.b16 %v3785, %v3783
        %v3826 = vpack.c.b16 %v3786, %v3784
        %v3827 = vpack.c.b16 %v3789, %v3787
        %v3828 = vpack.c.b16 %v3790, %v3788
        %v3829 = vpack.c.b16 %v3793, %v3791
        %v3830 = vpack.c.b16 %v3794, %v3792
        %v3831 = vpack.c.b16 %v3797, %v3795
        %v3832 = vpack.c.b16 %v3798, %v3796
        %v3833 = vpack.c.b16 %v3801, %v3799
        %v3834 = vpack.c.b16 %v3802, %v3800
        %3867 = vmatprep.subr.bf16.mxu0 %v3804
        %3868 = vmatpush1.bf16.msra.mxu0 %v3803
        %3869 = vmatprep.subr.bf16.mxu0 %v3806
        %3870 = vmatpush1.bf16.msra.mxu0 %v3805
        %3871 = vmatprep.subr.bf16.mxu0 %v3808
        %3872 = vmatpush1.bf16.msra.mxu0 %v3807
        %3873 = vmatprep.subr.bf16.mxu0 %v3810
        %3874 = vmatpush1.bf16.msra.mxu0 %v3809
        %3875 = vmatprep.subr.bf16.mxu0 %v3812
        %3876 = vmatpush1.bf16.msra.mxu0 %v3811
        %3877 = vmatprep.subr.bf16.mxu0 %v3814
        %3878 = vmatpush1.bf16.msra.mxu0 %v3813
        %3879 = vmatprep.subr.bf16.mxu0 %v3816
        %3880 = vmatpush1.bf16.msra.mxu0 %v3815
        %3881 = vmatprep.subr.bf16.mxu0 %v3818
        %3882 = vmatpush1.bf16.msra.mxu0 %v3817
        %3883 = vmatprep.subr.bf16.mxu0 %v3820
        %3884 = vmatpush1.bf16.msra.mxu0 %v3819
        %3885 = vmatprep.subr.bf16.mxu0 %v3822
        %3886 = vmatpush1.bf16.msra.mxu0 %v3821
        %3887 = vmatprep.subr.bf16.mxu0 %v3824
        %3888 = vmatpush1.bf16.msra.mxu0 %v3823
        %3889 = vmatprep.subr.bf16.mxu0 %v3826
        %3890 = vmatpush1.bf16.msra.mxu0 %v3825
        %3891 = vmatprep.subr.bf16.mxu0 %v3828
        %3892 = vmatpush1.bf16.msra.mxu0 %v3827
        %3893 = vmatprep.subr.bf16.mxu0 %v3830
        %3894 = vmatpush1.bf16.msra.mxu0 %v3829
        %3895 = vmatprep.subr.bf16.mxu0 %v3832
        %3896 = vmatpush1.bf16.msra.mxu0 %v3831
        %3897 = vmatprep.subr.bf16.mxu0 %v3834
        %3898 = vmatpush1.bf16.msra.mxu0 %v3833
        %3899 = vmatprep.mubr.bf16.mxu0 %v3704
        %3900 = vmatmul.mubr.bf16.gmra.mrb[0].mxu0 %v3703
        %v3901 = vpop.f32.mrb[0].mxu0
        %v3902 = vadd.f32 0.0, %v3901
        %v3903 = vpop.f32.mrb[0].mxu0
        %v3904 = vadd.f32 0.0, %v3903
        %v3905 = vpop.f32.mrb[0].mxu0
        %v3906 = vadd.f32 0.0, %v3905
        %v3907 = vpop.f32.mrb[0].mxu0
        %v3908 = vadd.f32 0.0, %v3907
        %3909 = vdwg.mxu0
        %v3910 = vadd.f32 %v3662, %v3902
        %v3911 = vadd.f32 %v3663, %v3904
        %v3912 = vadd.f32 %v3664, %v3906
        %v3913 = vadd.f32 %v3665, %v3908
        %v3914 = vld [vmem:[#allocation2 + $0x10] sm:$0xff]
        %v3915 = vld [vmem:[#allocation2 + $0x18] sm:$0xff]
        %v3916 = vld [vmem:[#allocation2 + $0x20] sm:$0x11]
        %s3917 = scalar_lea.vmem [#allocation14], 1792
        %v3918 = vld [vmem:[%s3917] sm:$0xff]
        %v3919 = vld [vmem:[%s3917 + $0x8] sm:$0xff]
        %v3920 = vld [vmem:[%s3917 + $0x10] sm:$0xff]
        %v3921 = vld [vmem:[%s3917 + $0x18] sm:$0xff]
        %v3922 = vld [vmem:[%s3917 + $0x20] sm:$0xff]
        %v3923 = vld [vmem:[%s3917 + $0x28] sm:$0xff]
        %v3924 = vld [vmem:[%s3917 + $0x30] sm:$0xff]
        %v3925 = vld [vmem:[%s3917 + $0x38] sm:$0xff]
        %v3926 = vld [vmem:[%s3917 + $0x40] sm:$0xff]
        %v3927 = vld [vmem:[%s3917 + $0x48] sm:$0xff]
        %v3928 = vld [vmem:[%s3917 + $0x50] sm:$0xff]
        %v3929 = vld [vmem:[%s3917 + $0x58] sm:$0xff]
        %v3930 = vld [vmem:[%s3917 + $0x60] sm:$0xff]
        %v3931 = vld [vmem:[%s3917 + $0x68] sm:$0xff]
        %v3932 = vld [vmem:[%s3917 + $0x70] sm:$0xff]
        %v3933 = vld [vmem:[%s3917 + $0x78] sm:$0xff]
        %v3934 = vld [vmem:[%s3917 + $0x80] sm:$0xff]
        %v3935 = vld [vmem:[%s3917 + $0x88] sm:$0xff]
        %v3936 = vld [vmem:[%s3917 + $0x90] sm:$0xff]
        %v3937 = vld [vmem:[%s3917 + $0x98] sm:$0xff]
        %v3938 = vld [vmem:[%s3917 + $0xa0] sm:$0xff]
        %v3939 = vld [vmem:[%s3917 + $0xa8] sm:$0xff]
        %v3940 = vld [vmem:[%s3917 + $0xb0] sm:$0xff]
        %v3941 = vld [vmem:[%s3917 + $0xb8] sm:$0xff]
        %v3942 = vld [vmem:[%s3917 + $0xc0] sm:$0xff]
        %v3943 = vld [vmem:[%s3917 + $0xc8] sm:$0xff]
        %v3944 = vld [vmem:[%s3917 + $0xd0] sm:$0xff]
        %v3945 = vld [vmem:[%s3917 + $0xd8] sm:$0xff]
        %v3946 = vld [vmem:[%s3917 + $0xe0] sm:$0xff]
        %v3947 = vld [vmem:[%s3917 + $0xe8] sm:$0xff]
        %v3948 = vld [vmem:[%s3917 + $0xf0] sm:$0xff]
        %v3949 = vld [vmem:[%s3917 + $0xf8] sm:$0xff]
        %v3953 = vunpack.c.l.b16 %v3914
        %v3954 = vunpack.c.h.b16 %v3914
        %v3955 = vunpack.c.l.b16 %v3915
        %v3956 = vunpack.c.h.b16 %v3915
        %v3957 = vunpack.c.l.b16 %v3916
        %v3958 = vunpack.c.h.b16 %v3916
        %v3959 = vpack.c.b16 %v3955, %v3953
        %v3960 = vpack.c.b16 %v3956, %v3954
        %v3961 = vpack.c.b16 %v3957, %v3957
        %v3962 = vpack.c.b16 %v3958, %v3958
        %v3964 = vshrl.u32 %v3959, 16
        %v3966 = vshll.u32 %v3959, 16
        %v3968 = vrot.slane %v3966, 1
        %v3969 = vor.u32 %v3964, %v3968
        %v3971 = vshll.u32 %v3961, 16
        %v3973 = vrot.slane %v3971, 1
        %v3974 = vsel %vm668, %v3969, %v3973
        %v3976 = vshrl.u32 %v3960, 16
        %v3978 = vshll.u32 %v3960, 16
        %v3980 = vrot.slane %v3978, 1
        %v3981 = vor.u32 %v3976, %v3980
        %v3983 = vshll.u32 %v3962, 16
        %v3985 = vrot.slane %v3983, 1
        %v3986 = vsel %vm668, %v3981, %v3985
        %v4021 = vunpack.c.l.b16 %v3918
        %v4022 = vunpack.c.h.b16 %v3918
        %v4023 = vunpack.c.l.b16 %v3919
        %v4024 = vunpack.c.h.b16 %v3919
        %v4025 = vunpack.c.l.b16 %v3920
        %v4026 = vunpack.c.h.b16 %v3920
        %v4027 = vunpack.c.l.b16 %v3921
        %v4028 = vunpack.c.h.b16 %v3921
        %v4029 = vunpack.c.l.b16 %v3922
        %v4030 = vunpack.c.h.b16 %v3922
        %v4031 = vunpack.c.l.b16 %v3923
        %v4032 = vunpack.c.h.b16 %v3923
        %v4033 = vunpack.c.l.b16 %v3924
        %v4034 = vunpack.c.h.b16 %v3924
        %v4035 = vunpack.c.l.b16 %v3925
        %v4036 = vunpack.c.h.b16 %v3925
        %v4037 = vunpack.c.l.b16 %v3926
        %v4038 = vunpack.c.h.b16 %v3926
        %v4039 = vunpack.c.l.b16 %v3927
        %v4040 = vunpack.c.h.b16 %v3927
        %v4041 = vunpack.c.l.b16 %v3928
        %v4042 = vunpack.c.h.b16 %v3928
        %v4043 = vunpack.c.l.b16 %v3929
        %v4044 = vunpack.c.h.b16 %v3929
        %v4045 = vunpack.c.l.b16 %v3930
        %v4046 = vunpack.c.h.b16 %v3930
        %v4047 = vunpack.c.l.b16 %v3931
        %v4048 = vunpack.c.h.b16 %v3931
        %v4049 = vunpack.c.l.b16 %v3932
        %v4050 = vunpack.c.h.b16 %v3932
        %v4051 = vunpack.c.l.b16 %v3933
        %v4052 = vunpack.c.h.b16 %v3933
        %v4053 = vunpack.c.l.b16 %v3934
        %v4054 = vunpack.c.h.b16 %v3934
        %v4055 = vunpack.c.l.b16 %v3935
        %v4056 = vunpack.c.h.b16 %v3935
        %v4057 = vunpack.c.l.b16 %v3936
        %v4058 = vunpack.c.h.b16 %v3936
        %v4059 = vunpack.c.l.b16 %v3937
        %v4060 = vunpack.c.h.b16 %v3937
        %v4061 = vunpack.c.l.b16 %v3938
        %v4062 = vunpack.c.h.b16 %v3938
        %v4063 = vunpack.c.l.b16 %v3939
        %v4064 = vunpack.c.h.b16 %v3939
        %v4065 = vunpack.c.l.b16 %v3940
        %v4066 = vunpack.c.h.b16 %v3940
        %v4067 = vunpack.c.l.b16 %v3941
        %v4068 = vunpack.c.h.b16 %v3941
        %v4069 = vunpack.c.l.b16 %v3942
        %v4070 = vunpack.c.h.b16 %v3942
        %v4071 = vunpack.c.l.b16 %v3943
        %v4072 = vunpack.c.h.b16 %v3943
        %v4073 = vunpack.c.l.b16 %v3944
        %v4074 = vunpack.c.h.b16 %v3944
        %v4075 = vunpack.c.l.b16 %v3945
        %v4076 = vunpack.c.h.b16 %v3945
        %v4077 = vunpack.c.l.b16 %v3946
        %v4078 = vunpack.c.h.b16 %v3946
        %v4079 = vunpack.c.l.b16 %v3947
        %v4080 = vunpack.c.h.b16 %v3947
        %v4081 = vunpack.c.l.b16 %v3948
        %v4082 = vunpack.c.h.b16 %v3948
        %v4083 = vunpack.c.l.b16 %v3949
        %v4084 = vunpack.c.h.b16 %v3949
        %v4085 = vpack.c.b16 %v4023, %v4021
        %v4086 = vpack.c.b16 %v4024, %v4022
        %v4087 = vpack.c.b16 %v4027, %v4025
        %v4088 = vpack.c.b16 %v4028, %v4026
        %v4089 = vpack.c.b16 %v4031, %v4029
        %v4090 = vpack.c.b16 %v4032, %v4030
        %v4091 = vpack.c.b16 %v4035, %v4033
        %v4092 = vpack.c.b16 %v4036, %v4034
        %v4093 = vpack.c.b16 %v4039, %v4037
        %v4094 = vpack.c.b16 %v4040, %v4038
        %v4095 = vpack.c.b16 %v4043, %v4041
        %v4096 = vpack.c.b16 %v4044, %v4042
        %v4097 = vpack.c.b16 %v4047, %v4045
        %v4098 = vpack.c.b16 %v4048, %v4046
        %v4099 = vpack.c.b16 %v4051, %v4049
        %v4100 = vpack.c.b16 %v4052, %v4050
        %v4101 = vpack.c.b16 %v4055, %v4053
        %v4102 = vpack.c.b16 %v4056, %v4054
        %v4103 = vpack.c.b16 %v4059, %v4057
        %v4104 = vpack.c.b16 %v4060, %v4058
        %v4105 = vpack.c.b16 %v4063, %v4061
        %v4106 = vpack.c.b16 %v4064, %v4062
        %v4107 = vpack.c.b16 %v4067, %v4065
        %v4108 = vpack.c.b16 %v4068, %v4066
        %v4109 = vpack.c.b16 %v4071, %v4069
        %v4110 = vpack.c.b16 %v4072, %v4070
        %v4111 = vpack.c.b16 %v4075, %v4073
        %v4112 = vpack.c.b16 %v4076, %v4074
        %v4113 = vpack.c.b16 %v4079, %v4077
        %v4114 = vpack.c.b16 %v4080, %v4078
        %v4115 = vpack.c.b16 %v4083, %v4081
        %v4116 = vpack.c.b16 %v4084, %v4082
        %4149 = vmatprep.subr.bf16.mxu0 %v4086
        %4150 = vmatpush1.bf16.msra.mxu0 %v4085
        %4151 = vmatprep.subr.bf16.mxu0 %v4088
        %4152 = vmatpush1.bf16.msra.mxu0 %v4087
        %4153 = vmatprep.subr.bf16.mxu0 %v4090
        %4154 = vmatpush1.bf16.msra.mxu0 %v4089
        %4155 = vmatprep.subr.bf16.mxu0 %v4092
        %4156 = vmatpush1.bf16.msra.mxu0 %v4091
        %4157 = vmatprep.subr.bf16.mxu0 %v4094
        %4158 = vmatpush1.bf16.msra.mxu0 %v4093
        %4159 = vmatprep.subr.bf16.mxu0 %v4096
        %4160 = vmatpush1.bf16.msra.mxu0 %v4095
        %4161 = vmatprep.subr.bf16.mxu0 %v4098
        %4162 = vmatpush1.bf16.msra.mxu0 %v4097
        %4163 = vmatprep.subr.bf16.mxu0 %v4100
        %4164 = vmatpush1.bf16.msra.mxu0 %v4099
        %4165 = vmatprep.subr.bf16.mxu0 %v4102
        %4166 = vmatpush1.bf16.msra.mxu0 %v4101
        %4167 = vmatprep.subr.bf16.mxu0 %v4104
        %4168 = vmatpush1.bf16.msra.mxu0 %v4103
        %4169 = vmatprep.subr.bf16.mxu0 %v4106
        %4170 = vmatpush1.bf16.msra.mxu0 %v4105
        %4171 = vmatprep.subr.bf16.mxu0 %v4108
        %4172 = vmatpush1.bf16.msra.mxu0 %v4107
        %4173 = vmatprep.subr.bf16.mxu0 %v4110
        %4174 = vmatpush1.bf16.msra.mxu0 %v4109
        %4175 = vmatprep.subr.bf16.mxu0 %v4112
        %4176 = vmatpush1.bf16.msra.mxu0 %v4111
        %4177 = vmatprep.subr.bf16.mxu0 %v4114
        %4178 = vmatpush1.bf16.msra.mxu0 %v4113
        %4179 = vmatprep.subr.bf16.mxu0 %v4116
        %4180 = vmatpush1.bf16.msra.mxu0 %v4115
        %4181 = vmatprep.mubr.bf16.mxu0 %v3986
        %4182 = vmatmul.mubr.bf16.gmra.mrb[0].mxu0 %v3974
        %v4183 = vpop.f32.mrb[0].mxu0
        %v4184 = vadd.f32 0.0, %v4183
        %v4185 = vpop.f32.mrb[0].mxu0
        %v4186 = vadd.f32 0.0, %v4185
        %v4187 = vpop.f32.mrb[0].mxu0
        %v4188 = vadd.f32 0.0, %v4187
        %v4189 = vpop.f32.mrb[0].mxu0
        %v4190 = vadd.f32 0.0, %v4189
        %4191 = vdwg.mxu0
        %v4192 = vadd.f32 %v3910, %v4184
        %v4193 = vadd.f32 %v3911, %v4186
        %v4194 = vadd.f32 %v3912, %v4188
        %v4195 = vadd.f32 %v3913, %v4190
        %v4196 = vld [vmem:[#allocation2 + $0x10] sm:$0xee]
        %s4197 = scalar_lea.vmem [#allocation14], 2048
        %v4198 = vld [vmem:[%s4197] sm:$0xff]
        %v4199 = vld [vmem:[%s4197 + $0x8] sm:$0xff]
        %v4200 = vld [vmem:[%s4197 + $0x10] sm:$0xff]
        %v4201 = vld [vmem:[%s4197 + $0x18] sm:$0xff]
        %v4202 = vld [vmem:[%s4197 + $0x20] sm:$0xff]
        %v4203 = vld [vmem:[%s4197 + $0x28] sm:$0xff]
        %v4204 = vld [vmem:[%s4197 + $0x30] sm:$0xff]
        %v4205 = vld [vmem:[%s4197 + $0x38] sm:$0xff]
        %v4206 = vld [vmem:[%s4197 + $0x40] sm:$0xff]
        %v4207 = vld [vmem:[%s4197 + $0x48] sm:$0xff]
        %v4208 = vld [vmem:[%s4197 + $0x50] sm:$0xff]
        %v4209 = vld [vmem:[%s4197 + $0x58] sm:$0xff]
        %v4210 = vld [vmem:[%s4197 + $0x60] sm:$0xff]
        %v4211 = vld [vmem:[%s4197 + $0x68] sm:$0xff]
        %v4212 = vld [vmem:[%s4197 + $0x70] sm:$0xff]
        %v4213 = vld [vmem:[%s4197 + $0x78] sm:$0xff]
        %v4214 = vld [vmem:[%s4197 + $0x80] sm:$0xff]
        %v4215 = vld [vmem:[%s4197 + $0x88] sm:$0xff]
        %v4216 = vld [vmem:[%s4197 + $0x90] sm:$0xff]
        %v4217 = vld [vmem:[%s4197 + $0x98] sm:$0xff]
        %v4218 = vld [vmem:[%s4197 + $0xa0] sm:$0xff]
        %v4219 = vld [vmem:[%s4197 + $0xa8] sm:$0xff]
        %v4220 = vld [vmem:[%s4197 + $0xb0] sm:$0xff]
        %v4221 = vld [vmem:[%s4197 + $0xb8] sm:$0xff]
        %v4222 = vld [vmem:[%s4197 + $0xc0] sm:$0xff]
        %v4223 = vld [vmem:[%s4197 + $0xc8] sm:$0xff]
        %v4224 = vld [vmem:[%s4197 + $0xd0] sm:$0xff]
        %v4225 = vld [vmem:[%s4197 + $0xd8] sm:$0xff]
        %v4226 = vld [vmem:[%s4197 + $0xe0] sm:$0xff]
        %v4227 = vld [vmem:[%s4197 + $0xe8] sm:$0xff]
        %v4228 = vld [vmem:[%s4197 + $0xf0] sm:$0xff]
        %v4229 = vld [vmem:[%s4197 + $0xf8] sm:$0xff]
        %v4231 = vunpack.c.l.b16 %v4196
        %v4232 = vunpack.c.h.b16 %v4196
        %v4233 = vpack.c.b16 %v3955, %v4231
        %v4234 = vpack.c.b16 %v3956, %v4232
        %v4235 = vrot.slane %v4233, 1
        %v4236 = vrot.slane %v3961, 1
        %v4237 = vsel %vm950, %v4235, %v4236
        %v4238 = vrot.slane %v4234, 1
        %v4239 = vrot.slane %v3962, 1
        %v4240 = vsel %vm950, %v4238, %v4239
        %v4275 = vunpack.c.l.b16 %v4198
        %v4276 = vunpack.c.h.b16 %v4198
        %v4277 = vunpack.c.l.b16 %v4199
        %v4278 = vunpack.c.h.b16 %v4199
        %v4279 = vunpack.c.l.b16 %v4200
        %v4280 = vunpack.c.h.b16 %v4200
        %v4281 = vunpack.c.l.b16 %v4201
        %v4282 = vunpack.c.h.b16 %v4201
        %v4283 = vunpack.c.l.b16 %v4202
        %v4284 = vunpack.c.h.b16 %v4202
        %v4285 = vunpack.c.l.b16 %v4203
        %v4286 = vunpack.c.h.b16 %v4203
        %v4287 = vunpack.c.l.b16 %v4204
        %v4288 = vunpack.c.h.b16 %v4204
        %v4289 = vunpack.c.l.b16 %v4205
        %v4290 = vunpack.c.h.b16 %v4205
        %v4291 = vunpack.c.l.b16 %v4206
        %v4292 = vunpack.c.h.b16 %v4206
        %v4293 = vunpack.c.l.b16 %v4207
        %v4294 = vunpack.c.h.b16 %v4207
        %v4295 = vunpack.c.l.b16 %v4208
        %v4296 = vunpack.c.h.b16 %v4208
        %v4297 = vunpack.c.l.b16 %v4209
        %v4298 = vunpack.c.h.b16 %v4209
        %v4299 = vunpack.c.l.b16 %v4210
        %v4300 = vunpack.c.h.b16 %v4210
        %v4301 = vunpack.c.l.b16 %v4211
        %v4302 = vunpack.c.h.b16 %v4211
        %v4303 = vunpack.c.l.b16 %v4212
        %v4304 = vunpack.c.h.b16 %v4212
        %v4305 = vunpack.c.l.b16 %v4213
        %v4306 = vunpack.c.h.b16 %v4213
        %v4307 = vunpack.c.l.b16 %v4214
        %v4308 = vunpack.c.h.b16 %v4214
        %v4309 = vunpack.c.l.b16 %v4215
        %v4310 = vunpack.c.h.b16 %v4215
        %v4311 = vunpack.c.l.b16 %v4216
        %v4312 = vunpack.c.h.b16 %v4216
        %v4313 = vunpack.c.l.b16 %v4217
        %v4314 = vunpack.c.h.b16 %v4217
        %v4315 = vunpack.c.l.b16 %v4218
        %v4316 = vunpack.c.h.b16 %v4218
        %v4317 = vunpack.c.l.b16 %v4219
        %v4318 = vunpack.c.h.b16 %v4219
        %v4319 = vunpack.c.l.b16 %v4220
        %v4320 = vunpack.c.h.b16 %v4220
        %v4321 = vunpack.c.l.b16 %v4221
        %v4322 = vunpack.c.h.b16 %v4221
        %v4323 = vunpack.c.l.b16 %v4222
        %v4324 = vunpack.c.h.b16 %v4222
        %v4325 = vunpack.c.l.b16 %v4223
        %v4326 = vunpack.c.h.b16 %v4223
        %v4327 = vunpack.c.l.b16 %v4224
        %v4328 = vunpack.c.h.b16 %v4224
        %v4329 = vunpack.c.l.b16 %v4225
        %v4330 = vunpack.c.h.b16 %v4225
        %v4331 = vunpack.c.l.b16 %v4226
        %v4332 = vunpack.c.h.b16 %v4226
        %v4333 = vunpack.c.l.b16 %v4227
        %v4334 = vunpack.c.h.b16 %v4227
        %v4335 = vunpack.c.l.b16 %v4228
        %v4336 = vunpack.c.h.b16 %v4228
        %v4337 = vunpack.c.l.b16 %v4229
        %v4338 = vunpack.c.h.b16 %v4229
        %v4339 = vpack.c.b16 %v4277, %v4275
        %v4340 = vpack.c.b16 %v4278, %v4276
        %v4341 = vpack.c.b16 %v4281, %v4279
        %v4342 = vpack.c.b16 %v4282, %v4280
        %v4343 = vpack.c.b16 %v4285, %v4283
        %v4344 = vpack.c.b16 %v4286, %v4284
        %v4345 = vpack.c.b16 %v4289, %v4287
        %v4346 = vpack.c.b16 %v4290, %v4288
        %v4347 = vpack.c.b16 %v4293, %v4291
        %v4348 = vpack.c.b16 %v4294, %v4292
        %v4349 = vpack.c.b16 %v4297, %v4295
        %v4350 = vpack.c.b16 %v4298, %v4296
        %v4351 = vpack.c.b16 %v4301, %v4299
        %v4352 = vpack.c.b16 %v4302, %v4300
        %v4353 = vpack.c.b16 %v4305, %v4303
        %v4354 = vpack.c.b16 %v4306, %v4304
        %v4355 = vpack.c.b16 %v4309, %v4307
        %v4356 = vpack.c.b16 %v4310, %v4308
        %v4357 = vpack.c.b16 %v4313, %v4311
        %v4358 = vpack.c.b16 %v4314, %v4312
        %v4359 = vpack.c.b16 %v4317, %v4315
        %v4360 = vpack.c.b16 %v4318, %v4316
        %v4361 = vpack.c.b16 %v4321, %v4319
        %v4362 = vpack.c.b16 %v4322, %v4320
        %v4363 = vpack.c.b16 %v4325, %v4323
        %v4364 = vpack.c.b16 %v4326, %v4324
        %v4365 = vpack.c.b16 %v4329, %v4327
        %v4366 = vpack.c.b16 %v4330, %v4328
        %v4367 = vpack.c.b16 %v4333, %v4331
        %v4368 = vpack.c.b16 %v4334, %v4332
        %v4369 = vpack.c.b16 %v4337, %v4335
        %v4370 = vpack.c.b16 %v4338, %v4336
        %4403 = vmatprep.subr.bf16.mxu0 %v4340
        %4404 = vmatpush1.bf16.msra.mxu0 %v4339
        %4405 = vmatprep.subr.bf16.mxu0 %v4342
        %4406 = vmatpush1.bf16.msra.mxu0 %v4341
        %4407 = vmatprep.subr.bf16.mxu0 %v4344
        %4408 = vmatpush1.bf16.msra.mxu0 %v4343
        %4409 = vmatprep.subr.bf16.mxu0 %v4346
        %4410 = vmatpush1.bf16.msra.mxu0 %v4345
        %4411 = vmatprep.subr.bf16.mxu0 %v4348
        %4412 = vmatpush1.bf16.msra.mxu0 %v4347
        %4413 = vmatprep.subr.bf16.mxu0 %v4350
        %4414 = vmatpush1.bf16.msra.mxu0 %v4349
        %4415 = vmatprep.subr.bf16.mxu0 %v4352
        %4416 = vmatpush1.bf16.msra.mxu0 %v4351
        %4417 = vmatprep.subr.bf16.mxu0 %v4354
        %4418 = vmatpush1.bf16.msra.mxu0 %v4353
        %4419 = vmatprep.subr.bf16.mxu0 %v4356
        %4420 = vmatpush1.bf16.msra.mxu0 %v4355
        %4421 = vmatprep.subr.bf16.mxu0 %v4358
        %4422 = vmatpush1.bf16.msra.mxu0 %v4357
        %4423 = vmatprep.subr.bf16.mxu0 %v4360
        %4424 = vmatpush1.bf16.msra.mxu0 %v4359
        %4425 = vmatprep.subr.bf16.mxu0 %v4362
        %4426 = vmatpush1.bf16.msra.mxu0 %v4361
        %4427 = vmatprep.subr.bf16.mxu0 %v4364
        %4428 = vmatpush1.bf16.msra.mxu0 %v4363
        %4429 = vmatprep.subr.bf16.mxu0 %v4366
        %4430 = vmatpush1.bf16.msra.mxu0 %v4365
        %4431 = vmatprep.subr.bf16.mxu0 %v4368
        %4432 = vmatpush1.bf16.msra.mxu0 %v4367
        %4433 = vmatprep.subr.bf16.mxu0 %v4370
        %4434 = vmatpush1.bf16.msra.mxu0 %v4369
        %4435 = vmatprep.mubr.bf16.mxu0 %v4240
        %4436 = vmatmul.mubr.bf16.gmra.mrb[0].mxu0 %v4237
        %v4437 = vpop.f32.mrb[0].mxu0
        %v4438 = vadd.f32 0.0, %v4437
        %v4439 = vpop.f32.mrb[0].mxu0
        %v4440 = vadd.f32 0.0, %v4439
        %v4441 = vpop.f32.mrb[0].mxu0
        %v4442 = vadd.f32 0.0, %v4441
        %v4443 = vpop.f32.mrb[0].mxu0
        %v4444 = vadd.f32 0.0, %v4443
        %4445 = vdwg.mxu0
        %v4446 = vadd.f32 %v4192, %v4438
        %v4447 = vadd.f32 %v4193, %v4440
        %v4448 = vadd.f32 %v4194, %v4442
        %v4449 = vadd.f32 %v4195, %v4444
        %v4450 = vld [vmem:[#allocation16] sm:$0x3]
        %v4452 = vlaneseq
        %v4453 = vshrl.u32 %v4452, 7
        %v4454 = vsub.s32 0, %v4453
        %v4455 = vrot.slane %v4450, %v4454
        %v4456 = vlaneseq
        %v4457 = vshrl.u32 %v4456, 7
        %v4458 = vsub.s32 1, %v4457
        %v4459 = vrot.slane %v4450, %v4458
        %v4462 = vadd.f32 %v4446, %v4455
        %v4463 = vadd.f32 %v4447, %v4459
        %v4464 = vadd.f32 %v4448, %v4455
        %v4465 = vadd.f32 %v4449, %v4459
        %v4466 = vld [vmem:[%s526 + $0x4] sm:$0xf]
        %v4467 = vld [vmem:[%s526 + $0x8] sm:$0xf]
        %v4468 = vld [vmem:[%s526 + $0xc] sm:$0x1]
        %v4469 = vld [vmem:[#allocation13] sm:$0xff]
        %v4470 = vld [vmem:[#allocation13 + $0x8] sm:$0xff]
        %v4471 = vld [vmem:[#allocation13 + $0x10] sm:$0xff]
        %v4472 = vld [vmem:[#allocation13 + $0x18] sm:$0xff]
        %v4473 = vld [vmem:[#allocation13 + $0x20] sm:$0xff]
        %v4474 = vld [vmem:[#allocation13 + $0x28] sm:$0xff]
        %v4475 = vld [vmem:[#allocation13 + $0x30] sm:$0xff]
        %v4476 = vld [vmem:[#allocation13 + $0x38] sm:$0xff]
        %v4477 = vld [vmem:[#allocation13 + $0x40] sm:$0xff]
        %v4478 = vld [vmem:[#allocation13 + $0x48] sm:$0xff]
        %v4479 = vld [vmem:[#allocation13 + $0x50] sm:$0xff]
        %v4480 = vld [vmem:[#allocation13 + $0x58] sm:$0xff]
        %v4481 = vld [vmem:[#allocation13 + $0x60] sm:$0xff]
        %v4482 = vld [vmem:[#allocation13 + $0x68] sm:$0xff]
        %v4483 = vld [vmem:[#allocation13 + $0x70] sm:$0xff]
        %v4484 = vld [vmem:[#allocation13 + $0x78] sm:$0xff]
        %v4488 = vunpack.c.l.b16 %v4466
        %v4489 = vunpack.c.l.b16 %v4467
        %v4490 = vunpack.c.l.b16 %v4468
        %v4491 = vpack.c.b16 %v4489, %v4488
        %v4492 = vpack.c.b16 %v4490, %v4490
        %v4494 = vshrl.u32 %v4491, 16
        %v4496 = vshll.u32 %v4491, 16
        %v4498 = vrot.slane %v4496, 1
        %v4499 = vor.u32 %v4494, %v4498
        %v4501 = vshll.u32 %v4492, 16
        %v4503 = vrot.slane %v4501, 1
        %v4504 = vsel %vm668, %v4499, %v4503
        %v4522 = vunpack.c.l.b16 %v4469
        %v4523 = vunpack.c.h.b16 %v4469
        %v4524 = vunpack.c.l.b16 %v4470
        %v4525 = vunpack.c.h.b16 %v4470
        %v4526 = vunpack.c.l.b16 %v4471
        %v4527 = vunpack.c.h.b16 %v4471
        %v4528 = vunpack.c.l.b16 %v4472
        %v4529 = vunpack.c.h.b16 %v4472
        %v4530 = vunpack.c.l.b16 %v4473
        %v4531 = vunpack.c.h.b16 %v4473
        %v4532 = vunpack.c.l.b16 %v4474
        %v4533 = vunpack.c.h.b16 %v4474
        %v4534 = vunpack.c.l.b16 %v4475
        %v4535 = vunpack.c.h.b16 %v4475
        %v4536 = vunpack.c.l.b16 %v4476
        %v4537 = vunpack.c.h.b16 %v4476
        %v4538 = vunpack.c.l.b16 %v4477
        %v4539 = vunpack.c.h.b16 %v4477
        %v4540 = vunpack.c.l.b16 %v4478
        %v4541 = vunpack.c.h.b16 %v4478
        %v4542 = vunpack.c.l.b16 %v4479
        %v4543 = vunpack.c.h.b16 %v4479
        %v4544 = vunpack.c.l.b16 %v4480
        %v4545 = vunpack.c.h.b16 %v4480
        %v4546 = vunpack.c.l.b16 %v4481
        %v4547 = vunpack.c.h.b16 %v4481
        %v4548 = vunpack.c.l.b16 %v4482
        %v4549 = vunpack.c.h.b16 %v4482
        %v4550 = vunpack.c.l.b16 %v4483
        %v4551 = vunpack.c.h.b16 %v4483
        %v4552 = vunpack.c.l.b16 %v4484
        %v4553 = vunpack.c.h.b16 %v4484
        %v4554 = vpack.c.b16 %v4524, %v4522
        %v4555 = vpack.c.b16 %v4525, %v4523
        %v4556 = vpack.c.b16 %v4528, %v4526
        %v4557 = vpack.c.b16 %v4529, %v4527
        %v4558 = vpack.c.b16 %v4532, %v4530
        %v4559 = vpack.c.b16 %v4533, %v4531
        %v4560 = vpack.c.b16 %v4536, %v4534
        %v4561 = vpack.c.b16 %v4537, %v4535
        %v4562 = vpack.c.b16 %v4540, %v4538
        %v4563 = vpack.c.b16 %v4541, %v4539
        %v4564 = vpack.c.b16 %v4544, %v4542
        %v4565 = vpack.c.b16 %v4545, %v4543
        %v4566 = vpack.c.b16 %v4548, %v4546
        %v4567 = vpack.c.b16 %v4549, %v4547
        %v4568 = vpack.c.b16 %v4552, %v4550
        %v4569 = vpack.c.b16 %v4553, %v4551
        %4586 = vmatprep.subr.bf16.mxu0 %v4555
        %4587 = vmatpush1.bf16.msra.mxu0 %v4554
        %4588 = vmatprep.subr.bf16.mxu0 %v4557
        %4589 = vmatpush1.bf16.msra.mxu0 %v4556
        %4590 = vmatprep.subr.bf16.mxu0 %v4559
        %4591 = vmatpush1.bf16.msra.mxu0 %v4558
        %4592 = vmatprep.subr.bf16.mxu0 %v4561
        %4593 = vmatpush1.bf16.msra.mxu0 %v4560
        %4594 = vmatprep.subr.bf16.mxu0 %v4563
        %4595 = vmatpush1.bf16.msra.mxu0 %v4562
        %4596 = vmatprep.subr.bf16.mxu0 %v4565
        %4597 = vmatpush1.bf16.msra.mxu0 %v4564
        %4598 = vmatprep.subr.bf16.mxu0 %v4567
        %4599 = vmatpush1.bf16.msra.mxu0 %v4566
        %4600 = vmatprep.subr.bf16.mxu0 %v4569
        %4601 = vmatpush1.bf16.msra.mxu0 %v4568
        %4602 = vmatprep.subr.bf16.mxu0 0
        %4603 = vmatpush1.bf16.msra.mxu0 0
        %4604 = vmatprep.subr.bf16.mxu0 0
        %4605 = vmatpush1.bf16.msra.mxu0 0
        %4606 = vmatprep.subr.bf16.mxu0 0
        %4607 = vmatpush1.bf16.msra.mxu0 0
        %4608 = vmatprep.subr.bf16.mxu0 0
        %4609 = vmatpush1.bf16.msra.mxu0 0
        %4610 = vmatprep.subr.bf16.mxu0 0
        %4611 = vmatpush1.bf16.msra.mxu0 0
        %4612 = vmatprep.subr.bf16.mxu0 0
        %4613 = vmatpush1.bf16.msra.mxu0 0
        %4614 = vmatprep.subr.bf16.mxu0 0
        %4615 = vmatpush1.bf16.msra.mxu0 0
        %4616 = vmatprep.subr.bf16.mxu0 0
        %4617 = vmatpush1.bf16.msra.mxu0 0
        %4618 = vmatprep.mubr.bf16.mxu0 0
        %4619 = vmatmul.mubr.bf16.gmra.mrb[0].mxu0 %v4504
        %v4620 = vpop.f32.mrb[0].mxu0
        %v4621 = vadd.f32 0.0, %v4620
        %v4622 = vpop.f32.mrb[0].mxu0
        %v4623 = vadd.f32 0.0, %v4622
        %v4624 = vpop.f32.mrb[0].mxu0
        %v4625 = vadd.f32 0.0, %v4624
        %v4626 = vpop.f32.mrb[0].mxu0
        %v4627 = vadd.f32 0.0, %v4626
        %4628 = vdwg.mxu0
        %v4629 = vadd.f32 %v4462, %v4621
        %v4630 = vadd.f32 %v4463, %v4623
        %v4631 = vadd.f32 %v4464, %v4625
        %v4632 = vadd.f32 %v4465, %v4627
        %v4633 = vmul.f32 %v4629, 0.2
        %v4634 = vmul.f32 %v4630, 0.2
        %v4635 = vmul.f32 %v4631, 0.2
        %v4636 = vmul.f32 %v4632, 0.2
        %v4637 = vmax.f32 %v4629, %v4633
        %v4638 = vmax.f32 %v4630, %v4634
        %v4639 = vmax.f32 %v4631, %v4635
        %v4640 = vmax.f32 %v4632, %v4636
        %v4641 = vld [vmem:[#allocation8] sm:$0xff]
        %v4642 = vld [vmem:[#allocation8 + $0x8] sm:$0xff]
        %4644 = vset.pattern.permute.xlu0 0
        %4645 = vperm.xlu0 %4644, %v4641
        %v4646 = vpop.permute.xlu0 %4645
        %4649 = vset.pattern.permute.xlu0 0
        %4650 = vperm.xlu0 %4649, %v4642
        %v4651 = vpop.permute.xlu0 %4650
        %v4653 = vmul.f32 %v4637, %v4646
        %v4654 = vmul.f32 %v4638, %v4646
        %v4655 = vmul.f32 %v4639, %v4651
        %v4656 = vmul.f32 %v4640, %v4651
        %v4657 = vpack.c.bf16 %v4655, %v4653
        %v4658 = vpack.c.bf16 %v4656, %v4654
        %v4661 = vunpack.c.l.b16 %v4657
        %v4662 = vunpack.c.l.b16 %v4658
        %v4663 = vunpack.c.h.b16 %v4657
        %v4664 = vunpack.c.h.b16 %v4658
        %v4665 = vpack.c.b16 %v4662, %v4661
        %v4666 = vpack.c.b16 %v4664, %v4663
        %v4668 = vshrl.u32 %v4665, 16
        %v4670 = vrot.slane %v4668, 7
        %v4671 = vshll.u32 %v4665, 16
        %v4673 = vor.u32 %v4670, %v4671
        %v4674 = vrot.slane %v4670, 4
        %v4676 = vshrl.u32 %v4666, 16
        %v4678 = vrot.slane %v4676, 7
        %v4679 = vshll.u32 %v4666, 16
        %v4681 = vor.u32 %v4678, %v4679
        %v4682 = vsel %vm2072, %v4674, %v4681
        %v4683 = vrot.slane %v4678, 4
        %v4687 = vld [vmem:[#allocation3 + $0x8] sm:$0xff]
        %v4688 = vsel %vm2099, %v4673, %v4687
        %4689 = vst [vmem:[#allocation3 + $0x8] sm:$0xff] %v4688
        %4690 = vst [vmem:[#allocation3 + $0x10] sm:$0xff] %v4682
        %v4691 = vld [vmem:[#allocation3 + $0x18] sm:$0x11]
        %v4692 = vsel %vm2109, %v4683, %v4691
        %4693 = vst [vmem:[#allocation3 + $0x18] sm:$0x11] %v4692
        %v4694 = vld [vmem:[#allocation3] sm:$0xff]
        %v4695 = vld [vmem:[#allocation3 + $0x8] sm:$0xff]
        %v4696 = vld [vmem:[#allocation17] sm:$0xff]
        %v4697 = vld [vmem:[#allocation17 + $0x8] sm:$0xff]
        %v4698 = vld [vmem:[#allocation17 + $0x10] sm:$0xff]
        %v4699 = vld [vmem:[#allocation17 + $0x18] sm:$0xff]
        %v4700 = vld [vmem:[#allocation17 + $0x20] sm:$0xff]
        %v4701 = vld [vmem:[#allocation17 + $0x28] sm:$0xff]
        %v4702 = vld [vmem:[#allocation17 + $0x30] sm:$0xff]
        %v4703 = vld [vmem:[#allocation17 + $0x38] sm:$0xff]
        %v4704 = vld [vmem:[#allocation17 + $0x40] sm:$0xff]
        %v4705 = vld [vmem:[#allocation17 + $0x48] sm:$0xff]
        %v4706 = vld [vmem:[#allocation17 + $0x50] sm:$0xff]
        %v4707 = vld [vmem:[#allocation17 + $0x58] sm:$0xff]
        %v4708 = vld [vmem:[#allocation17 + $0x60] sm:$0xff]
        %v4709 = vld [vmem:[#allocation17 + $0x68] sm:$0xff]
        %v4710 = vld [vmem:[#allocation17 + $0x70] sm:$0xff]
        %v4711 = vld [vmem:[#allocation17 + $0x78] sm:$0xff]
        %v4712 = vld [vmem:[#allocation17 + $0x80] sm:$0xff]
        %v4713 = vld [vmem:[#allocation17 + $0x88] sm:$0xff]
        %v4714 = vld [vmem:[#allocation17 + $0x90] sm:$0xff]
        %v4715 = vld [vmem:[#allocation17 + $0x98] sm:$0xff]
        %v4716 = vld [vmem:[#allocation17 + $0xa0] sm:$0xff]
        %v4717 = vld [vmem:[#allocation17 + $0xa8] sm:$0xff]
        %v4718 = vld [vmem:[#allocation17 + $0xb0] sm:$0xff]
        %v4719 = vld [vmem:[#allocation17 + $0xb8] sm:$0xff]
        %v4720 = vld [vmem:[#allocation17 + $0xc0] sm:$0xff]
        %v4721 = vld [vmem:[#allocation17 + $0xc8] sm:$0xff]
        %v4722 = vld [vmem:[#allocation17 + $0xd0] sm:$0xff]
        %v4723 = vld [vmem:[#allocation17 + $0xd8] sm:$0xff]
        %v4724 = vld [vmem:[#allocation17 + $0xe0] sm:$0xff]
        %v4725 = vld [vmem:[#allocation17 + $0xe8] sm:$0xff]
        %v4726 = vld [vmem:[#allocation17 + $0xf0] sm:$0xff]
        %v4727 = vld [vmem:[#allocation17 + $0xf8] sm:$0xff]
        %v4728 = vld [vmem:[#allocation3 + $0x10] sm:$0x11]
        %s4729 = scalar_lea.vmem [#allocation17], 256
        %v4730 = vld [vmem:[%s4729] sm:$0xff]
        %v4731 = vld [vmem:[%s4729 + $0x8] sm:$0xff]
        %v4732 = vld [vmem:[%s4729 + $0x10] sm:$0xff]
        %v4733 = vld [vmem:[%s4729 + $0x18] sm:$0xff]
        %v4734 = vld [vmem:[%s4729 + $0x20] sm:$0xff]
        %v4735 = vld [vmem:[%s4729 + $0x28] sm:$0xff]
        %v4736 = vld [vmem:[%s4729 + $0x30] sm:$0xff]
        %v4737 = vld [vmem:[%s4729 + $0x38] sm:$0xff]
        %v4738 = vld [vmem:[%s4729 + $0x40] sm:$0xff]
        %v4739 = vld [vmem:[%s4729 + $0x48] sm:$0xff]
        %v4740 = vld [vmem:[%s4729 + $0x50] sm:$0xff]
        %v4741 = vld [vmem:[%s4729 + $0x58] sm:$0xff]
        %v4742 = vld [vmem:[%s4729 + $0x60] sm:$0xff]
        %v4743 = vld [vmem:[%s4729 + $0x68] sm:$0xff]
        %v4744 = vld [vmem:[%s4729 + $0x70] sm:$0xff]
        %v4745 = vld [vmem:[%s4729 + $0x78] sm:$0xff]
        %v4746 = vld [vmem:[%s4729 + $0x80] sm:$0xff]
        %v4747 = vld [vmem:[%s4729 + $0x88] sm:$0xff]
        %v4748 = vld [vmem:[%s4729 + $0x90] sm:$0xff]
        %v4749 = vld [vmem:[%s4729 + $0x98] sm:$0xff]
        %v4750 = vld [vmem:[%s4729 + $0xa0] sm:$0xff]
        %v4751 = vld [vmem:[%s4729 + $0xa8] sm:$0xff]
        %v4752 = vld [vmem:[%s4729 + $0xb0] sm:$0xff]
        %v4753 = vld [vmem:[%s4729 + $0xb8] sm:$0xff]
        %v4754 = vld [vmem:[%s4729 + $0xc0] sm:$0xff]
        %v4755 = vld [vmem:[%s4729 + $0xc8] sm:$0xff]
        %v4756 = vld [vmem:[%s4729 + $0xd0] sm:$0xff]
        %v4757 = vld [vmem:[%s4729 + $0xd8] sm:$0xff]
        %v4758 = vld [vmem:[%s4729 + $0xe0] sm:$0xff]
        %v4759 = vld [vmem:[%s4729 + $0xe8] sm:$0xff]
        %v4760 = vld [vmem:[%s4729 + $0xf0] sm:$0xff]
        %v4761 = vld [vmem:[%s4729 + $0xf8] sm:$0xff]
        %v4765 = vunpack.c.l.b16 %v4694
        %v4766 = vunpack.c.h.b16 %v4694
        %v4767 = vunpack.c.l.b16 %v4695
        %v4768 = vunpack.c.h.b16 %v4695
        %v4769 = vunpack.c.l.b16 %v4728
        %v4770 = vunpack.c.h.b16 %v4728
        %v4771 = vpack.c.b16 %v4767, %v4765
        %v4772 = vpack.c.b16 %v4768, %v4766
        %v4773 = vpack.c.b16 %v4769, %v4769
        %v4774 = vpack.c.b16 %v4770, %v4770
        %v4776 = vshrl.u32 %v4771, 16
        %v4778 = vshll.u32 %v4771, 16
        %v4780 = vrot.slane %v4778, 1
        %v4781 = vor.u32 %v4776, %v4780
        %v4783 = vshll.u32 %v4773, 16
        %v4785 = vrot.slane %v4783, 1
        %v4786 = vsel %vm668, %v4781, %v4785
        %v4788 = vshrl.u32 %v4772, 16
        %v4790 = vshll.u32 %v4772, 16
        %v4792 = vrot.slane %v4790, 1
        %v4793 = vor.u32 %v4788, %v4792
        %v4795 = vshll.u32 %v4774, 16
        %v4797 = vrot.slane %v4795, 1
        %v4798 = vsel %vm668, %v4793, %v4797
        %v4833 = vunpack.c.l.b16 %v4730
        %v4834 = vunpack.c.h.b16 %v4730
        %v4835 = vunpack.c.l.b16 %v4731
        %v4836 = vunpack.c.h.b16 %v4731
        %v4837 = vunpack.c.l.b16 %v4732
        %v4838 = vunpack.c.h.b16 %v4732
        %v4839 = vunpack.c.l.b16 %v4733
        %v4840 = vunpack.c.h.b16 %v4733
        %v4841 = vunpack.c.l.b16 %v4734
        %v4842 = vunpack.c.h.b16 %v4734
        %v4843 = vunpack.c.l.b16 %v4735
        %v4844 = vunpack.c.h.b16 %v4735
        %v4845 = vunpack.c.l.b16 %v4736
        %v4846 = vunpack.c.h.b16 %v4736
        %v4847 = vunpack.c.l.b16 %v4737
        %v4848 = vunpack.c.h.b16 %v4737
        %v4849 = vunpack.c.l.b16 %v4738
        %v4850 = vunpack.c.h.b16 %v4738
        %v4851 = vunpack.c.l.b16 %v4739
        %v4852 = vunpack.c.h.b16 %v4739
        %v4853 = vunpack.c.l.b16 %v4740
        %v4854 = vunpack.c.h.b16 %v4740
        %v4855 = vunpack.c.l.b16 %v4741
        %v4856 = vunpack.c.h.b16 %v4741
        %v4857 = vunpack.c.l.b16 %v4742
        %v4858 = vunpack.c.h.b16 %v4742
        %v4859 = vunpack.c.l.b16 %v4743
        %v4860 = vunpack.c.h.b16 %v4743
        %v4861 = vunpack.c.l.b16 %v4744
        %v4862 = vunpack.c.h.b16 %v4744
        %v4863 = vunpack.c.l.b16 %v4745
        %v4864 = vunpack.c.h.b16 %v4745
        %v4865 = vunpack.c.l.b16 %v4746
        %v4866 = vunpack.c.h.b16 %v4746
        %v4867 = vunpack.c.l.b16 %v4747
        %v4868 = vunpack.c.h.b16 %v4747
        %v4869 = vunpack.c.l.b16 %v4748
        %v4870 = vunpack.c.h.b16 %v4748
        %v4871 = vunpack.c.l.b16 %v4749
        %v4872 = vunpack.c.h.b16 %v4749
        %v4873 = vunpack.c.l.b16 %v4750
        %v4874 = vunpack.c.h.b16 %v4750
        %v4875 = vunpack.c.l.b16 %v4751
        %v4876 = vunpack.c.h.b16 %v4751
        %v4877 = vunpack.c.l.b16 %v4752
        %v4878 = vunpack.c.h.b16 %v4752
        %v4879 = vunpack.c.l.b16 %v4753
        %v4880 = vunpack.c.h.b16 %v4753
        %v4881 = vunpack.c.l.b16 %v4754
        %v4882 = vunpack.c.h.b16 %v4754
        %v4883 = vunpack.c.l.b16 %v4755
        %v4884 = vunpack.c.h.b16 %v4755
        %v4885 = vunpack.c.l.b16 %v4756
        %v4886 = vunpack.c.h.b16 %v4756
        %v4887 = vunpack.c.l.b16 %v4757
        %v4888 = vunpack.c.h.b16 %v4757
        %v4889 = vunpack.c.l.b16 %v4758
        %v4890 = vunpack.c.h.b16 %v4758
        %v4891 = vunpack.c.l.b16 %v4759
        %v4892 = vunpack.c.h.b16 %v4759
        %v4893 = vunpack.c.l.b16 %v4760
        %v4894 = vunpack.c.h.b16 %v4760
        %v4895 = vunpack.c.l.b16 %v4761
        %v4896 = vunpack.c.h.b16 %v4761
        %v4897 = vpack.c.b16 %v4835, %v4833
        %v4898 = vpack.c.b16 %v4836, %v4834
        %v4899 = vpack.c.b16 %v4839, %v4837
        %v4900 = vpack.c.b16 %v4840, %v4838
        %v4901 = vpack.c.b16 %v4843, %v4841
        %v4902 = vpack.c.b16 %v4844, %v4842
        %v4903 = vpack.c.b16 %v4847, %v4845
        %v4904 = vpack.c.b16 %v4848, %v4846
        %v4905 = vpack.c.b16 %v4851, %v4849
        %v4906 = vpack.c.b16 %v4852, %v4850
        %v4907 = vpack.c.b16 %v4855, %v4853
        %v4908 = vpack.c.b16 %v4856, %v4854
        %v4909 = vpack.c.b16 %v4859, %v4857
        %v4910 = vpack.c.b16 %v4860, %v4858
        %v4911 = vpack.c.b16 %v4863, %v4861
        %v4912 = vpack.c.b16 %v4864, %v4862
        %v4913 = vpack.c.b16 %v4867, %v4865
        %v4914 = vpack.c.b16 %v4868, %v4866
        %v4915 = vpack.c.b16 %v4871, %v4869
        %v4916 = vpack.c.b16 %v4872, %v4870
        %v4917 = vpack.c.b16 %v4875, %v4873
        %v4918 = vpack.c.b16 %v4876, %v4874
        %v4919 = vpack.c.b16 %v4879, %v4877
        %v4920 = vpack.c.b16 %v4880, %v4878
        %v4921 = vpack.c.b16 %v4883, %v4881
        %v4922 = vpack.c.b16 %v4884, %v4882
        %v4923 = vpack.c.b16 %v4887, %v4885
        %v4924 = vpack.c.b16 %v4888, %v4886
        %v4925 = vpack.c.b16 %v4891, %v4889
        %v4926 = vpack.c.b16 %v4892, %v4890
        %v4927 = vpack.c.b16 %v4895, %v4893
        %v4928 = vpack.c.b16 %v4896, %v4894
        %4961 = vmatprep.subr.bf16.mxu0 %v4898
        %4962 = vmatpush1.bf16.msra.mxu0 %v4897
        %4963 = vmatprep.subr.bf16.mxu0 %v4900
        %4964 = vmatpush1.bf16.msra.mxu0 %v4899
        %4965 = vmatprep.subr.bf16.mxu0 %v4902
        %4966 = vmatpush1.bf16.msra.mxu0 %v4901
        %4967 = vmatprep.subr.bf16.mxu0 %v4904
        %4968 = vmatpush1.bf16.msra.mxu0 %v4903
        %4969 = vmatprep.subr.bf16.mxu0 %v4906
        %4970 = vmatpush1.bf16.msra.mxu0 %v4905
        %4971 = vmatprep.subr.bf16.mxu0 %v4908
        %4972 = vmatpush1.bf16.msra.mxu0 %v4907
        %4973 = vmatprep.subr.bf16.mxu0 %v4910
        %4974 = vmatpush1.bf16.msra.mxu0 %v4909
        %4975 = vmatprep.subr.bf16.mxu0 %v4912
        %4976 = vmatpush1.bf16.msra.mxu0 %v4911
        %4977 = vmatprep.subr.bf16.mxu0 %v4914
        %4978 = vmatpush1.bf16.msra.mxu0 %v4913
        %4979 = vmatprep.subr.bf16.mxu0 %v4916
        %4980 = vmatpush1.bf16.msra.mxu0 %v4915
        %4981 = vmatprep.subr.bf16.mxu0 %v4918
        %4982 = vmatpush1.bf16.msra.mxu0 %v4917
        %4983 = vmatprep.subr.bf16.mxu0 %v4920
        %4984 = vmatpush1.bf16.msra.mxu0 %v4919
        %4985 = vmatprep.subr.bf16.mxu0 %v4922
        %4986 = vmatpush1.bf16.msra.mxu0 %v4921
        %4987 = vmatprep.subr.bf16.mxu0 %v4924
        %4988 = vmatpush1.bf16.msra.mxu0 %v4923
        %4989 = vmatprep.subr.bf16.mxu0 %v4926
        %4990 = vmatpush1.bf16.msra.mxu0 %v4925
        %4991 = vmatprep.subr.bf16.mxu0 %v4928
        %4992 = vmatpush1.bf16.msra.mxu0 %v4927
        %4993 = vmatprep.mubr.bf16.mxu0 %v4798
        %4994 = vmatmul.mubr.bf16.gmra.mrb[0].mxu0 %v4786
        %v4995 = vpop.f32.mrb[0].mxu0
        %v4996 = vadd.f32 0.0, %v4995
        %v4997 = vpop.f32.mrb[0].mxu0
        %v4998 = vadd.f32 0.0, %v4997
        %v4999 = vpop.f32.mrb[0].mxu0
        %v5000 = vadd.f32 0.0, %v4999
        %v5001 = vpop.f32.mrb[0].mxu0
        %v5002 = vadd.f32 0.0, %v5001
        %5003 = vdwg.mxu0
        %v5038 = vunpack.c.l.b16 %v4696
        %v5039 = vunpack.c.h.b16 %v4696
        %v5040 = vunpack.c.l.b16 %v4697
        %v5041 = vunpack.c.h.b16 %v4697
        %v5042 = vunpack.c.l.b16 %v4698
        %v5043 = vunpack.c.h.b16 %v4698
        %v5044 = vunpack.c.l.b16 %v4699
        %v5045 = vunpack.c.h.b16 %v4699
        %v5046 = vunpack.c.l.b16 %v4700
        %v5047 = vunpack.c.h.b16 %v4700
        %v5048 = vunpack.c.l.b16 %v4701
        %v5049 = vunpack.c.h.b16 %v4701
        %v5050 = vunpack.c.l.b16 %v4702
        %v5051 = vunpack.c.h.b16 %v4702
        %v5052 = vunpack.c.l.b16 %v4703
        %v5053 = vunpack.c.h.b16 %v4703
        %v5054 = vunpack.c.l.b16 %v4704
        %v5055 = vunpack.c.h.b16 %v4704
        %v5056 = vunpack.c.l.b16 %v4705
        %v5057 = vunpack.c.h.b16 %v4705
        %v5058 = vunpack.c.l.b16 %v4706
        %v5059 = vunpack.c.h.b16 %v4706
        %v5060 = vunpack.c.l.b16 %v4707
        %v5061 = vunpack.c.h.b16 %v4707
        %v5062 = vunpack.c.l.b16 %v4708
        %v5063 = vunpack.c.h.b16 %v4708
        %v5064 = vunpack.c.l.b16 %v4709
        %v5065 = vunpack.c.h.b16 %v4709
        %v5066 = vunpack.c.l.b16 %v4710
        %v5067 = vunpack.c.h.b16 %v4710
        %v5068 = vunpack.c.l.b16 %v4711
        %v5069 = vunpack.c.h.b16 %v4711
        %v5070 = vunpack.c.l.b16 %v4712
        %v5071 = vunpack.c.h.b16 %v4712
        %v5072 = vunpack.c.l.b16 %v4713
        %v5073 = vunpack.c.h.b16 %v4713
        %v5074 = vunpack.c.l.b16 %v4714
        %v5075 = vunpack.c.h.b16 %v4714
        %v5076 = vunpack.c.l.b16 %v4715
        %v5077 = vunpack.c.h.b16 %v4715
        %v5078 = vunpack.c.l.b16 %v4716
        %v5079 = vunpack.c.h.b16 %v4716
        %v5080 = vunpack.c.l.b16 %v4717
        %v5081 = vunpack.c.h.b16 %v4717
        %v5082 = vunpack.c.l.b16 %v4718
        %v5083 = vunpack.c.h.b16 %v4718
        %v5084 = vunpack.c.l.b16 %v4719
        %v5085 = vunpack.c.h.b16 %v4719
        %v5086 = vunpack.c.l.b16 %v4720
        %v5087 = vunpack.c.h.b16 %v4720
        %v5088 = vunpack.c.l.b16 %v4721
        %v5089 = vunpack.c.h.b16 %v4721
        %v5090 = vunpack.c.l.b16 %v4722
        %v5091 = vunpack.c.h.b16 %v4722
        %v5092 = vunpack.c.l.b16 %v4723
        %v5093 = vunpack.c.h.b16 %v4723
        %v5094 = vunpack.c.l.b16 %v4724
        %v5095 = vunpack.c.h.b16 %v4724
        %v5096 = vunpack.c.l.b16 %v4725
        %v5097 = vunpack.c.h.b16 %v4725
        %v5098 = vunpack.c.l.b16 %v4726
        %v5099 = vunpack.c.h.b16 %v4726
        %v5100 = vunpack.c.l.b16 %v4727
        %v5101 = vunpack.c.h.b16 %v4727
        %v5102 = vpack.c.b16 %v5040, %v5038
        %v5103 = vpack.c.b16 %v5041, %v5039
        %v5104 = vpack.c.b16 %v5044, %v5042
        %v5105 = vpack.c.b16 %v5045, %v5043
        %v5106 = vpack.c.b16 %v5048, %v5046
        %v5107 = vpack.c.b16 %v5049, %v5047
        %v5108 = vpack.c.b16 %v5052, %v5050
        %v5109 = vpack.c.b16 %v5053, %v5051
        %v5110 = vpack.c.b16 %v5056, %v5054
        %v5111 = vpack.c.b16 %v5057, %v5055
        %v5112 = vpack.c.b16 %v5060, %v5058
        %v5113 = vpack.c.b16 %v5061, %v5059
        %v5114 = vpack.c.b16 %v5064, %v5062
        %v5115 = vpack.c.b16 %v5065, %v5063
        %v5116 = vpack.c.b16 %v5068, %v5066
        %v5117 = vpack.c.b16 %v5069, %v5067
        %v5118 = vpack.c.b16 %v5072, %v5070
        %v5119 = vpack.c.b16 %v5073, %v5071
        %v5120 = vpack.c.b16 %v5076, %v5074
        %v5121 = vpack.c.b16 %v5077, %v5075
        %v5122 = vpack.c.b16 %v5080, %v5078
        %v5123 = vpack.c.b16 %v5081, %v5079
        %v5124 = vpack.c.b16 %v5084, %v5082
        %v5125 = vpack.c.b16 %v5085, %v5083
        %v5126 = vpack.c.b16 %v5088, %v5086
        %v5127 = vpack.c.b16 %v5089, %v5087
        %v5128 = vpack.c.b16 %v5092, %v5090
        %v5129 = vpack.c.b16 %v5093, %v5091
        %v5130 = vpack.c.b16 %v5096, %v5094
        %v5131 = vpack.c.b16 %v5097, %v5095
        %v5132 = vpack.c.b16 %v5100, %v5098
        %v5133 = vpack.c.b16 %v5101, %v5099
        %5166 = vmatprep.subr.bf16.mxu0 %v5103
        %5167 = vmatpush1.bf16.msra.mxu0 %v5102
        %5168 = vmatprep.subr.bf16.mxu0 %v5105
        %5169 = vmatpush1.bf16.msra.mxu0 %v5104
        %5170 = vmatprep.subr.bf16.mxu0 %v5107
        %5171 = vmatpush1.bf16.msra.mxu0 %v5106
        %5172 = vmatprep.subr.bf16.mxu0 %v5109
        %5173 = vmatpush1.bf16.msra.mxu0 %v5108
        %5174 = vmatprep.subr.bf16.mxu0 %v5111
        %5175 = vmatpush1.bf16.msra.mxu0 %v5110
        %5176 = vmatprep.subr.bf16.mxu0 %v5113
        %5177 = vmatpush1.bf16.msra.mxu0 %v5112
        %5178 = vmatprep.subr.bf16.mxu0 %v5115
        %5179 = vmatpush1.bf16.msra.mxu0 %v5114
        %5180 = vmatprep.subr.bf16.mxu0 %v5117
        %5181 = vmatpush1.bf16.msra.mxu0 %v5116
        %5182 = vmatprep.subr.bf16.mxu0 %v5119
        %5183 = vmatpush1.bf16.msra.mxu0 %v5118
        %5184 = vmatprep.subr.bf16.mxu0 %v5121
        %5185 = vmatpush1.bf16.msra.mxu0 %v5120
        %5186 = vmatprep.subr.bf16.mxu0 %v5123
        %5187 = vmatpush1.bf16.msra.mxu0 %v5122
        %5188 = vmatprep.subr.bf16.mxu0 %v5125
        %5189 = vmatpush1.bf16.msra.mxu0 %v5124
        %5190 = vmatprep.subr.bf16.mxu0 %v5127
        %5191 = vmatpush1.bf16.msra.mxu0 %v5126
        %5192 = vmatprep.subr.bf16.mxu0 %v5129
        %5193 = vmatpush1.bf16.msra.mxu0 %v5128
        %5194 = vmatprep.subr.bf16.mxu0 %v5131
        %5195 = vmatpush1.bf16.msra.mxu0 %v5130
        %5196 = vmatprep.subr.bf16.mxu0 %v5133
        %5197 = vmatpush1.bf16.msra.mxu0 %v5132
        %5198 = vmatprep.mubr.bf16.mxu0 %v4772
        %5199 = vmatmul.mubr.bf16.gmra.mrb[0].mxu0 %v4771
        %v5200 = vpop.f32.mrb[0].mxu0
        %v5201 = vadd.f32 %v4996, %v5200
        %v5202 = vpop.f32.mrb[0].mxu0
        %v5203 = vadd.f32 %v4998, %v5202
        %v5204 = vpop.f32.mrb[0].mxu0
        %v5205 = vadd.f32 %v5000, %v5204
        %v5206 = vpop.f32.mrb[0].mxu0
        %v5207 = vadd.f32 %v5002, %v5206
        %5208 = vdwg.mxu0
        %v5209 = vld [vmem:[#allocation3] sm:$0xee]
        %s5210 = scalar_lea.vmem [#allocation17], 512
        %v5211 = vld [vmem:[%s5210] sm:$0xff]
        %v5212 = vld [vmem:[%s5210 + $0x8] sm:$0xff]
        %v5213 = vld [vmem:[%s5210 + $0x10] sm:$0xff]
        %v5214 = vld [vmem:[%s5210 + $0x18] sm:$0xff]
        %v5215 = vld [vmem:[%s5210 + $0x20] sm:$0xff]
        %v5216 = vld [vmem:[%s5210 + $0x28] sm:$0xff]
        %v5217 = vld [vmem:[%s5210 + $0x30] sm:$0xff]
        %v5218 = vld [vmem:[%s5210 + $0x38] sm:$0xff]
        %v5219 = vld [vmem:[%s5210 + $0x40] sm:$0xff]
        %v5220 = vld [vmem:[%s5210 + $0x48] sm:$0xff]
        %v5221 = vld [vmem:[%s5210 + $0x50] sm:$0xff]
        %v5222 = vld [vmem:[%s5210 + $0x58] sm:$0xff]
        %v5223 = vld [vmem:[%s5210 + $0x60] sm:$0xff]
        %v5224 = vld [vmem:[%s5210 + $0x68] sm:$0xff]
        %v5225 = vld [vmem:[%s5210 + $0x70] sm:$0xff]
        %v5226 = vld [vmem:[%s5210 + $0x78] sm:$0xff]
        %v5227 = vld [vmem:[%s5210 + $0x80] sm:$0xff]
        %v5228 = vld [vmem:[%s5210 + $0x88] sm:$0xff]
        %v5229 = vld [vmem:[%s5210 + $0x90] sm:$0xff]
        %v5230 = vld [vmem:[%s5210 + $0x98] sm:$0xff]
        %v5231 = vld [vmem:[%s5210 + $0xa0] sm:$0xff]
        %v5232 = vld [vmem:[%s5210 + $0xa8] sm:$0xff]
        %v5233 = vld [vmem:[%s5210 + $0xb0] sm:$0xff]
        %v5234 = vld [vmem:[%s5210 + $0xb8] sm:$0xff]
        %v5235 = vld [vmem:[%s5210 + $0xc0] sm:$0xff]
        %v5236 = vld [vmem:[%s5210 + $0xc8] sm:$0xff]
        %v5237 = vld [vmem:[%s5210 + $0xd0] sm:$0xff]
        %v5238 = vld [vmem:[%s5210 + $0xd8] sm:$0xff]
        %v5239 = vld [vmem:[%s5210 + $0xe0] sm:$0xff]
        %v5240 = vld [vmem:[%s5210 + $0xe8] sm:$0xff]
        %v5241 = vld [vmem:[%s5210 + $0xf0] sm:$0xff]
        %v5242 = vld [vmem:[%s5210 + $0xf8] sm:$0xff]
        %v5244 = vunpack.c.l.b16 %v5209
        %v5245 = vunpack.c.h.b16 %v5209
        %v5246 = vpack.c.b16 %v4767, %v5244
        %v5247 = vpack.c.b16 %v4768, %v5245
        %v5248 = vrot.slane %v5246, 1
        %v5249 = vrot.slane %v4773, 1
        %v5250 = vsel %vm950, %v5248, %v5249
        %v5251 = vrot.slane %v5247, 1
        %v5252 = vrot.slane %v4774, 1
        %v5253 = vsel %vm950, %v5251, %v5252
        %v5288 = vunpack.c.l.b16 %v5211
        %v5289 = vunpack.c.h.b16 %v5211
        %v5290 = vunpack.c.l.b16 %v5212
        %v5291 = vunpack.c.h.b16 %v5212
        %v5292 = vunpack.c.l.b16 %v5213
        %v5293 = vunpack.c.h.b16 %v5213
        %v5294 = vunpack.c.l.b16 %v5214
        %v5295 = vunpack.c.h.b16 %v5214
        %v5296 = vunpack.c.l.b16 %v5215
        %v5297 = vunpack.c.h.b16 %v5215
        %v5298 = vunpack.c.l.b16 %v5216
        %v5299 = vunpack.c.h.b16 %v5216
        %v5300 = vunpack.c.l.b16 %v5217
        %v5301 = vunpack.c.h.b16 %v5217
        %v5302 = vunpack.c.l.b16 %v5218
        %v5303 = vunpack.c.h.b16 %v5218
        %v5304 = vunpack.c.l.b16 %v5219
        %v5305 = vunpack.c.h.b16 %v5219
        %v5306 = vunpack.c.l.b16 %v5220
        %v5307 = vunpack.c.h.b16 %v5220
        %v5308 = vunpack.c.l.b16 %v5221
        %v5309 = vunpack.c.h.b16 %v5221
        %v5310 = vunpack.c.l.b16 %v5222
        %v5311 = vunpack.c.h.b16 %v5222
        %v5312 = vunpack.c.l.b16 %v5223
        %v5313 = vunpack.c.h.b16 %v5223
        %v5314 = vunpack.c.l.b16 %v5224
        %v5315 = vunpack.c.h.b16 %v5224
        %v5316 = vunpack.c.l.b16 %v5225
        %v5317 = vunpack.c.h.b16 %v5225
        %v5318 = vunpack.c.l.b16 %v5226
        %v5319 = vunpack.c.h.b16 %v5226
        %v5320 = vunpack.c.l.b16 %v5227
        %v5321 = vunpack.c.h.b16 %v5227
        %v5322 = vunpack.c.l.b16 %v5228
        %v5323 = vunpack.c.h.b16 %v5228
        %v5324 = vunpack.c.l.b16 %v5229
        %v5325 = vunpack.c.h.b16 %v5229
        %v5326 = vunpack.c.l.b16 %v5230
        %v5327 = vunpack.c.h.b16 %v5230
        %v5328 = vunpack.c.l.b16 %v5231
        %v5329 = vunpack.c.h.b16 %v5231
        %v5330 = vunpack.c.l.b16 %v5232
        %v5331 = vunpack.c.h.b16 %v5232
        %v5332 = vunpack.c.l.b16 %v5233
        %v5333 = vunpack.c.h.b16 %v5233
        %v5334 = vunpack.c.l.b16 %v5234
        %v5335 = vunpack.c.h.b16 %v5234
        %v5336 = vunpack.c.l.b16 %v5235
        %v5337 = vunpack.c.h.b16 %v5235
        %v5338 = vunpack.c.l.b16 %v5236
        %v5339 = vunpack.c.h.b16 %v5236
        %v5340 = vunpack.c.l.b16 %v5237
        %v5341 = vunpack.c.h.b16 %v5237
        %v5342 = vunpack.c.l.b16 %v5238
        %v5343 = vunpack.c.h.b16 %v5238
        %v5344 = vunpack.c.l.b16 %v5239
        %v5345 = vunpack.c.h.b16 %v5239
        %v5346 = vunpack.c.l.b16 %v5240
        %v5347 = vunpack.c.h.b16 %v5240
        %v5348 = vunpack.c.l.b16 %v5241
        %v5349 = vunpack.c.h.b16 %v5241
        %v5350 = vunpack.c.l.b16 %v5242
        %v5351 = vunpack.c.h.b16 %v5242
        %v5352 = vpack.c.b16 %v5290, %v5288
        %v5353 = vpack.c.b16 %v5291, %v5289
        %v5354 = vpack.c.b16 %v5294, %v5292
        %v5355 = vpack.c.b16 %v5295, %v5293
        %v5356 = vpack.c.b16 %v5298, %v5296
        %v5357 = vpack.c.b16 %v5299, %v5297
        %v5358 = vpack.c.b16 %v5302, %v5300
        %v5359 = vpack.c.b16 %v5303, %v5301
        %v5360 = vpack.c.b16 %v5306, %v5304
        %v5361 = vpack.c.b16 %v5307, %v5305
        %v5362 = vpack.c.b16 %v5310, %v5308
        %v5363 = vpack.c.b16 %v5311, %v5309
        %v5364 = vpack.c.b16 %v5314, %v5312
        %v5365 = vpack.c.b16 %v5315, %v5313
        %v5366 = vpack.c.b16 %v5318, %v5316
        %v5367 = vpack.c.b16 %v5319, %v5317
        %v5368 = vpack.c.b16 %v5322, %v5320
        %v5369 = vpack.c.b16 %v5323, %v5321
        %v5370 = vpack.c.b16 %v5326, %v5324
        %v5371 = vpack.c.b16 %v5327, %v5325
        %v5372 = vpack.c.b16 %v5330, %v5328
        %v5373 = vpack.c.b16 %v5331, %v5329
        %v5374 = vpack.c.b16 %v5334, %v5332
        %v5375 = vpack.c.b16 %v5335, %v5333
        %v5376 = vpack.c.b16 %v5338, %v5336
        %v5377 = vpack.c.b16 %v5339, %v5337
        %v5378 = vpack.c.b16 %v5342, %v5340
        %v5379 = vpack.c.b16 %v5343, %v5341
        %v5380 = vpack.c.b16 %v5346, %v5344
        %v5381 = vpack.c.b16 %v5347, %v5345
        %v5382 = vpack.c.b16 %v5350, %v5348
        %v5383 = vpack.c.b16 %v5351, %v5349
        %5416 = vmatprep.subr.bf16.mxu0 %v5353
        %5417 = vmatpush1.bf16.msra.mxu0 %v5352
        %5418 = vmatprep.subr.bf16.mxu0 %v5355
        %5419 = vmatpush1.bf16.msra.mxu0 %v5354
        %5420 = vmatprep.subr.bf16.mxu0 %v5357
        %5421 = vmatpush1.bf16.msra.mxu0 %v5356
        %5422 = vmatprep.subr.bf16.mxu0 %v5359
        %5423 = vmatpush1.bf16.msra.mxu0 %v5358
        %5424 = vmatprep.subr.bf16.mxu0 %v5361
        %5425 = vmatpush1.bf16.msra.mxu0 %v5360
        %5426 = vmatprep.subr.bf16.mxu0 %v5363
        %5427 = vmatpush1.bf16.msra.mxu0 %v5362
        %5428 = vmatprep.subr.bf16.mxu0 %v5365
        %5429 = vmatpush1.bf16.msra.mxu0 %v5364
        %5430 = vmatprep.subr.bf16.mxu0 %v5367
        %5431 = vmatpush1.bf16.msra.mxu0 %v5366
        %5432 = vmatprep.subr.bf16.mxu0 %v5369
        %5433 = vmatpush1.bf16.msra.mxu0 %v5368
        %5434 = vmatprep.subr.bf16.mxu0 %v5371
        %5435 = vmatpush1.bf16.msra.mxu0 %v5370
        %5436 = vmatprep.subr.bf16.mxu0 %v5373
        %5437 = vmatpush1.bf16.msra.mxu0 %v5372
        %5438 = vmatprep.subr.bf16.mxu0 %v5375
        %5439 = vmatpush1.bf16.msra.mxu0 %v5374
        %5440 = vmatprep.subr.bf16.mxu0 %v5377
        %5441 = vmatpush1.bf16.msra.mxu0 %v5376
        %5442 = vmatprep.subr.bf16.mxu0 %v5379
        %5443 = vmatpush1.bf16.msra.mxu0 %v5378
        %5444 = vmatprep.subr.bf16.mxu0 %v5381
        %5445 = vmatpush1.bf16.msra.mxu0 %v5380
        %5446 = vmatprep.subr.bf16.mxu0 %v5383
        %5447 = vmatpush1.bf16.msra.mxu0 %v5382
        %5448 = vmatprep.mubr.bf16.mxu0 %v5253
        %5449 = vmatmul.mubr.bf16.gmra.mrb[0].mxu0 %v5250
        %v5450 = vpop.f32.mrb[0].mxu0
        %v5451 = vadd.f32 0.0, %v5450
        %v5452 = vpop.f32.mrb[0].mxu0
        %v5453 = vadd.f32 0.0, %v5452
        %v5454 = vpop.f32.mrb[0].mxu0
        %v5455 = vadd.f32 0.0, %v5454
        %v5456 = vpop.f32.mrb[0].mxu0
        %v5457 = vadd.f32 0.0, %v5456
        %5458 = vdwg.mxu0
        %v5459 = vadd.f32 %v5201, %v5451
        %v5460 = vadd.f32 %v5203, %v5453
        %v5461 = vadd.f32 %v5205, %v5455
        %v5462 = vadd.f32 %v5207, %v5457
        %v5463 = vld [vmem:[#allocation3 + $0x10] sm:$0xff]
        %s5464 = scalar_lea.vmem [#allocation17], 768
        %v5465 = vld [vmem:[%s5464] sm:$0xff]
        %v5466 = vld [vmem:[%s5464 + $0x8] sm:$0xff]
        %v5467 = vld [vmem:[%s5464 + $0x10] sm:$0xff]
        %v5468 = vld [vmem:[%s5464 + $0x18] sm:$0xff]
        %v5469 = vld [vmem:[%s5464 + $0x20] sm:$0xff]
        %v5470 = vld [vmem:[%s5464 + $0x28] sm:$0xff]
        %v5471 = vld [vmem:[%s5464 + $0x30] sm:$0xff]
        %v5472 = vld [vmem:[%s5464 + $0x38] sm:$0xff]
        %v5473 = vld [vmem:[%s5464 + $0x40] sm:$0xff]
        %v5474 = vld [vmem:[%s5464 + $0x48] sm:$0xff]
        %v5475 = vld [vmem:[%s5464 + $0x50] sm:$0xff]
        %v5476 = vld [vmem:[%s5464 + $0x58] sm:$0xff]
        %v5477 = vld [vmem:[%s5464 + $0x60] sm:$0xff]
        %v5478 = vld [vmem:[%s5464 + $0x68] sm:$0xff]
        %v5479 = vld [vmem:[%s5464 + $0x70] sm:$0xff]
        %v5480 = vld [vmem:[%s5464 + $0x78] sm:$0xff]
        %v5481 = vld [vmem:[%s5464 + $0x80] sm:$0xff]
        %v5482 = vld [vmem:[%s5464 + $0x88] sm:$0xff]
        %v5483 = vld [vmem:[%s5464 + $0x90] sm:$0xff]
        %v5484 = vld [vmem:[%s5464 + $0x98] sm:$0xff]
        %v5485 = vld [vmem:[%s5464 + $0xa0] sm:$0xff]
        %v5486 = vld [vmem:[%s5464 + $0xa8] sm:$0xff]
        %v5487 = vld [vmem:[%s5464 + $0xb0] sm:$0xff]
        %v5488 = vld [vmem:[%s5464 + $0xb8] sm:$0xff]
        %v5489 = vld [vmem:[%s5464 + $0xc0] sm:$0xff]
        %v5490 = vld [vmem:[%s5464 + $0xc8] sm:$0xff]
        %v5491 = vld [vmem:[%s5464 + $0xd0] sm:$0xff]
        %v5492 = vld [vmem:[%s5464 + $0xd8] sm:$0xff]
        %v5493 = vld [vmem:[%s5464 + $0xe0] sm:$0xff]
        %v5494 = vld [vmem:[%s5464 + $0xe8] sm:$0xff]
        %v5495 = vld [vmem:[%s5464 + $0xf0] sm:$0xff]
        %v5496 = vld [vmem:[%s5464 + $0xf8] sm:$0xff]
        %v5498 = vunpack.c.l.b16 %v5463
        %v5499 = vunpack.c.h.b16 %v5463
        %v5500 = vpack.c.b16 %v5498, %v4767
        %v5501 = vpack.c.b16 %v5499, %v4768
        %v5536 = vunpack.c.l.b16 %v5465
        %v5537 = vunpack.c.h.b16 %v5465
        %v5538 = vunpack.c.l.b16 %v5466
        %v5539 = vunpack.c.h.b16 %v5466
        %v5540 = vunpack.c.l.b16 %v5467
        %v5541 = vunpack.c.h.b16 %v5467
        %v5542 = vunpack.c.l.b16 %v5468
        %v5543 = vunpack.c.h.b16 %v5468
        %v5544 = vunpack.c.l.b16 %v5469
        %v5545 = vunpack.c.h.b16 %v5469
        %v5546 = vunpack.c.l.b16 %v5470
        %v5547 = vunpack.c.h.b16 %v5470
        %v5548 = vunpack.c.l.b16 %v5471
        %v5549 = vunpack.c.h.b16 %v5471
        %v5550 = vunpack.c.l.b16 %v5472
        %v5551 = vunpack.c.h.b16 %v5472
        %v5552 = vunpack.c.l.b16 %v5473
        %v5553 = vunpack.c.h.b16 %v5473
        %v5554 = vunpack.c.l.b16 %v5474
        %v5555 = vunpack.c.h.b16 %v5474
        %v5556 = vunpack.c.l.b16 %v5475
        %v5557 = vunpack.c.h.b16 %v5475
        %v5558 = vunpack.c.l.b16 %v5476
        %v5559 = vunpack.c.h.b16 %v5476
        %v5560 = vunpack.c.l.b16 %v5477
        %v5561 = vunpack.c.h.b16 %v5477
        %v5562 = vunpack.c.l.b16 %v5478
        %v5563 = vunpack.c.h.b16 %v5478
        %v5564 = vunpack.c.l.b16 %v5479
        %v5565 = vunpack.c.h.b16 %v5479
        %v5566 = vunpack.c.l.b16 %v5480
        %v5567 = vunpack.c.h.b16 %v5480
        %v5568 = vunpack.c.l.b16 %v5481
        %v5569 = vunpack.c.h.b16 %v5481
        %v5570 = vunpack.c.l.b16 %v5482
        %v5571 = vunpack.c.h.b16 %v5482
        %v5572 = vunpack.c.l.b16 %v5483
        %v5573 = vunpack.c.h.b16 %v5483
        %v5574 = vunpack.c.l.b16 %v5484
        %v5575 = vunpack.c.h.b16 %v5484
        %v5576 = vunpack.c.l.b16 %v5485
        %v5577 = vunpack.c.h.b16 %v5485
        %v5578 = vunpack.c.l.b16 %v5486
        %v5579 = vunpack.c.h.b16 %v5486
        %v5580 = vunpack.c.l.b16 %v5487
        %v5581 = vunpack.c.h.b16 %v5487
        %v5582 = vunpack.c.l.b16 %v5488
        %v5583 = vunpack.c.h.b16 %v5488
        %v5584 = vunpack.c.l.b16 %v5489
        %v5585 = vunpack.c.h.b16 %v5489
        %v5586 = vunpack.c.l.b16 %v5490
        %v5587 = vunpack.c.h.b16 %v5490
        %v5588 = vunpack.c.l.b16 %v5491
        %v5589 = vunpack.c.h.b16 %v5491
        %v5590 = vunpack.c.l.b16 %v5492
        %v5591 = vunpack.c.h.b16 %v5492
        %v5592 = vunpack.c.l.b16 %v5493
        %v5593 = vunpack.c.h.b16 %v5493
        %v5594 = vunpack.c.l.b16 %v5494
        %v5595 = vunpack.c.h.b16 %v5494
        %v5596 = vunpack.c.l.b16 %v5495
        %v5597 = vunpack.c.h.b16 %v5495
        %v5598 = vunpack.c.l.b16 %v5496
        %v5599 = vunpack.c.h.b16 %v5496
        %v5600 = vpack.c.b16 %v5538, %v5536
        %v5601 = vpack.c.b16 %v5539, %v5537
        %v5602 = vpack.c.b16 %v5542, %v5540
        %v5603 = vpack.c.b16 %v5543, %v5541
        %v5604 = vpack.c.b16 %v5546, %v5544
        %v5605 = vpack.c.b16 %v5547, %v5545
        %v5606 = vpack.c.b16 %v5550, %v5548
        %v5607 = vpack.c.b16 %v5551, %v5549
        %v5608 = vpack.c.b16 %v5554, %v5552
        %v5609 = vpack.c.b16 %v5555, %v5553
        %v5610 = vpack.c.b16 %v5558, %v5556
        %v5611 = vpack.c.b16 %v5559, %v5557
        %v5612 = vpack.c.b16 %v5562, %v5560
        %v5613 = vpack.c.b16 %v5563, %v5561
        %v5614 = vpack.c.b16 %v5566, %v5564
        %v5615 = vpack.c.b16 %v5567, %v5565
        %v5616 = vpack.c.b16 %v5570, %v5568
        %v5617 = vpack.c.b16 %v5571, %v5569
        %v5618 = vpack.c.b16 %v5574, %v5572
        %v5619 = vpack.c.b16 %v5575, %v5573
        %v5620 = vpack.c.b16 %v5578, %v5576
        %v5621 = vpack.c.b16 %v5579, %v5577
        %v5622 = vpack.c.b16 %v5582, %v5580
        %v5623 = vpack.c.b16 %v5583, %v5581
        %v5624 = vpack.c.b16 %v5586, %v5584
        %v5625 = vpack.c.b16 %v5587, %v5585
        %v5626 = vpack.c.b16 %v5590, %v5588
        %v5627 = vpack.c.b16 %v5591, %v5589
        %v5628 = vpack.c.b16 %v5594, %v5592
        %v5629 = vpack.c.b16 %v5595, %v5593
        %v5630 = vpack.c.b16 %v5598, %v5596
        %v5631 = vpack.c.b16 %v5599, %v5597
        %5664 = vmatprep.subr.bf16.mxu0 %v5601
        %5665 = vmatpush1.bf16.msra.mxu0 %v5600
        %5666 = vmatprep.subr.bf16.mxu0 %v5603
        %5667 = vmatpush1.bf16.msra.mxu0 %v5602
        %5668 = vmatprep.subr.bf16.mxu0 %v5605
        %5669 = vmatpush1.bf16.msra.mxu0 %v5604
        %5670 = vmatprep.subr.bf16.mxu0 %v5607
        %5671 = vmatpush1.bf16.msra.mxu0 %v5606
        %5672 = vmatprep.subr.bf16.mxu0 %v5609
        %5673 = vmatpush1.bf16.msra.mxu0 %v5608
        %5674 = vmatprep.subr.bf16.mxu0 %v5611
        %5675 = vmatpush1.bf16.msra.mxu0 %v5610
        %5676 = vmatprep.subr.bf16.mxu0 %v5613
        %5677 = vmatpush1.bf16.msra.mxu0 %v5612
        %5678 = vmatprep.subr.bf16.mxu0 %v5615
        %5679 = vmatpush1.bf16.msra.mxu0 %v5614
        %5680 = vmatprep.subr.bf16.mxu0 %v5617
        %5681 = vmatpush1.bf16.msra.mxu0 %v5616
        %5682 = vmatprep.subr.bf16.mxu0 %v5619
        %5683 = vmatpush1.bf16.msra.mxu0 %v5618
        %5684 = vmatprep.subr.bf16.mxu0 %v5621
        %5685 = vmatpush1.bf16.msra.mxu0 %v5620
        %5686 = vmatprep.subr.bf16.mxu0 %v5623
        %5687 = vmatpush1.bf16.msra.mxu0 %v5622
        %5688 = vmatprep.subr.bf16.mxu0 %v5625
        %5689 = vmatpush1.bf16.msra.mxu0 %v5624
        %5690 = vmatprep.subr.bf16.mxu0 %v5627
        %5691 = vmatpush1.bf16.msra.mxu0 %v5626
        %5692 = vmatprep.subr.bf16.mxu0 %v5629
        %5693 = vmatpush1.bf16.msra.mxu0 %v5628
        %5694 = vmatprep.subr.bf16.mxu0 %v5631
        %5695 = vmatpush1.bf16.msra.mxu0 %v5630
        %5696 = vmatprep.mubr.bf16.mxu0 %v5501
        %5697 = vmatmul.mubr.bf16.gmra.mrb[0].mxu0 %v5500
        %v5698 = vpop.f32.mrb[0].mxu0
        %v5699 = vadd.f32 0.0, %v5698
        %v5700 = vpop.f32.mrb[0].mxu0
        %v5701 = vadd.f32 0.0, %v5700
        %v5702 = vpop.f32.mrb[0].mxu0
        %v5703 = vadd.f32 0.0, %v5702
        %v5704 = vpop.f32.mrb[0].mxu0
        %v5705 = vadd.f32 0.0, %v5704
        %5706 = vdwg.mxu0
        %v5707 = vadd.f32 %v5459, %v5699
        %v5708 = vadd.f32 %v5460, %v5701
        %v5709 = vadd.f32 %v5461, %v5703
        %v5710 = vadd.f32 %v5462, %v5705
        %v5711 = vld [vmem:[#allocation3 + $0x8] sm:$0xff]
        %v5712 = vld [vmem:[#allocation3 + $0x10] sm:$0xff]
        %v5713 = vld [vmem:[#allocation3 + $0x18] sm:$0x11]
        %s5714 = scalar_lea.vmem [#allocation17], 1024
        %v5715 = vld [vmem:[%s5714] sm:$0xff]
        %v5716 = vld [vmem:[%s5714 + $0x8] sm:$0xff]
        %v5717 = vld [vmem:[%s5714 + $0x10] sm:$0xff]
        %v5718 = vld [vmem:[%s5714 + $0x18] sm:$0xff]
        %v5719 = vld [vmem:[%s5714 + $0x20] sm:$0xff]
        %v5720 = vld [vmem:[%s5714 + $0x28] sm:$0xff]
        %v5721 = vld [vmem:[%s5714 + $0x30] sm:$0xff]
        %v5722 = vld [vmem:[%s5714 + $0x38] sm:$0xff]
        %v5723 = vld [vmem:[%s5714 + $0x40] sm:$0xff]
        %v5724 = vld [vmem:[%s5714 + $0x48] sm:$0xff]
        %v5725 = vld [vmem:[%s5714 + $0x50] sm:$0xff]
        %v5726 = vld [vmem:[%s5714 + $0x58] sm:$0xff]
        %v5727 = vld [vmem:[%s5714 + $0x60] sm:$0xff]
        %v5728 = vld [vmem:[%s5714 + $0x68] sm:$0xff]
        %v5729 = vld [vmem:[%s5714 + $0x70] sm:$0xff]
        %v5730 = vld [vmem:[%s5714 + $0x78] sm:$0xff]
        %v5731 = vld [vmem:[%s5714 + $0x80] sm:$0xff]
        %v5732 = vld [vmem:[%s5714 + $0x88] sm:$0xff]
        %v5733 = vld [vmem:[%s5714 + $0x90] sm:$0xff]
        %v5734 = vld [vmem:[%s5714 + $0x98] sm:$0xff]
        %v5735 = vld [vmem:[%s5714 + $0xa0] sm:$0xff]
        %v5736 = vld [vmem:[%s5714 + $0xa8] sm:$0xff]
        %v5737 = vld [vmem:[%s5714 + $0xb0] sm:$0xff]
        %v5738 = vld [vmem:[%s5714 + $0xb8] sm:$0xff]
        %v5739 = vld [vmem:[%s5714 + $0xc0] sm:$0xff]
        %v5740 = vld [vmem:[%s5714 + $0xc8] sm:$0xff]
        %v5741 = vld [vmem:[%s5714 + $0xd0] sm:$0xff]
        %v5742 = vld [vmem:[%s5714 + $0xd8] sm:$0xff]
        %v5743 = vld [vmem:[%s5714 + $0xe0] sm:$0xff]
        %v5744 = vld [vmem:[%s5714 + $0xe8] sm:$0xff]
        %v5745 = vld [vmem:[%s5714 + $0xf0] sm:$0xff]
        %v5746 = vld [vmem:[%s5714 + $0xf8] sm:$0xff]
        %v5750 = vunpack.c.l.b16 %v5711
        %v5751 = vunpack.c.h.b16 %v5711
        %v5752 = vunpack.c.l.b16 %v5712
        %v5753 = vunpack.c.h.b16 %v5712
        %v5754 = vunpack.c.l.b16 %v5713
        %v5755 = vunpack.c.h.b16 %v5713
        %v5756 = vpack.c.b16 %v5752, %v5750
        %v5757 = vpack.c.b16 %v5753, %v5751
        %v5758 = vpack.c.b16 %v5754, %v5754
        %v5759 = vpack.c.b16 %v5755, %v5755
        %v5761 = vshrl.u32 %v5756, 16
        %v5763 = vshll.u32 %v5756, 16
        %v5765 = vrot.slane %v5763, 1
        %v5766 = vor.u32 %v5761, %v5765
        %v5768 = vshll.u32 %v5758, 16
        %v5770 = vrot.slane %v5768, 1
        %v5771 = vsel %vm668, %v5766, %v5770
        %v5773 = vshrl.u32 %v5757, 16
        %v5775 = vshll.u32 %v5757, 16
        %v5777 = vrot.slane %v5775, 1
        %v5778 = vor.u32 %v5773, %v5777
        %v5780 = vshll.u32 %v5759, 16
        %v5782 = vrot.slane %v5780, 1
        %v5783 = vsel %vm668, %v5778, %v5782
        %v5818 = vunpack.c.l.b16 %v5715
        %v5819 = vunpack.c.h.b16 %v5715
        %v5820 = vunpack.c.l.b16 %v5716
        %v5821 = vunpack.c.h.b16 %v5716
        %v5822 = vunpack.c.l.b16 %v5717
        %v5823 = vunpack.c.h.b16 %v5717
        %v5824 = vunpack.c.l.b16 %v5718
        %v5825 = vunpack.c.h.b16 %v5718
        %v5826 = vunpack.c.l.b16 %v5719
        %v5827 = vunpack.c.h.b16 %v5719
        %v5828 = vunpack.c.l.b16 %v5720
        %v5829 = vunpack.c.h.b16 %v5720
        %v5830 = vunpack.c.l.b16 %v5721
        %v5831 = vunpack.c.h.b16 %v5721
        %v5832 = vunpack.c.l.b16 %v5722
        %v5833 = vunpack.c.h.b16 %v5722
        %v5834 = vunpack.c.l.b16 %v5723
        %v5835 = vunpack.c.h.b16 %v5723
        %v5836 = vunpack.c.l.b16 %v5724
        %v5837 = vunpack.c.h.b16 %v5724
        %v5838 = vunpack.c.l.b16 %v5725
        %v5839 = vunpack.c.h.b16 %v5725
        %v5840 = vunpack.c.l.b16 %v5726
        %v5841 = vunpack.c.h.b16 %v5726
        %v5842 = vunpack.c.l.b16 %v5727
        %v5843 = vunpack.c.h.b16 %v5727
        %v5844 = vunpack.c.l.b16 %v5728
        %v5845 = vunpack.c.h.b16 %v5728
        %v5846 = vunpack.c.l.b16 %v5729
        %v5847 = vunpack.c.h.b16 %v5729
        %v5848 = vunpack.c.l.b16 %v5730
        %v5849 = vunpack.c.h.b16 %v5730
        %v5850 = vunpack.c.l.b16 %v5731
        %v5851 = vunpack.c.h.b16 %v5731
        %v5852 = vunpack.c.l.b16 %v5732
        %v5853 = vunpack.c.h.b16 %v5732
        %v5854 = vunpack.c.l.b16 %v5733
        %v5855 = vunpack.c.h.b16 %v5733
        %v5856 = vunpack.c.l.b16 %v5734
        %v5857 = vunpack.c.h.b16 %v5734
        %v5858 = vunpack.c.l.b16 %v5735
        %v5859 = vunpack.c.h.b16 %v5735
        %v5860 = vunpack.c.l.b16 %v5736
        %v5861 = vunpack.c.h.b16 %v5736
        %v5862 = vunpack.c.l.b16 %v5737
        %v5863 = vunpack.c.h.b16 %v5737
        %v5864 = vunpack.c.l.b16 %v5738
        %v5865 = vunpack.c.h.b16 %v5738
        %v5866 = vunpack.c.l.b16 %v5739
        %v5867 = vunpack.c.h.b16 %v5739
        %v5868 = vunpack.c.l.b16 %v5740
        %v5869 = vunpack.c.h.b16 %v5740
        %v5870 = vunpack.c.l.b16 %v5741
        %v5871 = vunpack.c.h.b16 %v5741
        %v5872 = vunpack.c.l.b16 %v5742
        %v5873 = vunpack.c.h.b16 %v5742
        %v5874 = vunpack.c.l.b16 %v5743
        %v5875 = vunpack.c.h.b16 %v5743
        %v5876 = vunpack.c.l.b16 %v5744
        %v5877 = vunpack.c.h.b16 %v5744
        %v5878 = vunpack.c.l.b16 %v5745
        %v5879 = vunpack.c.h.b16 %v5745
        %v5880 = vunpack.c.l.b16 %v5746
        %v5881 = vunpack.c.h.b16 %v5746
        %v5882 = vpack.c.b16 %v5820, %v5818
        %v5883 = vpack.c.b16 %v5821, %v5819
        %v5884 = vpack.c.b16 %v5824, %v5822
        %v5885 = vpack.c.b16 %v5825, %v5823
        %v5886 = vpack.c.b16 %v5828, %v5826
        %v5887 = vpack.c.b16 %v5829, %v5827
        %v5888 = vpack.c.b16 %v5832, %v5830
        %v5889 = vpack.c.b16 %v5833, %v5831
        %v5890 = vpack.c.b16 %v5836, %v5834
        %v5891 = vpack.c.b16 %v5837, %v5835
        %v5892 = vpack.c.b16 %v5840, %v5838
        %v5893 = vpack.c.b16 %v5841, %v5839
        %v5894 = vpack.c.b16 %v5844, %v5842
        %v5895 = vpack.c.b16 %v5845, %v5843
        %v5896 = vpack.c.b16 %v5848, %v5846
        %v5897 = vpack.c.b16 %v5849, %v5847
        %v5898 = vpack.c.b16 %v5852, %v5850
        %v5899 = vpack.c.b16 %v5853, %v5851
        %v5900 = vpack.c.b16 %v5856, %v5854
        %v5901 = vpack.c.b16 %v5857, %v5855
        %v5902 = vpack.c.b16 %v5860, %v5858
        %v5903 = vpack.c.b16 %v5861, %v5859
        %v5904 = vpack.c.b16 %v5864, %v5862
        %v5905 = vpack.c.b16 %v5865, %v5863
        %v5906 = vpack.c.b16 %v5868, %v5866
        %v5907 = vpack.c.b16 %v5869, %v5867
        %v5908 = vpack.c.b16 %v5872, %v5870
        %v5909 = vpack.c.b16 %v5873, %v5871
        %v5910 = vpack.c.b16 %v5876, %v5874
        %v5911 = vpack.c.b16 %v5877, %v5875
        %v5912 = vpack.c.b16 %v5880, %v5878
        %v5913 = vpack.c.b16 %v5881, %v5879
        %5946 = vmatprep.subr.bf16.mxu0 %v5883
        %5947 = vmatpush1.bf16.msra.mxu0 %v5882
        %5948 = vmatprep.subr.bf16.mxu0 %v5885
        %5949 = vmatpush1.bf16.msra.mxu0 %v5884
        %5950 = vmatprep.subr.bf16.mxu0 %v5887
        %5951 = vmatpush1.bf16.msra.mxu0 %v5886
        %5952 = vmatprep.subr.bf16.mxu0 %v5889
        %5953 = vmatpush1.bf16.msra.mxu0 %v5888
        %5954 = vmatprep.subr.bf16.mxu0 %v5891
        %5955 = vmatpush1.bf16.msra.mxu0 %v5890
        %5956 = vmatprep.subr.bf16.mxu0 %v5893
        %5957 = vmatpush1.bf16.msra.mxu0 %v5892
        %5958 = vmatprep.subr.bf16.mxu0 %v5895
        %5959 = vmatpush1.bf16.msra.mxu0 %v5894
        %5960 = vmatprep.subr.bf16.mxu0 %v5897
        %5961 = vmatpush1.bf16.msra.mxu0 %v5896
        %5962 = vmatprep.subr.bf16.mxu0 %v5899
        %5963 = vmatpush1.bf16.msra.mxu0 %v5898
        %5964 = vmatprep.subr.bf16.mxu0 %v5901
        %5965 = vmatpush1.bf16.msra.mxu0 %v5900
        %5966 = vmatprep.subr.bf16.mxu0 %v5903
        %5967 = vmatpush1.bf16.msra.mxu0 %v5902
        %5968 = vmatprep.subr.bf16.mxu0 %v5905
        %5969 = vmatpush1.bf16.msra.mxu0 %v5904
        %5970 = vmatprep.subr.bf16.mxu0 %v5907
        %5971 = vmatpush1.bf16.msra.mxu0 %v5906
        %5972 = vmatprep.subr.bf16.mxu0 %v5909
        %5973 = vmatpush1.bf16.msra.mxu0 %v5908
        %5974 = vmatprep.subr.bf16.mxu0 %v5911
        %5975 = vmatpush1.bf16.msra.mxu0 %v5910
        %5976 = vmatprep.subr.bf16.mxu0 %v5913
        %5977 = vmatpush1.bf16.msra.mxu0 %v5912
        %5978 = vmatprep.mubr.bf16.mxu0 %v5783
        %5979 = vmatmul.mubr.bf16.gmra.mrb[0].mxu0 %v5771
        %v5980 = vpop.f32.mrb[0].mxu0
        %v5981 = vadd.f32 0.0, %v5980
        %v5982 = vpop.f32.mrb[0].mxu0
        %v5983 = vadd.f32 0.0, %v5982
        %v5984 = vpop.f32.mrb[0].mxu0
        %v5985 = vadd.f32 0.0, %v5984
        %v5986 = vpop.f32.mrb[0].mxu0
        %v5987 = vadd.f32 0.0, %v5986
        %5988 = vdwg.mxu0
        %v5989 = vadd.f32 %v5707, %v5981
        %v5990 = vadd.f32 %v5708, %v5983
        %v5991 = vadd.f32 %v5709, %v5985
        %v5992 = vadd.f32 %v5710, %v5987
        %v5993 = vld [vmem:[#allocation3 + $0x8] sm:$0xee]
        %s5994 = scalar_lea.vmem [#allocation17], 1280
        %v5995 = vld [vmem:[%s5994] sm:$0xff]
        %v5996 = vld [vmem:[%s5994 + $0x8] sm:$0xff]
        %v5997 = vld [vmem:[%s5994 + $0x10] sm:$0xff]
        %v5998 = vld [vmem:[%s5994 + $0x18] sm:$0xff]
        %v5999 = vld [vmem:[%s5994 + $0x20] sm:$0xff]
        %v6000 = vld [vmem:[%s5994 + $0x28] sm:$0xff]
        %v6001 = vld [vmem:[%s5994 + $0x30] sm:$0xff]
        %v6002 = vld [vmem:[%s5994 + $0x38] sm:$0xff]
        %v6003 = vld [vmem:[%s5994 + $0x40] sm:$0xff]
        %v6004 = vld [vmem:[%s5994 + $0x48] sm:$0xff]
        %v6005 = vld [vmem:[%s5994 + $0x50] sm:$0xff]
        %v6006 = vld [vmem:[%s5994 + $0x58] sm:$0xff]
        %v6007 = vld [vmem:[%s5994 + $0x60] sm:$0xff]
        %v6008 = vld [vmem:[%s5994 + $0x68] sm:$0xff]
        %v6009 = vld [vmem:[%s5994 + $0x70] sm:$0xff]
        %v6010 = vld [vmem:[%s5994 + $0x78] sm:$0xff]
        %v6011 = vld [vmem:[%s5994 + $0x80] sm:$0xff]
        %v6012 = vld [vmem:[%s5994 + $0x88] sm:$0xff]
        %v6013 = vld [vmem:[%s5994 + $0x90] sm:$0xff]
        %v6014 = vld [vmem:[%s5994 + $0x98] sm:$0xff]
        %v6015 = vld [vmem:[%s5994 + $0xa0] sm:$0xff]
        %v6016 = vld [vmem:[%s5994 + $0xa8] sm:$0xff]
        %v6017 = vld [vmem:[%s5994 + $0xb0] sm:$0xff]
        %v6018 = vld [vmem:[%s5994 + $0xb8] sm:$0xff]
        %v6019 = vld [vmem:[%s5994 + $0xc0] sm:$0xff]
        %v6020 = vld [vmem:[%s5994 + $0xc8] sm:$0xff]
        %v6021 = vld [vmem:[%s5994 + $0xd0] sm:$0xff]
        %v6022 = vld [vmem:[%s5994 + $0xd8] sm:$0xff]
        %v6023 = vld [vmem:[%s5994 + $0xe0] sm:$0xff]
        %v6024 = vld [vmem:[%s5994 + $0xe8] sm:$0xff]
        %v6025 = vld [vmem:[%s5994 + $0xf0] sm:$0xff]
        %v6026 = vld [vmem:[%s5994 + $0xf8] sm:$0xff]
        %v6028 = vunpack.c.l.b16 %v5993
        %v6029 = vunpack.c.h.b16 %v5993
        %v6030 = vpack.c.b16 %v5752, %v6028
        %v6031 = vpack.c.b16 %v5753, %v6029
        %v6032 = vrot.slane %v6030, 1
        %v6033 = vrot.slane %v5758, 1
        %v6034 = vsel %vm950, %v6032, %v6033
        %v6035 = vrot.slane %v6031, 1
        %v6036 = vrot.slane %v5759, 1
        %v6037 = vsel %vm950, %v6035, %v6036
        %v6072 = vunpack.c.l.b16 %v5995
        %v6073 = vunpack.c.h.b16 %v5995
        %v6074 = vunpack.c.l.b16 %v5996
        %v6075 = vunpack.c.h.b16 %v5996
        %v6076 = vunpack.c.l.b16 %v5997
        %v6077 = vunpack.c.h.b16 %v5997
        %v6078 = vunpack.c.l.b16 %v5998
        %v6079 = vunpack.c.h.b16 %v5998
        %v6080 = vunpack.c.l.b16 %v5999
        %v6081 = vunpack.c.h.b16 %v5999
        %v6082 = vunpack.c.l.b16 %v6000
        %v6083 = vunpack.c.h.b16 %v6000
        %v6084 = vunpack.c.l.b16 %v6001
        %v6085 = vunpack.c.h.b16 %v6001
        %v6086 = vunpack.c.l.b16 %v6002
        %v6087 = vunpack.c.h.b16 %v6002
        %v6088 = vunpack.c.l.b16 %v6003
        %v6089 = vunpack.c.h.b16 %v6003
        %v6090 = vunpack.c.l.b16 %v6004
        %v6091 = vunpack.c.h.b16 %v6004
        %v6092 = vunpack.c.l.b16 %v6005
        %v6093 = vunpack.c.h.b16 %v6005
        %v6094 = vunpack.c.l.b16 %v6006
        %v6095 = vunpack.c.h.b16 %v6006
        %v6096 = vunpack.c.l.b16 %v6007
        %v6097 = vunpack.c.h.b16 %v6007
        %v6098 = vunpack.c.l.b16 %v6008
        %v6099 = vunpack.c.h.b16 %v6008
        %v6100 = vunpack.c.l.b16 %v6009
        %v6101 = vunpack.c.h.b16 %v6009
        %v6102 = vunpack.c.l.b16 %v6010
        %v6103 = vunpack.c.h.b16 %v6010
        %v6104 = vunpack.c.l.b16 %v6011
        %v6105 = vunpack.c.h.b16 %v6011
        %v6106 = vunpack.c.l.b16 %v6012
        %v6107 = vunpack.c.h.b16 %v6012
        %v6108 = vunpack.c.l.b16 %v6013
        %v6109 = vunpack.c.h.b16 %v6013
        %v6110 = vunpack.c.l.b16 %v6014
        %v6111 = vunpack.c.h.b16 %v6014
        %v6112 = vunpack.c.l.b16 %v6015
        %v6113 = vunpack.c.h.b16 %v6015
        %v6114 = vunpack.c.l.b16 %v6016
        %v6115 = vunpack.c.h.b16 %v6016
        %v6116 = vunpack.c.l.b16 %v6017
        %v6117 = vunpack.c.h.b16 %v6017
        %v6118 = vunpack.c.l.b16 %v6018
        %v6119 = vunpack.c.h.b16 %v6018
        %v6120 = vunpack.c.l.b16 %v6019
        %v6121 = vunpack.c.h.b16 %v6019
        %v6122 = vunpack.c.l.b16 %v6020
        %v6123 = vunpack.c.h.b16 %v6020
        %v6124 = vunpack.c.l.b16 %v6021
        %v6125 = vunpack.c.h.b16 %v6021
        %v6126 = vunpack.c.l.b16 %v6022
        %v6127 = vunpack.c.h.b16 %v6022
        %v6128 = vunpack.c.l.b16 %v6023
        %v6129 = vunpack.c.h.b16 %v6023
        %v6130 = vunpack.c.l.b16 %v6024
        %v6131 = vunpack.c.h.b16 %v6024
        %v6132 = vunpack.c.l.b16 %v6025
        %v6133 = vunpack.c.h.b16 %v6025
        %v6134 = vunpack.c.l.b16 %v6026
        %v6135 = vunpack.c.h.b16 %v6026
        %v6136 = vpack.c.b16 %v6074, %v6072
        %v6137 = vpack.c.b16 %v6075, %v6073
        %v6138 = vpack.c.b16 %v6078, %v6076
        %v6139 = vpack.c.b16 %v6079, %v6077
        %v6140 = vpack.c.b16 %v6082, %v6080
        %v6141 = vpack.c.b16 %v6083, %v6081
        %v6142 = vpack.c.b16 %v6086, %v6084
        %v6143 = vpack.c.b16 %v6087, %v6085
        %v6144 = vpack.c.b16 %v6090, %v6088
        %v6145 = vpack.c.b16 %v6091, %v6089
        %v6146 = vpack.c.b16 %v6094, %v6092
        %v6147 = vpack.c.b16 %v6095, %v6093
        %v6148 = vpack.c.b16 %v6098, %v6096
        %v6149 = vpack.c.b16 %v6099, %v6097
        %v6150 = vpack.c.b16 %v6102, %v6100
        %v6151 = vpack.c.b16 %v6103, %v6101
        %v6152 = vpack.c.b16 %v6106, %v6104
        %v6153 = vpack.c.b16 %v6107, %v6105
        %v6154 = vpack.c.b16 %v6110, %v6108
        %v6155 = vpack.c.b16 %v6111, %v6109
        %v6156 = vpack.c.b16 %v6114, %v6112
        %v6157 = vpack.c.b16 %v6115, %v6113
        %v6158 = vpack.c.b16 %v6118, %v6116
        %v6159 = vpack.c.b16 %v6119, %v6117
        %v6160 = vpack.c.b16 %v6122, %v6120
        %v6161 = vpack.c.b16 %v6123, %v6121
        %v6162 = vpack.c.b16 %v6126, %v6124
        %v6163 = vpack.c.b16 %v6127, %v6125
        %v6164 = vpack.c.b16 %v6130, %v6128
        %v6165 = vpack.c.b16 %v6131, %v6129
        %v6166 = vpack.c.b16 %v6134, %v6132
        %v6167 = vpack.c.b16 %v6135, %v6133
        %6200 = vmatprep.subr.bf16.mxu0 %v6137
        %6201 = vmatpush1.bf16.msra.mxu0 %v6136
        %6202 = vmatprep.subr.bf16.mxu0 %v6139
        %6203 = vmatpush1.bf16.msra.mxu0 %v6138
        %6204 = vmatprep.subr.bf16.mxu0 %v6141
        %6205 = vmatpush1.bf16.msra.mxu0 %v6140
        %6206 = vmatprep.subr.bf16.mxu0 %v6143
        %6207 = vmatpush1.bf16.msra.mxu0 %v6142
        %6208 = vmatprep.subr.bf16.mxu0 %v6145
        %6209 = vmatpush1.bf16.msra.mxu0 %v6144
        %6210 = vmatprep.subr.bf16.mxu0 %v6147
        %6211 = vmatpush1.bf16.msra.mxu0 %v6146
        %6212 = vmatprep.subr.bf16.mxu0 %v6149
        %6213 = vmatpush1.bf16.msra.mxu0 %v6148
        %6214 = vmatprep.subr.bf16.mxu0 %v6151
        %6215 = vmatpush1.bf16.msra.mxu0 %v6150
        %6216 = vmatprep.subr.bf16.mxu0 %v6153
        %6217 = vmatpush1.bf16.msra.mxu0 %v6152
        %6218 = vmatprep.subr.bf16.mxu0 %v6155
        %6219 = vmatpush1.bf16.msra.mxu0 %v6154
        %6220 = vmatprep.subr.bf16.mxu0 %v6157
        %6221 = vmatpush1.bf16.msra.mxu0 %v6156
        %6222 = vmatprep.subr.bf16.mxu0 %v6159
        %6223 = vmatpush1.bf16.msra.mxu0 %v6158
        %6224 = vmatprep.subr.bf16.mxu0 %v6161
        %6225 = vmatpush1.bf16.msra.mxu0 %v6160
        %6226 = vmatprep.subr.bf16.mxu0 %v6163
        %6227 = vmatpush1.bf16.msra.mxu0 %v6162
        %6228 = vmatprep.subr.bf16.mxu0 %v6165
        %6229 = vmatpush1.bf16.msra.mxu0 %v6164
        %6230 = vmatprep.subr.bf16.mxu0 %v6167
        %6231 = vmatpush1.bf16.msra.mxu0 %v6166
        %6232 = vmatprep.mubr.bf16.mxu0 %v6037
        %6233 = vmatmul.mubr.bf16.gmra.mrb[0].mxu0 %v6034
        %v6234 = vpop.f32.mrb[0].mxu0
        %v6235 = vadd.f32 0.0, %v6234
        %v6236 = vpop.f32.mrb[0].mxu0
        %v6237 = vadd.f32 0.0, %v6236
        %v6238 = vpop.f32.mrb[0].mxu0
        %v6239 = vadd.f32 0.0, %v6238
        %v6240 = vpop.f32.mrb[0].mxu0
        %v6241 = vadd.f32 0.0, %v6240
        %6242 = vdwg.mxu0
        %v6243 = vadd.f32 %v5989, %v6235
        %v6244 = vadd.f32 %v5990, %v6237
        %v6245 = vadd.f32 %v5991, %v6239
        %v6246 = vadd.f32 %v5992, %v6241
        %v6247 = vld [vmem:[#allocation3 + $0x18] sm:$0xff]
        %s6248 = scalar_lea.vmem [#allocation17], 1536
        %v6249 = vld [vmem:[%s6248] sm:$0xff]
        %v6250 = vld [vmem:[%s6248 + $0x8] sm:$0xff]
        %v6251 = vld [vmem:[%s6248 + $0x10] sm:$0xff]
        %v6252 = vld [vmem:[%s6248 + $0x18] sm:$0xff]
        %v6253 = vld [vmem:[%s6248 + $0x20] sm:$0xff]
        %v6254 = vld [vmem:[%s6248 + $0x28] sm:$0xff]
        %v6255 = vld [vmem:[%s6248 + $0x30] sm:$0xff]
        %v6256 = vld [vmem:[%s6248 + $0x38] sm:$0xff]
        %v6257 = vld [vmem:[%s6248 + $0x40] sm:$0xff]
        %v6258 = vld [vmem:[%s6248 + $0x48] sm:$0xff]
        %v6259 = vld [vmem:[%s6248 + $0x50] sm:$0xff]
        %v6260 = vld [vmem:[%s6248 + $0x58] sm:$0xff]
        %v6261 = vld [vmem:[%s6248 + $0x60] sm:$0xff]
        %v6262 = vld [vmem:[%s6248 + $0x68] sm:$0xff]
        %v6263 = vld [vmem:[%s6248 + $0x70] sm:$0xff]
        %v6264 = vld [vmem:[%s6248 + $0x78] sm:$0xff]
        %v6265 = vld [vmem:[%s6248 + $0x80] sm:$0xff]
        %v6266 = vld [vmem:[%s6248 + $0x88] sm:$0xff]
        %v6267 = vld [vmem:[%s6248 + $0x90] sm:$0xff]
        %v6268 = vld [vmem:[%s6248 + $0x98] sm:$0xff]
        %v6269 = vld [vmem:[%s6248 + $0xa0] sm:$0xff]
        %v6270 = vld [vmem:[%s6248 + $0xa8] sm:$0xff]
        %v6271 = vld [vmem:[%s6248 + $0xb0] sm:$0xff]
        %v6272 = vld [vmem:[%s6248 + $0xb8] sm:$0xff]
        %v6273 = vld [vmem:[%s6248 + $0xc0] sm:$0xff]
        %v6274 = vld [vmem:[%s6248 + $0xc8] sm:$0xff]
        %v6275 = vld [vmem:[%s6248 + $0xd0] sm:$0xff]
        %v6276 = vld [vmem:[%s6248 + $0xd8] sm:$0xff]
        %v6277 = vld [vmem:[%s6248 + $0xe0] sm:$0xff]
        %v6278 = vld [vmem:[%s6248 + $0xe8] sm:$0xff]
        %v6279 = vld [vmem:[%s6248 + $0xf0] sm:$0xff]
        %v6280 = vld [vmem:[%s6248 + $0xf8] sm:$0xff]
        %v6282 = vunpack.c.l.b16 %v6247
        %v6283 = vunpack.c.h.b16 %v6247
        %v6284 = vpack.c.b16 %v6282, %v5752
        %v6285 = vpack.c.b16 %v6283, %v5753
        %v6320 = vunpack.c.l.b16 %v6249
        %v6321 = vunpack.c.h.b16 %v6249
        %v6322 = vunpack.c.l.b16 %v6250
        %v6323 = vunpack.c.h.b16 %v6250
        %v6324 = vunpack.c.l.b16 %v6251
        %v6325 = vunpack.c.h.b16 %v6251
        %v6326 = vunpack.c.l.b16 %v6252
        %v6327 = vunpack.c.h.b16 %v6252
        %v6328 = vunpack.c.l.b16 %v6253
        %v6329 = vunpack.c.h.b16 %v6253
        %v6330 = vunpack.c.l.b16 %v6254
        %v6331 = vunpack.c.h.b16 %v6254
        %v6332 = vunpack.c.l.b16 %v6255
        %v6333 = vunpack.c.h.b16 %v6255
        %v6334 = vunpack.c.l.b16 %v6256
        %v6335 = vunpack.c.h.b16 %v6256
        %v6336 = vunpack.c.l.b16 %v6257
        %v6337 = vunpack.c.h.b16 %v6257
        %v6338 = vunpack.c.l.b16 %v6258
        %v6339 = vunpack.c.h.b16 %v6258
        %v6340 = vunpack.c.l.b16 %v6259
        %v6341 = vunpack.c.h.b16 %v6259
        %v6342 = vunpack.c.l.b16 %v6260
        %v6343 = vunpack.c.h.b16 %v6260
        %v6344 = vunpack.c.l.b16 %v6261
        %v6345 = vunpack.c.h.b16 %v6261
        %v6346 = vunpack.c.l.b16 %v6262
        %v6347 = vunpack.c.h.b16 %v6262
        %v6348 = vunpack.c.l.b16 %v6263
        %v6349 = vunpack.c.h.b16 %v6263
        %v6350 = vunpack.c.l.b16 %v6264
        %v6351 = vunpack.c.h.b16 %v6264
        %v6352 = vunpack.c.l.b16 %v6265
        %v6353 = vunpack.c.h.b16 %v6265
        %v6354 = vunpack.c.l.b16 %v6266
        %v6355 = vunpack.c.h.b16 %v6266
        %v6356 = vunpack.c.l.b16 %v6267
        %v6357 = vunpack.c.h.b16 %v6267
        %v6358 = vunpack.c.l.b16 %v6268
        %v6359 = vunpack.c.h.b16 %v6268
        %v6360 = vunpack.c.l.b16 %v6269
        %v6361 = vunpack.c.h.b16 %v6269
        %v6362 = vunpack.c.l.b16 %v6270
        %v6363 = vunpack.c.h.b16 %v6270
        %v6364 = vunpack.c.l.b16 %v6271
        %v6365 = vunpack.c.h.b16 %v6271
        %v6366 = vunpack.c.l.b16 %v6272
        %v6367 = vunpack.c.h.b16 %v6272
        %v6368 = vunpack.c.l.b16 %v6273
        %v6369 = vunpack.c.h.b16 %v6273
        %v6370 = vunpack.c.l.b16 %v6274
        %v6371 = vunpack.c.h.b16 %v6274
        %v6372 = vunpack.c.l.b16 %v6275
        %v6373 = vunpack.c.h.b16 %v6275
        %v6374 = vunpack.c.l.b16 %v6276
        %v6375 = vunpack.c.h.b16 %v6276
        %v6376 = vunpack.c.l.b16 %v6277
        %v6377 = vunpack.c.h.b16 %v6277
        %v6378 = vunpack.c.l.b16 %v6278
        %v6379 = vunpack.c.h.b16 %v6278
        %v6380 = vunpack.c.l.b16 %v6279
        %v6381 = vunpack.c.h.b16 %v6279
        %v6382 = vunpack.c.l.b16 %v6280
        %v6383 = vunpack.c.h.b16 %v6280
        %v6384 = vpack.c.b16 %v6322, %v6320
        %v6385 = vpack.c.b16 %v6323, %v6321
        %v6386 = vpack.c.b16 %v6326, %v6324
        %v6387 = vpack.c.b16 %v6327, %v6325
        %v6388 = vpack.c.b16 %v6330, %v6328
        %v6389 = vpack.c.b16 %v6331, %v6329
        %v6390 = vpack.c.b16 %v6334, %v6332
        %v6391 = vpack.c.b16 %v6335, %v6333
        %v6392 = vpack.c.b16 %v6338, %v6336
        %v6393 = vpack.c.b16 %v6339, %v6337
        %v6394 = vpack.c.b16 %v6342, %v6340
        %v6395 = vpack.c.b16 %v6343, %v6341
        %v6396 = vpack.c.b16 %v6346, %v6344
        %v6397 = vpack.c.b16 %v6347, %v6345
        %v6398 = vpack.c.b16 %v6350, %v6348
        %v6399 = vpack.c.b16 %v6351, %v6349
        %v6400 = vpack.c.b16 %v6354, %v6352
        %v6401 = vpack.c.b16 %v6355, %v6353
        %v6402 = vpack.c.b16 %v6358, %v6356
        %v6403 = vpack.c.b16 %v6359, %v6357
        %v6404 = vpack.c.b16 %v6362, %v6360
        %v6405 = vpack.c.b16 %v6363, %v6361
        %v6406 = vpack.c.b16 %v6366, %v6364
        %v6407 = vpack.c.b16 %v6367, %v6365
        %v6408 = vpack.c.b16 %v6370, %v6368
        %v6409 = vpack.c.b16 %v6371, %v6369
        %v6410 = vpack.c.b16 %v6374, %v6372
        %v6411 = vpack.c.b16 %v6375, %v6373
        %v6412 = vpack.c.b16 %v6378, %v6376
        %v6413 = vpack.c.b16 %v6379, %v6377
        %v6414 = vpack.c.b16 %v6382, %v6380
        %v6415 = vpack.c.b16 %v6383, %v6381
        %6448 = vmatprep.subr.bf16.mxu0 %v6385
        %6449 = vmatpush1.bf16.msra.mxu0 %v6384
        %6450 = vmatprep.subr.bf16.mxu0 %v6387
        %6451 = vmatpush1.bf16.msra.mxu0 %v6386
        %6452 = vmatprep.subr.bf16.mxu0 %v6389
        %6453 = vmatpush1.bf16.msra.mxu0 %v6388
        %6454 = vmatprep.subr.bf16.mxu0 %v6391
        %6455 = vmatpush1.bf16.msra.mxu0 %v6390
        %6456 = vmatprep.subr.bf16.mxu0 %v6393
        %6457 = vmatpush1.bf16.msra.mxu0 %v6392
        %6458 = vmatprep.subr.bf16.mxu0 %v6395
        %6459 = vmatpush1.bf16.msra.mxu0 %v6394
        %6460 = vmatprep.subr.bf16.mxu0 %v6397
        %6461 = vmatpush1.bf16.msra.mxu0 %v6396
        %6462 = vmatprep.subr.bf16.mxu0 %v6399
        %6463 = vmatpush1.bf16.msra.mxu0 %v6398
        %6464 = vmatprep.subr.bf16.mxu0 %v6401
        %6465 = vmatpush1.bf16.msra.mxu0 %v6400
        %6466 = vmatprep.subr.bf16.mxu0 %v6403
        %6467 = vmatpush1.bf16.msra.mxu0 %v6402
        %6468 = vmatprep.subr.bf16.mxu0 %v6405
        %6469 = vmatpush1.bf16.msra.mxu0 %v6404
        %6470 = vmatprep.subr.bf16.mxu0 %v6407
        %6471 = vmatpush1.bf16.msra.mxu0 %v6406
        %6472 = vmatprep.subr.bf16.mxu0 %v6409
        %6473 = vmatpush1.bf16.msra.mxu0 %v6408
        %6474 = vmatprep.subr.bf16.mxu0 %v6411
        %6475 = vmatpush1.bf16.msra.mxu0 %v6410
        %6476 = vmatprep.subr.bf16.mxu0 %v6413
        %6477 = vmatpush1.bf16.msra.mxu0 %v6412
        %6478 = vmatprep.subr.bf16.mxu0 %v6415
        %6479 = vmatpush1.bf16.msra.mxu0 %v6414
        %6480 = vmatprep.mubr.bf16.mxu0 %v6285
        %6481 = vmatmul.mubr.bf16.gmra.mrb[0].mxu0 %v6284
        %v6482 = vpop.f32.mrb[0].mxu0
        %v6483 = vadd.f32 0.0, %v6482
        %v6484 = vpop.f32.mrb[0].mxu0
        %v6485 = vadd.f32 0.0, %v6484
        %v6486 = vpop.f32.mrb[0].mxu0
        %v6487 = vadd.f32 0.0, %v6486
        %v6488 = vpop.f32.mrb[0].mxu0
        %v6489 = vadd.f32 0.0, %v6488
        %6490 = vdwg.mxu0
        %v6491 = vadd.f32 %v6243, %v6483
        %v6492 = vadd.f32 %v6244, %v6485
        %v6493 = vadd.f32 %v6245, %v6487
        %v6494 = vadd.f32 %v6246, %v6489
        %v6495 = vld [vmem:[#allocation3 + $0x10] sm:$0xff]
        %v6496 = vld [vmem:[#allocation3 + $0x18] sm:$0xff]
        %v6497 = vld [vmem:[#allocation3 + $0x20] sm:$0x11]
        %s6498 = scalar_lea.vmem [#allocation17], 1792
        %v6499 = vld [vmem:[%s6498] sm:$0xff]
        %v6500 = vld [vmem:[%s6498 + $0x8] sm:$0xff]
        %v6501 = vld [vmem:[%s6498 + $0x10] sm:$0xff]
        %v6502 = vld [vmem:[%s6498 + $0x18] sm:$0xff]
        %v6503 = vld [vmem:[%s6498 + $0x20] sm:$0xff]
        %v6504 = vld [vmem:[%s6498 + $0x28] sm:$0xff]
        %v6505 = vld [vmem:[%s6498 + $0x30] sm:$0xff]
        %v6506 = vld [vmem:[%s6498 + $0x38] sm:$0xff]
        %v6507 = vld [vmem:[%s6498 + $0x40] sm:$0xff]
        %v6508 = vld [vmem:[%s6498 + $0x48] sm:$0xff]
        %v6509 = vld [vmem:[%s6498 + $0x50] sm:$0xff]
        %v6510 = vld [vmem:[%s6498 + $0x58] sm:$0xff]
        %v6511 = vld [vmem:[%s6498 + $0x60] sm:$0xff]
        %v6512 = vld [vmem:[%s6498 + $0x68] sm:$0xff]
        %v6513 = vld [vmem:[%s6498 + $0x70] sm:$0xff]
        %v6514 = vld [vmem:[%s6498 + $0x78] sm:$0xff]
        %v6515 = vld [vmem:[%s6498 + $0x80] sm:$0xff]
        %v6516 = vld [vmem:[%s6498 + $0x88] sm:$0xff]
        %v6517 = vld [vmem:[%s6498 + $0x90] sm:$0xff]
        %v6518 = vld [vmem:[%s6498 + $0x98] sm:$0xff]
        %v6519 = vld [vmem:[%s6498 + $0xa0] sm:$0xff]
        %v6520 = vld [vmem:[%s6498 + $0xa8] sm:$0xff]
        %v6521 = vld [vmem:[%s6498 + $0xb0] sm:$0xff]
        %v6522 = vld [vmem:[%s6498 + $0xb8] sm:$0xff]
        %v6523 = vld [vmem:[%s6498 + $0xc0] sm:$0xff]
        %v6524 = vld [vmem:[%s6498 + $0xc8] sm:$0xff]
        %v6525 = vld [vmem:[%s6498 + $0xd0] sm:$0xff]
        %v6526 = vld [vmem:[%s6498 + $0xd8] sm:$0xff]
        %v6527 = vld [vmem:[%s6498 + $0xe0] sm:$0xff]
        %v6528 = vld [vmem:[%s6498 + $0xe8] sm:$0xff]
        %v6529 = vld [vmem:[%s6498 + $0xf0] sm:$0xff]
        %v6530 = vld [vmem:[%s6498 + $0xf8] sm:$0xff]
        %v6534 = vunpack.c.l.b16 %v6495
        %v6535 = vunpack.c.h.b16 %v6495
        %v6536 = vunpack.c.l.b16 %v6496
        %v6537 = vunpack.c.h.b16 %v6496
        %v6538 = vunpack.c.l.b16 %v6497
        %v6539 = vunpack.c.h.b16 %v6497
        %v6540 = vpack.c.b16 %v6536, %v6534
        %v6541 = vpack.c.b16 %v6537, %v6535
        %v6542 = vpack.c.b16 %v6538, %v6538
        %v6543 = vpack.c.b16 %v6539, %v6539
        %v6545 = vshrl.u32 %v6540, 16
        %v6547 = vshll.u32 %v6540, 16
        %v6549 = vrot.slane %v6547, 1
        %v6550 = vor.u32 %v6545, %v6549
        %v6552 = vshll.u32 %v6542, 16
        %v6554 = vrot.slane %v6552, 1
        %v6555 = vsel %vm668, %v6550, %v6554
        %v6557 = vshrl.u32 %v6541, 16
        %v6559 = vshll.u32 %v6541, 16
        %v6561 = vrot.slane %v6559, 1
        %v6562 = vor.u32 %v6557, %v6561
        %v6564 = vshll.u32 %v6543, 16
        %v6566 = vrot.slane %v6564, 1
        %v6567 = vsel %vm668, %v6562, %v6566
        %v6602 = vunpack.c.l.b16 %v6499
        %v6603 = vunpack.c.h.b16 %v6499
        %v6604 = vunpack.c.l.b16 %v6500
        %v6605 = vunpack.c.h.b16 %v6500
        %v6606 = vunpack.c.l.b16 %v6501
        %v6607 = vunpack.c.h.b16 %v6501
        %v6608 = vunpack.c.l.b16 %v6502
        %v6609 = vunpack.c.h.b16 %v6502
        %v6610 = vunpack.c.l.b16 %v6503
        %v6611 = vunpack.c.h.b16 %v6503
        %v6612 = vunpack.c.l.b16 %v6504
        %v6613 = vunpack.c.h.b16 %v6504
        %v6614 = vunpack.c.l.b16 %v6505
        %v6615 = vunpack.c.h.b16 %v6505
        %v6616 = vunpack.c.l.b16 %v6506
        %v6617 = vunpack.c.h.b16 %v6506
        %v6618 = vunpack.c.l.b16 %v6507
        %v6619 = vunpack.c.h.b16 %v6507
        %v6620 = vunpack.c.l.b16 %v6508
        %v6621 = vunpack.c.h.b16 %v6508
        %v6622 = vunpack.c.l.b16 %v6509
        %v6623 = vunpack.c.h.b16 %v6509
        %v6624 = vunpack.c.l.b16 %v6510
        %v6625 = vunpack.c.h.b16 %v6510
        %v6626 = vunpack.c.l.b16 %v6511
        %v6627 = vunpack.c.h.b16 %v6511
        %v6628 = vunpack.c.l.b16 %v6512
        %v6629 = vunpack.c.h.b16 %v6512
        %v6630 = vunpack.c.l.b16 %v6513
        %v6631 = vunpack.c.h.b16 %v6513
        %v6632 = vunpack.c.l.b16 %v6514
        %v6633 = vunpack.c.h.b16 %v6514
        %v6634 = vunpack.c.l.b16 %v6515
        %v6635 = vunpack.c.h.b16 %v6515
        %v6636 = vunpack.c.l.b16 %v6516
        %v6637 = vunpack.c.h.b16 %v6516
        %v6638 = vunpack.c.l.b16 %v6517
        %v6639 = vunpack.c.h.b16 %v6517
        %v6640 = vunpack.c.l.b16 %v6518
        %v6641 = vunpack.c.h.b16 %v6518
        %v6642 = vunpack.c.l.b16 %v6519
        %v6643 = vunpack.c.h.b16 %v6519
        %v6644 = vunpack.c.l.b16 %v6520
        %v6645 = vunpack.c.h.b16 %v6520
        %v6646 = vunpack.c.l.b16 %v6521
        %v6647 = vunpack.c.h.b16 %v6521
        %v6648 = vunpack.c.l.b16 %v6522
        %v6649 = vunpack.c.h.b16 %v6522
        %v6650 = vunpack.c.l.b16 %v6523
        %v6651 = vunpack.c.h.b16 %v6523
        %v6652 = vunpack.c.l.b16 %v6524
        %v6653 = vunpack.c.h.b16 %v6524
        %v6654 = vunpack.c.l.b16 %v6525
        %v6655 = vunpack.c.h.b16 %v6525
        %v6656 = vunpack.c.l.b16 %v6526
        %v6657 = vunpack.c.h.b16 %v6526
        %v6658 = vunpack.c.l.b16 %v6527
        %v6659 = vunpack.c.h.b16 %v6527
        %v6660 = vunpack.c.l.b16 %v6528
        %v6661 = vunpack.c.h.b16 %v6528
        %v6662 = vunpack.c.l.b16 %v6529
        %v6663 = vunpack.c.h.b16 %v6529
        %v6664 = vunpack.c.l.b16 %v6530
        %v6665 = vunpack.c.h.b16 %v6530
        %v6666 = vpack.c.b16 %v6604, %v6602
        %v6667 = vpack.c.b16 %v6605, %v6603
        %v6668 = vpack.c.b16 %v6608, %v6606
        %v6669 = vpack.c.b16 %v6609, %v6607
        %v6670 = vpack.c.b16 %v6612, %v6610
        %v6671 = vpack.c.b16 %v6613, %v6611
        %v6672 = vpack.c.b16 %v6616, %v6614
        %v6673 = vpack.c.b16 %v6617, %v6615
        %v6674 = vpack.c.b16 %v6620, %v6618
        %v6675 = vpack.c.b16 %v6621, %v6619
        %v6676 = vpack.c.b16 %v6624, %v6622
        %v6677 = vpack.c.b16 %v6625, %v6623
        %v6678 = vpack.c.b16 %v6628, %v6626
        %v6679 = vpack.c.b16 %v6629, %v6627
        %v6680 = vpack.c.b16 %v6632, %v6630
        %v6681 = vpack.c.b16 %v6633, %v6631
        %v6682 = vpack.c.b16 %v6636, %v6634
        %v6683 = vpack.c.b16 %v6637, %v6635
        %v6684 = vpack.c.b16 %v6640, %v6638
        %v6685 = vpack.c.b16 %v6641, %v6639
        %v6686 = vpack.c.b16 %v6644, %v6642
        %v6687 = vpack.c.b16 %v6645, %v6643
        %v6688 = vpack.c.b16 %v6648, %v6646
        %v6689 = vpack.c.b16 %v6649, %v6647
        %v6690 = vpack.c.b16 %v6652, %v6650
        %v6691 = vpack.c.b16 %v6653, %v6651
        %v6692 = vpack.c.b16 %v6656, %v6654
        %v6693 = vpack.c.b16 %v6657, %v6655
        %v6694 = vpack.c.b16 %v6660, %v6658
        %v6695 = vpack.c.b16 %v6661, %v6659
        %v6696 = vpack.c.b16 %v6664, %v6662
        %v6697 = vpack.c.b16 %v6665, %v6663
        %6730 = vmatprep.subr.bf16.mxu0 %v6667
        %6731 = vmatpush1.bf16.msra.mxu0 %v6666
        %6732 = vmatprep.subr.bf16.mxu0 %v6669
        %6733 = vmatpush1.bf16.msra.mxu0 %v6668
        %6734 = vmatprep.subr.bf16.mxu0 %v6671
        %6735 = vmatpush1.bf16.msra.mxu0 %v6670
        %6736 = vmatprep.subr.bf16.mxu0 %v6673
        %6737 = vmatpush1.bf16.msra.mxu0 %v6672
        %6738 = vmatprep.subr.bf16.mxu0 %v6675
        %6739 = vmatpush1.bf16.msra.mxu0 %v6674
        %6740 = vmatprep.subr.bf16.mxu0 %v6677
        %6741 = vmatpush1.bf16.msra.mxu0 %v6676
        %6742 = vmatprep.subr.bf16.mxu0 %v6679
        %6743 = vmatpush1.bf16.msra.mxu0 %v6678
        %6744 = vmatprep.subr.bf16.mxu0 %v6681
        %6745 = vmatpush1.bf16.msra.mxu0 %v6680
        %6746 = vmatprep.subr.bf16.mxu0 %v6683
        %6747 = vmatpush1.bf16.msra.mxu0 %v6682
        %6748 = vmatprep.subr.bf16.mxu0 %v6685
        %6749 = vmatpush1.bf16.msra.mxu0 %v6684
        %6750 = vmatprep.subr.bf16.mxu0 %v6687
        %6751 = vmatpush1.bf16.msra.mxu0 %v6686
        %6752 = vmatprep.subr.bf16.mxu0 %v6689
        %6753 = vmatpush1.bf16.msra.mxu0 %v6688
        %6754 = vmatprep.subr.bf16.mxu0 %v6691
        %6755 = vmatpush1.bf16.msra.mxu0 %v6690
        %6756 = vmatprep.subr.bf16.mxu0 %v6693
        %6757 = vmatpush1.bf16.msra.mxu0 %v6692
        %6758 = vmatprep.subr.bf16.mxu0 %v6695
        %6759 = vmatpush1.bf16.msra.mxu0 %v6694
        %6760 = vmatprep.subr.bf16.mxu0 %v6697
        %6761 = vmatpush1.bf16.msra.mxu0 %v6696
        %6762 = vmatprep.mubr.bf16.mxu0 %v6567
        %6763 = vmatmul.mubr.bf16.gmra.mrb[0].mxu0 %v6555
        %v6764 = vpop.f32.mrb[0].mxu0
        %v6765 = vadd.f32 0.0, %v6764
        %v6766 = vpop.f32.mrb[0].mxu0
        %v6767 = vadd.f32 0.0, %v6766
        %v6768 = vpop.f32.mrb[0].mxu0
        %v6769 = vadd.f32 0.0, %v6768
        %v6770 = vpop.f32.mrb[0].mxu0
        %v6771 = vadd.f32 0.0, %v6770
        %6772 = vdwg.mxu0
        %v6773 = vadd.f32 %v6491, %v6765
        %v6774 = vadd.f32 %v6492, %v6767
        %v6775 = vadd.f32 %v6493, %v6769
        %v6776 = vadd.f32 %v6494, %v6771
        %v6777 = vld [vmem:[#allocation3 + $0x10] sm:$0xee]
        %s6778 = scalar_lea.vmem [#allocation17], 2048
        %v6779 = vld [vmem:[%s6778] sm:$0xff]
        %v6780 = vld [vmem:[%s6778 + $0x8] sm:$0xff]
        %v6781 = vld [vmem:[%s6778 + $0x10] sm:$0xff]
        %v6782 = vld [vmem:[%s6778 + $0x18] sm:$0xff]
        %v6783 = vld [vmem:[%s6778 + $0x20] sm:$0xff]
        %v6784 = vld [vmem:[%s6778 + $0x28] sm:$0xff]
        %v6785 = vld [vmem:[%s6778 + $0x30] sm:$0xff]
        %v6786 = vld [vmem:[%s6778 + $0x38] sm:$0xff]
        %v6787 = vld [vmem:[%s6778 + $0x40] sm:$0xff]
        %v6788 = vld [vmem:[%s6778 + $0x48] sm:$0xff]
        %v6789 = vld [vmem:[%s6778 + $0x50] sm:$0xff]
        %v6790 = vld [vmem:[%s6778 + $0x58] sm:$0xff]
        %v6791 = vld [vmem:[%s6778 + $0x60] sm:$0xff]
        %v6792 = vld [vmem:[%s6778 + $0x68] sm:$0xff]
        %v6793 = vld [vmem:[%s6778 + $0x70] sm:$0xff]
        %v6794 = vld [vmem:[%s6778 + $0x78] sm:$0xff]
        %v6795 = vld [vmem:[%s6778 + $0x80] sm:$0xff]
        %v6796 = vld [vmem:[%s6778 + $0x88] sm:$0xff]
        %v6797 = vld [vmem:[%s6778 + $0x90] sm:$0xff]
        %v6798 = vld [vmem:[%s6778 + $0x98] sm:$0xff]
        %v6799 = vld [vmem:[%s6778 + $0xa0] sm:$0xff]
        %v6800 = vld [vmem:[%s6778 + $0xa8] sm:$0xff]
        %v6801 = vld [vmem:[%s6778 + $0xb0] sm:$0xff]
        %v6802 = vld [vmem:[%s6778 + $0xb8] sm:$0xff]
        %v6803 = vld [vmem:[%s6778 + $0xc0] sm:$0xff]
        %v6804 = vld [vmem:[%s6778 + $0xc8] sm:$0xff]
        %v6805 = vld [vmem:[%s6778 + $0xd0] sm:$0xff]
        %v6806 = vld [vmem:[%s6778 + $0xd8] sm:$0xff]
        %v6807 = vld [vmem:[%s6778 + $0xe0] sm:$0xff]
        %v6808 = vld [vmem:[%s6778 + $0xe8] sm:$0xff]
        %v6809 = vld [vmem:[%s6778 + $0xf0] sm:$0xff]
        %v6810 = vld [vmem:[%s6778 + $0xf8] sm:$0xff]
        %v6812 = vunpack.c.l.b16 %v6777
        %v6813 = vunpack.c.h.b16 %v6777
        %v6814 = vpack.c.b16 %v6536, %v6812
        %v6815 = vpack.c.b16 %v6537, %v6813
        %v6816 = vrot.slane %v6814, 1
        %v6817 = vrot.slane %v6542, 1
        %v6818 = vsel %vm950, %v6816, %v6817
        %v6819 = vrot.slane %v6815, 1
        %v6820 = vrot.slane %v6543, 1
        %v6821 = vsel %vm950, %v6819, %v6820
        %v6856 = vunpack.c.l.b16 %v6779
        %v6857 = vunpack.c.h.b16 %v6779
        %v6858 = vunpack.c.l.b16 %v6780
        %v6859 = vunpack.c.h.b16 %v6780
        %v6860 = vunpack.c.l.b16 %v6781
        %v6861 = vunpack.c.h.b16 %v6781
        %v6862 = vunpack.c.l.b16 %v6782
        %v6863 = vunpack.c.h.b16 %v6782
        %v6864 = vunpack.c.l.b16 %v6783
        %v6865 = vunpack.c.h.b16 %v6783
        %v6866 = vunpack.c.l.b16 %v6784
        %v6867 = vunpack.c.h.b16 %v6784
        %v6868 = vunpack.c.l.b16 %v6785
        %v6869 = vunpack.c.h.b16 %v6785
        %v6870 = vunpack.c.l.b16 %v6786
        %v6871 = vunpack.c.h.b16 %v6786
        %v6872 = vunpack.c.l.b16 %v6787
        %v6873 = vunpack.c.h.b16 %v6787
        %v6874 = vunpack.c.l.b16 %v6788
        %v6875 = vunpack.c.h.b16 %v6788
        %v6876 = vunpack.c.l.b16 %v6789
        %v6877 = vunpack.c.h.b16 %v6789
        %v6878 = vunpack.c.l.b16 %v6790
        %v6879 = vunpack.c.h.b16 %v6790
        %v6880 = vunpack.c.l.b16 %v6791
        %v6881 = vunpack.c.h.b16 %v6791
        %v6882 = vunpack.c.l.b16 %v6792
        %v6883 = vunpack.c.h.b16 %v6792
        %v6884 = vunpack.c.l.b16 %v6793
        %v6885 = vunpack.c.h.b16 %v6793
        %v6886 = vunpack.c.l.b16 %v6794
        %v6887 = vunpack.c.h.b16 %v6794
        %v6888 = vunpack.c.l.b16 %v6795
        %v6889 = vunpack.c.h.b16 %v6795
        %v6890 = vunpack.c.l.b16 %v6796
        %v6891 = vunpack.c.h.b16 %v6796
        %v6892 = vunpack.c.l.b16 %v6797
        %v6893 = vunpack.c.h.b16 %v6797
        %v6894 = vunpack.c.l.b16 %v6798
        %v6895 = vunpack.c.h.b16 %v6798
        %v6896 = vunpack.c.l.b16 %v6799
        %v6897 = vunpack.c.h.b16 %v6799
        %v6898 = vunpack.c.l.b16 %v6800
        %v6899 = vunpack.c.h.b16 %v6800
        %v6900 = vunpack.c.l.b16 %v6801
        %v6901 = vunpack.c.h.b16 %v6801
        %v6902 = vunpack.c.l.b16 %v6802
        %v6903 = vunpack.c.h.b16 %v6802
        %v6904 = vunpack.c.l.b16 %v6803
        %v6905 = vunpack.c.h.b16 %v6803
        %v6906 = vunpack.c.l.b16 %v6804
        %v6907 = vunpack.c.h.b16 %v6804
        %v6908 = vunpack.c.l.b16 %v6805
        %v6909 = vunpack.c.h.b16 %v6805
        %v6910 = vunpack.c.l.b16 %v6806
        %v6911 = vunpack.c.h.b16 %v6806
        %v6912 = vunpack.c.l.b16 %v6807
        %v6913 = vunpack.c.h.b16 %v6807
        %v6914 = vunpack.c.l.b16 %v6808
        %v6915 = vunpack.c.h.b16 %v6808
        %v6916 = vunpack.c.l.b16 %v6809
        %v6917 = vunpack.c.h.b16 %v6809
        %v6918 = vunpack.c.l.b16 %v6810
        %v6919 = vunpack.c.h.b16 %v6810
        %v6920 = vpack.c.b16 %v6858, %v6856
        %v6921 = vpack.c.b16 %v6859, %v6857
        %v6922 = vpack.c.b16 %v6862, %v6860
        %v6923 = vpack.c.b16 %v6863, %v6861
        %v6924 = vpack.c.b16 %v6866, %v6864
        %v6925 = vpack.c.b16 %v6867, %v6865
        %v6926 = vpack.c.b16 %v6870, %v6868
        %v6927 = vpack.c.b16 %v6871, %v6869
        %v6928 = vpack.c.b16 %v6874, %v6872
        %v6929 = vpack.c.b16 %v6875, %v6873
        %v6930 = vpack.c.b16 %v6878, %v6876
        %v6931 = vpack.c.b16 %v6879, %v6877
        %v6932 = vpack.c.b16 %v6882, %v6880
        %v6933 = vpack.c.b16 %v6883, %v6881
        %v6934 = vpack.c.b16 %v6886, %v6884
        %v6935 = vpack.c.b16 %v6887, %v6885
        %v6936 = vpack.c.b16 %v6890, %v6888
        %v6937 = vpack.c.b16 %v6891, %v6889
        %v6938 = vpack.c.b16 %v6894, %v6892
        %v6939 = vpack.c.b16 %v6895, %v6893
        %v6940 = vpack.c.b16 %v6898, %v6896
        %v6941 = vpack.c.b16 %v6899, %v6897
        %v6942 = vpack.c.b16 %v6902, %v6900
        %v6943 = vpack.c.b16 %v6903, %v6901
        %v6944 = vpack.c.b16 %v6906, %v6904
        %v6945 = vpack.c.b16 %v6907, %v6905
        %v6946 = vpack.c.b16 %v6910, %v6908
        %v6947 = vpack.c.b16 %v6911, %v6909
        %v6948 = vpack.c.b16 %v6914, %v6912
        %v6949 = vpack.c.b16 %v6915, %v6913
        %v6950 = vpack.c.b16 %v6918, %v6916
        %v6951 = vpack.c.b16 %v6919, %v6917
        %6984 = vmatprep.subr.bf16.mxu0 %v6921
        %6985 = vmatpush1.bf16.msra.mxu0 %v6920
        %6986 = vmatprep.subr.bf16.mxu0 %v6923
        %6987 = vmatpush1.bf16.msra.mxu0 %v6922
        %6988 = vmatprep.subr.bf16.mxu0 %v6925
        %6989 = vmatpush1.bf16.msra.mxu0 %v6924
        %6990 = vmatprep.subr.bf16.mxu0 %v6927
        %6991 = vmatpush1.bf16.msra.mxu0 %v6926
        %6992 = vmatprep.subr.bf16.mxu0 %v6929
        %6993 = vmatpush1.bf16.msra.mxu0 %v6928
        %6994 = vmatprep.subr.bf16.mxu0 %v6931
        %6995 = vmatpush1.bf16.msra.mxu0 %v6930
        %6996 = vmatprep.subr.bf16.mxu0 %v6933
        %6997 = vmatpush1.bf16.msra.mxu0 %v6932
        %6998 = vmatprep.subr.bf16.mxu0 %v6935
        %6999 = vmatpush1.bf16.msra.mxu0 %v6934
        %7000 = vmatprep.subr.bf16.mxu0 %v6937
        %7001 = vmatpush1.bf16.msra.mxu0 %v6936
        %7002 = vmatprep.subr.bf16.mxu0 %v6939
        %7003 = vmatpush1.bf16.msra.mxu0 %v6938
        %7004 = vmatprep.subr.bf16.mxu0 %v6941
        %7005 = vmatpush1.bf16.msra.mxu0 %v6940
        %7006 = vmatprep.subr.bf16.mxu0 %v6943
        %7007 = vmatpush1.bf16.msra.mxu0 %v6942
        %7008 = vmatprep.subr.bf16.mxu0 %v6945
        %7009 = vmatpush1.bf16.msra.mxu0 %v6944
        %7010 = vmatprep.subr.bf16.mxu0 %v6947
        %7011 = vmatpush1.bf16.msra.mxu0 %v6946
        %7012 = vmatprep.subr.bf16.mxu0 %v6949
        %7013 = vmatpush1.bf16.msra.mxu0 %v6948
        %7014 = vmatprep.subr.bf16.mxu0 %v6951
        %7015 = vmatpush1.bf16.msra.mxu0 %v6950
        %7016 = vmatprep.mubr.bf16.mxu0 %v6821
        %7017 = vmatmul.mubr.bf16.gmra.mrb[0].mxu0 %v6818
        %v7018 = vpop.f32.mrb[0].mxu0
        %v7019 = vadd.f32 0.0, %v7018
        %v7020 = vpop.f32.mrb[0].mxu0
        %v7021 = vadd.f32 0.0, %v7020
        %v7022 = vpop.f32.mrb[0].mxu0
        %v7023 = vadd.f32 0.0, %v7022
        %v7024 = vpop.f32.mrb[0].mxu0
        %v7025 = vadd.f32 0.0, %v7024
        %7026 = vdwg.mxu0
        %v7027 = vadd.f32 %v6773, %v7019
        %v7028 = vadd.f32 %v6774, %v7021
        %v7029 = vadd.f32 %v6775, %v7023
        %v7030 = vadd.f32 %v6776, %v7025
        %v7031 = vld [vmem:[#allocation19] sm:$0x3]
        %v7033 = vlaneseq
        %v7034 = vshrl.u32 %v7033, 7
        %v7035 = vsub.s32 0, %v7034
        %v7036 = vrot.slane %v7031, %v7035
        %v7037 = vlaneseq
        %v7038 = vshrl.u32 %v7037, 7
        %v7039 = vsub.s32 1, %v7038
        %v7040 = vrot.slane %v7031, %v7039
        %v7043 = vadd.f32 %v7027, %v7036
        %v7044 = vadd.f32 %v7028, %v7040
        %v7045 = vadd.f32 %v7029, %v7036
        %v7046 = vadd.f32 %v7030, %v7040
        %v7047 = vmul.f32 %v7043, 0.2
        %v7048 = vmul.f32 %v7044, 0.2
        %v7049 = vmul.f32 %v7045, 0.2
        %v7050 = vmul.f32 %v7046, 0.2
        %v7051 = vmax.f32 %v7043, %v7047
        %v7052 = vmax.f32 %v7044, %v7048
        %v7053 = vmax.f32 %v7045, %v7049
        %v7054 = vmax.f32 %v7046, %v7050
        %v7055 = vld [vmem:[#allocation8] sm:$0xff]
        %v7056 = vld [vmem:[#allocation8 + $0x8] sm:$0xff]
        %7058 = vset.pattern.permute.xlu0 0
        %7059 = vperm.xlu0 %7058, %v7055
        %v7060 = vpop.permute.xlu0 %7059
        %7063 = vset.pattern.permute.xlu0 0
        %7064 = vperm.xlu0 %7063, %v7056
        %v7065 = vpop.permute.xlu0 %7064
        %v7067 = vmul.f32 %v7051, %v7060
        %v7068 = vmul.f32 %v7052, %v7060
        %v7069 = vmul.f32 %v7053, %v7065
        %v7070 = vmul.f32 %v7054, %v7065
        %v7071 = vpack.c.bf16 %v7069, %v7067
        %v7072 = vpack.c.bf16 %v7070, %v7068
        %v7075 = vunpack.c.l.b16 %v7071
        %v7076 = vunpack.c.l.b16 %v7072
        %v7077 = vunpack.c.h.b16 %v7071
        %v7078 = vunpack.c.h.b16 %v7072
        %v7079 = vpack.c.b16 %v7076, %v7075
        %v7080 = vpack.c.b16 %v7078, %v7077
        %v7082 = vshrl.u32 %v7079, 16
        %v7084 = vrot.slane %v7082, 7
        %v7085 = vshll.u32 %v7079, 16
        %v7087 = vor.u32 %v7084, %v7085
        %v7088 = vrot.slane %v7084, 4
        %v7090 = vshrl.u32 %v7080, 16
        %v7092 = vrot.slane %v7090, 7
        %v7093 = vshll.u32 %v7080, 16
        %v7095 = vor.u32 %v7092, %v7093
        %v7096 = vsel %vm2072, %v7088, %v7095
        %v7097 = vrot.slane %v7092, 4
        %v7101 = vld [vmem:[#allocation2 + $0x8] sm:$0xff]
        %v7102 = vsel %vm2099, %v7087, %v7101
        %7103 = vst [vmem:[#allocation2 + $0x8] sm:$0xff] %v7102
        %7104 = vst [vmem:[#allocation2 + $0x10] sm:$0xff] %v7096
        %v7105 = vld [vmem:[#allocation2 + $0x18] sm:$0x11]
        %v7106 = vsel %vm2109, %v7097, %v7105
        %7107 = vst [vmem:[#allocation2 + $0x18] sm:$0x11] %v7106
        %v7108 = vld [vmem:[#allocation2] sm:$0xff]
        %v7109 = vld [vmem:[#allocation2 + $0x8] sm:$0xff]
        %v7110 = vld [vmem:[#allocation20] sm:$0xff]
        %v7111 = vld [vmem:[#allocation20 + $0x8] sm:$0xff]
        %v7112 = vld [vmem:[#allocation20 + $0x10] sm:$0xff]
        %v7113 = vld [vmem:[#allocation20 + $0x18] sm:$0xff]
        %v7114 = vld [vmem:[#allocation20 + $0x20] sm:$0xff]
        %v7115 = vld [vmem:[#allocation20 + $0x28] sm:$0xff]
        %v7116 = vld [vmem:[#allocation20 + $0x30] sm:$0xff]
        %v7117 = vld [vmem:[#allocation20 + $0x38] sm:$0xff]
        %v7118 = vld [vmem:[#allocation20 + $0x40] sm:$0xff]
        %v7119 = vld [vmem:[#allocation20 + $0x48] sm:$0xff]
        %v7120 = vld [vmem:[#allocation20 + $0x50] sm:$0xff]
        %v7121 = vld [vmem:[#allocation20 + $0x58] sm:$0xff]
        %v7122 = vld [vmem:[#allocation20 + $0x60] sm:$0xff]
        %v7123 = vld [vmem:[#allocation20 + $0x68] sm:$0xff]
        %v7124 = vld [vmem:[#allocation20 + $0x70] sm:$0xff]
        %v7125 = vld [vmem:[#allocation20 + $0x78] sm:$0xff]
        %v7126 = vld [vmem:[#allocation20 + $0x80] sm:$0xff]
        %v7127 = vld [vmem:[#allocation20 + $0x88] sm:$0xff]
        %v7128 = vld [vmem:[#allocation20 + $0x90] sm:$0xff]
        %v7129 = vld [vmem:[#allocation20 + $0x98] sm:$0xff]
        %v7130 = vld [vmem:[#allocation20 + $0xa0] sm:$0xff]
        %v7131 = vld [vmem:[#allocation20 + $0xa8] sm:$0xff]
        %v7132 = vld [vmem:[#allocation20 + $0xb0] sm:$0xff]
        %v7133 = vld [vmem:[#allocation20 + $0xb8] sm:$0xff]
        %v7134 = vld [vmem:[#allocation20 + $0xc0] sm:$0xff]
        %v7135 = vld [vmem:[#allocation20 + $0xc8] sm:$0xff]
        %v7136 = vld [vmem:[#allocation20 + $0xd0] sm:$0xff]
        %v7137 = vld [vmem:[#allocation20 + $0xd8] sm:$0xff]
        %v7138 = vld [vmem:[#allocation20 + $0xe0] sm:$0xff]
        %v7139 = vld [vmem:[#allocation20 + $0xe8] sm:$0xff]
        %v7140 = vld [vmem:[#allocation20 + $0xf0] sm:$0xff]
        %v7141 = vld [vmem:[#allocation20 + $0xf8] sm:$0xff]
        %v7142 = vld [vmem:[#allocation2 + $0x10] sm:$0x11]
        %s7143 = scalar_lea.vmem [#allocation20], 256
        %v7144 = vld [vmem:[%s7143] sm:$0xff]
        %v7145 = vld [vmem:[%s7143 + $0x8] sm:$0xff]
        %v7146 = vld [vmem:[%s7143 + $0x10] sm:$0xff]
        %v7147 = vld [vmem:[%s7143 + $0x18] sm:$0xff]
        %v7148 = vld [vmem:[%s7143 + $0x20] sm:$0xff]
        %v7149 = vld [vmem:[%s7143 + $0x28] sm:$0xff]
        %v7150 = vld [vmem:[%s7143 + $0x30] sm:$0xff]
        %v7151 = vld [vmem:[%s7143 + $0x38] sm:$0xff]
        %v7152 = vld [vmem:[%s7143 + $0x40] sm:$0xff]
        %v7153 = vld [vmem:[%s7143 + $0x48] sm:$0xff]
        %v7154 = vld [vmem:[%s7143 + $0x50] sm:$0xff]
        %v7155 = vld [vmem:[%s7143 + $0x58] sm:$0xff]
        %v7156 = vld [vmem:[%s7143 + $0x60] sm:$0xff]
        %v7157 = vld [vmem:[%s7143 + $0x68] sm:$0xff]
        %v7158 = vld [vmem:[%s7143 + $0x70] sm:$0xff]
        %v7159 = vld [vmem:[%s7143 + $0x78] sm:$0xff]
        %v7160 = vld [vmem:[%s7143 + $0x80] sm:$0xff]
        %v7161 = vld [vmem:[%s7143 + $0x88] sm:$0xff]
        %v7162 = vld [vmem:[%s7143 + $0x90] sm:$0xff]
        %v7163 = vld [vmem:[%s7143 + $0x98] sm:$0xff]
        %v7164 = vld [vmem:[%s7143 + $0xa0] sm:$0xff]
        %v7165 = vld [vmem:[%s7143 + $0xa8] sm:$0xff]
        %v7166 = vld [vmem:[%s7143 + $0xb0] sm:$0xff]
        %v7167 = vld [vmem:[%s7143 + $0xb8] sm:$0xff]
        %v7168 = vld [vmem:[%s7143 + $0xc0] sm:$0xff]
        %v7169 = vld [vmem:[%s7143 + $0xc8] sm:$0xff]
        %v7170 = vld [vmem:[%s7143 + $0xd0] sm:$0xff]
        %v7171 = vld [vmem:[%s7143 + $0xd8] sm:$0xff]
        %v7172 = vld [vmem:[%s7143 + $0xe0] sm:$0xff]
        %v7173 = vld [vmem:[%s7143 + $0xe8] sm:$0xff]
        %v7174 = vld [vmem:[%s7143 + $0xf0] sm:$0xff]
        %v7175 = vld [vmem:[%s7143 + $0xf8] sm:$0xff]
        %v7179 = vunpack.c.l.b16 %v7108
        %v7180 = vunpack.c.h.b16 %v7108
        %v7181 = vunpack.c.l.b16 %v7109
        %v7182 = vunpack.c.h.b16 %v7109
        %v7183 = vunpack.c.l.b16 %v7142
        %v7184 = vunpack.c.h.b16 %v7142
        %v7185 = vpack.c.b16 %v7181, %v7179
        %v7186 = vpack.c.b16 %v7182, %v7180
        %v7187 = vpack.c.b16 %v7183, %v7183
        %v7188 = vpack.c.b16 %v7184, %v7184
        %v7190 = vshrl.u32 %v7185, 16
        %v7192 = vshll.u32 %v7185, 16
        %v7194 = vrot.slane %v7192, 1
        %v7195 = vor.u32 %v7190, %v7194
        %v7197 = vshll.u32 %v7187, 16
        %v7199 = vrot.slane %v7197, 1
        %v7200 = vsel %vm668, %v7195, %v7199
        %v7202 = vshrl.u32 %v7186, 16
        %v7204 = vshll.u32 %v7186, 16
        %v7206 = vrot.slane %v7204, 1
        %v7207 = vor.u32 %v7202, %v7206
        %v7209 = vshll.u32 %v7188, 16
        %v7211 = vrot.slane %v7209, 1
        %v7212 = vsel %vm668, %v7207, %v7211
        %v7247 = vunpack.c.l.b16 %v7144
        %v7248 = vunpack.c.h.b16 %v7144
        %v7249 = vunpack.c.l.b16 %v7145
        %v7250 = vunpack.c.h.b16 %v7145
        %v7251 = vunpack.c.l.b16 %v7146
        %v7252 = vunpack.c.h.b16 %v7146
        %v7253 = vunpack.c.l.b16 %v7147
        %v7254 = vunpack.c.h.b16 %v7147
        %v7255 = vunpack.c.l.b16 %v7148
        %v7256 = vunpack.c.h.b16 %v7148
        %v7257 = vunpack.c.l.b16 %v7149
        %v7258 = vunpack.c.h.b16 %v7149
        %v7259 = vunpack.c.l.b16 %v7150
        %v7260 = vunpack.c.h.b16 %v7150
        %v7261 = vunpack.c.l.b16 %v7151
        %v7262 = vunpack.c.h.b16 %v7151
        %v7263 = vunpack.c.l.b16 %v7152
        %v7264 = vunpack.c.h.b16 %v7152
        %v7265 = vunpack.c.l.b16 %v7153
        %v7266 = vunpack.c.h.b16 %v7153
        %v7267 = vunpack.c.l.b16 %v7154
        %v7268 = vunpack.c.h.b16 %v7154
        %v7269 = vunpack.c.l.b16 %v7155
        %v7270 = vunpack.c.h.b16 %v7155
        %v7271 = vunpack.c.l.b16 %v7156
        %v7272 = vunpack.c.h.b16 %v7156
        %v7273 = vunpack.c.l.b16 %v7157
        %v7274 = vunpack.c.h.b16 %v7157
        %v7275 = vunpack.c.l.b16 %v7158
        %v7276 = vunpack.c.h.b16 %v7158
        %v7277 = vunpack.c.l.b16 %v7159
        %v7278 = vunpack.c.h.b16 %v7159
        %v7279 = vunpack.c.l.b16 %v7160
        %v7280 = vunpack.c.h.b16 %v7160
        %v7281 = vunpack.c.l.b16 %v7161
        %v7282 = vunpack.c.h.b16 %v7161
        %v7283 = vunpack.c.l.b16 %v7162
        %v7284 = vunpack.c.h.b16 %v7162
        %v7285 = vunpack.c.l.b16 %v7163
        %v7286 = vunpack.c.h.b16 %v7163
        %v7287 = vunpack.c.l.b16 %v7164
        %v7288 = vunpack.c.h.b16 %v7164
        %v7289 = vunpack.c.l.b16 %v7165
        %v7290 = vunpack.c.h.b16 %v7165
        %v7291 = vunpack.c.l.b16 %v7166
        %v7292 = vunpack.c.h.b16 %v7166
        %v7293 = vunpack.c.l.b16 %v7167
        %v7294 = vunpack.c.h.b16 %v7167
        %v7295 = vunpack.c.l.b16 %v7168
        %v7296 = vunpack.c.h.b16 %v7168
        %v7297 = vunpack.c.l.b16 %v7169
        %v7298 = vunpack.c.h.b16 %v7169
        %v7299 = vunpack.c.l.b16 %v7170
        %v7300 = vunpack.c.h.b16 %v7170
        %v7301 = vunpack.c.l.b16 %v7171
        %v7302 = vunpack.c.h.b16 %v7171
        %v7303 = vunpack.c.l.b16 %v7172
        %v7304 = vunpack.c.h.b16 %v7172
        %v7305 = vunpack.c.l.b16 %v7173
        %v7306 = vunpack.c.h.b16 %v7173
        %v7307 = vunpack.c.l.b16 %v7174
        %v7308 = vunpack.c.h.b16 %v7174
        %v7309 = vunpack.c.l.b16 %v7175
        %v7310 = vunpack.c.h.b16 %v7175
        %v7311 = vpack.c.b16 %v7249, %v7247
        %v7312 = vpack.c.b16 %v7250, %v7248
        %v7313 = vpack.c.b16 %v7253, %v7251
        %v7314 = vpack.c.b16 %v7254, %v7252
        %v7315 = vpack.c.b16 %v7257, %v7255
        %v7316 = vpack.c.b16 %v7258, %v7256
        %v7317 = vpack.c.b16 %v7261, %v7259
        %v7318 = vpack.c.b16 %v7262, %v7260
        %v7319 = vpack.c.b16 %v7265, %v7263
        %v7320 = vpack.c.b16 %v7266, %v7264
        %v7321 = vpack.c.b16 %v7269, %v7267
        %v7322 = vpack.c.b16 %v7270, %v7268
        %v7323 = vpack.c.b16 %v7273, %v7271
        %v7324 = vpack.c.b16 %v7274, %v7272
        %v7325 = vpack.c.b16 %v7277, %v7275
        %v7326 = vpack.c.b16 %v7278, %v7276
        %v7327 = vpack.c.b16 %v7281, %v7279
        %v7328 = vpack.c.b16 %v7282, %v7280
        %v7329 = vpack.c.b16 %v7285, %v7283
        %v7330 = vpack.c.b16 %v7286, %v7284
        %v7331 = vpack.c.b16 %v7289, %v7287
        %v7332 = vpack.c.b16 %v7290, %v7288
        %v7333 = vpack.c.b16 %v7293, %v7291
        %v7334 = vpack.c.b16 %v7294, %v7292
        %v7335 = vpack.c.b16 %v7297, %v7295
        %v7336 = vpack.c.b16 %v7298, %v7296
        %v7337 = vpack.c.b16 %v7301, %v7299
        %v7338 = vpack.c.b16 %v7302, %v7300
        %v7339 = vpack.c.b16 %v7305, %v7303
        %v7340 = vpack.c.b16 %v7306, %v7304
        %v7341 = vpack.c.b16 %v7309, %v7307
        %v7342 = vpack.c.b16 %v7310, %v7308
        %7375 = vmatprep.subr.bf16.mxu0 %v7312
        %7376 = vmatpush1.bf16.msra.mxu0 %v7311
        %7377 = vmatprep.subr.bf16.mxu0 %v7314
        %7378 = vmatpush1.bf16.msra.mxu0 %v7313
        %7379 = vmatprep.subr.bf16.mxu0 %v7316
        %7380 = vmatpush1.bf16.msra.mxu0 %v7315
        %7381 = vmatprep.subr.bf16.mxu0 %v7318
        %7382 = vmatpush1.bf16.msra.mxu0 %v7317
        %7383 = vmatprep.subr.bf16.mxu0 %v7320
        %7384 = vmatpush1.bf16.msra.mxu0 %v7319
        %7385 = vmatprep.subr.bf16.mxu0 %v7322
        %7386 = vmatpush1.bf16.msra.mxu0 %v7321
        %7387 = vmatprep.subr.bf16.mxu0 %v7324
        %7388 = vmatpush1.bf16.msra.mxu0 %v7323
        %7389 = vmatprep.subr.bf16.mxu0 %v7326
        %7390 = vmatpush1.bf16.msra.mxu0 %v7325
        %7391 = vmatprep.subr.bf16.mxu0 %v7328
        %7392 = vmatpush1.bf16.msra.mxu0 %v7327
        %7393 = vmatprep.subr.bf16.mxu0 %v7330
        %7394 = vmatpush1.bf16.msra.mxu0 %v7329
        %7395 = vmatprep.subr.bf16.mxu0 %v7332
        %7396 = vmatpush1.bf16.msra.mxu0 %v7331
        %7397 = vmatprep.subr.bf16.mxu0 %v7334
        %7398 = vmatpush1.bf16.msra.mxu0 %v7333
        %7399 = vmatprep.subr.bf16.mxu0 %v7336
        %7400 = vmatpush1.bf16.msra.mxu0 %v7335
        %7401 = vmatprep.subr.bf16.mxu0 %v7338
        %7402 = vmatpush1.bf16.msra.mxu0 %v7337
        %7403 = vmatprep.subr.bf16.mxu0 %v7340
        %7404 = vmatpush1.bf16.msra.mxu0 %v7339
        %7405 = vmatprep.subr.bf16.mxu0 %v7342
        %7406 = vmatpush1.bf16.msra.mxu0 %v7341
        %7407 = vmatprep.mubr.bf16.mxu0 %v7212
        %7408 = vmatmul.mubr.bf16.gmra.mrb[0].mxu0 %v7200
        %v7409 = vpop.f32.mrb[0].mxu0
        %v7410 = vadd.f32 0.0, %v7409
        %v7411 = vpop.f32.mrb[0].mxu0
        %v7412 = vadd.f32 0.0, %v7411
        %v7413 = vpop.f32.mrb[0].mxu0
        %v7414 = vadd.f32 0.0, %v7413
        %v7415 = vpop.f32.mrb[0].mxu0
        %v7416 = vadd.f32 0.0, %v7415
        %7417 = vdwg.mxu0
        %v7452 = vunpack.c.l.b16 %v7110
        %v7453 = vunpack.c.h.b16 %v7110
        %v7454 = vunpack.c.l.b16 %v7111
        %v7455 = vunpack.c.h.b16 %v7111
        %v7456 = vunpack.c.l.b16 %v7112
        %v7457 = vunpack.c.h.b16 %v7112
        %v7458 = vunpack.c.l.b16 %v7113
        %v7459 = vunpack.c.h.b16 %v7113
        %v7460 = vunpack.c.l.b16 %v7114
        %v7461 = vunpack.c.h.b16 %v7114
        %v7462 = vunpack.c.l.b16 %v7115
        %v7463 = vunpack.c.h.b16 %v7115
        %v7464 = vunpack.c.l.b16 %v7116
        %v7465 = vunpack.c.h.b16 %v7116
        %v7466 = vunpack.c.l.b16 %v7117
        %v7467 = vunpack.c.h.b16 %v7117
        %v7468 = vunpack.c.l.b16 %v7118
        %v7469 = vunpack.c.h.b16 %v7118
        %v7470 = vunpack.c.l.b16 %v7119
        %v7471 = vunpack.c.h.b16 %v7119
        %v7472 = vunpack.c.l.b16 %v7120
        %v7473 = vunpack.c.h.b16 %v7120
        %v7474 = vunpack.c.l.b16 %v7121
        %v7475 = vunpack.c.h.b16 %v7121
        %v7476 = vunpack.c.l.b16 %v7122
        %v7477 = vunpack.c.h.b16 %v7122
        %v7478 = vunpack.c.l.b16 %v7123
        %v7479 = vunpack.c.h.b16 %v7123
        %v7480 = vunpack.c.l.b16 %v7124
        %v7481 = vunpack.c.h.b16 %v7124
        %v7482 = vunpack.c.l.b16 %v7125
        %v7483 = vunpack.c.h.b16 %v7125
        %v7484 = vunpack.c.l.b16 %v7126
        %v7485 = vunpack.c.h.b16 %v7126
        %v7486 = vunpack.c.l.b16 %v7127
        %v7487 = vunpack.c.h.b16 %v7127
        %v7488 = vunpack.c.l.b16 %v7128
        %v7489 = vunpack.c.h.b16 %v7128
        %v7490 = vunpack.c.l.b16 %v7129
        %v7491 = vunpack.c.h.b16 %v7129
        %v7492 = vunpack.c.l.b16 %v7130
        %v7493 = vunpack.c.h.b16 %v7130
        %v7494 = vunpack.c.l.b16 %v7131
        %v7495 = vunpack.c.h.b16 %v7131
        %v7496 = vunpack.c.l.b16 %v7132
        %v7497 = vunpack.c.h.b16 %v7132
        %v7498 = vunpack.c.l.b16 %v7133
        %v7499 = vunpack.c.h.b16 %v7133
        %v7500 = vunpack.c.l.b16 %v7134
        %v7501 = vunpack.c.h.b16 %v7134
        %v7502 = vunpack.c.l.b16 %v7135
        %v7503 = vunpack.c.h.b16 %v7135
        %v7504 = vunpack.c.l.b16 %v7136
        %v7505 = vunpack.c.h.b16 %v7136
        %v7506 = vunpack.c.l.b16 %v7137
        %v7507 = vunpack.c.h.b16 %v7137
        %v7508 = vunpack.c.l.b16 %v7138
        %v7509 = vunpack.c.h.b16 %v7138
        %v7510 = vunpack.c.l.b16 %v7139
        %v7511 = vunpack.c.h.b16 %v7139
        %v7512 = vunpack.c.l.b16 %v7140
        %v7513 = vunpack.c.h.b16 %v7140
        %v7514 = vunpack.c.l.b16 %v7141
        %v7515 = vunpack.c.h.b16 %v7141
        %v7516 = vpack.c.b16 %v7454, %v7452
        %v7517 = vpack.c.b16 %v7455, %v7453
        %v7518 = vpack.c.b16 %v7458, %v7456
        %v7519 = vpack.c.b16 %v7459, %v7457
        %v7520 = vpack.c.b16 %v7462, %v7460
        %v7521 = vpack.c.b16 %v7463, %v7461
        %v7522 = vpack.c.b16 %v7466, %v7464
        %v7523 = vpack.c.b16 %v7467, %v7465
        %v7524 = vpack.c.b16 %v7470, %v7468
        %v7525 = vpack.c.b16 %v7471, %v7469
        %v7526 = vpack.c.b16 %v7474, %v7472
        %v7527 = vpack.c.b16 %v7475, %v7473
        %v7528 = vpack.c.b16 %v7478, %v7476
        %v7529 = vpack.c.b16 %v7479, %v7477
        %v7530 = vpack.c.b16 %v7482, %v7480
        %v7531 = vpack.c.b16 %v7483, %v7481
        %v7532 = vpack.c.b16 %v7486, %v7484
        %v7533 = vpack.c.b16 %v7487, %v7485
        %v7534 = vpack.c.b16 %v7490, %v7488
        %v7535 = vpack.c.b16 %v7491, %v7489
        %v7536 = vpack.c.b16 %v7494, %v7492
        %v7537 = vpack.c.b16 %v7495, %v7493
        %v7538 = vpack.c.b16 %v7498, %v7496
        %v7539 = vpack.c.b16 %v7499, %v7497
        %v7540 = vpack.c.b16 %v7502, %v7500
        %v7541 = vpack.c.b16 %v7503, %v7501
        %v7542 = vpack.c.b16 %v7506, %v7504
        %v7543 = vpack.c.b16 %v7507, %v7505
        %v7544 = vpack.c.b16 %v7510, %v7508
        %v7545 = vpack.c.b16 %v7511, %v7509
        %v7546 = vpack.c.b16 %v7514, %v7512
        %v7547 = vpack.c.b16 %v7515, %v7513
        %7580 = vmatprep.subr.bf16.mxu0 %v7517
        %7581 = vmatpush1.bf16.msra.mxu0 %v7516
        %7582 = vmatprep.subr.bf16.mxu0 %v7519
        %7583 = vmatpush1.bf16.msra.mxu0 %v7518
        %7584 = vmatprep.subr.bf16.mxu0 %v7521
        %7585 = vmatpush1.bf16.msra.mxu0 %v7520
        %7586 = vmatprep.subr.bf16.mxu0 %v7523
        %7587 = vmatpush1.bf16.msra.mxu0 %v7522
        %7588 = vmatprep.subr.bf16.mxu0 %v7525
        %7589 = vmatpush1.bf16.msra.mxu0 %v7524
        %7590 = vmatprep.subr.bf16.mxu0 %v7527
        %7591 = vmatpush1.bf16.msra.mxu0 %v7526
        %7592 = vmatprep.subr.bf16.mxu0 %v7529
        %7593 = vmatpush1.bf16.msra.mxu0 %v7528
        %7594 = vmatprep.subr.bf16.mxu0 %v7531
        %7595 = vmatpush1.bf16.msra.mxu0 %v7530
        %7596 = vmatprep.subr.bf16.mxu0 %v7533
        %7597 = vmatpush1.bf16.msra.mxu0 %v7532
        %7598 = vmatprep.subr.bf16.mxu0 %v7535
        %7599 = vmatpush1.bf16.msra.mxu0 %v7534
        %7600 = vmatprep.subr.bf16.mxu0 %v7537
        %7601 = vmatpush1.bf16.msra.mxu0 %v7536
        %7602 = vmatprep.subr.bf16.mxu0 %v7539
        %7603 = vmatpush1.bf16.msra.mxu0 %v7538
        %7604 = vmatprep.subr.bf16.mxu0 %v7541
        %7605 = vmatpush1.bf16.msra.mxu0 %v7540
        %7606 = vmatprep.subr.bf16.mxu0 %v7543
        %7607 = vmatpush1.bf16.msra.mxu0 %v7542
        %7608 = vmatprep.subr.bf16.mxu0 %v7545
        %7609 = vmatpush1.bf16.msra.mxu0 %v7544
        %7610 = vmatprep.subr.bf16.mxu0 %v7547
        %7611 = vmatpush1.bf16.msra.mxu0 %v7546
        %7612 = vmatprep.mubr.bf16.mxu0 %v7186
        %7613 = vmatmul.mubr.bf16.gmra.mrb[0].mxu0 %v7185
        %v7614 = vpop.f32.mrb[0].mxu0
        %v7615 = vadd.f32 %v7410, %v7614
        %v7616 = vpop.f32.mrb[0].mxu0
        %v7617 = vadd.f32 %v7412, %v7616
        %v7618 = vpop.f32.mrb[0].mxu0
        %v7619 = vadd.f32 %v7414, %v7618
        %v7620 = vpop.f32.mrb[0].mxu0
        %v7621 = vadd.f32 %v7416, %v7620
        %7622 = vdwg.mxu0
        %v7623 = vld [vmem:[#allocation2] sm:$0xee]
        %s7624 = scalar_lea.vmem [#allocation20], 512
        %v7625 = vld [vmem:[%s7624] sm:$0xff]
        %v7626 = vld [vmem:[%s7624 + $0x8] sm:$0xff]
        %v7627 = vld [vmem:[%s7624 + $0x10] sm:$0xff]
        %v7628 = vld [vmem:[%s7624 + $0x18] sm:$0xff]
        %v7629 = vld [vmem:[%s7624 + $0x20] sm:$0xff]
        %v7630 = vld [vmem:[%s7624 + $0x28] sm:$0xff]
        %v7631 = vld [vmem:[%s7624 + $0x30] sm:$0xff]
        %v7632 = vld [vmem:[%s7624 + $0x38] sm:$0xff]
        %v7633 = vld [vmem:[%s7624 + $0x40] sm:$0xff]
        %v7634 = vld [vmem:[%s7624 + $0x48] sm:$0xff]
        %v7635 = vld [vmem:[%s7624 + $0x50] sm:$0xff]
        %v7636 = vld [vmem:[%s7624 + $0x58] sm:$0xff]
        %v7637 = vld [vmem:[%s7624 + $0x60] sm:$0xff]
        %v7638 = vld [vmem:[%s7624 + $0x68] sm:$0xff]
        %v7639 = vld [vmem:[%s7624 + $0x70] sm:$0xff]
        %v7640 = vld [vmem:[%s7624 + $0x78] sm:$0xff]
        %v7641 = vld [vmem:[%s7624 + $0x80] sm:$0xff]
        %v7642 = vld [vmem:[%s7624 + $0x88] sm:$0xff]
        %v7643 = vld [vmem:[%s7624 + $0x90] sm:$0xff]
        %v7644 = vld [vmem:[%s7624 + $0x98] sm:$0xff]
        %v7645 = vld [vmem:[%s7624 + $0xa0] sm:$0xff]
        %v7646 = vld [vmem:[%s7624 + $0xa8] sm:$0xff]
        %v7647 = vld [vmem:[%s7624 + $0xb0] sm:$0xff]
        %v7648 = vld [vmem:[%s7624 + $0xb8] sm:$0xff]
        %v7649 = vld [vmem:[%s7624 + $0xc0] sm:$0xff]
        %v7650 = vld [vmem:[%s7624 + $0xc8] sm:$0xff]
        %v7651 = vld [vmem:[%s7624 + $0xd0] sm:$0xff]
        %v7652 = vld [vmem:[%s7624 + $0xd8] sm:$0xff]
        %v7653 = vld [vmem:[%s7624 + $0xe0] sm:$0xff]
        %v7654 = vld [vmem:[%s7624 + $0xe8] sm:$0xff]
        %v7655 = vld [vmem:[%s7624 + $0xf0] sm:$0xff]
        %v7656 = vld [vmem:[%s7624 + $0xf8] sm:$0xff]
        %v7658 = vunpack.c.l.b16 %v7623
        %v7659 = vunpack.c.h.b16 %v7623
        %v7660 = vpack.c.b16 %v7181, %v7658
        %v7661 = vpack.c.b16 %v7182, %v7659
        %v7662 = vrot.slane %v7660, 1
        %v7663 = vrot.slane %v7187, 1
        %v7664 = vsel %vm950, %v7662, %v7663
        %v7665 = vrot.slane %v7661, 1
        %v7666 = vrot.slane %v7188, 1
        %v7667 = vsel %vm950, %v7665, %v7666
        %v7702 = vunpack.c.l.b16 %v7625
        %v7703 = vunpack.c.h.b16 %v7625
        %v7704 = vunpack.c.l.b16 %v7626
        %v7705 = vunpack.c.h.b16 %v7626
        %v7706 = vunpack.c.l.b16 %v7627
        %v7707 = vunpack.c.h.b16 %v7627
        %v7708 = vunpack.c.l.b16 %v7628
        %v7709 = vunpack.c.h.b16 %v7628
        %v7710 = vunpack.c.l.b16 %v7629
        %v7711 = vunpack.c.h.b16 %v7629
        %v7712 = vunpack.c.l.b16 %v7630
        %v7713 = vunpack.c.h.b16 %v7630
        %v7714 = vunpack.c.l.b16 %v7631
        %v7715 = vunpack.c.h.b16 %v7631
        %v7716 = vunpack.c.l.b16 %v7632
        %v7717 = vunpack.c.h.b16 %v7632
        %v7718 = vunpack.c.l.b16 %v7633
        %v7719 = vunpack.c.h.b16 %v7633
        %v7720 = vunpack.c.l.b16 %v7634
        %v7721 = vunpack.c.h.b16 %v7634
        %v7722 = vunpack.c.l.b16 %v7635
        %v7723 = vunpack.c.h.b16 %v7635
        %v7724 = vunpack.c.l.b16 %v7636
        %v7725 = vunpack.c.h.b16 %v7636
        %v7726 = vunpack.c.l.b16 %v7637
        %v7727 = vunpack.c.h.b16 %v7637
        %v7728 = vunpack.c.l.b16 %v7638
        %v7729 = vunpack.c.h.b16 %v7638
        %v7730 = vunpack.c.l.b16 %v7639
        %v7731 = vunpack.c.h.b16 %v7639
        %v7732 = vunpack.c.l.b16 %v7640
        %v7733 = vunpack.c.h.b16 %v7640
        %v7734 = vunpack.c.l.b16 %v7641
        %v7735 = vunpack.c.h.b16 %v7641
        %v7736 = vunpack.c.l.b16 %v7642
        %v7737 = vunpack.c.h.b16 %v7642
        %v7738 = vunpack.c.l.b16 %v7643
        %v7739 = vunpack.c.h.b16 %v7643
        %v7740 = vunpack.c.l.b16 %v7644
        %v7741 = vunpack.c.h.b16 %v7644
        %v7742 = vunpack.c.l.b16 %v7645
        %v7743 = vunpack.c.h.b16 %v7645
        %v7744 = vunpack.c.l.b16 %v7646
        %v7745 = vunpack.c.h.b16 %v7646
        %v7746 = vunpack.c.l.b16 %v7647
        %v7747 = vunpack.c.h.b16 %v7647
        %v7748 = vunpack.c.l.b16 %v7648
        %v7749 = vunpack.c.h.b16 %v7648
        %v7750 = vunpack.c.l.b16 %v7649
        %v7751 = vunpack.c.h.b16 %v7649
        %v7752 = vunpack.c.l.b16 %v7650
        %v7753 = vunpack.c.h.b16 %v7650
        %v7754 = vunpack.c.l.b16 %v7651
        %v7755 = vunpack.c.h.b16 %v7651
        %v7756 = vunpack.c.l.b16 %v7652
        %v7757 = vunpack.c.h.b16 %v7652
        %v7758 = vunpack.c.l.b16 %v7653
        %v7759 = vunpack.c.h.b16 %v7653
        %v7760 = vunpack.c.l.b16 %v7654
        %v7761 = vunpack.c.h.b16 %v7654
        %v7762 = vunpack.c.l.b16 %v7655
        %v7763 = vunpack.c.h.b16 %v7655
        %v7764 = vunpack.c.l.b16 %v7656
        %v7765 = vunpack.c.h.b16 %v7656
        %v7766 = vpack.c.b16 %v7704, %v7702
        %v7767 = vpack.c.b16 %v7705, %v7703
        %v7768 = vpack.c.b16 %v7708, %v7706
        %v7769 = vpack.c.b16 %v7709, %v7707
        %v7770 = vpack.c.b16 %v7712, %v7710
        %v7771 = vpack.c.b16 %v7713, %v7711
        %v7772 = vpack.c.b16 %v7716, %v7714
        %v7773 = vpack.c.b16 %v7717, %v7715
        %v7774 = vpack.c.b16 %v7720, %v7718
        %v7775 = vpack.c.b16 %v7721, %v7719
        %v7776 = vpack.c.b16 %v7724, %v7722
        %v7777 = vpack.c.b16 %v7725, %v7723
        %v7778 = vpack.c.b16 %v7728, %v7726
        %v7779 = vpack.c.b16 %v7729, %v7727
        %v7780 = vpack.c.b16 %v7732, %v7730
        %v7781 = vpack.c.b16 %v7733, %v7731
        %v7782 = vpack.c.b16 %v7736, %v7734
        %v7783 = vpack.c.b16 %v7737, %v7735
        %v7784 = vpack.c.b16 %v7740, %v7738
        %v7785 = vpack.c.b16 %v7741, %v7739
        %v7786 = vpack.c.b16 %v7744, %v7742
        %v7787 = vpack.c.b16 %v7745, %v7743
        %v7788 = vpack.c.b16 %v7748, %v7746
        %v7789 = vpack.c.b16 %v7749, %v7747
        %v7790 = vpack.c.b16 %v7752, %v7750
        %v7791 = vpack.c.b16 %v7753, %v7751
        %v7792 = vpack.c.b16 %v7756, %v7754
        %v7793 = vpack.c.b16 %v7757, %v7755
        %v7794 = vpack.c.b16 %v7760, %v7758
        %v7795 = vpack.c.b16 %v7761, %v7759
        %v7796 = vpack.c.b16 %v7764, %v7762
        %v7797 = vpack.c.b16 %v7765, %v7763
        %7830 = vmatprep.subr.bf16.mxu0 %v7767
        %7831 = vmatpush1.bf16.msra.mxu0 %v7766
        %7832 = vmatprep.subr.bf16.mxu0 %v7769
        %7833 = vmatpush1.bf16.msra.mxu0 %v7768
        %7834 = vmatprep.subr.bf16.mxu0 %v7771
        %7835 = vmatpush1.bf16.msra.mxu0 %v7770
        %7836 = vmatprep.subr.bf16.mxu0 %v7773
        %7837 = vmatpush1.bf16.msra.mxu0 %v7772
        %7838 = vmatprep.subr.bf16.mxu0 %v7775
        %7839 = vmatpush1.bf16.msra.mxu0 %v7774
        %7840 = vmatprep.subr.bf16.mxu0 %v7777
        %7841 = vmatpush1.bf16.msra.mxu0 %v7776
        %7842 = vmatprep.subr.bf16.mxu0 %v7779
        %7843 = vmatpush1.bf16.msra.mxu0 %v7778
        %7844 = vmatprep.subr.bf16.mxu0 %v7781
        %7845 = vmatpush1.bf16.msra.mxu0 %v7780
        %7846 = vmatprep.subr.bf16.mxu0 %v7783
        %7847 = vmatpush1.bf16.msra.mxu0 %v7782
        %7848 = vmatprep.subr.bf16.mxu0 %v7785
        %7849 = vmatpush1.bf16.msra.mxu0 %v7784
        %7850 = vmatprep.subr.bf16.mxu0 %v7787
        %7851 = vmatpush1.bf16.msra.mxu0 %v7786
        %7852 = vmatprep.subr.bf16.mxu0 %v7789
        %7853 = vmatpush1.bf16.msra.mxu0 %v7788
        %7854 = vmatprep.subr.bf16.mxu0 %v7791
        %7855 = vmatpush1.bf16.msra.mxu0 %v7790
        %7856 = vmatprep.subr.bf16.mxu0 %v7793
        %7857 = vmatpush1.bf16.msra.mxu0 %v7792
        %7858 = vmatprep.subr.bf16.mxu0 %v7795
        %7859 = vmatpush1.bf16.msra.mxu0 %v7794
        %7860 = vmatprep.subr.bf16.mxu0 %v7797
        %7861 = vmatpush1.bf16.msra.mxu0 %v7796
        %7862 = vmatprep.mubr.bf16.mxu0 %v7667
        %7863 = vmatmul.mubr.bf16.gmra.mrb[0].mxu0 %v7664
        %v7864 = vpop.f32.mrb[0].mxu0
        %v7865 = vadd.f32 0.0, %v7864
        %v7866 = vpop.f32.mrb[0].mxu0
        %v7867 = vadd.f32 0.0, %v7866
        %v7868 = vpop.f32.mrb[0].mxu0
        %v7869 = vadd.f32 0.0, %v7868
        %v7870 = vpop.f32.mrb[0].mxu0
        %v7871 = vadd.f32 0.0, %v7870
        %7872 = vdwg.mxu0
        %v7873 = vadd.f32 %v7615, %v7865
        %v7874 = vadd.f32 %v7617, %v7867
        %v7875 = vadd.f32 %v7619, %v7869
        %v7876 = vadd.f32 %v7621, %v7871
        %v7877 = vld [vmem:[#allocation2 + $0x10] sm:$0xff]
        %s7878 = scalar_lea.vmem [#allocation20], 768
        %v7879 = vld [vmem:[%s7878] sm:$0xff]
        %v7880 = vld [vmem:[%s7878 + $0x8] sm:$0xff]
        %v7881 = vld [vmem:[%s7878 + $0x10] sm:$0xff]
        %v7882 = vld [vmem:[%s7878 + $0x18] sm:$0xff]
        %v7883 = vld [vmem:[%s7878 + $0x20] sm:$0xff]
        %v7884 = vld [vmem:[%s7878 + $0x28] sm:$0xff]
        %v7885 = vld [vmem:[%s7878 + $0x30] sm:$0xff]
        %v7886 = vld [vmem:[%s7878 + $0x38] sm:$0xff]
        %v7887 = vld [vmem:[%s7878 + $0x40] sm:$0xff]
        %v7888 = vld [vmem:[%s7878 + $0x48] sm:$0xff]
        %v7889 = vld [vmem:[%s7878 + $0x50] sm:$0xff]
        %v7890 = vld [vmem:[%s7878 + $0x58] sm:$0xff]
        %v7891 = vld [vmem:[%s7878 + $0x60] sm:$0xff]
        %v7892 = vld [vmem:[%s7878 + $0x68] sm:$0xff]
        %v7893 = vld [vmem:[%s7878 + $0x70] sm:$0xff]
        %v7894 = vld [vmem:[%s7878 + $0x78] sm:$0xff]
        %v7895 = vld [vmem:[%s7878 + $0x80] sm:$0xff]
        %v7896 = vld [vmem:[%s7878 + $0x88] sm:$0xff]
        %v7897 = vld [vmem:[%s7878 + $0x90] sm:$0xff]
        %v7898 = vld [vmem:[%s7878 + $0x98] sm:$0xff]
        %v7899 = vld [vmem:[%s7878 + $0xa0] sm:$0xff]
        %v7900 = vld [vmem:[%s7878 + $0xa8] sm:$0xff]
        %v7901 = vld [vmem:[%s7878 + $0xb0] sm:$0xff]
        %v7902 = vld [vmem:[%s7878 + $0xb8] sm:$0xff]
        %v7903 = vld [vmem:[%s7878 + $0xc0] sm:$0xff]
        %v7904 = vld [vmem:[%s7878 + $0xc8] sm:$0xff]
        %v7905 = vld [vmem:[%s7878 + $0xd0] sm:$0xff]
        %v7906 = vld [vmem:[%s7878 + $0xd8] sm:$0xff]
        %v7907 = vld [vmem:[%s7878 + $0xe0] sm:$0xff]
        %v7908 = vld [vmem:[%s7878 + $0xe8] sm:$0xff]
        %v7909 = vld [vmem:[%s7878 + $0xf0] sm:$0xff]
        %v7910 = vld [vmem:[%s7878 + $0xf8] sm:$0xff]
        %v7912 = vunpack.c.l.b16 %v7877
        %v7913 = vunpack.c.h.b16 %v7877
        %v7914 = vpack.c.b16 %v7912, %v7181
        %v7915 = vpack.c.b16 %v7913, %v7182
        %v7950 = vunpack.c.l.b16 %v7879
        %v7951 = vunpack.c.h.b16 %v7879
        %v7952 = vunpack.c.l.b16 %v7880
        %v7953 = vunpack.c.h.b16 %v7880
        %v7954 = vunpack.c.l.b16 %v7881
        %v7955 = vunpack.c.h.b16 %v7881
        %v7956 = vunpack.c.l.b16 %v7882
        %v7957 = vunpack.c.h.b16 %v7882
        %v7958 = vunpack.c.l.b16 %v7883
        %v7959 = vunpack.c.h.b16 %v7883
        %v7960 = vunpack.c.l.b16 %v7884
        %v7961 = vunpack.c.h.b16 %v7884
        %v7962 = vunpack.c.l.b16 %v7885
        %v7963 = vunpack.c.h.b16 %v7885
        %v7964 = vunpack.c.l.b16 %v7886
        %v7965 = vunpack.c.h.b16 %v7886
        %v7966 = vunpack.c.l.b16 %v7887
        %v7967 = vunpack.c.h.b16 %v7887
        %v7968 = vunpack.c.l.b16 %v7888
        %v7969 = vunpack.c.h.b16 %v7888
        %v7970 = vunpack.c.l.b16 %v7889
        %v7971 = vunpack.c.h.b16 %v7889
        %v7972 = vunpack.c.l.b16 %v7890
        %v7973 = vunpack.c.h.b16 %v7890
        %v7974 = vunpack.c.l.b16 %v7891
        %v7975 = vunpack.c.h.b16 %v7891
        %v7976 = vunpack.c.l.b16 %v7892
        %v7977 = vunpack.c.h.b16 %v7892
        %v7978 = vunpack.c.l.b16 %v7893
        %v7979 = vunpack.c.h.b16 %v7893
        %v7980 = vunpack.c.l.b16 %v7894
        %v7981 = vunpack.c.h.b16 %v7894
        %v7982 = vunpack.c.l.b16 %v7895
        %v7983 = vunpack.c.h.b16 %v7895
        %v7984 = vunpack.c.l.b16 %v7896
        %v7985 = vunpack.c.h.b16 %v7896
        %v7986 = vunpack.c.l.b16 %v7897
        %v7987 = vunpack.c.h.b16 %v7897
        %v7988 = vunpack.c.l.b16 %v7898
        %v7989 = vunpack.c.h.b16 %v7898
        %v7990 = vunpack.c.l.b16 %v7899
        %v7991 = vunpack.c.h.b16 %v7899
        %v7992 = vunpack.c.l.b16 %v7900
        %v7993 = vunpack.c.h.b16 %v7900
        %v7994 = vunpack.c.l.b16 %v7901
        %v7995 = vunpack.c.h.b16 %v7901
        %v7996 = vunpack.c.l.b16 %v7902
        %v7997 = vunpack.c.h.b16 %v7902
        %v7998 = vunpack.c.l.b16 %v7903
        %v7999 = vunpack.c.h.b16 %v7903
        %v8000 = vunpack.c.l.b16 %v7904
        %v8001 = vunpack.c.h.b16 %v7904
        %v8002 = vunpack.c.l.b16 %v7905
        %v8003 = vunpack.c.h.b16 %v7905
        %v8004 = vunpack.c.l.b16 %v7906
        %v8005 = vunpack.c.h.b16 %v7906
        %v8006 = vunpack.c.l.b16 %v7907
        %v8007 = vunpack.c.h.b16 %v7907
        %v8008 = vunpack.c.l.b16 %v7908
        %v8009 = vunpack.c.h.b16 %v7908
        %v8010 = vunpack.c.l.b16 %v7909
        %v8011 = vunpack.c.h.b16 %v7909
        %v8012 = vunpack.c.l.b16 %v7910
        %v8013 = vunpack.c.h.b16 %v7910
        %v8014 = vpack.c.b16 %v7952, %v7950
        %v8015 = vpack.c.b16 %v7953, %v7951
        %v8016 = vpack.c.b16 %v7956, %v7954
        %v8017 = vpack.c.b16 %v7957, %v7955
        %v8018 = vpack.c.b16 %v7960, %v7958
        %v8019 = vpack.c.b16 %v7961, %v7959
        %v8020 = vpack.c.b16 %v7964, %v7962
        %v8021 = vpack.c.b16 %v7965, %v7963
        %v8022 = vpack.c.b16 %v7968, %v7966
        %v8023 = vpack.c.b16 %v7969, %v7967
        %v8024 = vpack.c.b16 %v7972, %v7970
        %v8025 = vpack.c.b16 %v7973, %v7971
        %v8026 = vpack.c.b16 %v7976, %v7974
        %v8027 = vpack.c.b16 %v7977, %v7975
        %v8028 = vpack.c.b16 %v7980, %v7978
        %v8029 = vpack.c.b16 %v7981, %v7979
        %v8030 = vpack.c.b16 %v7984, %v7982
        %v8031 = vpack.c.b16 %v7985, %v7983
        %v8032 = vpack.c.b16 %v7988, %v7986
        %v8033 = vpack.c.b16 %v7989, %v7987
        %v8034 = vpack.c.b16 %v7992, %v7990
        %v8035 = vpack.c.b16 %v7993, %v7991
        %v8036 = vpack.c.b16 %v7996, %v7994
        %v8037 = vpack.c.b16 %v7997, %v7995
        %v8038 = vpack.c.b16 %v8000, %v7998
        %v8039 = vpack.c.b16 %v8001, %v7999
        %v8040 = vpack.c.b16 %v8004, %v8002
        %v8041 = vpack.c.b16 %v8005, %v8003
        %v8042 = vpack.c.b16 %v8008, %v8006
        %v8043 = vpack.c.b16 %v8009, %v8007
        %v8044 = vpack.c.b16 %v8012, %v8010
        %v8045 = vpack.c.b16 %v8013, %v8011
        %8078 = vmatprep.subr.bf16.mxu0 %v8015
        %8079 = vmatpush1.bf16.msra.mxu0 %v8014
        %8080 = vmatprep.subr.bf16.mxu0 %v8017
        %8081 = vmatpush1.bf16.msra.mxu0 %v8016
        %8082 = vmatprep.subr.bf16.mxu0 %v8019
        %8083 = vmatpush1.bf16.msra.mxu0 %v8018
        %8084 = vmatprep.subr.bf16.mxu0 %v8021
        %8085 = vmatpush1.bf16.msra.mxu0 %v8020
        %8086 = vmatprep.subr.bf16.mxu0 %v8023
        %8087 = vmatpush1.bf16.msra.mxu0 %v8022
        %8088 = vmatprep.subr.bf16.mxu0 %v8025
        %8089 = vmatpush1.bf16.msra.mxu0 %v8024
        %8090 = vmatprep.subr.bf16.mxu0 %v8027
        %8091 = vmatpush1.bf16.msra.mxu0 %v8026
        %8092 = vmatprep.subr.bf16.mxu0 %v8029
        %8093 = vmatpush1.bf16.msra.mxu0 %v8028
        %8094 = vmatprep.subr.bf16.mxu0 %v8031
        %8095 = vmatpush1.bf16.msra.mxu0 %v8030
        %8096 = vmatprep.subr.bf16.mxu0 %v8033
        %8097 = vmatpush1.bf16.msra.mxu0 %v8032
        %8098 = vmatprep.subr.bf16.mxu0 %v8035
        %8099 = vmatpush1.bf16.msra.mxu0 %v8034
        %8100 = vmatprep.subr.bf16.mxu0 %v8037
        %8101 = vmatpush1.bf16.msra.mxu0 %v8036
        %8102 = vmatprep.subr.bf16.mxu0 %v8039
        %8103 = vmatpush1.bf16.msra.mxu0 %v8038
        %8104 = vmatprep.subr.bf16.mxu0 %v8041
        %8105 = vmatpush1.bf16.msra.mxu0 %v8040
        %8106 = vmatprep.subr.bf16.mxu0 %v8043
        %8107 = vmatpush1.bf16.msra.mxu0 %v8042
        %8108 = vmatprep.subr.bf16.mxu0 %v8045
        %8109 = vmatpush1.bf16.msra.mxu0 %v8044
        %8110 = vmatprep.mubr.bf16.mxu0 %v7915
        %8111 = vmatmul.mubr.bf16.gmra.mrb[0].mxu0 %v7914
        %v8112 = vpop.f32.mrb[0].mxu0
        %v8113 = vadd.f32 0.0, %v8112
        %v8114 = vpop.f32.mrb[0].mxu0
        %v8115 = vadd.f32 0.0, %v8114
        %v8116 = vpop.f32.mrb[0].mxu0
        %v8117 = vadd.f32 0.0, %v8116
        %v8118 = vpop.f32.mrb[0].mxu0
        %v8119 = vadd.f32 0.0, %v8118
        %8120 = vdwg.mxu0
        %v8121 = vadd.f32 %v7873, %v8113
        %v8122 = vadd.f32 %v7874, %v8115
        %v8123 = vadd.f32 %v7875, %v8117
        %v8124 = vadd.f32 %v7876, %v8119
        %v8125 = vld [vmem:[#allocation2 + $0x8] sm:$0xff]
        %v8126 = vld [vmem:[#allocation2 + $0x10] sm:$0xff]
        %v8127 = vld [vmem:[#allocation2 + $0x18] sm:$0x11]
        %s8128 = scalar_lea.vmem [#allocation20], 1024
        %v8129 = vld [vmem:[%s8128] sm:$0xff]
        %v8130 = vld [vmem:[%s8128 + $0x8] sm:$0xff]
        %v8131 = vld [vmem:[%s8128 + $0x10] sm:$0xff]
        %v8132 = vld [vmem:[%s8128 + $0x18] sm:$0xff]
        %v8133 = vld [vmem:[%s8128 + $0x20] sm:$0xff]
        %v8134 = vld [vmem:[%s8128 + $0x28] sm:$0xff]
        %v8135 = vld [vmem:[%s8128 + $0x30] sm:$0xff]
        %v8136 = vld [vmem:[%s8128 + $0x38] sm:$0xff]
        %v8137 = vld [vmem:[%s8128 + $0x40] sm:$0xff]
        %v8138 = vld [vmem:[%s8128 + $0x48] sm:$0xff]
        %v8139 = vld [vmem:[%s8128 + $0x50] sm:$0xff]
        %v8140 = vld [vmem:[%s8128 + $0x58] sm:$0xff]
        %v8141 = vld [vmem:[%s8128 + $0x60] sm:$0xff]
        %v8142 = vld [vmem:[%s8128 + $0x68] sm:$0xff]
        %v8143 = vld [vmem:[%s8128 + $0x70] sm:$0xff]
        %v8144 = vld [vmem:[%s8128 + $0x78] sm:$0xff]
        %v8145 = vld [vmem:[%s8128 + $0x80] sm:$0xff]
        %v8146 = vld [vmem:[%s8128 + $0x88] sm:$0xff]
        %v8147 = vld [vmem:[%s8128 + $0x90] sm:$0xff]
        %v8148 = vld [vmem:[%s8128 + $0x98] sm:$0xff]
        %v8149 = vld [vmem:[%s8128 + $0xa0] sm:$0xff]
        %v8150 = vld [vmem:[%s8128 + $0xa8] sm:$0xff]
        %v8151 = vld [vmem:[%s8128 + $0xb0] sm:$0xff]
        %v8152 = vld [vmem:[%s8128 + $0xb8] sm:$0xff]
        %v8153 = vld [vmem:[%s8128 + $0xc0] sm:$0xff]
        %v8154 = vld [vmem:[%s8128 + $0xc8] sm:$0xff]
        %v8155 = vld [vmem:[%s8128 + $0xd0] sm:$0xff]
        %v8156 = vld [vmem:[%s8128 + $0xd8] sm:$0xff]
        %v8157 = vld [vmem:[%s8128 + $0xe0] sm:$0xff]
        %v8158 = vld [vmem:[%s8128 + $0xe8] sm:$0xff]
        %v8159 = vld [vmem:[%s8128 + $0xf0] sm:$0xff]
        %v8160 = vld [vmem:[%s8128 + $0xf8] sm:$0xff]
        %v8164 = vunpack.c.l.b16 %v8125
        %v8165 = vunpack.c.h.b16 %v8125
        %v8166 = vunpack.c.l.b16 %v8126
        %v8167 = vunpack.c.h.b16 %v8126
        %v8168 = vunpack.c.l.b16 %v8127
        %v8169 = vunpack.c.h.b16 %v8127
        %v8170 = vpack.c.b16 %v8166, %v8164
        %v8171 = vpack.c.b16 %v8167, %v8165
        %v8172 = vpack.c.b16 %v8168, %v8168
        %v8173 = vpack.c.b16 %v8169, %v8169
        %v8175 = vshrl.u32 %v8170, 16
        %v8177 = vshll.u32 %v8170, 16
        %v8179 = vrot.slane %v8177, 1
        %v8180 = vor.u32 %v8175, %v8179
        %v8182 = vshll.u32 %v8172, 16
        %v8184 = vrot.slane %v8182, 1
        %v8185 = vsel %vm668, %v8180, %v8184
        %v8187 = vshrl.u32 %v8171, 16
        %v8189 = vshll.u32 %v8171, 16
        %v8191 = vrot.slane %v8189, 1
        %v8192 = vor.u32 %v8187, %v8191
        %v8194 = vshll.u32 %v8173, 16
        %v8196 = vrot.slane %v8194, 1
        %v8197 = vsel %vm668, %v8192, %v8196
        %v8232 = vunpack.c.l.b16 %v8129
        %v8233 = vunpack.c.h.b16 %v8129
        %v8234 = vunpack.c.l.b16 %v8130
        %v8235 = vunpack.c.h.b16 %v8130
        %v8236 = vunpack.c.l.b16 %v8131
        %v8237 = vunpack.c.h.b16 %v8131
        %v8238 = vunpack.c.l.b16 %v8132
        %v8239 = vunpack.c.h.b16 %v8132
        %v8240 = vunpack.c.l.b16 %v8133
        %v8241 = vunpack.c.h.b16 %v8133
        %v8242 = vunpack.c.l.b16 %v8134
        %v8243 = vunpack.c.h.b16 %v8134
        %v8244 = vunpack.c.l.b16 %v8135
        %v8245 = vunpack.c.h.b16 %v8135
        %v8246 = vunpack.c.l.b16 %v8136
        %v8247 = vunpack.c.h.b16 %v8136
        %v8248 = vunpack.c.l.b16 %v8137
        %v8249 = vunpack.c.h.b16 %v8137
        %v8250 = vunpack.c.l.b16 %v8138
        %v8251 = vunpack.c.h.b16 %v8138
        %v8252 = vunpack.c.l.b16 %v8139
        %v8253 = vunpack.c.h.b16 %v8139
        %v8254 = vunpack.c.l.b16 %v8140
        %v8255 = vunpack.c.h.b16 %v8140
        %v8256 = vunpack.c.l.b16 %v8141
        %v8257 = vunpack.c.h.b16 %v8141
        %v8258 = vunpack.c.l.b16 %v8142
        %v8259 = vunpack.c.h.b16 %v8142
        %v8260 = vunpack.c.l.b16 %v8143
        %v8261 = vunpack.c.h.b16 %v8143
        %v8262 = vunpack.c.l.b16 %v8144
        %v8263 = vunpack.c.h.b16 %v8144
        %v8264 = vunpack.c.l.b16 %v8145
        %v8265 = vunpack.c.h.b16 %v8145
        %v8266 = vunpack.c.l.b16 %v8146
        %v8267 = vunpack.c.h.b16 %v8146
        %v8268 = vunpack.c.l.b16 %v8147
        %v8269 = vunpack.c.h.b16 %v8147
        %v8270 = vunpack.c.l.b16 %v8148
        %v8271 = vunpack.c.h.b16 %v8148
        %v8272 = vunpack.c.l.b16 %v8149
        %v8273 = vunpack.c.h.b16 %v8149
        %v8274 = vunpack.c.l.b16 %v8150
        %v8275 = vunpack.c.h.b16 %v8150
        %v8276 = vunpack.c.l.b16 %v8151
        %v8277 = vunpack.c.h.b16 %v8151
        %v8278 = vunpack.c.l.b16 %v8152
        %v8279 = vunpack.c.h.b16 %v8152
        %v8280 = vunpack.c.l.b16 %v8153
        %v8281 = vunpack.c.h.b16 %v8153
        %v8282 = vunpack.c.l.b16 %v8154
        %v8283 = vunpack.c.h.b16 %v8154
        %v8284 = vunpack.c.l.b16 %v8155
        %v8285 = vunpack.c.h.b16 %v8155
        %v8286 = vunpack.c.l.b16 %v8156
        %v8287 = vunpack.c.h.b16 %v8156
        %v8288 = vunpack.c.l.b16 %v8157
        %v8289 = vunpack.c.h.b16 %v8157
        %v8290 = vunpack.c.l.b16 %v8158
        %v8291 = vunpack.c.h.b16 %v8158
        %v8292 = vunpack.c.l.b16 %v8159
        %v8293 = vunpack.c.h.b16 %v8159
        %v8294 = vunpack.c.l.b16 %v8160
        %v8295 = vunpack.c.h.b16 %v8160
        %v8296 = vpack.c.b16 %v8234, %v8232
        %v8297 = vpack.c.b16 %v8235, %v8233
        %v8298 = vpack.c.b16 %v8238, %v8236
        %v8299 = vpack.c.b16 %v8239, %v8237
        %v8300 = vpack.c.b16 %v8242, %v8240
        %v8301 = vpack.c.b16 %v8243, %v8241
        %v8302 = vpack.c.b16 %v8246, %v8244
        %v8303 = vpack.c.b16 %v8247, %v8245
        %v8304 = vpack.c.b16 %v8250, %v8248
        %v8305 = vpack.c.b16 %v8251, %v8249
        %v8306 = vpack.c.b16 %v8254, %v8252
        %v8307 = vpack.c.b16 %v8255, %v8253
        %v8308 = vpack.c.b16 %v8258, %v8256
        %v8309 = vpack.c.b16 %v8259, %v8257
        %v8310 = vpack.c.b16 %v8262, %v8260
        %v8311 = vpack.c.b16 %v8263, %v8261
        %v8312 = vpack.c.b16 %v8266, %v8264
        %v8313 = vpack.c.b16 %v8267, %v8265
        %v8314 = vpack.c.b16 %v8270, %v8268
        %v8315 = vpack.c.b16 %v8271, %v8269
        %v8316 = vpack.c.b16 %v8274, %v8272
        %v8317 = vpack.c.b16 %v8275, %v8273
        %v8318 = vpack.c.b16 %v8278, %v8276
        %v8319 = vpack.c.b16 %v8279, %v8277
        %v8320 = vpack.c.b16 %v8282, %v8280
        %v8321 = vpack.c.b16 %v8283, %v8281
        %v8322 = vpack.c.b16 %v8286, %v8284
        %v8323 = vpack.c.b16 %v8287, %v8285
        %v8324 = vpack.c.b16 %v8290, %v8288
        %v8325 = vpack.c.b16 %v8291, %v8289
        %v8326 = vpack.c.b16 %v8294, %v8292
        %v8327 = vpack.c.b16 %v8295, %v8293
        %8360 = vmatprep.subr.bf16.mxu0 %v8297
        %8361 = vmatpush1.bf16.msra.mxu0 %v8296
        %8362 = vmatprep.subr.bf16.mxu0 %v8299
        %8363 = vmatpush1.bf16.msra.mxu0 %v8298
        %8364 = vmatprep.subr.bf16.mxu0 %v8301
        %8365 = vmatpush1.bf16.msra.mxu0 %v8300
        %8366 = vmatprep.subr.bf16.mxu0 %v8303
        %8367 = vmatpush1.bf16.msra.mxu0 %v8302
        %8368 = vmatprep.subr.bf16.mxu0 %v8305
        %8369 = vmatpush1.bf16.msra.mxu0 %v8304
        %8370 = vmatprep.subr.bf16.mxu0 %v8307
        %8371 = vmatpush1.bf16.msra.mxu0 %v8306
        %8372 = vmatprep.subr.bf16.mxu0 %v8309
        %8373 = vmatpush1.bf16.msra.mxu0 %v8308
        %8374 = vmatprep.subr.bf16.mxu0 %v8311
        %8375 = vmatpush1.bf16.msra.mxu0 %v8310
        %8376 = vmatprep.subr.bf16.mxu0 %v8313
        %8377 = vmatpush1.bf16.msra.mxu0 %v8312
        %8378 = vmatprep.subr.bf16.mxu0 %v8315
        %8379 = vmatpush1.bf16.msra.mxu0 %v8314
        %8380 = vmatprep.subr.bf16.mxu0 %v8317
        %8381 = vmatpush1.bf16.msra.mxu0 %v8316
        %8382 = vmatprep.subr.bf16.mxu0 %v8319
        %8383 = vmatpush1.bf16.msra.mxu0 %v8318
        %8384 = vmatprep.subr.bf16.mxu0 %v8321
        %8385 = vmatpush1.bf16.msra.mxu0 %v8320
        %8386 = vmatprep.subr.bf16.mxu0 %v8323
        %8387 = vmatpush1.bf16.msra.mxu0 %v8322
        %8388 = vmatprep.subr.bf16.mxu0 %v8325
        %8389 = vmatpush1.bf16.msra.mxu0 %v8324
        %8390 = vmatprep.subr.bf16.mxu0 %v8327
        %8391 = vmatpush1.bf16.msra.mxu0 %v8326
        %8392 = vmatprep.mubr.bf16.mxu0 %v8197
        %8393 = vmatmul.mubr.bf16.gmra.mrb[0].mxu0 %v8185
        %v8394 = vpop.f32.mrb[0].mxu0
        %v8395 = vadd.f32 0.0, %v8394
        %v8396 = vpop.f32.mrb[0].mxu0
        %v8397 = vadd.f32 0.0, %v8396
        %v8398 = vpop.f32.mrb[0].mxu0
        %v8399 = vadd.f32 0.0, %v8398
        %v8400 = vpop.f32.mrb[0].mxu0
        %v8401 = vadd.f32 0.0, %v8400
        %8402 = vdwg.mxu0
        %v8403 = vadd.f32 %v8121, %v8395
        %v8404 = vadd.f32 %v8122, %v8397
        %v8405 = vadd.f32 %v8123, %v8399
        %v8406 = vadd.f32 %v8124, %v8401
        %v8407 = vld [vmem:[#allocation2 + $0x8] sm:$0xee]
        %s8408 = scalar_lea.vmem [#allocation20], 1280
        %v8409 = vld [vmem:[%s8408] sm:$0xff]
        %v8410 = vld [vmem:[%s8408 + $0x8] sm:$0xff]
        %v8411 = vld [vmem:[%s8408 + $0x10] sm:$0xff]
        %v8412 = vld [vmem:[%s8408 + $0x18] sm:$0xff]
        %v8413 = vld [vmem:[%s8408 + $0x20] sm:$0xff]
        %v8414 = vld [vmem:[%s8408 + $0x28] sm:$0xff]
        %v8415 = vld [vmem:[%s8408 + $0x30] sm:$0xff]
        %v8416 = vld [vmem:[%s8408 + $0x38] sm:$0xff]
        %v8417 = vld [vmem:[%s8408 + $0x40] sm:$0xff]
        %v8418 = vld [vmem:[%s8408 + $0x48] sm:$0xff]
        %v8419 = vld [vmem:[%s8408 + $0x50] sm:$0xff]
        %v8420 = vld [vmem:[%s8408 + $0x58] sm:$0xff]
        %v8421 = vld [vmem:[%s8408 + $0x60] sm:$0xff]
        %v8422 = vld [vmem:[%s8408 + $0x68] sm:$0xff]
        %v8423 = vld [vmem:[%s8408 + $0x70] sm:$0xff]
        %v8424 = vld [vmem:[%s8408 + $0x78] sm:$0xff]
        %v8425 = vld [vmem:[%s8408 + $0x80] sm:$0xff]
        %v8426 = vld [vmem:[%s8408 + $0x88] sm:$0xff]
        %v8427 = vld [vmem:[%s8408 + $0x90] sm:$0xff]
        %v8428 = vld [vmem:[%s8408 + $0x98] sm:$0xff]
        %v8429 = vld [vmem:[%s8408 + $0xa0] sm:$0xff]
        %v8430 = vld [vmem:[%s8408 + $0xa8] sm:$0xff]
        %v8431 = vld [vmem:[%s8408 + $0xb0] sm:$0xff]
        %v8432 = vld [vmem:[%s8408 + $0xb8] sm:$0xff]
        %v8433 = vld [vmem:[%s8408 + $0xc0] sm:$0xff]
        %v8434 = vld [vmem:[%s8408 + $0xc8] sm:$0xff]
        %v8435 = vld [vmem:[%s8408 + $0xd0] sm:$0xff]
        %v8436 = vld [vmem:[%s8408 + $0xd8] sm:$0xff]
        %v8437 = vld [vmem:[%s8408 + $0xe0] sm:$0xff]
        %v8438 = vld [vmem:[%s8408 + $0xe8] sm:$0xff]
        %v8439 = vld [vmem:[%s8408 + $0xf0] sm:$0xff]
        %v8440 = vld [vmem:[%s8408 + $0xf8] sm:$0xff]
        %v8442 = vunpack.c.l.b16 %v8407
        %v8443 = vunpack.c.h.b16 %v8407
        %v8444 = vpack.c.b16 %v8166, %v8442
        %v8445 = vpack.c.b16 %v8167, %v8443
        %v8446 = vrot.slane %v8444, 1
        %v8447 = vrot.slane %v8172, 1
        %v8448 = vsel %vm950, %v8446, %v8447
        %v8449 = vrot.slane %v8445, 1
        %v8450 = vrot.slane %v8173, 1
        %v8451 = vsel %vm950, %v8449, %v8450
        %v8486 = vunpack.c.l.b16 %v8409
        %v8487 = vunpack.c.h.b16 %v8409
        %v8488 = vunpack.c.l.b16 %v8410
        %v8489 = vunpack.c.h.b16 %v8410
        %v8490 = vunpack.c.l.b16 %v8411
        %v8491 = vunpack.c.h.b16 %v8411
        %v8492 = vunpack.c.l.b16 %v8412
        %v8493 = vunpack.c.h.b16 %v8412
        %v8494 = vunpack.c.l.b16 %v8413
        %v8495 = vunpack.c.h.b16 %v8413
        %v8496 = vunpack.c.l.b16 %v8414
        %v8497 = vunpack.c.h.b16 %v8414
        %v8498 = vunpack.c.l.b16 %v8415
        %v8499 = vunpack.c.h.b16 %v8415
        %v8500 = vunpack.c.l.b16 %v8416
        %v8501 = vunpack.c.h.b16 %v8416
        %v8502 = vunpack.c.l.b16 %v8417
        %v8503 = vunpack.c.h.b16 %v8417
        %v8504 = vunpack.c.l.b16 %v8418
        %v8505 = vunpack.c.h.b16 %v8418
        %v8506 = vunpack.c.l.b16 %v8419
        %v8507 = vunpack.c.h.b16 %v8419
        %v8508 = vunpack.c.l.b16 %v8420
        %v8509 = vunpack.c.h.b16 %v8420
        %v8510 = vunpack.c.l.b16 %v8421
        %v8511 = vunpack.c.h.b16 %v8421
        %v8512 = vunpack.c.l.b16 %v8422
        %v8513 = vunpack.c.h.b16 %v8422
        %v8514 = vunpack.c.l.b16 %v8423
        %v8515 = vunpack.c.h.b16 %v8423
        %v8516 = vunpack.c.l.b16 %v8424
        %v8517 = vunpack.c.h.b16 %v8424
        %v8518 = vunpack.c.l.b16 %v8425
        %v8519 = vunpack.c.h.b16 %v8425
        %v8520 = vunpack.c.l.b16 %v8426
        %v8521 = vunpack.c.h.b16 %v8426
        %v8522 = vunpack.c.l.b16 %v8427
        %v8523 = vunpack.c.h.b16 %v8427
        %v8524 = vunpack.c.l.b16 %v8428
        %v8525 = vunpack.c.h.b16 %v8428
        %v8526 = vunpack.c.l.b16 %v8429
        %v8527 = vunpack.c.h.b16 %v8429
        %v8528 = vunpack.c.l.b16 %v8430
        %v8529 = vunpack.c.h.b16 %v8430
        %v8530 = vunpack.c.l.b16 %v8431
        %v8531 = vunpack.c.h.b16 %v8431
        %v8532 = vunpack.c.l.b16 %v8432
        %v8533 = vunpack.c.h.b16 %v8432
        %v8534 = vunpack.c.l.b16 %v8433
        %v8535 = vunpack.c.h.b16 %v8433
        %v8536 = vunpack.c.l.b16 %v8434
        %v8537 = vunpack.c.h.b16 %v8434
        %v8538 = vunpack.c.l.b16 %v8435
        %v8539 = vunpack.c.h.b16 %v8435
        %v8540 = vunpack.c.l.b16 %v8436
        %v8541 = vunpack.c.h.b16 %v8436
        %v8542 = vunpack.c.l.b16 %v8437
        %v8543 = vunpack.c.h.b16 %v8437
        %v8544 = vunpack.c.l.b16 %v8438
        %v8545 = vunpack.c.h.b16 %v8438
        %v8546 = vunpack.c.l.b16 %v8439
        %v8547 = vunpack.c.h.b16 %v8439
        %v8548 = vunpack.c.l.b16 %v8440
        %v8549 = vunpack.c.h.b16 %v8440
        %v8550 = vpack.c.b16 %v8488, %v8486
        %v8551 = vpack.c.b16 %v8489, %v8487
        %v8552 = vpack.c.b16 %v8492, %v8490
        %v8553 = vpack.c.b16 %v8493, %v8491
        %v8554 = vpack.c.b16 %v8496, %v8494
        %v8555 = vpack.c.b16 %v8497, %v8495
        %v8556 = vpack.c.b16 %v8500, %v8498
        %v8557 = vpack.c.b16 %v8501, %v8499
        %v8558 = vpack.c.b16 %v8504, %v8502
        %v8559 = vpack.c.b16 %v8505, %v8503
        %v8560 = vpack.c.b16 %v8508, %v8506
        %v8561 = vpack.c.b16 %v8509, %v8507
        %v8562 = vpack.c.b16 %v8512, %v8510
        %v8563 = vpack.c.b16 %v8513, %v8511
        %v8564 = vpack.c.b16 %v8516, %v8514
        %v8565 = vpack.c.b16 %v8517, %v8515
        %v8566 = vpack.c.b16 %v8520, %v8518
        %v8567 = vpack.c.b16 %v8521, %v8519
        %v8568 = vpack.c.b16 %v8524, %v8522
        %v8569 = vpack.c.b16 %v8525, %v8523
        %v8570 = vpack.c.b16 %v8528, %v8526
        %v8571 = vpack.c.b16 %v8529, %v8527
        %v8572 = vpack.c.b16 %v8532, %v8530
        %v8573 = vpack.c.b16 %v8533, %v8531
        %v8574 = vpack.c.b16 %v8536, %v8534
        %v8575 = vpack.c.b16 %v8537, %v8535
        %v8576 = vpack.c.b16 %v8540, %v8538
        %v8577 = vpack.c.b16 %v8541, %v8539
        %v8578 = vpack.c.b16 %v8544, %v8542
        %v8579 = vpack.c.b16 %v8545, %v8543
        %v8580 = vpack.c.b16 %v8548, %v8546
        %v8581 = vpack.c.b16 %v8549, %v8547
        %8614 = vmatprep.subr.bf16.mxu0 %v8551
        %8615 = vmatpush1.bf16.msra.mxu0 %v8550
        %8616 = vmatprep.subr.bf16.mxu0 %v8553
        %8617 = vmatpush1.bf16.msra.mxu0 %v8552
        %8618 = vmatprep.subr.bf16.mxu0 %v8555
        %8619 = vmatpush1.bf16.msra.mxu0 %v8554
        %8620 = vmatprep.subr.bf16.mxu0 %v8557
        %8621 = vmatpush1.bf16.msra.mxu0 %v8556
        %8622 = vmatprep.subr.bf16.mxu0 %v8559
        %8623 = vmatpush1.bf16.msra.mxu0 %v8558
        %8624 = vmatprep.subr.bf16.mxu0 %v8561
        %8625 = vmatpush1.bf16.msra.mxu0 %v8560
        %8626 = vmatprep.subr.bf16.mxu0 %v8563
        %8627 = vmatpush1.bf16.msra.mxu0 %v8562
        %8628 = vmatprep.subr.bf16.mxu0 %v8565
        %8629 = vmatpush1.bf16.msra.mxu0 %v8564
        %8630 = vmatprep.subr.bf16.mxu0 %v8567
        %8631 = vmatpush1.bf16.msra.mxu0 %v8566
        %8632 = vmatprep.subr.bf16.mxu0 %v8569
        %8633 = vmatpush1.bf16.msra.mxu0 %v8568
        %8634 = vmatprep.subr.bf16.mxu0 %v8571
        %8635 = vmatpush1.bf16.msra.mxu0 %v8570
        %8636 = vmatprep.subr.bf16.mxu0 %v8573
        %8637 = vmatpush1.bf16.msra.mxu0 %v8572
        %8638 = vmatprep.subr.bf16.mxu0 %v8575
        %8639 = vmatpush1.bf16.msra.mxu0 %v8574
        %8640 = vmatprep.subr.bf16.mxu0 %v8577
        %8641 = vmatpush1.bf16.msra.mxu0 %v8576
        %8642 = vmatprep.subr.bf16.mxu0 %v8579
        %8643 = vmatpush1.bf16.msra.mxu0 %v8578
        %8644 = vmatprep.subr.bf16.mxu0 %v8581
        %8645 = vmatpush1.bf16.msra.mxu0 %v8580
        %8646 = vmatprep.mubr.bf16.mxu0 %v8451
        %8647 = vmatmul.mubr.bf16.gmra.mrb[0].mxu0 %v8448
        %v8648 = vpop.f32.mrb[0].mxu0
        %v8649 = vadd.f32 0.0, %v8648
        %v8650 = vpop.f32.mrb[0].mxu0
        %v8651 = vadd.f32 0.0, %v8650
        %v8652 = vpop.f32.mrb[0].mxu0
        %v8653 = vadd.f32 0.0, %v8652
        %v8654 = vpop.f32.mrb[0].mxu0
        %v8655 = vadd.f32 0.0, %v8654
        %8656 = vdwg.mxu0
        %v8657 = vadd.f32 %v8403, %v8649
        %v8658 = vadd.f32 %v8404, %v8651
        %v8659 = vadd.f32 %v8405, %v8653
        %v8660 = vadd.f32 %v8406, %v8655
        %v8661 = vld [vmem:[#allocation2 + $0x18] sm:$0xff]
        %s8662 = scalar_lea.vmem [#allocation20], 1536
        %v8663 = vld [vmem:[%s8662] sm:$0xff]
        %v8664 = vld [vmem:[%s8662 + $0x8] sm:$0xff]
        %v8665 = vld [vmem:[%s8662 + $0x10] sm:$0xff]
        %v8666 = vld [vmem:[%s8662 + $0x18] sm:$0xff]
        %v8667 = vld [vmem:[%s8662 + $0x20] sm:$0xff]
        %v8668 = vld [vmem:[%s8662 + $0x28] sm:$0xff]
        %v8669 = vld [vmem:[%s8662 + $0x30] sm:$0xff]
        %v8670 = vld [vmem:[%s8662 + $0x38] sm:$0xff]
        %v8671 = vld [vmem:[%s8662 + $0x40] sm:$0xff]
        %v8672 = vld [vmem:[%s8662 + $0x48] sm:$0xff]
        %v8673 = vld [vmem:[%s8662 + $0x50] sm:$0xff]
        %v8674 = vld [vmem:[%s8662 + $0x58] sm:$0xff]
        %v8675 = vld [vmem:[%s8662 + $0x60] sm:$0xff]
        %v8676 = vld [vmem:[%s8662 + $0x68] sm:$0xff]
        %v8677 = vld [vmem:[%s8662 + $0x70] sm:$0xff]
        %v8678 = vld [vmem:[%s8662 + $0x78] sm:$0xff]
        %v8679 = vld [vmem:[%s8662 + $0x80] sm:$0xff]
        %v8680 = vld [vmem:[%s8662 + $0x88] sm:$0xff]
        %v8681 = vld [vmem:[%s8662 + $0x90] sm:$0xff]
        %v8682 = vld [vmem:[%s8662 + $0x98] sm:$0xff]
        %v8683 = vld [vmem:[%s8662 + $0xa0] sm:$0xff]
        %v8684 = vld [vmem:[%s8662 + $0xa8] sm:$0xff]
        %v8685 = vld [vmem:[%s8662 + $0xb0] sm:$0xff]
        %v8686 = vld [vmem:[%s8662 + $0xb8] sm:$0xff]
        %v8687 = vld [vmem:[%s8662 + $0xc0] sm:$0xff]
        %v8688 = vld [vmem:[%s8662 + $0xc8] sm:$0xff]
        %v8689 = vld [vmem:[%s8662 + $0xd0] sm:$0xff]
        %v8690 = vld [vmem:[%s8662 + $0xd8] sm:$0xff]
        %v8691 = vld [vmem:[%s8662 + $0xe0] sm:$0xff]
        %v8692 = vld [vmem:[%s8662 + $0xe8] sm:$0xff]
        %v8693 = vld [vmem:[%s8662 + $0xf0] sm:$0xff]
        %v8694 = vld [vmem:[%s8662 + $0xf8] sm:$0xff]
        %v8696 = vunpack.c.l.b16 %v8661
        %v8697 = vunpack.c.h.b16 %v8661
        %v8698 = vpack.c.b16 %v8696, %v8166
        %v8699 = vpack.c.b16 %v8697, %v8167
        %v8734 = vunpack.c.l.b16 %v8663
        %v8735 = vunpack.c.h.b16 %v8663
        %v8736 = vunpack.c.l.b16 %v8664
        %v8737 = vunpack.c.h.b16 %v8664
        %v8738 = vunpack.c.l.b16 %v8665
        %v8739 = vunpack.c.h.b16 %v8665
        %v8740 = vunpack.c.l.b16 %v8666
        %v8741 = vunpack.c.h.b16 %v8666
        %v8742 = vunpack.c.l.b16 %v8667
        %v8743 = vunpack.c.h.b16 %v8667
        %v8744 = vunpack.c.l.b16 %v8668
        %v8745 = vunpack.c.h.b16 %v8668
        %v8746 = vunpack.c.l.b16 %v8669
        %v8747 = vunpack.c.h.b16 %v8669
        %v8748 = vunpack.c.l.b16 %v8670
        %v8749 = vunpack.c.h.b16 %v8670
        %v8750 = vunpack.c.l.b16 %v8671
        %v8751 = vunpack.c.h.b16 %v8671
        %v8752 = vunpack.c.l.b16 %v8672
        %v8753 = vunpack.c.h.b16 %v8672
        %v8754 = vunpack.c.l.b16 %v8673
        %v8755 = vunpack.c.h.b16 %v8673
        %v8756 = vunpack.c.l.b16 %v8674
        %v8757 = vunpack.c.h.b16 %v8674
        %v8758 = vunpack.c.l.b16 %v8675
        %v8759 = vunpack.c.h.b16 %v8675
        %v8760 = vunpack.c.l.b16 %v8676
        %v8761 = vunpack.c.h.b16 %v8676
        %v8762 = vunpack.c.l.b16 %v8677
        %v8763 = vunpack.c.h.b16 %v8677
        %v8764 = vunpack.c.l.b16 %v8678
        %v8765 = vunpack.c.h.b16 %v8678
        %v8766 = vunpack.c.l.b16 %v8679
        %v8767 = vunpack.c.h.b16 %v8679
        %v8768 = vunpack.c.l.b16 %v8680
        %v8769 = vunpack.c.h.b16 %v8680
        %v8770 = vunpack.c.l.b16 %v8681
        %v8771 = vunpack.c.h.b16 %v8681
        %v8772 = vunpack.c.l.b16 %v8682
        %v8773 = vunpack.c.h.b16 %v8682
        %v8774 = vunpack.c.l.b16 %v8683
        %v8775 = vunpack.c.h.b16 %v8683
        %v8776 = vunpack.c.l.b16 %v8684
        %v8777 = vunpack.c.h.b16 %v8684
        %v8778 = vunpack.c.l.b16 %v8685
        %v8779 = vunpack.c.h.b16 %v8685
        %v8780 = vunpack.c.l.b16 %v8686
        %v8781 = vunpack.c.h.b16 %v8686
        %v8782 = vunpack.c.l.b16 %v8687
        %v8783 = vunpack.c.h.b16 %v8687
        %v8784 = vunpack.c.l.b16 %v8688
        %v8785 = vunpack.c.h.b16 %v8688
        %v8786 = vunpack.c.l.b16 %v8689
        %v8787 = vunpack.c.h.b16 %v8689
        %v8788 = vunpack.c.l.b16 %v8690
        %v8789 = vunpack.c.h.b16 %v8690
        %v8790 = vunpack.c.l.b16 %v8691
        %v8791 = vunpack.c.h.b16 %v8691
        %v8792 = vunpack.c.l.b16 %v8692
        %v8793 = vunpack.c.h.b16 %v8692
        %v8794 = vunpack.c.l.b16 %v8693
        %v8795 = vunpack.c.h.b16 %v8693
        %v8796 = vunpack.c.l.b16 %v8694
        %v8797 = vunpack.c.h.b16 %v8694
        %v8798 = vpack.c.b16 %v8736, %v8734
        %v8799 = vpack.c.b16 %v8737, %v8735
        %v8800 = vpack.c.b16 %v8740, %v8738
        %v8801 = vpack.c.b16 %v8741, %v8739
        %v8802 = vpack.c.b16 %v8744, %v8742
        %v8803 = vpack.c.b16 %v8745, %v8743
        %v8804 = vpack.c.b16 %v8748, %v8746
        %v8805 = vpack.c.b16 %v8749, %v8747
        %v8806 = vpack.c.b16 %v8752, %v8750
        %v8807 = vpack.c.b16 %v8753, %v8751
        %v8808 = vpack.c.b16 %v8756, %v8754
        %v8809 = vpack.c.b16 %v8757, %v8755
        %v8810 = vpack.c.b16 %v8760, %v8758
        %v8811 = vpack.c.b16 %v8761, %v8759
        %v8812 = vpack.c.b16 %v8764, %v8762
        %v8813 = vpack.c.b16 %v8765, %v8763
        %v8814 = vpack.c.b16 %v8768, %v8766
        %v8815 = vpack.c.b16 %v8769, %v8767
        %v8816 = vpack.c.b16 %v8772, %v8770
        %v8817 = vpack.c.b16 %v8773, %v8771
        %v8818 = vpack.c.b16 %v8776, %v8774
        %v8819 = vpack.c.b16 %v8777, %v8775
        %v8820 = vpack.c.b16 %v8780, %v8778
        %v8821 = vpack.c.b16 %v8781, %v8779
        %v8822 = vpack.c.b16 %v8784, %v8782
        %v8823 = vpack.c.b16 %v8785, %v8783
        %v8824 = vpack.c.b16 %v8788, %v8786
        %v8825 = vpack.c.b16 %v8789, %v8787
        %v8826 = vpack.c.b16 %v8792, %v8790
        %v8827 = vpack.c.b16 %v8793, %v8791
        %v8828 = vpack.c.b16 %v8796, %v8794
        %v8829 = vpack.c.b16 %v8797, %v8795
        %8862 = vmatprep.subr.bf16.mxu0 %v8799
        %8863 = vmatpush1.bf16.msra.mxu0 %v8798
        %8864 = vmatprep.subr.bf16.mxu0 %v8801
        %8865 = vmatpush1.bf16.msra.mxu0 %v8800
        %8866 = vmatprep.subr.bf16.mxu0 %v8803
        %8867 = vmatpush1.bf16.msra.mxu0 %v8802
        %8868 = vmatprep.subr.bf16.mxu0 %v8805
        %8869 = vmatpush1.bf16.msra.mxu0 %v8804
        %8870 = vmatprep.subr.bf16.mxu0 %v8807
        %8871 = vmatpush1.bf16.msra.mxu0 %v8806
        %8872 = vmatprep.subr.bf16.mxu0 %v8809
        %8873 = vmatpush1.bf16.msra.mxu0 %v8808
        %8874 = vmatprep.subr.bf16.mxu0 %v8811
        %8875 = vmatpush1.bf16.msra.mxu0 %v8810
        %8876 = vmatprep.subr.bf16.mxu0 %v8813
        %8877 = vmatpush1.bf16.msra.mxu0 %v8812
        %8878 = vmatprep.subr.bf16.mxu0 %v8815
        %8879 = vmatpush1.bf16.msra.mxu0 %v8814
        %8880 = vmatprep.subr.bf16.mxu0 %v8817
        %8881 = vmatpush1.bf16.msra.mxu0 %v8816
        %8882 = vmatprep.subr.bf16.mxu0 %v8819
        %8883 = vmatpush1.bf16.msra.mxu0 %v8818
        %8884 = vmatprep.subr.bf16.mxu0 %v8821
        %8885 = vmatpush1.bf16.msra.mxu0 %v8820
        %8886 = vmatprep.subr.bf16.mxu0 %v8823
        %8887 = vmatpush1.bf16.msra.mxu0 %v8822
        %8888 = vmatprep.subr.bf16.mxu0 %v8825
        %8889 = vmatpush1.bf16.msra.mxu0 %v8824
        %8890 = vmatprep.subr.bf16.mxu0 %v8827
        %8891 = vmatpush1.bf16.msra.mxu0 %v8826
        %8892 = vmatprep.subr.bf16.mxu0 %v8829
        %8893 = vmatpush1.bf16.msra.mxu0 %v8828
        %8894 = vmatprep.mubr.bf16.mxu0 %v8699
        %8895 = vmatmul.mubr.bf16.gmra.mrb[0].mxu0 %v8698
        %v8896 = vpop.f32.mrb[0].mxu0
        %v8897 = vadd.f32 0.0, %v8896
        %v8898 = vpop.f32.mrb[0].mxu0
        %v8899 = vadd.f32 0.0, %v8898
        %v8900 = vpop.f32.mrb[0].mxu0
        %v8901 = vadd.f32 0.0, %v8900
        %v8902 = vpop.f32.mrb[0].mxu0
        %v8903 = vadd.f32 0.0, %v8902
        %8904 = vdwg.mxu0
        %v8905 = vadd.f32 %v8657, %v8897
        %v8906 = vadd.f32 %v8658, %v8899
        %v8907 = vadd.f32 %v8659, %v8901
        %v8908 = vadd.f32 %v8660, %v8903
        %v8909 = vld [vmem:[#allocation2 + $0x10] sm:$0xff]
        %v8910 = vld [vmem:[#allocation2 + $0x18] sm:$0xff]
        %v8911 = vld [vmem:[#allocation2 + $0x20] sm:$0x11]
        %s8912 = scalar_lea.vmem [#allocation20], 1792
        %v8913 = vld [vmem:[%s8912] sm:$0xff]
        %v8914 = vld [vmem:[%s8912 + $0x8] sm:$0xff]
        %v8915 = vld [vmem:[%s8912 + $0x10] sm:$0xff]
        %v8916 = vld [vmem:[%s8912 + $0x18] sm:$0xff]
        %v8917 = vld [vmem:[%s8912 + $0x20] sm:$0xff]
        %v8918 = vld [vmem:[%s8912 + $0x28] sm:$0xff]
        %v8919 = vld [vmem:[%s8912 + $0x30] sm:$0xff]
        %v8920 = vld [vmem:[%s8912 + $0x38] sm:$0xff]
        %v8921 = vld [vmem:[%s8912 + $0x40] sm:$0xff]
        %v8922 = vld [vmem:[%s8912 + $0x48] sm:$0xff]
        %v8923 = vld [vmem:[%s8912 + $0x50] sm:$0xff]
        %v8924 = vld [vmem:[%s8912 + $0x58] sm:$0xff]
        %v8925 = vld [vmem:[%s8912 + $0x60] sm:$0xff]
        %v8926 = vld [vmem:[%s8912 + $0x68] sm:$0xff]
        %v8927 = vld [vmem:[%s8912 + $0x70] sm:$0xff]
        %v8928 = vld [vmem:[%s8912 + $0x78] sm:$0xff]
        %v8929 = vld [vmem:[%s8912 + $0x80] sm:$0xff]
        %v8930 = vld [vmem:[%s8912 + $0x88] sm:$0xff]
        %v8931 = vld [vmem:[%s8912 + $0x90] sm:$0xff]
        %v8932 = vld [vmem:[%s8912 + $0x98] sm:$0xff]
        %v8933 = vld [vmem:[%s8912 + $0xa0] sm:$0xff]
        %v8934 = vld [vmem:[%s8912 + $0xa8] sm:$0xff]
        %v8935 = vld [vmem:[%s8912 + $0xb0] sm:$0xff]
        %v8936 = vld [vmem:[%s8912 + $0xb8] sm:$0xff]
        %v8937 = vld [vmem:[%s8912 + $0xc0] sm:$0xff]
        %v8938 = vld [vmem:[%s8912 + $0xc8] sm:$0xff]
        %v8939 = vld [vmem:[%s8912 + $0xd0] sm:$0xff]
        %v8940 = vld [vmem:[%s8912 + $0xd8] sm:$0xff]
        %v8941 = vld [vmem:[%s8912 + $0xe0] sm:$0xff]
        %v8942 = vld [vmem:[%s8912 + $0xe8] sm:$0xff]
        %v8943 = vld [vmem:[%s8912 + $0xf0] sm:$0xff]
        %v8944 = vld [vmem:[%s8912 + $0xf8] sm:$0xff]
        %v8948 = vunpack.c.l.b16 %v8909
        %v8949 = vunpack.c.h.b16 %v8909
        %v8950 = vunpack.c.l.b16 %v8910
        %v8951 = vunpack.c.h.b16 %v8910
        %v8952 = vunpack.c.l.b16 %v8911
        %v8953 = vunpack.c.h.b16 %v8911
        %v8954 = vpack.c.b16 %v8950, %v8948
        %v8955 = vpack.c.b16 %v8951, %v8949
        %v8956 = vpack.c.b16 %v8952, %v8952
        %v8957 = vpack.c.b16 %v8953, %v8953
        %v8959 = vshrl.u32 %v8954, 16
        %v8961 = vshll.u32 %v8954, 16
        %v8963 = vrot.slane %v8961, 1
        %v8964 = vor.u32 %v8959, %v8963
        %v8966 = vshll.u32 %v8956, 16
        %v8968 = vrot.slane %v8966, 1
        %v8969 = vsel %vm668, %v8964, %v8968
        %v8971 = vshrl.u32 %v8955, 16
        %v8973 = vshll.u32 %v8955, 16
        %v8975 = vrot.slane %v8973, 1
        %v8976 = vor.u32 %v8971, %v8975
        %v8978 = vshll.u32 %v8957, 16
        %v8980 = vrot.slane %v8978, 1
        %v8981 = vsel %vm668, %v8976, %v8980
        %v9016 = vunpack.c.l.b16 %v8913
        %v9017 = vunpack.c.h.b16 %v8913
        %v9018 = vunpack.c.l.b16 %v8914
        %v9019 = vunpack.c.h.b16 %v8914
        %v9020 = vunpack.c.l.b16 %v8915
        %v9021 = vunpack.c.h.b16 %v8915
        %v9022 = vunpack.c.l.b16 %v8916
        %v9023 = vunpack.c.h.b16 %v8916
        %v9024 = vunpack.c.l.b16 %v8917
        %v9025 = vunpack.c.h.b16 %v8917
        %v9026 = vunpack.c.l.b16 %v8918
        %v9027 = vunpack.c.h.b16 %v8918
        %v9028 = vunpack.c.l.b16 %v8919
        %v9029 = vunpack.c.h.b16 %v8919
        %v9030 = vunpack.c.l.b16 %v8920
        %v9031 = vunpack.c.h.b16 %v8920
        %v9032 = vunpack.c.l.b16 %v8921
        %v9033 = vunpack.c.h.b16 %v8921
        %v9034 = vunpack.c.l.b16 %v8922
        %v9035 = vunpack.c.h.b16 %v8922
        %v9036 = vunpack.c.l.b16 %v8923
        %v9037 = vunpack.c.h.b16 %v8923
        %v9038 = vunpack.c.l.b16 %v8924
        %v9039 = vunpack.c.h.b16 %v8924
        %v9040 = vunpack.c.l.b16 %v8925
        %v9041 = vunpack.c.h.b16 %v8925
        %v9042 = vunpack.c.l.b16 %v8926
        %v9043 = vunpack.c.h.b16 %v8926
        %v9044 = vunpack.c.l.b16 %v8927
        %v9045 = vunpack.c.h.b16 %v8927
        %v9046 = vunpack.c.l.b16 %v8928
        %v9047 = vunpack.c.h.b16 %v8928
        %v9048 = vunpack.c.l.b16 %v8929
        %v9049 = vunpack.c.h.b16 %v8929
        %v9050 = vunpack.c.l.b16 %v8930
        %v9051 = vunpack.c.h.b16 %v8930
        %v9052 = vunpack.c.l.b16 %v8931
        %v9053 = vunpack.c.h.b16 %v8931
        %v9054 = vunpack.c.l.b16 %v8932
        %v9055 = vunpack.c.h.b16 %v8932
        %v9056 = vunpack.c.l.b16 %v8933
        %v9057 = vunpack.c.h.b16 %v8933
        %v9058 = vunpack.c.l.b16 %v8934
        %v9059 = vunpack.c.h.b16 %v8934
        %v9060 = vunpack.c.l.b16 %v8935
        %v9061 = vunpack.c.h.b16 %v8935
        %v9062 = vunpack.c.l.b16 %v8936
        %v9063 = vunpack.c.h.b16 %v8936
        %v9064 = vunpack.c.l.b16 %v8937
        %v9065 = vunpack.c.h.b16 %v8937
        %v9066 = vunpack.c.l.b16 %v8938
        %v9067 = vunpack.c.h.b16 %v8938
        %v9068 = vunpack.c.l.b16 %v8939
        %v9069 = vunpack.c.h.b16 %v8939
        %v9070 = vunpack.c.l.b16 %v8940
        %v9071 = vunpack.c.h.b16 %v8940
        %v9072 = vunpack.c.l.b16 %v8941
        %v9073 = vunpack.c.h.b16 %v8941
        %v9074 = vunpack.c.l.b16 %v8942
        %v9075 = vunpack.c.h.b16 %v8942
        %v9076 = vunpack.c.l.b16 %v8943
        %v9077 = vunpack.c.h.b16 %v8943
        %v9078 = vunpack.c.l.b16 %v8944
        %v9079 = vunpack.c.h.b16 %v8944
        %v9080 = vpack.c.b16 %v9018, %v9016
        %v9081 = vpack.c.b16 %v9019, %v9017
        %v9082 = vpack.c.b16 %v9022, %v9020
        %v9083 = vpack.c.b16 %v9023, %v9021
        %v9084 = vpack.c.b16 %v9026, %v9024
        %v9085 = vpack.c.b16 %v9027, %v9025
        %v9086 = vpack.c.b16 %v9030, %v9028
        %v9087 = vpack.c.b16 %v9031, %v9029
        %v9088 = vpack.c.b16 %v9034, %v9032
        %v9089 = vpack.c.b16 %v9035, %v9033
        %v9090 = vpack.c.b16 %v9038, %v9036
        %v9091 = vpack.c.b16 %v9039, %v9037
        %v9092 = vpack.c.b16 %v9042, %v9040
        %v9093 = vpack.c.b16 %v9043, %v9041
        %v9094 = vpack.c.b16 %v9046, %v9044
        %v9095 = vpack.c.b16 %v9047, %v9045
        %v9096 = vpack.c.b16 %v9050, %v9048
        %v9097 = vpack.c.b16 %v9051, %v9049
        %v9098 = vpack.c.b16 %v9054, %v9052
        %v9099 = vpack.c.b16 %v9055, %v9053
        %v9100 = vpack.c.b16 %v9058, %v9056
        %v9101 = vpack.c.b16 %v9059, %v9057
        %v9102 = vpack.c.b16 %v9062, %v9060
        %v9103 = vpack.c.b16 %v9063, %v9061
        %v9104 = vpack.c.b16 %v9066, %v9064
        %v9105 = vpack.c.b16 %v9067, %v9065
        %v9106 = vpack.c.b16 %v9070, %v9068
        %v9107 = vpack.c.b16 %v9071, %v9069
        %v9108 = vpack.c.b16 %v9074, %v9072
        %v9109 = vpack.c.b16 %v9075, %v9073
        %v9110 = vpack.c.b16 %v9078, %v9076
        %v9111 = vpack.c.b16 %v9079, %v9077
        %9144 = vmatprep.subr.bf16.mxu0 %v9081
        %9145 = vmatpush1.bf16.msra.mxu0 %v9080
        %9146 = vmatprep.subr.bf16.mxu0 %v9083
        %9147 = vmatpush1.bf16.msra.mxu0 %v9082
        %9148 = vmatprep.subr.bf16.mxu0 %v9085
        %9149 = vmatpush1.bf16.msra.mxu0 %v9084
        %9150 = vmatprep.subr.bf16.mxu0 %v9087
        %9151 = vmatpush1.bf16.msra.mxu0 %v9086
        %9152 = vmatprep.subr.bf16.mxu0 %v9089
        %9153 = vmatpush1.bf16.msra.mxu0 %v9088
        %9154 = vmatprep.subr.bf16.mxu0 %v9091
        %9155 = vmatpush1.bf16.msra.mxu0 %v9090
        %9156 = vmatprep.subr.bf16.mxu0 %v9093
        %9157 = vmatpush1.bf16.msra.mxu0 %v9092
        %9158 = vmatprep.subr.bf16.mxu0 %v9095
        %9159 = vmatpush1.bf16.msra.mxu0 %v9094
        %9160 = vmatprep.subr.bf16.mxu0 %v9097
        %9161 = vmatpush1.bf16.msra.mxu0 %v9096
        %9162 = vmatprep.subr.bf16.mxu0 %v9099
        %9163 = vmatpush1.bf16.msra.mxu0 %v9098
        %9164 = vmatprep.subr.bf16.mxu0 %v9101
        %9165 = vmatpush1.bf16.msra.mxu0 %v9100
        %9166 = vmatprep.subr.bf16.mxu0 %v9103
        %9167 = vmatpush1.bf16.msra.mxu0 %v9102
        %9168 = vmatprep.subr.bf16.mxu0 %v9105
        %9169 = vmatpush1.bf16.msra.mxu0 %v9104
        %9170 = vmatprep.subr.bf16.mxu0 %v9107
        %9171 = vmatpush1.bf16.msra.mxu0 %v9106
        %9172 = vmatprep.subr.bf16.mxu0 %v9109
        %9173 = vmatpush1.bf16.msra.mxu0 %v9108
        %9174 = vmatprep.subr.bf16.mxu0 %v9111
        %9175 = vmatpush1.bf16.msra.mxu0 %v9110
        %9176 = vmatprep.mubr.bf16.mxu0 %v8981
        %9177 = vmatmul.mubr.bf16.gmra.mrb[0].mxu0 %v8969
        %v9178 = vpop.f32.mrb[0].mxu0
        %v9179 = vadd.f32 0.0, %v9178
        %v9180 = vpop.f32.mrb[0].mxu0
        %v9181 = vadd.f32 0.0, %v9180
        %v9182 = vpop.f32.mrb[0].mxu0
        %v9183 = vadd.f32 0.0, %v9182
        %v9184 = vpop.f32.mrb[0].mxu0
        %v9185 = vadd.f32 0.0, %v9184
        %9186 = vdwg.mxu0
        %v9187 = vadd.f32 %v8905, %v9179
        %v9188 = vadd.f32 %v8906, %v9181
        %v9189 = vadd.f32 %v8907, %v9183
        %v9190 = vadd.f32 %v8908, %v9185
        %v9191 = vld [vmem:[#allocation2 + $0x10] sm:$0xee]
        %s9192 = scalar_lea.vmem [#allocation20], 2048
        %v9193 = vld [vmem:[%s9192] sm:$0xff]
        %v9194 = vld [vmem:[%s9192 + $0x8] sm:$0xff]
        %v9195 = vld [vmem:[%s9192 + $0x10] sm:$0xff]
        %v9196 = vld [vmem:[%s9192 + $0x18] sm:$0xff]
        %v9197 = vld [vmem:[%s9192 + $0x20] sm:$0xff]
        %v9198 = vld [vmem:[%s9192 + $0x28] sm:$0xff]
        %v9199 = vld [vmem:[%s9192 + $0x30] sm:$0xff]
        %v9200 = vld [vmem:[%s9192 + $0x38] sm:$0xff]
        %v9201 = vld [vmem:[%s9192 + $0x40] sm:$0xff]
        %v9202 = vld [vmem:[%s9192 + $0x48] sm:$0xff]
        %v9203 = vld [vmem:[%s9192 + $0x50] sm:$0xff]
        %v9204 = vld [vmem:[%s9192 + $0x58] sm:$0xff]
        %v9205 = vld [vmem:[%s9192 + $0x60] sm:$0xff]
        %v9206 = vld [vmem:[%s9192 + $0x68] sm:$0xff]
        %v9207 = vld [vmem:[%s9192 + $0x70] sm:$0xff]
        %v9208 = vld [vmem:[%s9192 + $0x78] sm:$0xff]
        %v9209 = vld [vmem:[%s9192 + $0x80] sm:$0xff]
        %v9210 = vld [vmem:[%s9192 + $0x88] sm:$0xff]
        %v9211 = vld [vmem:[%s9192 + $0x90] sm:$0xff]
        %v9212 = vld [vmem:[%s9192 + $0x98] sm:$0xff]
        %v9213 = vld [vmem:[%s9192 + $0xa0] sm:$0xff]
        %v9214 = vld [vmem:[%s9192 + $0xa8] sm:$0xff]
        %v9215 = vld [vmem:[%s9192 + $0xb0] sm:$0xff]
        %v9216 = vld [vmem:[%s9192 + $0xb8] sm:$0xff]
        %v9217 = vld [vmem:[%s9192 + $0xc0] sm:$0xff]
        %v9218 = vld [vmem:[%s9192 + $0xc8] sm:$0xff]
        %v9219 = vld [vmem:[%s9192 + $0xd0] sm:$0xff]
        %v9220 = vld [vmem:[%s9192 + $0xd8] sm:$0xff]
        %v9221 = vld [vmem:[%s9192 + $0xe0] sm:$0xff]
        %v9222 = vld [vmem:[%s9192 + $0xe8] sm:$0xff]
        %v9223 = vld [vmem:[%s9192 + $0xf0] sm:$0xff]
        %v9224 = vld [vmem:[%s9192 + $0xf8] sm:$0xff]
        %v9226 = vunpack.c.l.b16 %v9191
        %v9227 = vunpack.c.h.b16 %v9191
        %v9228 = vpack.c.b16 %v8950, %v9226
        %v9229 = vpack.c.b16 %v8951, %v9227
        %v9230 = vrot.slane %v9228, 1
        %v9231 = vrot.slane %v8956, 1
        %v9232 = vsel %vm950, %v9230, %v9231
        %v9233 = vrot.slane %v9229, 1
        %v9234 = vrot.slane %v8957, 1
        %v9235 = vsel %vm950, %v9233, %v9234
        %v9270 = vunpack.c.l.b16 %v9193
        %v9271 = vunpack.c.h.b16 %v9193
        %v9272 = vunpack.c.l.b16 %v9194
        %v9273 = vunpack.c.h.b16 %v9194
        %v9274 = vunpack.c.l.b16 %v9195
        %v9275 = vunpack.c.h.b16 %v9195
        %v9276 = vunpack.c.l.b16 %v9196
        %v9277 = vunpack.c.h.b16 %v9196
        %v9278 = vunpack.c.l.b16 %v9197
        %v9279 = vunpack.c.h.b16 %v9197
        %v9280 = vunpack.c.l.b16 %v9198
        %v9281 = vunpack.c.h.b16 %v9198
        %v9282 = vunpack.c.l.b16 %v9199
        %v9283 = vunpack.c.h.b16 %v9199
        %v9284 = vunpack.c.l.b16 %v9200
        %v9285 = vunpack.c.h.b16 %v9200
        %v9286 = vunpack.c.l.b16 %v9201
        %v9287 = vunpack.c.h.b16 %v9201
        %v9288 = vunpack.c.l.b16 %v9202
        %v9289 = vunpack.c.h.b16 %v9202
        %v9290 = vunpack.c.l.b16 %v9203
        %v9291 = vunpack.c.h.b16 %v9203
        %v9292 = vunpack.c.l.b16 %v9204
        %v9293 = vunpack.c.h.b16 %v9204
        %v9294 = vunpack.c.l.b16 %v9205
        %v9295 = vunpack.c.h.b16 %v9205
        %v9296 = vunpack.c.l.b16 %v9206
        %v9297 = vunpack.c.h.b16 %v9206
        %v9298 = vunpack.c.l.b16 %v9207
        %v9299 = vunpack.c.h.b16 %v9207
        %v9300 = vunpack.c.l.b16 %v9208
        %v9301 = vunpack.c.h.b16 %v9208
        %v9302 = vunpack.c.l.b16 %v9209
        %v9303 = vunpack.c.h.b16 %v9209
        %v9304 = vunpack.c.l.b16 %v9210
        %v9305 = vunpack.c.h.b16 %v9210
        %v9306 = vunpack.c.l.b16 %v9211
        %v9307 = vunpack.c.h.b16 %v9211
        %v9308 = vunpack.c.l.b16 %v9212
        %v9309 = vunpack.c.h.b16 %v9212
        %v9310 = vunpack.c.l.b16 %v9213
        %v9311 = vunpack.c.h.b16 %v9213
        %v9312 = vunpack.c.l.b16 %v9214
        %v9313 = vunpack.c.h.b16 %v9214
        %v9314 = vunpack.c.l.b16 %v9215
        %v9315 = vunpack.c.h.b16 %v9215
        %v9316 = vunpack.c.l.b16 %v9216
        %v9317 = vunpack.c.h.b16 %v9216
        %v9318 = vunpack.c.l.b16 %v9217
        %v9319 = vunpack.c.h.b16 %v9217
        %v9320 = vunpack.c.l.b16 %v9218
        %v9321 = vunpack.c.h.b16 %v9218
        %v9322 = vunpack.c.l.b16 %v9219
        %v9323 = vunpack.c.h.b16 %v9219
        %v9324 = vunpack.c.l.b16 %v9220
        %v9325 = vunpack.c.h.b16 %v9220
        %v9326 = vunpack.c.l.b16 %v9221
        %v9327 = vunpack.c.h.b16 %v9221
        %v9328 = vunpack.c.l.b16 %v9222
        %v9329 = vunpack.c.h.b16 %v9222
        %v9330 = vunpack.c.l.b16 %v9223
        %v9331 = vunpack.c.h.b16 %v9223
        %v9332 = vunpack.c.l.b16 %v9224
        %v9333 = vunpack.c.h.b16 %v9224
        %v9334 = vpack.c.b16 %v9272, %v9270
        %v9335 = vpack.c.b16 %v9273, %v9271
        %v9336 = vpack.c.b16 %v9276, %v9274
        %v9337 = vpack.c.b16 %v9277, %v9275
        %v9338 = vpack.c.b16 %v9280, %v9278
        %v9339 = vpack.c.b16 %v9281, %v9279
        %v9340 = vpack.c.b16 %v9284, %v9282
        %v9341 = vpack.c.b16 %v9285, %v9283
        %v9342 = vpack.c.b16 %v9288, %v9286
        %v9343 = vpack.c.b16 %v9289, %v9287
        %v9344 = vpack.c.b16 %v9292, %v9290
        %v9345 = vpack.c.b16 %v9293, %v9291
        %v9346 = vpack.c.b16 %v9296, %v9294
        %v9347 = vpack.c.b16 %v9297, %v9295
        %v9348 = vpack.c.b16 %v9300, %v9298
        %v9349 = vpack.c.b16 %v9301, %v9299
        %v9350 = vpack.c.b16 %v9304, %v9302
        %v9351 = vpack.c.b16 %v9305, %v9303
        %v9352 = vpack.c.b16 %v9308, %v9306
        %v9353 = vpack.c.b16 %v9309, %v9307
        %v9354 = vpack.c.b16 %v9312, %v9310
        %v9355 = vpack.c.b16 %v9313, %v9311
        %v9356 = vpack.c.b16 %v9316, %v9314
        %v9357 = vpack.c.b16 %v9317, %v9315
        %v9358 = vpack.c.b16 %v9320, %v9318
        %v9359 = vpack.c.b16 %v9321, %v9319
        %v9360 = vpack.c.b16 %v9324, %v9322
        %v9361 = vpack.c.b16 %v9325, %v9323
        %v9362 = vpack.c.b16 %v9328, %v9326
        %v9363 = vpack.c.b16 %v9329, %v9327
        %v9364 = vpack.c.b16 %v9332, %v9330
        %v9365 = vpack.c.b16 %v9333, %v9331
        %9398 = vmatprep.subr.bf16.mxu0 %v9335
        %9399 = vmatpush1.bf16.msra.mxu0 %v9334
        %9400 = vmatprep.subr.bf16.mxu0 %v9337
        %9401 = vmatpush1.bf16.msra.mxu0 %v9336
        %9402 = vmatprep.subr.bf16.mxu0 %v9339
        %9403 = vmatpush1.bf16.msra.mxu0 %v9338
        %9404 = vmatprep.subr.bf16.mxu0 %v9341
        %9405 = vmatpush1.bf16.msra.mxu0 %v9340
        %9406 = vmatprep.subr.bf16.mxu0 %v9343
        %9407 = vmatpush1.bf16.msra.mxu0 %v9342
        %9408 = vmatprep.subr.bf16.mxu0 %v9345
        %9409 = vmatpush1.bf16.msra.mxu0 %v9344
        %9410 = vmatprep.subr.bf16.mxu0 %v9347
        %9411 = vmatpush1.bf16.msra.mxu0 %v9346
        %9412 = vmatprep.subr.bf16.mxu0 %v9349
        %9413 = vmatpush1.bf16.msra.mxu0 %v9348
        %9414 = vmatprep.subr.bf16.mxu0 %v9351
        %9415 = vmatpush1.bf16.msra.mxu0 %v9350
        %9416 = vmatprep.subr.bf16.mxu0 %v9353
        %9417 = vmatpush1.bf16.msra.mxu0 %v9352
        %9418 = vmatprep.subr.bf16.mxu0 %v9355
        %9419 = vmatpush1.bf16.msra.mxu0 %v9354
        %9420 = vmatprep.subr.bf16.mxu0 %v9357
        %9421 = vmatpush1.bf16.msra.mxu0 %v9356
        %9422 = vmatprep.subr.bf16.mxu0 %v9359
        %9423 = vmatpush1.bf16.msra.mxu0 %v9358
        %9424 = vmatprep.subr.bf16.mxu0 %v9361
        %9425 = vmatpush1.bf16.msra.mxu0 %v9360
        %9426 = vmatprep.subr.bf16.mxu0 %v9363
        %9427 = vmatpush1.bf16.msra.mxu0 %v9362
        %9428 = vmatprep.subr.bf16.mxu0 %v9365
        %9429 = vmatpush1.bf16.msra.mxu0 %v9364
        %9430 = vmatprep.mubr.bf16.mxu0 %v9235
        %9431 = vmatmul.mubr.bf16.gmra.mrb[0].mxu0 %v9232
        %v9432 = vpop.f32.mrb[0].mxu0
        %v9433 = vadd.f32 0.0, %v9432
        %v9434 = vpop.f32.mrb[0].mxu0
        %v9435 = vadd.f32 0.0, %v9434
        %v9436 = vpop.f32.mrb[0].mxu0
        %v9437 = vadd.f32 0.0, %v9436
        %v9438 = vpop.f32.mrb[0].mxu0
        %v9439 = vadd.f32 0.0, %v9438
        %9440 = vdwg.mxu0
        %v9441 = vadd.f32 %v9187, %v9433
        %v9442 = vadd.f32 %v9188, %v9435
        %v9443 = vadd.f32 %v9189, %v9437
        %v9444 = vadd.f32 %v9190, %v9439
        %v9445 = vld [vmem:[#allocation22] sm:$0x3]
        %v9447 = vlaneseq
        %v9448 = vshrl.u32 %v9447, 7
        %v9449 = vsub.s32 0, %v9448
        %v9450 = vrot.slane %v9445, %v9449
        %v9451 = vlaneseq
        %v9452 = vshrl.u32 %v9451, 7
        %v9453 = vsub.s32 1, %v9452
        %v9454 = vrot.slane %v9445, %v9453
        %v9457 = vadd.f32 %v9441, %v9450
        %v9458 = vadd.f32 %v9442, %v9454
        %v9459 = vadd.f32 %v9443, %v9450
        %v9460 = vadd.f32 %v9444, %v9454
        %v9461 = vld [vmem:[#allocation3 + $0x8] sm:$0xff]
        %v9462 = vld [vmem:[#allocation3 + $0x10] sm:$0xff]
        %v9463 = vld [vmem:[#allocation3 + $0x18] sm:$0x11]
        %v9464 = vunpack.c.l.bf16 %v9461
        %v9465 = vunpack.c.h.bf16 %v9461
        %v9466 = vunpack.c.l.bf16 %v9462
        %v9467 = vunpack.c.h.bf16 %v9462
        %v9468 = vunpack.c.l.bf16 %v9463
        %v9469 = vunpack.c.h.bf16 %v9463
        %vm9476 = vcmask 1046528
        %v9477 = vrot.slane %v9464, 1
        %v9478 = vrot.slane %v9466, 1
        %v9479 = vsel %vm9476, %v9477, %v9478
        %v9480 = vrot.slane %v9465, 1
        %v9481 = vrot.slane %v9467, 1
        %v9482 = vsel %vm9476, %v9480, %v9481
        %v9483 = vrot.slane %v9468, 1
        %v9484 = vsel %vm9476, %v9478, %v9483
        %v9485 = vrot.slane %v9469, 1
        %v9486 = vsel %vm9476, %v9481, %v9485
        %v9491 = vadd.f32 %v9457, %v9479
        %v9492 = vadd.f32 %v9458, %v9482
        %v9493 = vadd.f32 %v9459, %v9484
        %v9494 = vadd.f32 %v9460, %v9486
        %v9495 = vmul.f32 %v9491, 0.2
        %v9496 = vmul.f32 %v9492, 0.2
        %v9497 = vmul.f32 %v9493, 0.2
        %v9498 = vmul.f32 %v9494, 0.2
        %v9499 = vmax.f32 %v9491, %v9495
        %v9500 = vmax.f32 %v9492, %v9496
        %v9501 = vmax.f32 %v9493, %v9497
        %v9502 = vmax.f32 %v9494, %v9498
        %v9503 = vld [vmem:[#allocation8] sm:$0xff]
        %v9504 = vld [vmem:[#allocation8 + $0x8] sm:$0xff]
        %9506 = vset.pattern.permute.xlu0 0
        %9507 = vperm.xlu0 %9506, %v9503
        %v9508 = vpop.permute.xlu0 %9507
        %9511 = vset.pattern.permute.xlu0 0
        %9512 = vperm.xlu0 %9511, %v9504
        %v9513 = vpop.permute.xlu0 %9512
        %v9515 = vmul.f32 %v9499, %v9508
        %v9516 = vmul.f32 %v9500, %v9508
        %v9517 = vmul.f32 %v9501, %v9513
        %v9518 = vmul.f32 %v9502, %v9513
        %v9519 = vpack.c.bf16 %v9517, %v9515
        %v9520 = vpack.c.bf16 %v9518, %v9516
        %v9523 = vunpack.c.l.b16 %v9519
        %v9524 = vunpack.c.l.b16 %v9520
        %v9525 = vunpack.c.h.b16 %v9519
        %v9526 = vunpack.c.h.b16 %v9520
        %v9527 = vpack.c.b16 %v9524, %v9523
        %v9528 = vpack.c.b16 %v9526, %v9525
        %v9530 = vshrl.u32 %v9527, 16
        %v9532 = vrot.slane %v9530, 7
        %v9533 = vshll.u32 %v9527, 16
        %v9535 = vor.u32 %v9532, %v9533
        %v9536 = vrot.slane %v9532, 4
        %v9538 = vshrl.u32 %v9528, 16
        %v9540 = vrot.slane %v9538, 7
        %v9541 = vshll.u32 %v9528, 16
        %v9543 = vor.u32 %v9540, %v9541
        %v9544 = vsel %vm2072, %v9536, %v9543
        %v9545 = vrot.slane %v9540, 4
        %v9549 = vsel %vm2099, %v9535, %v9461
        %9550 = vst [vmem:[#allocation3 + $0x8] sm:$0xff] %v9549
        %9551 = vst [vmem:[#allocation3 + $0x10] sm:$0xff] %v9544
        %v9552 = vld [vmem:[#allocation3 + $0x18] sm:$0x11]
        %v9553 = vsel %vm2109, %v9545, %v9552
        %9554 = vst [vmem:[#allocation3 + $0x18] sm:$0x11] %v9553
        %v9555 = vld [vmem:[#allocation3] sm:$0xff]
        %v9556 = vld [vmem:[#allocation3 + $0x8] sm:$0xff]
        %v9557 = vunpack.c.l.bf16 %v9555
        %v9558 = vunpack.c.h.bf16 %v9555
        %v9559 = vunpack.c.l.bf16 %v9556
        %v9560 = vunpack.c.h.bf16 %v9556
        %v9561 = vld [vmem:[#allocation23] sm:$0x3]
        %v9563 = vlaneseq
        %v9564 = vshrl.u32 %v9563, 7
        %v9565 = vsub.s32 0, %v9564
        %v9566 = vrot.slane %v9561, %v9565
        %v9567 = vlaneseq
        %v9568 = vshrl.u32 %v9567, 7
        %v9569 = vsub.s32 1, %v9568
        %v9570 = vrot.slane %v9561, %v9569
        %v9573 = vmul.f32 %v9557, %v9566
        %v9574 = vmul.f32 %v9558, %v9570
        %v9575 = vmul.f32 %v9559, %v9566
        %v9576 = vmul.f32 %v9560, %v9570
        %v9577 = vadd.f32 %v9573, 0.0
        %v9578 = vadd.f32 %v9574, 0.0
        %v9579 = vadd.f32 %v9575, 0.0
        %v9580 = vadd.f32 %v9576, 0.0
        %v9581 = vld [vmem:[#allocation3 + $0x10] sm:$0x11]
        %v9582 = vunpack.c.l.bf16 %v9581
        %v9583 = vunpack.c.h.bf16 %v9581
        %s9584 = scalar_lea.vmem [#allocation23], 2
        %v9585 = vld [vmem:[%s9584] sm:$0x3]
        %v9587 = vlaneseq
        %v9588 = vshrl.u32 %v9587, 7
        %v9589 = vsub.s32 0, %v9588
        %v9590 = vrot.slane %v9585, %v9589
        %v9591 = vlaneseq
        %v9592 = vshrl.u32 %v9591, 7
        %v9593 = vsub.s32 1, %v9592
        %v9594 = vrot.slane %v9585, %v9593
        %v9597 = vmul.f32 %v9557, %v9590
        %v9598 = vmul.f32 %v9558, %v9594
        %v9599 = vmul.f32 %v9559, %v9590
        %v9600 = vmul.f32 %v9560, %v9594
        %v9601 = vmul.f32 %v9582, %v9590
        %v9602 = vmul.f32 %v9583, %v9594
        %v9609 = vrot.slane %v9597, 1
        %v9610 = vrot.slane %v9599, 1
        %v9611 = vsel %vm9476, %v9609, %v9610
        %v9612 = vrot.slane %v9598, 1
        %v9613 = vrot.slane %v9600, 1
        %v9614 = vsel %vm9476, %v9612, %v9613
        %v9615 = vrot.slane %v9601, 1
        %v9616 = vsel %vm9476, %v9610, %v9615
        %v9617 = vrot.slane %v9602, 1
        %v9618 = vsel %vm9476, %v9613, %v9617
        %v9623 = vadd.f32 %v9577, %v9611
        %v9624 = vadd.f32 %v9578, %v9614
        %v9625 = vadd.f32 %v9579, %v9616
        %v9626 = vadd.f32 %v9580, %v9618
        %v9627 = vld [vmem:[#allocation3] sm:$0xee]
        %v9628 = vunpack.c.l.bf16 %v9627
        %v9629 = vunpack.c.h.bf16 %v9627
        %s9630 = scalar_lea.vmem [#allocation23], 4
        %v9631 = vld [vmem:[%s9630] sm:$0x3]
        %v9633 = vlaneseq
        %v9634 = vshrl.u32 %v9633, 7
        %v9635 = vsub.s32 0, %v9634
        %v9636 = vrot.slane %v9631, %v9635
        %v9637 = vlaneseq
        %v9638 = vshrl.u32 %v9637, 7
        %v9639 = vsub.s32 1, %v9638
        %v9640 = vrot.slane %v9631, %v9639
        %v9643 = vmul.f32 %v9628, %v9636
        %v9644 = vmul.f32 %v9629, %v9640
        %v9645 = vmul.f32 %v9559, %v9636
        %v9646 = vmul.f32 %v9560, %v9640
        %v9647 = vmul.f32 %v9582, %v9636
        %v9648 = vmul.f32 %v9583, %v9640
        %vm9655 = vcmask 1045504
        %v9656 = vrot.slane %v9643, 2
        %v9657 = vrot.slane %v9645, 2
        %v9658 = vsel %vm9655, %v9656, %v9657
        %v9659 = vrot.slane %v9644, 2
        %v9660 = vrot.slane %v9646, 2
        %v9661 = vsel %vm9655, %v9659, %v9660
        %v9662 = vrot.slane %v9647, 2
        %v9663 = vsel %vm9655, %v9657, %v9662
        %v9664 = vrot.slane %v9648, 2
        %v9665 = vsel %vm9655, %v9660, %v9664
        %v9670 = vadd.f32 %v9623, %v9658
        %v9671 = vadd.f32 %v9624, %v9661
        %v9672 = vadd.f32 %v9625, %v9663
        %v9673 = vadd.f32 %v9626, %v9665
        %v9674 = vld [vmem:[#allocation3 + $0x10] sm:$0xff]
        %v9675 = vunpack.c.l.bf16 %v9674
        %v9676 = vunpack.c.h.bf16 %v9674
        %s9677 = scalar_lea.vmem [#allocation23], 6
        %v9678 = vld [vmem:[%s9677] sm:$0x3]
        %v9680 = vlaneseq
        %v9681 = vshrl.u32 %v9680, 7
        %v9682 = vsub.s32 0, %v9681
        %v9683 = vrot.slane %v9678, %v9682
        %v9684 = vlaneseq
        %v9685 = vshrl.u32 %v9684, 7
        %v9686 = vsub.s32 1, %v9685
        %v9687 = vrot.slane %v9678, %v9686
        %v9690 = vmul.f32 %v9559, %v9683
        %v9691 = vmul.f32 %v9560, %v9687
        %v9692 = vmul.f32 %v9675, %v9683
        %v9693 = vmul.f32 %v9676, %v9687
        %v9694 = vadd.f32 %v9670, %v9690
        %v9695 = vadd.f32 %v9671, %v9691
        %v9696 = vadd.f32 %v9672, %v9692
        %v9697 = vadd.f32 %v9673, %v9693
        %v9698 = vld [vmem:[#allocation3 + $0x18] sm:$0x11]
        %v9699 = vunpack.c.l.bf16 %v9698
        %v9700 = vunpack.c.h.bf16 %v9698
        %s9701 = scalar_lea.vmem [#allocation23], 8
        %v9702 = vld [vmem:[%s9701] sm:$0x3]
        %v9704 = vlaneseq
        %v9705 = vshrl.u32 %v9704, 7
        %v9706 = vsub.s32 0, %v9705
        %v9707 = vrot.slane %v9702, %v9706
        %v9708 = vlaneseq
        %v9709 = vshrl.u32 %v9708, 7
        %v9710 = vsub.s32 1, %v9709
        %v9711 = vrot.slane %v9702, %v9710
        %v9714 = vmul.f32 %v9559, %v9707
        %v9715 = vmul.f32 %v9560, %v9711
        %v9716 = vmul.f32 %v9675, %v9707
        %v9717 = vmul.f32 %v9676, %v9711
        %v9718 = vmul.f32 %v9699, %v9707
        %v9719 = vmul.f32 %v9700, %v9711
        %v9726 = vrot.slane %v9714, 1
        %v9727 = vrot.slane %v9716, 1
        %v9728 = vsel %vm9476, %v9726, %v9727
        %v9729 = vrot.slane %v9715, 1
        %v9730 = vrot.slane %v9717, 1
        %v9731 = vsel %vm9476, %v9729, %v9730
        %v9732 = vrot.slane %v9718, 1
        %v9733 = vsel %vm9476, %v9727, %v9732
        %v9734 = vrot.slane %v9719, 1
        %v9735 = vsel %vm9476, %v9730, %v9734
        %v9740 = vadd.f32 %v9694, %v9728
        %v9741 = vadd.f32 %v9695, %v9731
        %v9742 = vadd.f32 %v9696, %v9733
        %v9743 = vadd.f32 %v9697, %v9735
        %v9744 = vld [vmem:[#allocation3 + $0x8] sm:$0xee]
        %v9745 = vunpack.c.l.bf16 %v9744
        %v9746 = vunpack.c.h.bf16 %v9744
        %s9747 = scalar_lea.vmem [#allocation23], 10
        %v9748 = vld [vmem:[%s9747] sm:$0x3]
        %v9750 = vlaneseq
        %v9751 = vshrl.u32 %v9750, 7
        %v9752 = vsub.s32 0, %v9751
        %v9753 = vrot.slane %v9748, %v9752
        %v9754 = vlaneseq
        %v9755 = vshrl.u32 %v9754, 7
        %v9756 = vsub.s32 1, %v9755
        %v9757 = vrot.slane %v9748, %v9756
        %v9760 = vmul.f32 %v9745, %v9753
        %v9761 = vmul.f32 %v9746, %v9757
        %v9762 = vmul.f32 %v9675, %v9753
        %v9763 = vmul.f32 %v9676, %v9757
        %v9764 = vmul.f32 %v9699, %v9753
        %v9765 = vmul.f32 %v9700, %v9757
        %v9772 = vrot.slane %v9760, 2
        %v9773 = vrot.slane %v9762, 2
        %v9774 = vsel %vm9655, %v9772, %v9773
        %v9775 = vrot.slane %v9761, 2
        %v9776 = vrot.slane %v9763, 2
        %v9777 = vsel %vm9655, %v9775, %v9776
        %v9778 = vrot.slane %v9764, 2
        %v9779 = vsel %vm9655, %v9773, %v9778
        %v9780 = vrot.slane %v9765, 2
        %v9781 = vsel %vm9655, %v9776, %v9780
        %v9786 = vadd.f32 %v9740, %v9774
        %v9787 = vadd.f32 %v9741, %v9777
        %v9788 = vadd.f32 %v9742, %v9779
        %v9789 = vadd.f32 %v9743, %v9781
        %v9790 = vld [vmem:[#allocation3 + $0x18] sm:$0xff]
        %v9791 = vunpack.c.l.bf16 %v9790
        %v9792 = vunpack.c.h.bf16 %v9790
        %s9793 = scalar_lea.vmem [#allocation23], 12
        %v9794 = vld [vmem:[%s9793] sm:$0x3]
        %v9796 = vlaneseq
        %v9797 = vshrl.u32 %v9796, 7
        %v9798 = vsub.s32 0, %v9797
        %v9799 = vrot.slane %v9794, %v9798
        %v9800 = vlaneseq
        %v9801 = vshrl.u32 %v9800, 7
        %v9802 = vsub.s32 1, %v9801
        %v9803 = vrot.slane %v9794, %v9802
        %v9806 = vmul.f32 %v9675, %v9799
        %v9807 = vmul.f32 %v9676, %v9803
        %v9808 = vmul.f32 %v9791, %v9799
        %v9809 = vmul.f32 %v9792, %v9803
        %v9810 = vadd.f32 %v9786, %v9806
        %v9811 = vadd.f32 %v9787, %v9807
        %v9812 = vadd.f32 %v9788, %v9808
        %v9813 = vadd.f32 %v9789, %v9809
        %v9814 = vld [vmem:[#allocation3 + $0x10] sm:$0xff]
        %v9815 = vld [vmem:[#allocation3 + $0x18] sm:$0xff]
        %v9816 = vld [vmem:[#allocation3 + $0x20] sm:$0x11]
        %v9817 = vunpack.c.l.bf16 %v9814
        %v9818 = vunpack.c.h.bf16 %v9814
        %v9819 = vunpack.c.l.bf16 %v9815
        %v9820 = vunpack.c.h.bf16 %v9815
        %v9821 = vunpack.c.l.bf16 %v9816
        %v9822 = vunpack.c.h.bf16 %v9816
        %s9823 = scalar_lea.vmem [#allocation23], 14
        %v9824 = vld [vmem:[%s9823] sm:$0x3]
        %v9826 = vlaneseq
        %v9827 = vshrl.u32 %v9826, 7
        %v9828 = vsub.s32 0, %v9827
        %v9829 = vrot.slane %v9824, %v9828
        %v9830 = vlaneseq
        %v9831 = vshrl.u32 %v9830, 7
        %v9832 = vsub.s32 1, %v9831
        %v9833 = vrot.slane %v9824, %v9832
        %v9836 = vmul.f32 %v9817, %v9829
        %v9837 = vmul.f32 %v9818, %v9833
        %v9838 = vmul.f32 %v9819, %v9829
        %v9839 = vmul.f32 %v9820, %v9833
        %v9840 = vmul.f32 %v9821, %v9829
        %v9841 = vmul.f32 %v9822, %v9833
        %v9848 = vrot.slane %v9836, 1
        %v9849 = vrot.slane %v9838, 1
        %v9850 = vsel %vm9476, %v9848, %v9849
        %v9851 = vrot.slane %v9837, 1
        %v9852 = vrot.slane %v9839, 1
        %v9853 = vsel %vm9476, %v9851, %v9852
        %v9854 = vrot.slane %v9840, 1
        %v9855 = vsel %vm9476, %v9849, %v9854
        %v9856 = vrot.slane %v9841, 1
        %v9857 = vsel %vm9476, %v9852, %v9856
        %v9862 = vadd.f32 %v9810, %v9850
        %v9863 = vadd.f32 %v9811, %v9853
        %v9864 = vadd.f32 %v9812, %v9855
        %v9865 = vadd.f32 %v9813, %v9857
        %v9866 = vld [vmem:[#allocation3 + $0x10] sm:$0xee]
        %v9867 = vunpack.c.l.bf16 %v9866
        %v9868 = vunpack.c.h.bf16 %v9866
        %s9869 = scalar_lea.vmem [#allocation23], 16
        %v9870 = vld [vmem:[%s9869] sm:$0x3]
        %v9872 = vlaneseq
        %v9873 = vshrl.u32 %v9872, 7
        %v9874 = vsub.s32 0, %v9873
        %v9875 = vrot.slane %v9870, %v9874
        %v9876 = vlaneseq
        %v9877 = vshrl.u32 %v9876, 7
        %v9878 = vsub.s32 1, %v9877
        %v9879 = vrot.slane %v9870, %v9878
        %v9882 = vmul.f32 %v9867, %v9875
        %v9883 = vmul.f32 %v9868, %v9879
        %v9884 = vmul.f32 %v9819, %v9875
        %v9885 = vmul.f32 %v9820, %v9879
        %v9886 = vmul.f32 %v9821, %v9875
        %v9887 = vmul.f32 %v9822, %v9879
        %v9894 = vrot.slane %v9882, 2
        %v9895 = vrot.slane %v9884, 2
        %v9896 = vsel %vm9655, %v9894, %v9895
        %v9897 = vrot.slane %v9883, 2
        %v9898 = vrot.slane %v9885, 2
        %v9899 = vsel %vm9655, %v9897, %v9898
        %v9900 = vrot.slane %v9886, 2
        %v9901 = vsel %vm9655, %v9895, %v9900
        %v9902 = vrot.slane %v9887, 2
        %v9903 = vsel %vm9655, %v9898, %v9902
        %v9908 = vadd.f32 %v9862, %v9896
        %v9909 = vadd.f32 %v9863, %v9899
        %v9910 = vadd.f32 %v9864, %v9901
        %v9911 = vadd.f32 %v9865, %v9903
        %v9912 = vadd.f32 %v9908, %v9909
        %9913 = vadd.xlane.f32.xlu0 %v9912
        %v9914 = vpop.xlane.xlu0 %9913
        %v9915 = vadd.f32 %v9910, %v9911
        %9916 = vadd.xlane.f32.xlu0 %v9915
        %v9917 = vpop.xlane.xlu0 %9916
        %v9918 = vld [vmem:[#allocation4] sm:$0x1]
        %v9920 = vlaneseq
        %v9921 = vshrl.u32 %v9920, 7
        %v9922 = vsub.s32 0, %v9921
        %v9923 = vrot.slane %v9918, %v9922
        %v9925 = vadd.f32 %v9914, %v9923
        %v9926 = vadd.f32 %v9917, %v9923
        %vm9927 = vcmask 7168
        %9928 = vst.msk [vmem:[%s612] sm:$0xff] %vm9927, %v9925
        %9929 = vst.msk [vmem:[%s612 + $0x8] sm:$0xff] %vm9927, %v9926
        %s9930 = sand.u32 %s324, 1
        %s9931 = scalar_lea.sflag [#allocation7], %s9930
        %s9932 = sand.u32 %s324, 1
        %s9933 = smul.addr %s9932, 16
        %s9934 = scalar_lea.vmem [#allocation25], %s9933
        // Predicated region
        $region121: #{discriminator_forward.7} parent=71 // pred_check
          %p9935 = pneg %p334
        $region122: #{discriminator_forward.7} parent=71 // pred_check_branch
          %9937 = sbr.rel (%p9935) target = $region124
        $region123: #{discriminator_forward.7} parent=71 // pred_region
          %s9939 = ssub.s32 256, 256
          %9940 = vsyncadd %s9931, %s9939
          %s9941 = smul.addr %s38, 2
          %s9942 = smul.addr %s9941, 128
          %s9943 = scalar_lea.hbm %s13, %s9942
          %s9944 = sshll.u32 %s9934, 4
          %s9945 = int_to_ptr.vmem [resolvable:$true] %s9944
          %9950 = dma.vmem_to_hbm [thread:$0]  %s9945, 256, %s9943, %s9931, 128, 128, 8
        $region124: #{discriminator_forward.7} parent=71 // pred_fallthru
          _
      $region72: #{discriminator_forward.7} parent=5 // pred_fallthru
        _
      %p9951 = scmp.le.s32.totalorder 2, %s33
      // Predicated region
      $region125: #{discriminator_forward.7} parent=5 // pred_check
        %p9952 = pneg %p9951
      $region126: #{discriminator_forward.7} parent=5 // pred_check_branch
        %9954 = sbr.rel (%p9952) target = $region128
      $region127: #{discriminator_forward.7} parent=5 // pred_region
        %s9955 = ssub.s32 %s33, 2
        // Predicated region
        $region129: #{discriminator_forward.7} parent=127 // pred_check
          %p9956 = pneg %p340
        $region130: #{discriminator_forward.7} parent=127 // pred_check_branch
          %9958 = sbr.rel (%p9956) target = $region132
        $region131: #{discriminator_forward.7} parent=127 // pred_region
          %s9959 = sand.u32 %s325, 1
          %s9960 = scalar_lea.sflag [#allocation7], %s9959
          %s9961 = sand.u32 %s325, 1
          %s9962 = smul.addr %s9961, 16
          %s9963 = scalar_lea.vmem [#allocation25], %s9962
          %9964 = dma.done %s9960, 256
        $region132: #{discriminator_forward.7} parent=127 // pred_fallthru
          _
      $region128: #{discriminator_forward.7} parent=5 // pred_fallthru
        _
    $region6: #{discriminator_forward.7} parent=1 // loop_footer
      %s37 = sadd.s32 1, %s33
    $region7: #{discriminator_forward.7} parent=1 // loop_footer_branch
      %32 = sbr.rel target = $region3
    $region8: #{discriminator_forward.7} parent=1 // loop_exit
      _
    %9965 = vsyncpa [#allocation6], 1
    %s9966 = scalar_lea.sflag [#allocation6], 1
    %9967 = vsyncpa %s9966, 1
    %9968 = vsyncpa [#allocation9], 1
    %9969 = vsyncpa [#allocation12], 1
    %9970 = vsyncpa [#allocation15], 1
    %9971 = vsyncpa [#allocation18], 1
    %9972 = vsyncpa [#allocation21], 1
    %9973 = vsyncpa [#allocation24], 1
    %9974 = vsyncpa [#allocation7], 1
    %s9975 = scalar_lea.sflag [#allocation7], 1
    %9976 = vsyncpa %s9975, 1

</llo_original>
